<compile_context>
chip_gen: v5e
topology: v5e:2x2
jax: 0.10.0
libtpu: 0.0.40
codegen_flags: <defaults>
</compile_context>

<pallas_src>
import jax
import jax.numpy as jnp
from jax.experimental import pallas as pl
from jax.experimental.pallas import tpu as pltpu

DIM = 256           # GATConv out_dim (module constant `dim`)
LSTM_HIDDEN = 256   # module constant `lstm_hidden`
NEG = -1e30         # additive softmax mask value


def _round_up(x, m):
    return ((x + m - 1) // m) * m


def _pick_tile(n_pad, pref):
    """Largest multiple of 128 that is <= pref and divides n_pad."""
    t = min(pref, n_pad)
    while n_pad % t != 0:
        t -= 128
    return t


# ----------------------------- fused Pallas kernel -------------------------

def _geniepath_kernel(xp_ref, a_src_ref, a_dst_ref, adj_ref, b_gat_ref,
                      h_ref, c_ref, w_ih_ref, w_hh_ref,
                      h_out_ref, c_out_ref,
                      m_sc, l_sc, acc_sc):
    """Grid = (query row tiles [parallel], neighbor tiles [arbitrary]).

    Online-softmax GAT aggregation over neighbor tiles; at the last neighbor
    tile the tanh + single-step bias-free LSTM cell is applied and written out.
    """
    j = pl.program_id(1)

    @pl.when(j == 0)
    def _():
        m_sc[...] = jnp.full_like(m_sc, -jnp.inf)
        l_sc[...] = jnp.zeros_like(l_sc)
        acc_sc[...] = jnp.zeros_like(acc_sc)

    # logits[q, n] = leaky_relu(a_dst[q] + a_src[n], 0.2), masked where no edge.
    logits = a_dst_ref[...] + a_src_ref[...]                  # (tm,1)+(1,tn)->(tm,tn) f32
    logits = jnp.where(logits > 0, logits, 0.2 * logits)
    edge = adj_ref[...].astype(jnp.float32)                   # int8 {0,1} -> f32
    logits = jnp.where(edge != 0.0, logits, NEG)

    # online softmax accumulation (self-loops guarantee >=1 valid entry per row)
    m_prev = m_sc[...]
    m_new = jnp.maximum(m_prev, jnp.max(logits, axis=-1, keepdims=True))
    a = jnp.exp(m_prev - m_new)
    p = jnp.exp(logits - m_new)                               # (tm, tn) f32
    l_sc[...] = a * l_sc[...] + jnp.sum(p, axis=-1, keepdims=True)
    acc_sc[...] = a * acc_sc[...] + jnp.dot(
        p.astype(jnp.bfloat16), xp_ref[...],
        preferred_element_type=jnp.float32)                   # (tm, DIM) f32
    m_sc[...] = m_new

    @pl.when(j == pl.num_programs(1) - 1)
    def _():
        # Breadth finalize: normalize after aggregation, add GAT bias, tanh.
        xb = jnp.tanh(acc_sc[...] * pl.reciprocal(l_sc[...], approx=True)
                      + b_gat_ref[...])                       # (tm, DIM) f32

        # Depth: single-step LSTM cell (PyTorch gate order i, f, g, o), bias=False.
        gates = (jnp.dot(xb.astype(jnp.bfloat16), w_ih_ref[...],
                         preferred_element_type=jnp.float32)
                 + jnp.dot(h_ref[...].astype(jnp.bfloat16), w_hh_ref[...],
                           preferred_element_type=jnp.float32))  # (tm, 4H) f32
        H = LSTM_HIDDEN
        i_g = jax.nn.sigmoid(gates[:, 0 * H:1 * H])
        f_g = jax.nn.sigmoid(gates[:, 1 * H:2 * H])
        g_g = jnp.tanh(gates[:, 2 * H:3 * H])
        o_g = jax.nn.sigmoid(gates[:, 3 * H:4 * H])
        c_new = f_g * c_ref[...] + i_g * g_g
        h_out_ref[...] = o_g * jnp.tanh(c_new)
        c_out_ref[...] = c_new


# ------------------------------ JAX wrappers --------------------------------

def geniepath_fused(xp, a_src, a_dst, adj, b_gat, h, c, w_ih, w_hh,
                    *, tm=None, tn=None):
    n_pad = xp.shape[0]
    H = LSTM_HIDDEN
    if tm is None:
        tm = _pick_tile(n_pad, 256)   # fills the 256-wide MXU M dim on v6e/v7x
    if tn is None:
        tn = _pick_tile(n_pad, 512)
    grid = (n_pad // tm, n_pad // tn)

    return pl.pallas_call(
        _geniepath_kernel,
        out_shape=(jax.ShapeDtypeStruct((n_pad, H), jnp.float32),   # h_new (== x_out)
                   jax.ShapeDtypeStruct((n_pad, H), jnp.float32)),  # c_new
        grid_spec=pltpu.PrefetchScalarGridSpec(
            num_scalar_prefetch=0,
            grid=grid,
            in_specs=[
                pl.BlockSpec((tn, DIM), lambda i, j: (j, 0)),      # xp      bf16, neighbor-tiled
                pl.BlockSpec((1, tn), lambda i, j: (0, j)),        # a_src   f32, lane-dense
                pl.BlockSpec((tm, 1), lambda i, j: (i, 0)),        # a_dst   f32, row-tiled
                pl.BlockSpec((tm, tn), lambda i, j: (i, j)),       # adj     int8 {0,1}
                pl.BlockSpec((1, DIM), lambda i, j: (0, 0)),       # b_gat   f32, resident
                pl.BlockSpec((tm, H), lambda i, j: (i, 0)),        # h       f32, row-tiled
                pl.BlockSpec((tm, H), lambda i, j: (i, 0)),        # c       f32, row-tiled
                pl.BlockSpec((DIM, 4 * H), lambda i, j: (0, 0)),   # W_ih^T  bf16, resident
                pl.BlockSpec((H, 4 * H), lambda i, j: (0, 0)),     # W_hh^T  bf16, resident
            ],
            out_specs=(pl.BlockSpec((tm, H), lambda i, j: (i, 0)),
                       pl.BlockSpec((tm, H), lambda i, j: (i, 0))),
            scratch_shapes=[pltpu.VMEM((tm, 1), jnp.float32),      # m (running max)
                            pltpu.VMEM((tm, 1), jnp.float32),      # l (running sum)
                            pltpu.VMEM((tm, DIM), jnp.float32)],   # acc
        ),
        compiler_params=pltpu.CompilerParams(
            # row-tile axis parallel (megacore on v7x), neighbor axis is the reduction.
            # TODO(synk): on v7x verify 2-TC sharding; else switch to pltpu.CORE_PARALLEL.
            dimension_semantics=("parallel", "arbitrary")),
        # h/c state is overwritten each step: alias inputs 5/6 to outputs 0/1.
        input_output_aliases={5: 0, 6: 1},
    )(xp, a_src, a_dst, adj, b_gat, h, c, w_ih, w_hh)


def init_geniepath_params(key, in_dim):
    ks = jax.random.split(key, 5)
    scale = 0.05
    return {
        # GATConv(in_dim, DIM, heads=1)
        "w_gat":   scale * jax.random.normal(ks[0], (in_dim, DIM), jnp.float32),
        "att_src": scale * jax.random.normal(ks[1], (DIM, 1), jnp.float32),
        "att_dst": scale * jax.random.normal(ks[2], (DIM, 1), jnp.float32),
        "b_gat":   jnp.zeros((1, DIM), jnp.float32),
        # LSTM(DIM, H, 1, bias=False): W_ih (4H, DIM), W_hh (4H, H) stored pre-transposed
        "w_ih_t":  scale * jax.random.normal(ks[3], (DIM, 4 * LSTM_HIDDEN), jnp.float32),
        "w_hh_t":  scale * jax.random.normal(ks[4], (LSTM_HIDDEN, 4 * LSTM_HIDDEN), jnp.float32),
    }


def geniepath_layer(x, edge_index, h, c, params):
    """Mirrors GeniePathLayer.forward: returns (x_out, (h_new, c_new)).

    x: (N, in_dim); h, c: (1, N, LSTM_HIDDEN) -- PyTorch (num_layers, batch, hidden).
    """
    N, _ = x.shape

    # One-time projection / attention-score precompute (plain XLA, done once).
    xp_f32 = x.astype(jnp.float32) @ params["w_gat"]           # (N, DIM)   W x
    a_dst = xp_f32 @ params["att_dst"]                         # (N, 1)  <Wx_i, att_dst>
    a_src = (xp_f32 @ params["att_src"]).reshape(1, N)         # (1, N)  <Wx_j, att_src>

    n_pad = _round_up(N, 128)
    pad_n = n_pad - N
    xp = jnp.pad(xp_f32.astype(jnp.bfloat16), ((0, pad_n), (0, 0)))
    a_dst_p = jnp.pad(a_dst, ((0, pad_n), (0, 0)))
    a_src_p = jnp.pad(a_src, ((0, 0), (0, pad_n)))
    h_p = jnp.pad(h[0], ((0, pad_n), (0, 0)))
    c_p = jnp.pad(c[0], ((0, pad_n), (0, 0)))

    # int8 adjacency mask (dst, src) with self-loops (GATConv add_self_loops=True).
    # NOTE: duplicate/multi-edges collapse into one adjacency entry (simple graphs).
    src, dst = edge_index[0], edge_index[1]
    adj = jnp.zeros((n_pad, n_pad), jnp.int8)
    adj = adj.at[dst, src].set(1)
    diag = jnp.arange(N)
    adj = adj.at[diag, diag].set(1)

    h_new_p, c_new_p = geniepath_fused(
        xp, a_src_p, a_dst_p, adj,
        params["b_gat"].astype(jnp.float32),
        h_p, c_p,
        params["w_ih_t"].astype(jnp.bfloat16),
        params["w_hh_t"].astype(jnp.bfloat16))

    h_new = h_new_p[:N]
    c_new = c_new_p[:N]
    x_out = h_new                              # seq_len=1: LSTM output == new h
    return x_out, (h_new[None], c_new[None])


# ------------------------------ pure-JAX reference --------------------------

def _reference(x, edge_index, h, c, params):
    N = x.shape[0]
    xp = x @ params["w_gat"]
    a_dst = xp @ params["att_dst"]
    a_src = xp @ params["att_src"]
    logits = a_dst + a_src.T
    logits = jnp.where(logits > 0, logits, 0.2 * logits)
    adj = jnp.zeros((N, N), bool).at[edge_index[1], edge_index[0]].set(True)
    adj = adj.at[jnp.arange(N), jnp.arange(N)].set(True)
    logits = jnp.where(adj, logits, -jnp.inf)
    alpha = jax.nn.softmax(logits, axis=-1)
    xb = jnp.tanh(alpha @ xp + params["b_gat"])
    gates = xb @ params["w_ih_t"] + h[0] @ params["w_hh_t"]
    H = LSTM_HIDDEN
    i_g = jax.nn.sigmoid(gates[:, :H])
    f_g = jax.nn.sigmoid(gates[:, H:2 * H])
    g_g = jnp.tanh(gates[:, 2 * H:3 * H])
    o_g = jax.nn.sigmoid(gates[:, 3 * H:])
    c_new = f_g * c[0] + i_g * g_g
    h_new = o_g * jnp.tanh(c_new)
    return h_new, (h_new[None], c_new[None])


# --------------------------------- driver -----------------------------------

if __name__ == "__main__":
    key = jax.random.PRNGKey(0)
    k_param, k_x, k_src, k_dst = jax.random.split(key, 4)

    N = 128        # number of graph nodes
    IN_DIM = 64    # input feature dim
    E = 512        # number of directed edges

    params = init_geniepath_params(k_param, IN_DIM)

    x = jax.random.normal(k_x, (N, IN_DIM), jnp.float32)
    edge_index = jnp.stack([
        jax.random.randint(k_src, (E,), 0, N),
        jax.random.randint(k_dst, (E,), 0, N),
    ], axis=0)                                       # (2, E) like PyG
    h0 = jnp.zeros((1, N, LSTM_HIDDEN), jnp.float32)
    c0 = jnp.zeros((1, N, LSTM_HIDDEN), jnp.float32)

    x_out, (h_new, c_new) = geniepath_layer(x, edge_index, h0, c0, params)
    jax.block_until_ready((x_out, h_new, c_new))

    assert x_out.shape == (N, DIM)
    assert h_new.shape == (1, N, LSTM_HIDDEN) and c_new.shape == (1, N, LSTM_HIDDEN)
    assert bool(jnp.all(jnp.isfinite(x_out)))
    assert bool(jnp.all(jnp.isfinite(c_new)))

    # correctness vs. pure-JAX f32 reference (bf16 MXU + approx reciprocal => loose tol)
    x_ref, (h_ref, c_ref) = _reference(x, edge_index, h0, c0, params)
    err_h = float(jnp.max(jnp.abs(x_out - x_ref)))
    err_c = float(jnp.max(jnp.abs(c_new - c_ref)))
    assert err_h < 3e-2 and err_c < 3e-2, (err_h, err_c)

    print("KERNEL_OK")
</pallas_src>

<mosaic_0001>
module attributes {stable_mosaic.version = 11 : i64} {
  func.func @_geniepath_kernel(%arg0: i32, %arg1: i32, %arg2: memref<128x256xbf16, #tpu.memory_space<vmem>>, %arg3: memref<1x128xf32, #tpu.memory_space<vmem>>, %arg4: memref<128x1xf32, #tpu.memory_space<vmem>>, %arg5: memref<128x128xi8, #tpu.memory_space<vmem>>, %arg6: memref<1x256xf32, #tpu.memory_space<vmem>>, %arg7: memref<128x256xf32, #tpu.memory_space<vmem>>, %arg8: memref<128x256xf32, #tpu.memory_space<vmem>>, %arg9: memref<256x1024xbf16, #tpu.memory_space<vmem>>, %arg10: memref<256x1024xbf16, #tpu.memory_space<vmem>>, %arg11: memref<128x256xf32, #tpu.memory_space<vmem>>, %arg12: memref<128x256xf32, #tpu.memory_space<vmem>>, %arg13: memref<128x1xf32, #tpu.memory_space<vmem>>, %arg14: memref<128x1xf32, #tpu.memory_space<vmem>>, %arg15: memref<128x256xf32, #tpu.memory_space<vmem>>) attributes {dimension_semantics = [#tpu.dimension_semantics<parallel>, #tpu.dimension_semantics<arbitrary>], iteration_bounds = array<i64: 1, 1>, scalar_prefetch = 0 : i64, scratch_operands = 3 : i64, tpu.core_type = #tpu.core_type<tc>, window_params = [{transform_indices = @transform_0, window_bounds = array<i64: 128, 256>}, {transform_indices = @transform_1, window_bounds = array<i64: 1, 128>}, {transform_indices = @transform_2, window_bounds = array<i64: 128, 1>}, {transform_indices = @transform_3, window_bounds = array<i64: 128, 128>}, {pipeline_mode = #tpu.pipeline_mode<synchronous>, transform_indices = @transform_4, window_bounds = array<i64: 1, 256>}, {transform_indices = @transform_5, window_bounds = array<i64: 128, 256>}, {transform_indices = @transform_6, window_bounds = array<i64: 128, 256>}, {pipeline_mode = #tpu.pipeline_mode<synchronous>, transform_indices = @transform_7, window_bounds = array<i64: 256, 1024>}, {pipeline_mode = #tpu.pipeline_mode<synchronous>, transform_indices = @transform_8, window_bounds = array<i64: 256, 1024>}, {transform_indices = @transform_9, window_bounds = array<i64: 128, 256>}, {transform_indices = @transform_10, window_bounds = array<i64: 128, 256>}]} {
    %c0_i32 = arith.constant 0 : i32
    %0 = arith.cmpi eq, %arg1, %c0_i32 : i32
    %1 = arith.extui %0 : i1 to i32
    %c0_i32_0 = arith.constant 0 : i32
    %2 = arith.cmpi ne, %1, %c0_i32_0 : i32
    scf.if %2 {
      %cst_28 = arith.constant 0xFF800000 : f32
      %46 = vector.broadcast %cst_28 : f32 to vector<128x1xf32>
      %c0_29 = arith.constant 0 : index
      %c0_30 = arith.constant 0 : index
      %47 = vector.load %arg13[%c0_29, %c0_30] : memref<128x1xf32, #tpu.memory_space<vmem>>, vector<128x1xf32>
      tpu.vector_store %arg13[%c0_29, %c0_30], %46 {strides = array<i32>} : memref<128x1xf32, #tpu.memory_space<vmem>>, vector<128x1xf32>,
      %cst_31 = arith.constant 0.000000e+00 : f32
      %48 = vector.broadcast %cst_31 : f32 to vector<128x1xf32>
      %c0_32 = arith.constant 0 : index
      %c0_33 = arith.constant 0 : index
      %49 = vector.load %arg14[%c0_32, %c0_33] : memref<128x1xf32, #tpu.memory_space<vmem>>, vector<128x1xf32>
      tpu.vector_store %arg14[%c0_32, %c0_33], %48 {strides = array<i32>} : memref<128x1xf32, #tpu.memory_space<vmem>>, vector<128x1xf32>,
      %cst_34 = arith.constant 0.000000e+00 : f32
      %50 = vector.broadcast %cst_34 : f32 to vector<128x256xf32>
      %c0_35 = arith.constant 0 : index
      %c0_36 = arith.constant 0 : index
      %51 = vector.load %arg15[%c0_35, %c0_36] : memref<128x256xf32, #tpu.memory_space<vmem>>, vector<128x256xf32>
      tpu.vector_store %arg15[%c0_35, %c0_36], %50 {strides = array<i32>} : memref<128x256xf32, #tpu.memory_space<vmem>>, vector<128x256xf32>,
    } else {
    }
    %c0 = arith.constant 0 : index
    %c0_1 = arith.constant 0 : index
    %3 = vector.load %arg4[%c0, %c0_1] : memref<128x1xf32, #tpu.memory_space<vmem>>, vector<128x1xf32>
    %c0_2 = arith.constant 0 : index
    %c0_3 = arith.constant 0 : index
    %4 = vector.load %arg3[%c0_2, %c0_3] : memref<1x128xf32, #tpu.memory_space<vmem>>, vector<1x128xf32>
    %5 = vector.broadcast %3 : vector<128x1xf32> to vector<128x128xf32>
    %6 = vector.broadcast %4 : vector<1x128xf32> to vector<128x128xf32>
    %7 = arith.addf %5, %6 : vector<128x128xf32>
    %cst = arith.constant 0.000000e+00 : f32
    %8 = vector.broadcast %cst : f32 to vector<128x128xf32>
    %9 = arith.cmpf ogt, %7, %8 : vector<128x128xf32>
    %cst_4 = arith.constant 2.000000e-01 : f32
    %10 = vector.broadcast %cst_4 : f32 to vector<128x128xf32>
    %11 = arith.mulf %10, %7 : vector<128x128xf32>
    %12 = arith.select %9, %7, %11 : vector<128x128xi1>, vector<128x128xf32>
    %c0_5 = arith.constant 0 : index
    %c0_6 = arith.constant 0 : index
    %13 = vector.load %arg5[%c0_5, %c0_6] : memref<128x128xi8, #tpu.memory_space<vmem>>, vector<128x128xi8>
    %14 = arith.sitofp %13 : vector<128x128xi8> to vector<128x128xf32>
    %cst_7 = arith.constant 0.000000e+00 : f32
    %15 = vector.broadcast %cst_7 : f32 to vector<128x128xf32>
    %16 = arith.cmpf one, %14, %15 : vector<128x128xf32>
    %cst_8 = arith.constant -1.000000e+30 : f32
    %17 = vector.broadcast %cst_8 : f32 to vector<128x128xf32>
    %18 = arith.select %16, %12, %17 : vector<128x128xi1>, vector<128x128xf32>
    %c0_9 = arith.constant 0 : index
    %c0_10 = arith.constant 0 : index
    %19 = vector.load %arg13[%c0_9, %c0_10] : memref<128x1xf32, #tpu.memory_space<vmem>>, vector<128x1xf32>
    %cst_11 = arith.constant dense<0xFF800000> : vector<128xf32>
    %20 = vector.multi_reduction <maximumf>, %18, %cst_11 [1] : vector<128x128xf32> to vector<128xf32>
    %21 = vector.shape_cast %20 : vector<128xf32> to vector<128x1xf32>
    %22 = arith.maximumf %19, %21 : vector<128x1xf32>
    %23 = arith.subf %19, %22 : vector<128x1xf32>
    %24 = math.exp %23 : vector<128x1xf32>
    %25 = vector.broadcast %22 : vector<128x1xf32> to vector<128x128xf32>
    %26 = arith.subf %18, %25 : vector<128x128xf32>
    %27 = math.exp %26 : vector<128x128xf32>
    %c0_12 = arith.constant 0 : index
    %c0_13 = arith.constant 0 : index
    %28 = vector.load %arg14[%c0_12, %c0_13] : memref<128x1xf32, #tpu.memory_space<vmem>>, vector<128x1xf32>
    %29 = arith.mulf %24, %28 : vector<128x1xf32>
    %cst_14 = arith.constant dense<0.000000e+00> : vector<128xf32>
    %30 = vector.multi_reduction <add>, %27, %cst_14 [1] : vector<128x128xf32> to vector<128xf32>
    %31 = vector.shape_cast %30 : vector<128xf32> to vector<128x1xf32>
    %32 = arith.addf %29, %31 : vector<128x1xf32>
    %c0_15 = arith.constant 0 : index
    %c0_16 = arith.constant 0 : index
    %33 = vector.load %arg14[%c0_15, %c0_16] : memref<128x1xf32, #tpu.memory_space<vmem>>, vector<128x1xf32>
    tpu.vector_store %arg14[%c0_15, %c0_16], %32 {strides = array<i32>} : memref<128x1xf32, #tpu.memory_space<vmem>>, vector<128x1xf32>,
    %c0_17 = arith.constant 0 : index
    %c0_18 = arith.constant 0 : index
    %34 = vector.load %arg15[%c0_17, %c0_18] : memref<128x256xf32, #tpu.memory_space<vmem>>, vector<128x256xf32>
    %35 = vector.broadcast %24 : vector<128x1xf32> to vector<128x256xf32>
    %36 = arith.mulf %35, %34 : vector<128x256xf32>
    %37 = arith.truncf %27 : vector<128x128xf32> to vector<128x128xbf16>
    %c0_19 = arith.constant 0 : index
    %c0_20 = arith.constant 0 : index
    %38 = vector.load %arg2[%c0_19, %c0_20] : memref<128x256xbf16, #tpu.memory_space<vmem>>, vector<128x256xbf16>
    %cst_21 = arith.constant dense<0.000000e+00> : vector<128x256xf32>
    %39 = tpu.matmul %37, %38, %cst_21 {dimension_numbers = #tpu.dot_dimension_numbers<[1], [0], [0], [1], [0, 0, 1, 1], [], []>} : vector<128x128xbf16>, vector<128x256xbf16>, vector<128x256xf32> -> vector<128x256xf32>
    %40 = arith.addf %36, %39 : vector<128x256xf32>
    %c0_22 = arith.constant 0 : index
    %c0_23 = arith.constant 0 : index
    %41 = vector.load %arg15[%c0_22, %c0_23] : memref<128x256xf32, #tpu.memory_space<vmem>>, vector<128x256xf32>
    tpu.vector_store %arg15[%c0_22, %c0_23], %40 {strides = array<i32>} : memref<128x256xf32, #tpu.memory_space<vmem>>, vector<128x256xf32>,
    %c0_24 = arith.constant 0 : index
    %c0_25 = arith.constant 0 : index
    %42 = vector.load %arg13[%c0_24, %c0_25] : memref<128x1xf32, #tpu.memory_space<vmem>>, vector<128x1xf32>
    tpu.vector_store %arg13[%c0_24, %c0_25], %22 {strides = array<i32>} : memref<128x1xf32, #tpu.memory_space<vmem>>, vector<128x1xf32>,
    %c0_i32_26 = arith.constant 0 : i32
    %43 = arith.cmpi eq, %arg1, %c0_i32_26 : i32
    %44 = arith.extui %43 : i1 to i32
    %c0_i32_27 = arith.constant 0 : i32
    %45 = arith.cmpi ne, %44, %c0_i32_27 : i32
    scf.if %45 {
      %c0_28 = arith.constant 0 : index
      %c0_29 = arith.constant 0 : index
      %46 = vector.load %arg15[%c0_28, %c0_29] : memref<128x256xf32, #tpu.memory_space<vmem>>, vector<128x256xf32>
      %c0_30 = arith.constant 0 : index
      %c0_31 = arith.constant 0 : index
      %47 = vector.load %arg14[%c0_30, %c0_31] : memref<128x1xf32, #tpu.memory_space<vmem>>, vector<128x1xf32>
      %48 = tpu.reciprocal %47 {approx = true} : vector<128x1xf32> -> vector<128x1xf32>
      %49 = vector.broadcast %48 : vector<128x1xf32> to vector<128x256xf32>
      %50 = arith.mulf %46, %49 : vector<128x256xf32>
      %c0_32 = arith.constant 0 : index
      %c0_33 = arith.constant 0 : index
      %51 = vector.load %arg6[%c0_32, %c0_33] : memref<1x256xf32, #tpu.memory_space<vmem>>, vector<1x256xf32>
      %52 = vector.broadcast %51 : vector<1x256xf32> to vector<128x256xf32>
      %53 = arith.addf %50, %52 : vector<128x256xf32>
      %54 = math.tanh %53 : vector<128x256xf32>
      %55 = arith.truncf %54 : vector<128x256xf32> to vector<128x256xbf16>
      %c0_34 = arith.constant 0 : index
      %c0_35 = arith.constant 0 : index
      %56 = vector.load %arg9[%c0_34, %c0_35] : memref<256x1024xbf16, #tpu.memory_space<vmem>>, vector<256x1024xbf16>
      %cst_36 = arith.constant dense<0.000000e+00> : vector<128x1024xf32>
      %57 = tpu.matmul %55, %56, %cst_36 {dimension_numbers = #tpu.dot_dimension_numbers<[1], [0], [0], [1], [0, 0, 1, 1], [], []>} : vector<128x256xbf16>, vector<256x1024xbf16>, vector<128x1024xf32> -> vector<128x1024xf32>
      %c0_37 = arith.constant 0 : index
      %c0_38 = arith.constant 0 : index
      %58 = vector.load %arg7[%c0_37, %c0_38] : memref<128x256xf32, #tpu.memory_space<vmem>>, vector<128x256xf32>
      %59 = arith.truncf %58 : vector<128x256xf32> to vector<128x256xbf16>
      %c0_39 = arith.constant 0 : index
      %c0_40 = arith.constant 0 : index
      %60 = vector.load %arg10[%c0_39, %c0_40] : memref<256x1024xbf16, #tpu.memory_space<vmem>>, vector<256x1024xbf16>
      %cst_41 = arith.constant dense<0.000000e+00> : vector<128x1024xf32>
      %61 = tpu.matmul %59, %60, %cst_41 {dimension_numbers = #tpu.dot_dimension_numbers<[1], [0], [0], [1], [0, 0, 1, 1], [], []>} : vector<128x256xbf16>, vector<256x1024xbf16>, vector<128x1024xf32> -> vector<128x1024xf32>
      %62 = arith.addf %57, %61 : vector<128x1024xf32>
      %63 = vector.extract_strided_slice %62 {offsets = [0, 0], sizes = [128, 256], strides = [1, 1]} : vector<128x1024xf32> to vector<128x256xf32>
      %64 = arith.negf %63 : vector<128x256xf32>
      %65 = math.exp %64 : vector<128x256xf32>
      %cst_42 = arith.constant 1.000000e+00 : f32
      %66 = vector.broadcast %cst_42 : f32 to vector<128x256xf32>
      %67 = arith.addf %66, %65 : vector<128x256xf32>
      %68 = arith.divf %66, %67 : vector<128x256xf32>
      %69 = vector.extract_strided_slice %62 {offsets = [0, 256], sizes = [128, 256], strides = [1, 1]} : vector<128x1024xf32> to vector<128x256xf32>
      %70 = arith.negf %69 : vector<128x256xf32>
      %71 = math.exp %70 : vector<128x256xf32>
      %cst_43 = arith.constant 1.000000e+00 : f32
      %72 = vector.broadcast %cst_43 : f32 to vector<128x256xf32>
      %73 = arith.addf %72, %71 : vector<128x256xf32>
      %74 = arith.divf %72, %73 : vector<128x256xf32>
      %75 = vector.extract_strided_slice %62 {offsets = [0, 512], sizes = [128, 256], strides = [1, 1]} : vector<128x1024xf32> to vector<128x256xf32>
      %76 = math.tanh %75 : vector<128x256xf32>
      %77 = vector.extract_strided_slice %62 {offsets = [0, 768], sizes = [128, 256], strides = [1, 1]} : vector<128x1024xf32> to vector<128x256xf32>
      %78 = arith.negf %77 : vector<128x256xf32>
      %79 = math.exp %78 : vector<128x256xf32>
      %cst_44 = arith.constant 1.000000e+00 : f32
      %80 = vector.broadcast %cst_44 : f32 to vector<128x256xf32>
      %81 = arith.addf %80, %79 : vector<128x256xf32>
      %82 = arith.divf %80, %81 : vector<128x256xf32>
      %c0_45 = arith.constant 0 : index
      %c0_46 = arith.constant 0 : index
      %83 = vector.load %arg8[%c0_45, %c0_46] : memref<128x256xf32, #tpu.memory_space<vmem>>, vector<128x256xf32>
      %84 = arith.mulf %74, %83 : vector<128x256xf32>
      %85 = arith.mulf %68, %76 : vector<128x256xf32>
      %86 = arith.addf %84, %85 : vector<128x256xf32>
      %87 = math.tanh %86 : vector<128x256xf32>
      %88 = arith.mulf %82, %87 : vector<128x256xf32>
      %c0_47 = arith.constant 0 : index
      %c0_48 = arith.constant 0 : index
      %89 = vector.load %arg11[%c0_47, %c0_48] : memref<128x256xf32, #tpu.memory_space<vmem>>, vector<128x256xf32>
      tpu.vector_store %arg11[%c0_47, %c0_48], %88 {strides = array<i32>} : memref<128x256xf32, #tpu.memory_space<vmem>>, vector<128x256xf32>,
      %c0_49 = arith.constant 0 : index
      %c0_50 = arith.constant 0 : index
      %90 = vector.load %arg12[%c0_49, %c0_50] : memref<128x256xf32, #tpu.memory_space<vmem>>, vector<128x256xf32>
      tpu.vector_store %arg12[%c0_49, %c0_50], %86 {strides = array<i32>} : memref<128x256xf32, #tpu.memory_space<vmem>>, vector<128x256xf32>,
    } else {
    }
    return
  }
  func.func @transform_0(%arg0: i32, %arg1: i32) -> (i32, i32) {
    %c0_i32 = arith.constant 0 : i32
    %c0_i32_0 = arith.constant 0 : i32
    return %arg1, %c0_i32 : i32, i32
  }
  func.func @transform_1(%arg0: i32, %arg1: i32) -> (i32, i32) {
    %c0_i32 = arith.constant 0 : i32
    %c0_i32_0 = arith.constant 0 : i32
    return %c0_i32, %arg1 : i32, i32
  }
  func.func @transform_2(%arg0: i32, %arg1: i32) -> (i32, i32) {
    %c0_i32 = arith.constant 0 : i32
    %c0_i32_0 = arith.constant 0 : i32
    return %arg0, %c0_i32 : i32, i32
  }
  func.func @transform_3(%arg0: i32, %arg1: i32) -> (i32, i32) {
    %c0_i32 = arith.constant 0 : i32
    return %arg0, %arg1 : i32, i32
  }
  func.func @transform_4(%arg0: i32, %arg1: i32) -> (i32, i32) {
    %c0_i32 = arith.constant 0 : i32
    %c0_i32_0 = arith.constant 0 : i32
    %c0_i32_1 = arith.constant 0 : i32
    return %c0_i32, %c0_i32_0 : i32, i32
  }
  func.func @transform_5(%arg0: i32, %arg1: i32) -> (i32, i32) {
    %c0_i32 = arith.constant 0 : i32
    %c0_i32_0 = arith.constant 0 : i32
    return %arg0, %c0_i32 : i32, i32
  }
  func.func @transform_6(%arg0: i32, %arg1: i32) -> (i32, i32) {
    %c0_i32 = arith.constant 0 : i32
    %c0_i32_0 = arith.constant 0 : i32
    return %arg0, %c0_i32 : i32, i32
  }
  func.func @transform_7(%arg0: i32, %arg1: i32) -> (i32, i32) {
    %c0_i32 = arith.constant 0 : i32
    %c0_i32_0 = arith.constant 0 : i32
    %c0_i32_1 = arith.constant 0 : i32
    return %c0_i32, %c0_i32_0 : i32, i32
  }
  func.func @transform_8(%arg0: i32, %arg1: i32) -> (i32, i32) {
    %c0_i32 = arith.constant 0 : i32
    %c0_i32_0 = arith.constant 0 : i32
    %c0_i32_1 = arith.constant 0 : i32
    return %c0_i32, %c0_i32_0 : i32, i32
  }
  func.func @transform_9(%arg0: i32, %arg1: i32) -> (i32, i32) {
    %c0_i32 = arith.constant 0 : i32
    %c0_i32_0 = arith.constant 0 : i32
    return %arg0, %c0_i32 : i32, i32
  }
  func.func @transform_10(%arg0: i32, %arg1: i32) -> (i32, i32) {
    %c0_i32 = arith.constant 0 : i32
    %c0_i32_0 = arith.constant 0 : i32
    return %arg0, %c0_i32 : i32, i32
  }
}

</mosaic_0001>

<llo_original>
// kernel: tpu_custom_call.1
$region0: #{tpu_custom_call.1}
  #allocation0 [shape = 'u32[]', space=smem, size = 0x4, offset = 0x4, fixed_abs, tag = 'smem constant byte address 0x4 - core index']
  #allocation1 [shape = 'u32[72,128]{1,0:T(1,128)}', space=vmem, size = 0x9000, scoped, tag = 'internal scratch']
  #allocation2 [shape = 'f32[128,1]{1,0:T(8,128)}', space=vmem, size = 0x10000, scoped, tag = 'scratch operand']
  #allocation3 [shape = 'f32[128,1]{1,0:T(8,128)}', space=vmem, size = 0x10000, scoped, tag = 'scratch operand']
  #allocation4 [shape = 'f32[128,256]{1,0:T(8,128)}', space=vmem, size = 0x20000, scoped, tag = 'scratch operand']
  %s0 = inlined_call_operand.vmem [shape: bf16[128,256], index: 0, kind: input, shape index: {}]
  %s1 = inlined_call_operand.vmem [shape: f32[1,128], index: 1, kind: input, shape index: {}]
  %s2 = inlined_call_operand.vmem [shape: f32[128,1], index: 2, kind: input, shape index: {}]
  %s3 = inlined_call_operand.vmem [shape: s8[128,128], index: 3, kind: input, shape index: {}]
  %s4 = inlined_call_operand.vmem [shape: f32[1,256], index: 4, kind: input, shape index: {}]
  %s5 = inlined_call_operand.hbm [shape: f32[128,256], index: 5, kind: input, shape index: {}, may-alias: {5,9}]
  %s6 = inlined_call_operand.hbm [shape: f32[128,256], index: 6, kind: input, shape index: {}, may-alias: {6,10}]
  %s7 = inlined_call_operand.hbm [shape: bf16[256,1024], index: 7, kind: input, shape index: {}]
  %s8 = inlined_call_operand.hbm [shape: bf16[256,1024], index: 8, kind: input, shape index: {}]
  %s9 = inlined_call_operand.hbm [shape: f32[128,256], index: 9, kind: output, shape index: {0}, may-alias: {5,9}]
  %s10 = inlined_call_operand.hbm [shape: f32[128,256], index: 10, kind: output, shape index: {1}, may-alias: {6,10}]
  %11 = xla_tuple %s9, %s10
  %s12 = sld [smem:[#allocation0]]
  $region78: #{tpu_custom_call.1} parent=0
    _
  %s14 = ssub.s32 1, %s12
  %s15 = scalar_select 0, %s14, %s12
  $region1: #{tpu_custom_call.1} parent=0
    #allocation5 [shape = 'u8[131072]{0}', space=vmem, size = 0x20000, scoped, tag = 'input window, operand 5, single buffered']
    #allocation6 [shape = 's32[1]{0}', space=sflag, size = 0x4, scoped, tag = 'scoped memory for tpu_custom_call.1']
    #allocation7 [shape = 's32[1]{0}', space=sflag, size = 0x4, scoped, tag = 'scoped memory for tpu_custom_call.1']
    #allocation8 [shape = 'u8[131072]{0}', space=vmem, size = 0x20000, scoped, tag = 'input window, operand 6, single buffered']
    #allocation9 [shape = 's32[1]{0}', space=sflag, size = 0x4, scoped, tag = 'scoped memory for tpu_custom_call.1']
    #allocation10 [shape = 'u8[524288]{0}', space=vmem, size = 0x80000, scoped, tag = 'input window, operand 7, single buffered']
    #allocation11 [shape = 'u8[524288]{0}', space=vmem, size = 0x80000, scoped, tag = 'input window, operand 8, single buffered']
    #allocation12 [shape = 's32[1]{0}', space=sflag, size = 0x4, scoped, tag = 'scoped memory for tpu_custom_call.1']
    #allocation13 [shape = 'u8[131072]{0}', space=vmem, size = 0x20000, scoped, tag = 'output window, operand 0, single buffered']
    #allocation14 [shape = 'u8[131072]{0}', space=vmem, size = 0x20000, scoped, tag = 'output window, operand 1, single buffered']
    #allocation15 [shape = 's32[1]{0}', space=sflag, size = 0x4, scoped, tag = 'scoped memory for tpu_custom_call.1']
    %16 = vsyncpa [#allocation6], 0
    %17 = vsyncpa [#allocation9], 0
    %18 = vsyncpa [#allocation12], 0
    %19 = vsyncpa [#allocation7], 0
    %20 = vsyncpa [#allocation15], 0
    // Predicated region
    $region2: #{tpu_custom_call.1} parent=1 // pred_check
      _
    $region3: #{tpu_custom_call.1} parent=1 // pred_check_branch
      %22 = sbr.rel (0) target = $region5
    $region4: #{tpu_custom_call.1} parent=1 // pred_region
      _
    $region5: #{tpu_custom_call.1} parent=1 // pred_fallthru
      _
    // Predicated region
    $region6: #{tpu_custom_call.1} parent=1 // pred_check
      _
    $region7: #{tpu_custom_call.1} parent=1 // pred_check_branch
      %24 = sbr.rel (0) target = $region9
    $region8: #{tpu_custom_call.1} parent=1 // pred_region
      _
    $region9: #{tpu_custom_call.1} parent=1 // pred_fallthru
      _
    // Predicated region
    $region10: #{tpu_custom_call.1} parent=1 // pred_check
      _
    $region11: #{tpu_custom_call.1} parent=1 // pred_check_branch
      %26 = sbr.rel (0) target = $region13
    $region12: #{tpu_custom_call.1} parent=1 // pred_region
      _
    $region13: #{tpu_custom_call.1} parent=1 // pred_fallthru
      _
    // Predicated region
    $region14: #{tpu_custom_call.1} parent=1 // pred_check
      _
    $region15: #{tpu_custom_call.1} parent=1 // pred_check_branch
      %28 = sbr.rel (0) target = $region17
    $region16: #{tpu_custom_call.1} parent=1 // pred_region
      _
    $region17: #{tpu_custom_call.1} parent=1 // pred_fallthru
      _
    // Predicated region
    $region18: #{tpu_custom_call.1} parent=1 // pred_check
      _
    $region19: #{tpu_custom_call.1} parent=1 // pred_check_branch
      %30 = sbr.rel (0) target = $region21
    $region20: #{tpu_custom_call.1} parent=1 // pred_region
      _
    $region21: #{tpu_custom_call.1} parent=1 // pred_fallthru
      _
    // Predicated region
    $region22: #{tpu_custom_call.1} parent=1 // pred_check
      _
    $region23: #{tpu_custom_call.1} parent=1 // pred_check_branch
      %32 = sbr.rel (0) target = $region25
    $region24: #{tpu_custom_call.1} parent=1 // pred_region
      %34 = vsyncadd [#allocation6], 0
      %s35 = sshll.u32 %s5, 4
      %s36 = int_to_ptr.hbm [resolvable:$true] %s35
      %s37 = sshll.u32 [#allocation5], 4
      %s38 = int_to_ptr.vmem [resolvable:$true] %s37
      %43 = dma.hbm_to_vmem [thread:$0]  %s36, 4096, %s38, [#allocation6], 256, 256, 16
    $region25: #{tpu_custom_call.1} parent=1 // pred_fallthru
      _
    // Predicated region
    $region26: #{tpu_custom_call.1} parent=1 // pred_check
      _
    $region27: #{tpu_custom_call.1} parent=1 // pred_check_branch
      %45 = sbr.rel (0) target = $region29
    $region28: #{tpu_custom_call.1} parent=1 // pred_region
      %47 = vsyncadd [#allocation9], 0
      %s48 = sshll.u32 %s6, 4
      %s49 = int_to_ptr.hbm [resolvable:$true] %s48
      %s50 = sshll.u32 [#allocation8], 4
      %s51 = int_to_ptr.vmem [resolvable:$true] %s50
      %56 = dma.hbm_to_vmem [thread:$0]  %s49, 4096, %s51, [#allocation9], 256, 256, 16
    $region29: #{tpu_custom_call.1} parent=1 // pred_fallthru
      _
    // Predicated region
    $region30: #{tpu_custom_call.1} parent=1 // pred_check
      _
    $region31: #{tpu_custom_call.1} parent=1 // pred_check_branch
      %58 = sbr.rel (0) target = $region33
    $region32: #{tpu_custom_call.1} parent=1 // pred_region
      %60 = vsyncadd [#allocation9], 0
      %s61 = sshll.u32 %s7, 4
      %s62 = int_to_ptr.hbm [resolvable:$true] %s61
      %s63 = sshll.u32 [#allocation10], 4
      %s64 = int_to_ptr.vmem [resolvable:$true] %s63
      %69 = dma.hbm_to_vmem [thread:$0]  %s62, 16384, %s64, [#allocation9], 512, 512, 32
    $region33: #{tpu_custom_call.1} parent=1 // pred_fallthru
      _
    // Predicated region
    $region34: #{tpu_custom_call.1} parent=1 // pred_check
      _
    $region35: #{tpu_custom_call.1} parent=1 // pred_check_branch
      %71 = sbr.rel (0) target = $region37
    $region36: #{tpu_custom_call.1} parent=1 // pred_region
      %73 = vsyncadd [#allocation12], 0
      %s74 = sshll.u32 %s8, 4
      %s75 = int_to_ptr.hbm [resolvable:$true] %s74
      %s76 = sshll.u32 [#allocation11], 4
      %s77 = int_to_ptr.vmem [resolvable:$true] %s76
      %82 = dma.hbm_to_vmem [thread:$0]  %s75, 16384, %s77, [#allocation12], 512, 512, 32
    $region37: #{tpu_custom_call.1} parent=1 // pred_fallthru
      _
    // Predicated region
    $region38: #{tpu_custom_call.1} parent=1 // pred_check
      _
    $region39: #{tpu_custom_call.1} parent=1 // pred_check_branch
      %84 = sbr.rel (0) target = $region41
    $region40: #{tpu_custom_call.1} parent=1 // pred_region
      %86 = dma.done [#allocation6], 4096
    $region41: #{tpu_custom_call.1} parent=1 // pred_fallthru
      _
    // Predicated region
    $region42: #{tpu_custom_call.1} parent=1 // pred_check
      _
    $region43: #{tpu_custom_call.1} parent=1 // pred_check_branch
      %88 = sbr.rel (0) target = $region45
    $region44: #{tpu_custom_call.1} parent=1 // pred_region
      %90 = dma.done [#allocation9], 4096
    $region45: #{tpu_custom_call.1} parent=1 // pred_fallthru
      _
    // Predicated region
    $region46: #{tpu_custom_call.1} parent=1 // pred_check
      _
    $region47: #{tpu_custom_call.1} parent=1 // pred_check_branch
      %92 = sbr.rel (0) target = $region49
    $region48: #{tpu_custom_call.1} parent=1 // pred_region
      %94 = dma.done [#allocation9], 16384
    $region49: #{tpu_custom_call.1} parent=1 // pred_fallthru
      _
    // Predicated region
    $region50: #{tpu_custom_call.1} parent=1 // pred_check
      _
    $region51: #{tpu_custom_call.1} parent=1 // pred_check_branch
      %96 = sbr.rel (0) target = $region53
    $region52: #{tpu_custom_call.1} parent=1 // pred_region
      %98 = dma.done [#allocation12], 16384
    $region53: #{tpu_custom_call.1} parent=1 // pred_fallthru
      _
    %p99 = scmp.eq.s32.totalorder 0, 0
    // Predicated region
    $region54: #{tpu_custom_call.1} parent=1 // pred_check
      %p100 = pneg %p99
    $region55: #{tpu_custom_call.1} parent=1 // pred_check_branch
      %102 = sbr.rel (%p100) target = $region57
    $region56: #{tpu_custom_call.1} parent=1 // pred_region
      %vm103 = vcmask 7168
      %104 = vst.msk [vmem:[#allocation2] sm:$0xff] %vm103, -inf
      %105 = vst.msk [vmem:[#allocation2 + $0x8] sm:$0xff] %vm103, -inf
      %106 = vst.msk [vmem:[#allocation2 + $0x10] sm:$0xff] %vm103, -inf
      %107 = vst.msk [vmem:[#allocation2 + $0x18] sm:$0xff] %vm103, -inf
      %108 = vst.msk [vmem:[#allocation2 + $0x20] sm:$0xff] %vm103, -inf
      %109 = vst.msk [vmem:[#allocation2 + $0x28] sm:$0xff] %vm103, -inf
      %110 = vst.msk [vmem:[#allocation2 + $0x30] sm:$0xff] %vm103, -inf
      %111 = vst.msk [vmem:[#allocation2 + $0x38] sm:$0xff] %vm103, -inf
      %112 = vst.msk [vmem:[#allocation2 + $0x40] sm:$0xff] %vm103, -inf
      %113 = vst.msk [vmem:[#allocation2 + $0x48] sm:$0xff] %vm103, -inf
      %114 = vst.msk [vmem:[#allocation2 + $0x50] sm:$0xff] %vm103, -inf
      %115 = vst.msk [vmem:[#allocation2 + $0x58] sm:$0xff] %vm103, -inf
      %116 = vst.msk [vmem:[#allocation2 + $0x60] sm:$0xff] %vm103, -inf
      %117 = vst.msk [vmem:[#allocation2 + $0x68] sm:$0xff] %vm103, -inf
      %118 = vst.msk [vmem:[#allocation2 + $0x70] sm:$0xff] %vm103, -inf
      %119 = vst.msk [vmem:[#allocation2 + $0x78] sm:$0xff] %vm103, -inf
      %120 = vst.msk [vmem:[#allocation3] sm:$0xff] %vm103, 0.0
      %121 = vst.msk [vmem:[#allocation3 + $0x8] sm:$0xff] %vm103, 0.0
      %122 = vst.msk [vmem:[#allocation3 + $0x10] sm:$0xff] %vm103, 0.0
      %123 = vst.msk [vmem:[#allocation3 + $0x18] sm:$0xff] %vm103, 0.0
      %124 = vst.msk [vmem:[#allocation3 + $0x20] sm:$0xff] %vm103, 0.0
      %125 = vst.msk [vmem:[#allocation3 + $0x28] sm:$0xff] %vm103, 0.0
      %126 = vst.msk [vmem:[#allocation3 + $0x30] sm:$0xff] %vm103, 0.0
      %127 = vst.msk [vmem:[#allocation3 + $0x38] sm:$0xff] %vm103, 0.0
      %128 = vst.msk [vmem:[#allocation3 + $0x40] sm:$0xff] %vm103, 0.0
      %129 = vst.msk [vmem:[#allocation3 + $0x48] sm:$0xff] %vm103, 0.0
      %130 = vst.msk [vmem:[#allocation3 + $0x50] sm:$0xff] %vm103, 0.0
      %131 = vst.msk [vmem:[#allocation3 + $0x58] sm:$0xff] %vm103, 0.0
      %132 = vst.msk [vmem:[#allocation3 + $0x60] sm:$0xff] %vm103, 0.0
      %133 = vst.msk [vmem:[#allocation3 + $0x68] sm:$0xff] %vm103, 0.0
      %134 = vst.msk [vmem:[#allocation3 + $0x70] sm:$0xff] %vm103, 0.0
      %135 = vst.msk [vmem:[#allocation3 + $0x78] sm:$0xff] %vm103, 0.0
      %136 = vst [vmem:[#allocation4] sm:$0xff] 0.0
      %137 = vst [vmem:[#allocation4 + $0x8] sm:$0xff] 0.0
      %138 = vst [vmem:[#allocation4 + $0x10] sm:$0xff] 0.0
      %139 = vst [vmem:[#allocation4 + $0x18] sm:$0xff] 0.0
      %140 = vst [vmem:[#allocation4 + $0x20] sm:$0xff] 0.0
      %141 = vst [vmem:[#allocation4 + $0x28] sm:$0xff] 0.0
      %142 = vst [vmem:[#allocation4 + $0x30] sm:$0xff] 0.0
      %143 = vst [vmem:[#allocation4 + $0x38] sm:$0xff] 0.0
      %144 = vst [vmem:[#allocation4 + $0x40] sm:$0xff] 0.0
      %145 = vst [vmem:[#allocation4 + $0x48] sm:$0xff] 0.0
      %146 = vst [vmem:[#allocation4 + $0x50] sm:$0xff] 0.0
      %147 = vst [vmem:[#allocation4 + $0x58] sm:$0xff] 0.0
      %148 = vst [vmem:[#allocation4 + $0x60] sm:$0xff] 0.0
      %149 = vst [vmem:[#allocation4 + $0x68] sm:$0xff] 0.0
      %150 = vst [vmem:[#allocation4 + $0x70] sm:$0xff] 0.0
      %151 = vst [vmem:[#allocation4 + $0x78] sm:$0xff] 0.0
      %152 = vst [vmem:[#allocation4 + $0x80] sm:$0xff] 0.0
      %153 = vst [vmem:[#allocation4 + $0x88] sm:$0xff] 0.0
      %154 = vst [vmem:[#allocation4 + $0x90] sm:$0xff] 0.0
      %155 = vst [vmem:[#allocation4 + $0x98] sm:$0xff] 0.0
      %156 = vst [vmem:[#allocation4 + $0xa0] sm:$0xff] 0.0
      %157 = vst [vmem:[#allocation4 + $0xa8] sm:$0xff] 0.0
      %158 = vst [vmem:[#allocation4 + $0xb0] sm:$0xff] 0.0
      %159 = vst [vmem:[#allocation4 + $0xb8] sm:$0xff] 0.0
      %160 = vst [vmem:[#allocation4 + $0xc0] sm:$0xff] 0.0
      %161 = vst [vmem:[#allocation4 + $0xc8] sm:$0xff] 0.0
      %162 = vst [vmem:[#allocation4 + $0xd0] sm:$0xff] 0.0
      %163 = vst [vmem:[#allocation4 + $0xd8] sm:$0xff] 0.0
      %164 = vst [vmem:[#allocation4 + $0xe0] sm:$0xff] 0.0
      %165 = vst [vmem:[#allocation4 + $0xe8] sm:$0xff] 0.0
      %166 = vst [vmem:[#allocation4 + $0xf0] sm:$0xff] 0.0
      %167 = vst [vmem:[#allocation4 + $0xf8] sm:$0xff] 0.0
    $region57: #{tpu_custom_call.1} parent=1 // pred_fallthru
      _
    %v168 = vld [vmem:[%s2] sm:$0xff]
    %v169 = vld [vmem:[%s2 + $0x8] sm:$0xff]
    %v170 = vld [vmem:[%s2 + $0x10] sm:$0xff]
    %v171 = vld [vmem:[%s2 + $0x18] sm:$0xff]
    %v172 = vld [vmem:[%s2 + $0x20] sm:$0xff]
    %v173 = vld [vmem:[%s2 + $0x28] sm:$0xff]
    %v174 = vld [vmem:[%s2 + $0x30] sm:$0xff]
    %v175 = vld [vmem:[%s2 + $0x38] sm:$0xff]
    %v176 = vld [vmem:[%s2 + $0x40] sm:$0xff]
    %v177 = vld [vmem:[%s2 + $0x48] sm:$0xff]
    %v178 = vld [vmem:[%s2 + $0x50] sm:$0xff]
    %v179 = vld [vmem:[%s2 + $0x58] sm:$0xff]
    %v180 = vld [vmem:[%s2 + $0x60] sm:$0xff]
    %v181 = vld [vmem:[%s2 + $0x68] sm:$0xff]
    %v182 = vld [vmem:[%s2 + $0x70] sm:$0xff]
    %v183 = vld [vmem:[%s2 + $0x78] sm:$0xff]
    %v184 = vld [vmem:[%s1] sm:$0x1]
    %186 = vset.pattern.permute.xlu0 0
    %187 = vperm.xlu0 %186, %v168
    %v188 = vpop.permute.xlu0 %187
    %191 = vset.pattern.permute.xlu0 0
    %192 = vperm.xlu0 %191, %v169
    %v193 = vpop.permute.xlu0 %192
    %196 = vset.pattern.permute.xlu0 0
    %197 = vperm.xlu0 %196, %v170
    %v198 = vpop.permute.xlu0 %197
    %201 = vset.pattern.permute.xlu0 0
    %202 = vperm.xlu0 %201, %v171
    %v203 = vpop.permute.xlu0 %202
    %206 = vset.pattern.permute.xlu0 0
    %207 = vperm.xlu0 %206, %v172
    %v208 = vpop.permute.xlu0 %207
    %211 = vset.pattern.permute.xlu0 0
    %212 = vperm.xlu0 %211, %v173
    %v213 = vpop.permute.xlu0 %212
    %216 = vset.pattern.permute.xlu0 0
    %217 = vperm.xlu0 %216, %v174
    %v218 = vpop.permute.xlu0 %217
    %221 = vset.pattern.permute.xlu0 0
    %222 = vperm.xlu0 %221, %v175
    %v223 = vpop.permute.xlu0 %222
    %226 = vset.pattern.permute.xlu0 0
    %227 = vperm.xlu0 %226, %v176
    %v228 = vpop.permute.xlu0 %227
    %231 = vset.pattern.permute.xlu0 0
    %232 = vperm.xlu0 %231, %v177
    %v233 = vpop.permute.xlu0 %232
    %236 = vset.pattern.permute.xlu0 0
    %237 = vperm.xlu0 %236, %v178
    %v238 = vpop.permute.xlu0 %237
    %241 = vset.pattern.permute.xlu0 0
    %242 = vperm.xlu0 %241, %v179
    %v243 = vpop.permute.xlu0 %242
    %246 = vset.pattern.permute.xlu0 0
    %247 = vperm.xlu0 %246, %v180
    %v248 = vpop.permute.xlu0 %247
    %251 = vset.pattern.permute.xlu0 0
    %252 = vperm.xlu0 %251, %v181
    %v253 = vpop.permute.xlu0 %252
    %256 = vset.pattern.permute.xlu0 0
    %257 = vperm.xlu0 %256, %v182
    %v258 = vpop.permute.xlu0 %257
    %261 = vset.pattern.permute.xlu0 0
    %262 = vperm.xlu0 %261, %v183
    %v263 = vpop.permute.xlu0 %262
    %v266 = vperm.slane %v184, 0
    %v268 = vadd.f32 %v188, %v266
    %v269 = vadd.f32 %v193, %v266
    %v270 = vadd.f32 %v198, %v266
    %v271 = vadd.f32 %v203, %v266
    %v272 = vadd.f32 %v208, %v266
    %v273 = vadd.f32 %v213, %v266
    %v274 = vadd.f32 %v218, %v266
    %v275 = vadd.f32 %v223, %v266
    %v276 = vadd.f32 %v228, %v266
    %v277 = vadd.f32 %v233, %v266
    %v278 = vadd.f32 %v238, %v266
    %v279 = vadd.f32 %v243, %v266
    %v280 = vadd.f32 %v248, %v266
    %v281 = vadd.f32 %v253, %v266
    %v282 = vadd.f32 %v258, %v266
    %v283 = vadd.f32 %v263, %v266
    %vm284 = vcmp.gt.f32.partialorder %v268, 0.0
    %vm285 = vcmp.gt.f32.partialorder %v269, 0.0
    %vm286 = vcmp.gt.f32.partialorder %v270, 0.0
    %vm287 = vcmp.gt.f32.partialorder %v271, 0.0
    %vm288 = vcmp.gt.f32.partialorder %v272, 0.0
    %vm289 = vcmp.gt.f32.partialorder %v273, 0.0
    %vm290 = vcmp.gt.f32.partialorder %v274, 0.0
    %vm291 = vcmp.gt.f32.partialorder %v275, 0.0
    %vm292 = vcmp.gt.f32.partialorder %v276, 0.0
    %vm293 = vcmp.gt.f32.partialorder %v277, 0.0
    %vm294 = vcmp.gt.f32.partialorder %v278, 0.0
    %vm295 = vcmp.gt.f32.partialorder %v279, 0.0
    %vm296 = vcmp.gt.f32.partialorder %v280, 0.0
    %vm297 = vcmp.gt.f32.partialorder %v281, 0.0
    %vm298 = vcmp.gt.f32.partialorder %v282, 0.0
    %vm299 = vcmp.gt.f32.partialorder %v283, 0.0
    %v300 = vmul.f32 %v268, 0.2
    %v301 = vmul.f32 %v269, 0.2
    %v302 = vmul.f32 %v270, 0.2
    %v303 = vmul.f32 %v271, 0.2
    %v304 = vmul.f32 %v272, 0.2
    %v305 = vmul.f32 %v273, 0.2
    %v306 = vmul.f32 %v274, 0.2
    %v307 = vmul.f32 %v275, 0.2
    %v308 = vmul.f32 %v276, 0.2
    %v309 = vmul.f32 %v277, 0.2
    %v310 = vmul.f32 %v278, 0.2
    %v311 = vmul.f32 %v279, 0.2
    %v312 = vmul.f32 %v280, 0.2
    %v313 = vmul.f32 %v281, 0.2
    %v314 = vmul.f32 %v282, 0.2
    %v315 = vmul.f32 %v283, 0.2
    %v316 = vsel %vm284, %v268, %v300
    %v317 = vsel %vm285, %v269, %v301
    %v318 = vsel %vm286, %v270, %v302
    %v319 = vsel %vm287, %v271, %v303
    %v320 = vsel %vm288, %v272, %v304
    %v321 = vsel %vm289, %v273, %v305
    %v322 = vsel %vm290, %v274, %v306
    %v323 = vsel %vm291, %v275, %v307
    %v324 = vsel %vm292, %v276, %v308
    %v325 = vsel %vm293, %v277, %v309
    %v326 = vsel %vm294, %v278, %v310
    %v327 = vsel %vm295, %v279, %v311
    %v328 = vsel %vm296, %v280, %v312
    %v329 = vsel %vm297, %v281, %v313
    %v330 = vsel %vm298, %v282, %v314
    %v331 = vsel %vm299, %v283, %v315
    %v332 = vld [vmem:[%s3] sm:$0xff]
    %v333 = vld [vmem:[%s3 + $0x8] sm:$0xff]
    %v334 = vld [vmem:[%s3 + $0x10] sm:$0xff]
    %v335 = vld [vmem:[%s3 + $0x18] sm:$0xff]
    %v336 = vunpack.c.0.s8 %v332
    %v337 = vunpack.c.1.s8 %v332
    %v338 = vunpack.c.2.s8 %v332
    %v339 = vunpack.c.3.s8 %v332
    %v340 = vunpack.c.0.s8 %v333
    %v341 = vunpack.c.1.s8 %v333
    %v342 = vunpack.c.2.s8 %v333
    %v343 = vunpack.c.3.s8 %v333
    %v344 = vunpack.c.0.s8 %v334
    %v345 = vunpack.c.1.s8 %v334
    %v346 = vunpack.c.2.s8 %v334
    %v347 = vunpack.c.3.s8 %v334
    %v348 = vunpack.c.0.s8 %v335
    %v349 = vunpack.c.1.s8 %v335
    %v350 = vunpack.c.2.s8 %v335
    %v351 = vunpack.c.3.s8 %v335
    %v352 = vcvt.s32.f32 %v336
    %v353 = vcvt.s32.f32 %v337
    %v354 = vcvt.s32.f32 %v338
    %v355 = vcvt.s32.f32 %v339
    %v356 = vcvt.s32.f32 %v340
    %v357 = vcvt.s32.f32 %v341
    %v358 = vcvt.s32.f32 %v342
    %v359 = vcvt.s32.f32 %v343
    %v360 = vcvt.s32.f32 %v344
    %v361 = vcvt.s32.f32 %v345
    %v362 = vcvt.s32.f32 %v346
    %v363 = vcvt.s32.f32 %v347
    %v364 = vcvt.s32.f32 %v348
    %v365 = vcvt.s32.f32 %v349
    %v366 = vcvt.s32.f32 %v350
    %v367 = vcvt.s32.f32 %v351
    %vm368 = vcmp.ne.f32.partialorder %v352, 0.0
    %vm369 = vcmp.ne.f32.partialorder %v353, 0.0
    %vm370 = vcmp.ne.f32.partialorder %v354, 0.0
    %vm371 = vcmp.ne.f32.partialorder %v355, 0.0
    %vm372 = vcmp.ne.f32.partialorder %v356, 0.0
    %vm373 = vcmp.ne.f32.partialorder %v357, 0.0
    %vm374 = vcmp.ne.f32.partialorder %v358, 0.0
    %vm375 = vcmp.ne.f32.partialorder %v359, 0.0
    %vm376 = vcmp.ne.f32.partialorder %v360, 0.0
    %vm377 = vcmp.ne.f32.partialorder %v361, 0.0
    %vm378 = vcmp.ne.f32.partialorder %v362, 0.0
    %vm379 = vcmp.ne.f32.partialorder %v363, 0.0
    %vm380 = vcmp.ne.f32.partialorder %v364, 0.0
    %vm381 = vcmp.ne.f32.partialorder %v365, 0.0
    %vm382 = vcmp.ne.f32.partialorder %v366, 0.0
    %vm383 = vcmp.ne.f32.partialorder %v367, 0.0
    %v384 = vsel %vm368, %v316, -1e+30
    %v385 = vsel %vm369, %v317, -1e+30
    %v386 = vsel %vm370, %v318, -1e+30
    %v387 = vsel %vm371, %v319, -1e+30
    %v388 = vsel %vm372, %v320, -1e+30
    %v389 = vsel %vm373, %v321, -1e+30
    %v390 = vsel %vm374, %v322, -1e+30
    %v391 = vsel %vm375, %v323, -1e+30
    %v392 = vsel %vm376, %v324, -1e+30
    %v393 = vsel %vm377, %v325, -1e+30
    %v394 = vsel %vm378, %v326, -1e+30
    %v395 = vsel %vm379, %v327, -1e+30
    %v396 = vsel %vm380, %v328, -1e+30
    %v397 = vsel %vm381, %v329, -1e+30
    %v398 = vsel %vm382, %v330, -1e+30
    %v399 = vsel %vm383, %v331, -1e+30
    %v400 = vld [vmem:[#allocation2] sm:$0xff]
    %v401 = vld [vmem:[#allocation2 + $0x8] sm:$0xff]
    %v402 = vld [vmem:[#allocation2 + $0x10] sm:$0xff]
    %v403 = vld [vmem:[#allocation2 + $0x18] sm:$0xff]
    %v404 = vld [vmem:[#allocation2 + $0x20] sm:$0xff]
    %v405 = vld [vmem:[#allocation2 + $0x28] sm:$0xff]
    %v406 = vld [vmem:[#allocation2 + $0x30] sm:$0xff]
    %v407 = vld [vmem:[#allocation2 + $0x38] sm:$0xff]
    %v408 = vld [vmem:[#allocation2 + $0x40] sm:$0xff]
    %v409 = vld [vmem:[#allocation2 + $0x48] sm:$0xff]
    %v410 = vld [vmem:[#allocation2 + $0x50] sm:$0xff]
    %v411 = vld [vmem:[#allocation2 + $0x58] sm:$0xff]
    %v412 = vld [vmem:[#allocation2 + $0x60] sm:$0xff]
    %v413 = vld [vmem:[#allocation2 + $0x68] sm:$0xff]
    %v414 = vld [vmem:[#allocation2 + $0x70] sm:$0xff]
    %v415 = vld [vmem:[#allocation2 + $0x78] sm:$0xff]
    %416 = vmax.xlane.f32.xlu0 %v384
    %v417 = vpop.xlane.xlu0 %416
    %418 = vmax.xlane.f32.xlu0 %v385
    %v419 = vpop.xlane.xlu0 %418
    %420 = vmax.xlane.f32.xlu0 %v386
    %v421 = vpop.xlane.xlu0 %420
    %422 = vmax.xlane.f32.xlu0 %v387
    %v423 = vpop.xlane.xlu0 %422
    %424 = vmax.xlane.f32.xlu0 %v388
    %v425 = vpop.xlane.xlu0 %424
    %426 = vmax.xlane.f32.xlu0 %v389
    %v427 = vpop.xlane.xlu0 %426
    %428 = vmax.xlane.f32.xlu0 %v390
    %v429 = vpop.xlane.xlu0 %428
    %430 = vmax.xlane.f32.xlu0 %v391
    %v431 = vpop.xlane.xlu0 %430
    %432 = vmax.xlane.f32.xlu0 %v392
    %v433 = vpop.xlane.xlu0 %432
    %434 = vmax.xlane.f32.xlu0 %v393
    %v435 = vpop.xlane.xlu0 %434
    %436 = vmax.xlane.f32.xlu0 %v394
    %v437 = vpop.xlane.xlu0 %436
    %438 = vmax.xlane.f32.xlu0 %v395
    %v439 = vpop.xlane.xlu0 %438
    %440 = vmax.xlane.f32.xlu0 %v396
    %v441 = vpop.xlane.xlu0 %440
    %442 = vmax.xlane.f32.xlu0 %v397
    %v443 = vpop.xlane.xlu0 %442
    %444 = vmax.xlane.f32.xlu0 %v398
    %v445 = vpop.xlane.xlu0 %444
    %446 = vmax.xlane.f32.xlu0 %v399
    %v447 = vpop.xlane.xlu0 %446
    %v448 = vmax.f32 %v400, %v417
    %v449 = vmax.f32 %v401, %v419
    %v450 = vmax.f32 %v402, %v421
    %v451 = vmax.f32 %v403, %v423
    %v452 = vmax.f32 %v404, %v425
    %v453 = vmax.f32 %v405, %v427
    %v454 = vmax.f32 %v406, %v429
    %v455 = vmax.f32 %v407, %v431
    %v456 = vmax.f32 %v408, %v433
    %v457 = vmax.f32 %v409, %v435
    %v458 = vmax.f32 %v410, %v437
    %v459 = vmax.f32 %v411, %v439
    %v460 = vmax.f32 %v412, %v441
    %v461 = vmax.f32 %v413, %v443
    %v462 = vmax.f32 %v414, %v445
    %v463 = vmax.f32 %v415, %v447
    %v464 = vsub.f32 %v400, %v448
    %v465 = vsub.f32 %v401, %v449
    %v466 = vsub.f32 %v402, %v450
    %v467 = vsub.f32 %v403, %v451
    %v468 = vsub.f32 %v404, %v452
    %v469 = vsub.f32 %v405, %v453
    %v470 = vsub.f32 %v406, %v454
    %v471 = vsub.f32 %v407, %v455
    %v472 = vsub.f32 %v408, %v456
    %v473 = vsub.f32 %v409, %v457
    %v474 = vsub.f32 %v410, %v458
    %v475 = vsub.f32 %v411, %v459
    %v476 = vsub.f32 %v412, %v460
    %v477 = vsub.f32 %v413, %v461
    %v478 = vsub.f32 %v414, %v462
    %v479 = vsub.f32 %v415, %v463
    %v480 = vmul.f32 %v464, 1.442695
    %v481 = vpow.pop %v480
    %v482 = vmul.f32 %v465, 1.442695
    %v483 = vpow.pop %v482
    %v484 = vmul.f32 %v466, 1.442695
    %v485 = vpow.pop %v484
    %v486 = vmul.f32 %v467, 1.442695
    %v487 = vpow.pop %v486
    %v488 = vmul.f32 %v468, 1.442695
    %v489 = vpow.pop %v488
    %v490 = vmul.f32 %v469, 1.442695
    %v491 = vpow.pop %v490
    %v492 = vmul.f32 %v470, 1.442695
    %v493 = vpow.pop %v492
    %v494 = vmul.f32 %v471, 1.442695
    %v495 = vpow.pop %v494
    %v496 = vmul.f32 %v472, 1.442695
    %v497 = vpow.pop %v496
    %v498 = vmul.f32 %v473, 1.442695
    %v499 = vpow.pop %v498
    %v500 = vmul.f32 %v474, 1.442695
    %v501 = vpow.pop %v500
    %v502 = vmul.f32 %v475, 1.442695
    %v503 = vpow.pop %v502
    %v504 = vmul.f32 %v476, 1.442695
    %v505 = vpow.pop %v504
    %v506 = vmul.f32 %v477, 1.442695
    %v507 = vpow.pop %v506
    %v508 = vmul.f32 %v478, 1.442695
    %v509 = vpow.pop %v508
    %v510 = vmul.f32 %v479, 1.442695
    %v511 = vpow.pop %v510
    %513 = vset.pattern.permute.xlu0 0
    %514 = vperm.xlu0 %513, %v448
    %v515 = vpop.permute.xlu0 %514
    %518 = vset.pattern.permute.xlu0 0
    %519 = vperm.xlu0 %518, %v449
    %v520 = vpop.permute.xlu0 %519
    %523 = vset.pattern.permute.xlu0 0
    %524 = vperm.xlu0 %523, %v450
    %v525 = vpop.permute.xlu0 %524
    %528 = vset.pattern.permute.xlu0 0
    %529 = vperm.xlu0 %528, %v451
    %v530 = vpop.permute.xlu0 %529
    %533 = vset.pattern.permute.xlu0 0
    %534 = vperm.xlu0 %533, %v452
    %v535 = vpop.permute.xlu0 %534
    %538 = vset.pattern.permute.xlu0 0
    %539 = vperm.xlu0 %538, %v453
    %v540 = vpop.permute.xlu0 %539
    %543 = vset.pattern.permute.xlu0 0
    %544 = vperm.xlu0 %543, %v454
    %v545 = vpop.permute.xlu0 %544
    %548 = vset.pattern.permute.xlu0 0
    %549 = vperm.xlu0 %548, %v455
    %v550 = vpop.permute.xlu0 %549
    %553 = vset.pattern.permute.xlu0 0
    %554 = vperm.xlu0 %553, %v456
    %v555 = vpop.permute.xlu0 %554
    %558 = vset.pattern.permute.xlu0 0
    %559 = vperm.xlu0 %558, %v457
    %v560 = vpop.permute.xlu0 %559
    %563 = vset.pattern.permute.xlu0 0
    %564 = vperm.xlu0 %563, %v458
    %v565 = vpop.permute.xlu0 %564
    %568 = vset.pattern.permute.xlu0 0
    %569 = vperm.xlu0 %568, %v459
    %v570 = vpop.permute.xlu0 %569
    %573 = vset.pattern.permute.xlu0 0
    %574 = vperm.xlu0 %573, %v460
    %v575 = vpop.permute.xlu0 %574
    %578 = vset.pattern.permute.xlu0 0
    %579 = vperm.xlu0 %578, %v461
    %v580 = vpop.permute.xlu0 %579
    %583 = vset.pattern.permute.xlu0 0
    %584 = vperm.xlu0 %583, %v462
    %v585 = vpop.permute.xlu0 %584
    %588 = vset.pattern.permute.xlu0 0
    %589 = vperm.xlu0 %588, %v463
    %v590 = vpop.permute.xlu0 %589
    %v592 = vsub.f32 %v384, %v515
    %v593 = vsub.f32 %v385, %v520
    %v594 = vsub.f32 %v386, %v525
    %v595 = vsub.f32 %v387, %v530
    %v596 = vsub.f32 %v388, %v535
    %v597 = vsub.f32 %v389, %v540
    %v598 = vsub.f32 %v390, %v545
    %v599 = vsub.f32 %v391, %v550
    %v600 = vsub.f32 %v392, %v555
    %v601 = vsub.f32 %v393, %v560
    %v602 = vsub.f32 %v394, %v565
    %v603 = vsub.f32 %v395, %v570
    %v604 = vsub.f32 %v396, %v575
    %v605 = vsub.f32 %v397, %v580
    %v606 = vsub.f32 %v398, %v585
    %v607 = vsub.f32 %v399, %v590
    %v608 = vmul.f32 %v592, 1.442695
    %v609 = vpow.pop %v608
    %v610 = vmul.f32 %v593, 1.442695
    %v611 = vpow.pop %v610
    %v612 = vmul.f32 %v594, 1.442695
    %v613 = vpow.pop %v612
    %v614 = vmul.f32 %v595, 1.442695
    %v615 = vpow.pop %v614
    %v616 = vmul.f32 %v596, 1.442695
    %v617 = vpow.pop %v616
    %v618 = vmul.f32 %v597, 1.442695
    %v619 = vpow.pop %v618
    %v620 = vmul.f32 %v598, 1.442695
    %v621 = vpow.pop %v620
    %v622 = vmul.f32 %v599, 1.442695
    %v623 = vpow.pop %v622
    %v624 = vmul.f32 %v600, 1.442695
    %v625 = vpow.pop %v624
    %v626 = vmul.f32 %v601, 1.442695
    %v627 = vpow.pop %v626
    %v628 = vmul.f32 %v602, 1.442695
    %v629 = vpow.pop %v628
    %v630 = vmul.f32 %v603, 1.442695
    %v631 = vpow.pop %v630
    %v632 = vmul.f32 %v604, 1.442695
    %v633 = vpow.pop %v632
    %v634 = vmul.f32 %v605, 1.442695
    %v635 = vpow.pop %v634
    %v636 = vmul.f32 %v606, 1.442695
    %v637 = vpow.pop %v636
    %v638 = vmul.f32 %v607, 1.442695
    %v639 = vpow.pop %v638
    %v640 = vld [vmem:[#allocation3] sm:$0xff]
    %v641 = vld [vmem:[#allocation3 + $0x8] sm:$0xff]
    %v642 = vld [vmem:[#allocation3 + $0x10] sm:$0xff]
    %v643 = vld [vmem:[#allocation3 + $0x18] sm:$0xff]
    %v644 = vld [vmem:[#allocation3 + $0x20] sm:$0xff]
    %v645 = vld [vmem:[#allocation3 + $0x28] sm:$0xff]
    %v646 = vld [vmem:[#allocation3 + $0x30] sm:$0xff]
    %v647 = vld [vmem:[#allocation3 + $0x38] sm:$0xff]
    %v648 = vld [vmem:[#allocation3 + $0x40] sm:$0xff]
    %v649 = vld [vmem:[#allocation3 + $0x48] sm:$0xff]
    %v650 = vld [vmem:[#allocation3 + $0x50] sm:$0xff]
    %v651 = vld [vmem:[#allocation3 + $0x58] sm:$0xff]
    %v652 = vld [vmem:[#allocation3 + $0x60] sm:$0xff]
    %v653 = vld [vmem:[#allocation3 + $0x68] sm:$0xff]
    %v654 = vld [vmem:[#allocation3 + $0x70] sm:$0xff]
    %v655 = vld [vmem:[#allocation3 + $0x78] sm:$0xff]
    %v656 = vmul.f32 %v481, %v640
    %v657 = vmul.f32 %v483, %v641
    %v658 = vmul.f32 %v485, %v642
    %v659 = vmul.f32 %v487, %v643
    %v660 = vmul.f32 %v489, %v644
    %v661 = vmul.f32 %v491, %v645
    %v662 = vmul.f32 %v493, %v646
    %v663 = vmul.f32 %v495, %v647
    %v664 = vmul.f32 %v497, %v648
    %v665 = vmul.f32 %v499, %v649
    %v666 = vmul.f32 %v501, %v650
    %v667 = vmul.f32 %v503, %v651
    %v668 = vmul.f32 %v505, %v652
    %v669 = vmul.f32 %v507, %v653
    %v670 = vmul.f32 %v509, %v654
    %v671 = vmul.f32 %v511, %v655
    %672 = vadd.xlane.f32.xlu0 %v609
    %v673 = vpop.xlane.xlu0 %672
    %674 = vadd.xlane.f32.xlu0 %v611
    %v675 = vpop.xlane.xlu0 %674
    %676 = vadd.xlane.f32.xlu0 %v613
    %v677 = vpop.xlane.xlu0 %676
    %678 = vadd.xlane.f32.xlu0 %v615
    %v679 = vpop.xlane.xlu0 %678
    %680 = vadd.xlane.f32.xlu0 %v617
    %v681 = vpop.xlane.xlu0 %680
    %682 = vadd.xlane.f32.xlu0 %v619
    %v683 = vpop.xlane.xlu0 %682
    %684 = vadd.xlane.f32.xlu0 %v621
    %v685 = vpop.xlane.xlu0 %684
    %686 = vadd.xlane.f32.xlu0 %v623
    %v687 = vpop.xlane.xlu0 %686
    %688 = vadd.xlane.f32.xlu0 %v625
    %v689 = vpop.xlane.xlu0 %688
    %690 = vadd.xlane.f32.xlu0 %v627
    %v691 = vpop.xlane.xlu0 %690
    %692 = vadd.xlane.f32.xlu0 %v629
    %v693 = vpop.xlane.xlu0 %692
    %694 = vadd.xlane.f32.xlu0 %v631
    %v695 = vpop.xlane.xlu0 %694
    %696 = vadd.xlane.f32.xlu0 %v633
    %v697 = vpop.xlane.xlu0 %696
    %698 = vadd.xlane.f32.xlu0 %v635
    %v699 = vpop.xlane.xlu0 %698
    %700 = vadd.xlane.f32.xlu0 %v637
    %v701 = vpop.xlane.xlu0 %700
    %702 = vadd.xlane.f32.xlu0 %v639
    %v703 = vpop.xlane.xlu0 %702
    %v704 = vadd.f32 %v656, %v673
    %v705 = vadd.f32 %v657, %v675
    %v706 = vadd.f32 %v658, %v677
    %v707 = vadd.f32 %v659, %v679
    %v708 = vadd.f32 %v660, %v681
    %v709 = vadd.f32 %v661, %v683
    %v710 = vadd.f32 %v662, %v685
    %v711 = vadd.f32 %v663, %v687
    %v712 = vadd.f32 %v664, %v689
    %v713 = vadd.f32 %v665, %v691
    %v714 = vadd.f32 %v666, %v693
    %v715 = vadd.f32 %v667, %v695
    %v716 = vadd.f32 %v668, %v697
    %v717 = vadd.f32 %v669, %v699
    %v718 = vadd.f32 %v670, %v701
    %v719 = vadd.f32 %v671, %v703
    %vm720 = vcmask 7168
    %721 = vst.msk [vmem:[#allocation3] sm:$0xff] %vm720, %v704
    %722 = vst.msk [vmem:[#allocation3 + $0x8] sm:$0xff] %vm720, %v705
    %723 = vst.msk [vmem:[#allocation3 + $0x10] sm:$0xff] %vm720, %v706
    %724 = vst.msk [vmem:[#allocation3 + $0x18] sm:$0xff] %vm720, %v707
    %725 = vst.msk [vmem:[#allocation3 + $0x20] sm:$0xff] %vm720, %v708
    %726 = vst.msk [vmem:[#allocation3 + $0x28] sm:$0xff] %vm720, %v709
    %727 = vst.msk [vmem:[#allocation3 + $0x30] sm:$0xff] %vm720, %v710
    %728 = vst.msk [vmem:[#allocation3 + $0x38] sm:$0xff] %vm720, %v711
    %729 = vst.msk [vmem:[#allocation3 + $0x40] sm:$0xff] %vm720, %v712
    %730 = vst.msk [vmem:[#allocation3 + $0x48] sm:$0xff] %vm720, %v713
    %731 = vst.msk [vmem:[#allocation3 + $0x50] sm:$0xff] %vm720, %v714
    %732 = vst.msk [vmem:[#allocation3 + $0x58] sm:$0xff] %vm720, %v715
    %733 = vst.msk [vmem:[#allocation3 + $0x60] sm:$0xff] %vm720, %v716
    %734 = vst.msk [vmem:[#allocation3 + $0x68] sm:$0xff] %vm720, %v717
    %735 = vst.msk [vmem:[#allocation3 + $0x70] sm:$0xff] %vm720, %v718
    %736 = vst.msk [vmem:[#allocation3 + $0x78] sm:$0xff] %vm720, %v719
    %v737 = vld [vmem:[#allocation4] sm:$0xff]
    %v738 = vld [vmem:[#allocation4 + $0x8] sm:$0xff]
    %v739 = vld [vmem:[#allocation4 + $0x10] sm:$0xff]
    %v740 = vld [vmem:[#allocation4 + $0x18] sm:$0xff]
    %v741 = vld [vmem:[#allocation4 + $0x20] sm:$0xff]
    %v742 = vld [vmem:[#allocation4 + $0x28] sm:$0xff]
    %v743 = vld [vmem:[#allocation4 + $0x30] sm:$0xff]
    %v744 = vld [vmem:[#allocation4 + $0x38] sm:$0xff]
    %v745 = vld [vmem:[#allocation4 + $0x40] sm:$0xff]
    %v746 = vld [vmem:[#allocation4 + $0x48] sm:$0xff]
    %v747 = vld [vmem:[#allocation4 + $0x50] sm:$0xff]
    %v748 = vld [vmem:[#allocation4 + $0x58] sm:$0xff]
    %v749 = vld [vmem:[#allocation4 + $0x60] sm:$0xff]
    %v750 = vld [vmem:[#allocation4 + $0x68] sm:$0xff]
    %v751 = vld [vmem:[#allocation4 + $0x70] sm:$0xff]
    %v752 = vld [vmem:[#allocation4 + $0x78] sm:$0xff]
    %v753 = vld [vmem:[#allocation4 + $0x80] sm:$0xff]
    %v754 = vld [vmem:[#allocation4 + $0x88] sm:$0xff]
    %v755 = vld [vmem:[#allocation4 + $0x90] sm:$0xff]
    %v756 = vld [vmem:[#allocation4 + $0x98] sm:$0xff]
    %v757 = vld [vmem:[#allocation4 + $0xa0] sm:$0xff]
    %v758 = vld [vmem:[#allocation4 + $0xa8] sm:$0xff]
    %v759 = vld [vmem:[#allocation4 + $0xb0] sm:$0xff]
    %v760 = vld [vmem:[#allocation4 + $0xb8] sm:$0xff]
    %v761 = vld [vmem:[#allocation4 + $0xc0] sm:$0xff]
    %v762 = vld [vmem:[#allocation4 + $0xc8] sm:$0xff]
    %v763 = vld [vmem:[#allocation4 + $0xd0] sm:$0xff]
    %v764 = vld [vmem:[#allocation4 + $0xd8] sm:$0xff]
    %v765 = vld [vmem:[#allocation4 + $0xe0] sm:$0xff]
    %v766 = vld [vmem:[#allocation4 + $0xe8] sm:$0xff]
    %v767 = vld [vmem:[#allocation4 + $0xf0] sm:$0xff]
    %v768 = vld [vmem:[#allocation4 + $0xf8] sm:$0xff]
    %770 = vset.pattern.permute.xlu0 0
    %771 = vperm.xlu0 %770, %v481
    %v772 = vpop.permute.xlu0 %771
    %775 = vset.pattern.permute.xlu0 0
    %776 = vperm.xlu0 %775, %v483
    %v777 = vpop.permute.xlu0 %776
    %780 = vset.pattern.permute.xlu0 0
    %781 = vperm.xlu0 %780, %v485
    %v782 = vpop.permute.xlu0 %781
    %785 = vset.pattern.permute.xlu0 0
    %786 = vperm.xlu0 %785, %v487
    %v787 = vpop.permute.xlu0 %786
    %790 = vset.pattern.permute.xlu0 0
    %791 = vperm.xlu0 %790, %v489
    %v792 = vpop.permute.xlu0 %791
    %795 = vset.pattern.permute.xlu0 0
    %796 = vperm.xlu0 %795, %v491
    %v797 = vpop.permute.xlu0 %796
    %800 = vset.pattern.permute.xlu0 0
    %801 = vperm.xlu0 %800, %v493
    %v802 = vpop.permute.xlu0 %801
    %805 = vset.pattern.permute.xlu0 0
    %806 = vperm.xlu0 %805, %v495
    %v807 = vpop.permute.xlu0 %806
    %810 = vset.pattern.permute.xlu0 0
    %811 = vperm.xlu0 %810, %v497
    %v812 = vpop.permute.xlu0 %811
    %815 = vset.pattern.permute.xlu0 0
    %816 = vperm.xlu0 %815, %v499
    %v817 = vpop.permute.xlu0 %816
    %820 = vset.pattern.permute.xlu0 0
    %821 = vperm.xlu0 %820, %v501
    %v822 = vpop.permute.xlu0 %821
    %825 = vset.pattern.permute.xlu0 0
    %826 = vperm.xlu0 %825, %v503
    %v827 = vpop.permute.xlu0 %826
    %830 = vset.pattern.permute.xlu0 0
    %831 = vperm.xlu0 %830, %v505
    %v832 = vpop.permute.xlu0 %831
    %835 = vset.pattern.permute.xlu0 0
    %836 = vperm.xlu0 %835, %v507
    %v837 = vpop.permute.xlu0 %836
    %840 = vset.pattern.permute.xlu0 0
    %841 = vperm.xlu0 %840, %v509
    %v842 = vpop.permute.xlu0 %841
    %845 = vset.pattern.permute.xlu0 0
    %846 = vperm.xlu0 %845, %v511
    %v847 = vpop.permute.xlu0 %846
    %v849 = vmul.f32 %v772, %v737
    %v850 = vmul.f32 %v772, %v738
    %v851 = vmul.f32 %v777, %v739
    %v852 = vmul.f32 %v777, %v740
    %v853 = vmul.f32 %v782, %v741
    %v854 = vmul.f32 %v782, %v742
    %v855 = vmul.f32 %v787, %v743
    %v856 = vmul.f32 %v787, %v744
    %v857 = vmul.f32 %v792, %v745
    %v858 = vmul.f32 %v792, %v746
    %v859 = vmul.f32 %v797, %v747
    %v860 = vmul.f32 %v797, %v748
    %v861 = vmul.f32 %v802, %v749
    %v862 = vmul.f32 %v802, %v750
    %v863 = vmul.f32 %v807, %v751
    %v864 = vmul.f32 %v807, %v752
    %v865 = vmul.f32 %v812, %v753
    %v866 = vmul.f32 %v812, %v754
    %v867 = vmul.f32 %v817, %v755
    %v868 = vmul.f32 %v817, %v756
    %v869 = vmul.f32 %v822, %v757
    %v870 = vmul.f32 %v822, %v758
    %v871 = vmul.f32 %v827, %v759
    %v872 = vmul.f32 %v827, %v760
    %v873 = vmul.f32 %v832, %v761
    %v874 = vmul.f32 %v832, %v762
    %v875 = vmul.f32 %v837, %v763
    %v876 = vmul.f32 %v837, %v764
    %v877 = vmul.f32 %v842, %v765
    %v878 = vmul.f32 %v842, %v766
    %v879 = vmul.f32 %v847, %v767
    %v880 = vmul.f32 %v847, %v768
    %v881 = vpack.c.bf16 %v611, %v609
    %v882 = vpack.c.bf16 %v615, %v613
    %v883 = vpack.c.bf16 %v619, %v617
    %v884 = vpack.c.bf16 %v623, %v621
    %v885 = vpack.c.bf16 %v627, %v625
    %v886 = vpack.c.bf16 %v631, %v629
    %v887 = vpack.c.bf16 %v635, %v633
    %v888 = vpack.c.bf16 %v639, %v637
    %v889 = vld [vmem:[%s0] sm:$0xff]
    %v890 = vld [vmem:[%s0 + $0x8] sm:$0xff]
    %v891 = vld [vmem:[%s0 + $0x10] sm:$0xff]
    %v892 = vld [vmem:[%s0 + $0x18] sm:$0xff]
    %v893 = vld [vmem:[%s0 + $0x20] sm:$0xff]
    %v894 = vld [vmem:[%s0 + $0x28] sm:$0xff]
    %v895 = vld [vmem:[%s0 + $0x30] sm:$0xff]
    %v896 = vld [vmem:[%s0 + $0x38] sm:$0xff]
    %v897 = vld [vmem:[%s0 + $0x40] sm:$0xff]
    %v898 = vld [vmem:[%s0 + $0x48] sm:$0xff]
    %v899 = vld [vmem:[%s0 + $0x50] sm:$0xff]
    %v900 = vld [vmem:[%s0 + $0x58] sm:$0xff]
    %v901 = vld [vmem:[%s0 + $0x60] sm:$0xff]
    %v902 = vld [vmem:[%s0 + $0x68] sm:$0xff]
    %v903 = vld [vmem:[%s0 + $0x70] sm:$0xff]
    %v904 = vld [vmem:[%s0 + $0x78] sm:$0xff]
    %v921 = vunpack.c.l.b16 %v889
    %v922 = vunpack.c.h.b16 %v889
    %v923 = vunpack.c.l.b16 %v890
    %v924 = vunpack.c.h.b16 %v890
    %v925 = vunpack.c.l.b16 %v891
    %v926 = vunpack.c.h.b16 %v891
    %v927 = vunpack.c.l.b16 %v892
    %v928 = vunpack.c.h.b16 %v892
    %v929 = vunpack.c.l.b16 %v893
    %v930 = vunpack.c.h.b16 %v893
    %v931 = vunpack.c.l.b16 %v894
    %v932 = vunpack.c.h.b16 %v894
    %v933 = vunpack.c.l.b16 %v895
    %v934 = vunpack.c.h.b16 %v895
    %v935 = vunpack.c.l.b16 %v896
    %v936 = vunpack.c.h.b16 %v896
    %v937 = vunpack.c.l.b16 %v897
    %v938 = vunpack.c.h.b16 %v897
    %v939 = vunpack.c.l.b16 %v898
    %v940 = vunpack.c.h.b16 %v898
    %v941 = vunpack.c.l.b16 %v899
    %v942 = vunpack.c.h.b16 %v899
    %v943 = vunpack.c.l.b16 %v900
    %v944 = vunpack.c.h.b16 %v900
    %v945 = vunpack.c.l.b16 %v901
    %v946 = vunpack.c.h.b16 %v901
    %v947 = vunpack.c.l.b16 %v902
    %v948 = vunpack.c.h.b16 %v902
    %v949 = vunpack.c.l.b16 %v903
    %v950 = vunpack.c.h.b16 %v903
    %v951 = vunpack.c.l.b16 %v904
    %v952 = vunpack.c.h.b16 %v904
    %v953 = vpack.c.b16 %v923, %v921
    %v954 = vpack.c.b16 %v924, %v922
    %v955 = vpack.c.b16 %v927, %v925
    %v956 = vpack.c.b16 %v928, %v926
    %v957 = vpack.c.b16 %v931, %v929
    %v958 = vpack.c.b16 %v932, %v930
    %v959 = vpack.c.b16 %v935, %v933
    %v960 = vpack.c.b16 %v936, %v934
    %v961 = vpack.c.b16 %v939, %v937
    %v962 = vpack.c.b16 %v940, %v938
    %v963 = vpack.c.b16 %v943, %v941
    %v964 = vpack.c.b16 %v944, %v942
    %v965 = vpack.c.b16 %v947, %v945
    %v966 = vpack.c.b16 %v948, %v946
    %v967 = vpack.c.b16 %v951, %v949
    %v968 = vpack.c.b16 %v952, %v950
    %985 = vmatpush.bf16.msra.mxu0 %v967
    %986 = vmatpush.bf16.msra.mxu0 %v965
    %987 = vmatpush.bf16.msra.mxu0 %v963
    %988 = vmatpush.bf16.msra.mxu0 %v961
    %989 = vmatpush.bf16.msra.mxu0 %v959
    %990 = vmatpush.bf16.msra.mxu0 %v957
    %991 = vmatpush.bf16.msra.mxu0 %v955
    %992 = vmatpush.bf16.msra.mxu0 %v953
    %993 = vmatmul.bf16.gmra.mxu0 %v881
    %v994 = vpop.f32.mrf.mxu0
    %v995 = vadd.f32 0.0, %v994
    %v996 = vpop.f32.mrf.mxu0
    %v997 = vadd.f32 0.0, %v996
    %998 = vmatmul.bf16.gmra.mxu0 %v882
    %v999 = vpop.f32.mrf.mxu0
    %v1000 = vadd.f32 0.0, %v999
    %v1001 = vpop.f32.mrf.mxu0
    %v1002 = vadd.f32 0.0, %v1001
    %1003 = vmatmul.bf16.gmra.mxu0 %v883
    %v1004 = vpop.f32.mrf.mxu0
    %v1005 = vadd.f32 0.0, %v1004
    %v1006 = vpop.f32.mrf.mxu0
    %v1007 = vadd.f32 0.0, %v1006
    %1008 = vmatmul.bf16.gmra.mxu0 %v884
    %v1009 = vpop.f32.mrf.mxu0
    %v1010 = vadd.f32 0.0, %v1009
    %v1011 = vpop.f32.mrf.mxu0
    %v1012 = vadd.f32 0.0, %v1011
    %1013 = vmatmul.bf16.gmra.mxu0 %v885
    %v1014 = vpop.f32.mrf.mxu0
    %v1015 = vadd.f32 0.0, %v1014
    %v1016 = vpop.f32.mrf.mxu0
    %v1017 = vadd.f32 0.0, %v1016
    %1018 = vmatmul.bf16.gmra.mxu0 %v886
    %v1019 = vpop.f32.mrf.mxu0
    %v1020 = vadd.f32 0.0, %v1019
    %v1021 = vpop.f32.mrf.mxu0
    %v1022 = vadd.f32 0.0, %v1021
    %1023 = vmatmul.bf16.gmra.mxu0 %v887
    %v1024 = vpop.f32.mrf.mxu0
    %v1025 = vadd.f32 0.0, %v1024
    %v1026 = vpop.f32.mrf.mxu0
    %v1027 = vadd.f32 0.0, %v1026
    %1028 = vmatmul.bf16.gmra.mxu0 %v888
    %v1029 = vpop.f32.mrf.mxu0
    %v1030 = vadd.f32 0.0, %v1029
    %v1031 = vpop.f32.mrf.mxu0
    %v1032 = vadd.f32 0.0, %v1031
    %1033 = vdwg.mxu0
    %1034 = vmatpush.bf16.msra.mxu0 %v968
    %1035 = vmatpush.bf16.msra.mxu0 %v966
    %1036 = vmatpush.bf16.msra.mxu0 %v964
    %1037 = vmatpush.bf16.msra.mxu0 %v962
    %1038 = vmatpush.bf16.msra.mxu0 %v960
    %1039 = vmatpush.bf16.msra.mxu0 %v958
    %1040 = vmatpush.bf16.msra.mxu0 %v956
    %1041 = vmatpush.bf16.msra.mxu0 %v954
    %1042 = vmatmul.bf16.gmra.mxu0 %v881
    %v1043 = vpop.f32.mrf.mxu0
    %v1044 = vadd.f32 0.0, %v1043
    %v1045 = vpop.f32.mrf.mxu0
    %v1046 = vadd.f32 0.0, %v1045
    %1047 = vmatmul.bf16.gmra.mxu0 %v882
    %v1048 = vpop.f32.mrf.mxu0
    %v1049 = vadd.f32 0.0, %v1048
    %v1050 = vpop.f32.mrf.mxu0
    %v1051 = vadd.f32 0.0, %v1050
    %1052 = vmatmul.bf16.gmra.mxu0 %v883
    %v1053 = vpop.f32.mrf.mxu0
    %v1054 = vadd.f32 0.0, %v1053
    %v1055 = vpop.f32.mrf.mxu0
    %v1056 = vadd.f32 0.0, %v1055
    %1057 = vmatmul.bf16.gmra.mxu0 %v884
    %v1058 = vpop.f32.mrf.mxu0
    %v1059 = vadd.f32 0.0, %v1058
    %v1060 = vpop.f32.mrf.mxu0
    %v1061 = vadd.f32 0.0, %v1060
    %1062 = vmatmul.bf16.gmra.mxu0 %v885
    %v1063 = vpop.f32.mrf.mxu0
    %v1064 = vadd.f32 0.0, %v1063
    %v1065 = vpop.f32.mrf.mxu0
    %v1066 = vadd.f32 0.0, %v1065
    %1067 = vmatmul.bf16.gmra.mxu0 %v886
    %v1068 = vpop.f32.mrf.mxu0
    %v1069 = vadd.f32 0.0, %v1068
    %v1070 = vpop.f32.mrf.mxu0
    %v1071 = vadd.f32 0.0, %v1070
    %1072 = vmatmul.bf16.gmra.mxu0 %v887
    %v1073 = vpop.f32.mrf.mxu0
    %v1074 = vadd.f32 0.0, %v1073
    %v1075 = vpop.f32.mrf.mxu0
    %v1076 = vadd.f32 0.0, %v1075
    %1077 = vmatmul.bf16.gmra.mxu0 %v888
    %v1078 = vpop.f32.mrf.mxu0
    %v1079 = vadd.f32 0.0, %v1078
    %v1080 = vpop.f32.mrf.mxu0
    %v1081 = vadd.f32 0.0, %v1080
    %1082 = vdwg.mxu0
    %v1083 = vadd.f32 %v849, %v995
    %v1084 = vadd.f32 %v850, %v1044
    %v1085 = vadd.f32 %v851, %v997
    %v1086 = vadd.f32 %v852, %v1046
    %v1087 = vadd.f32 %v853, %v1000
    %v1088 = vadd.f32 %v854, %v1049
    %v1089 = vadd.f32 %v855, %v1002
    %v1090 = vadd.f32 %v856, %v1051
    %v1091 = vadd.f32 %v857, %v1005
    %v1092 = vadd.f32 %v858, %v1054
    %v1093 = vadd.f32 %v859, %v1007
    %v1094 = vadd.f32 %v860, %v1056
    %v1095 = vadd.f32 %v861, %v1010
    %v1096 = vadd.f32 %v862, %v1059
    %v1097 = vadd.f32 %v863, %v1012
    %v1098 = vadd.f32 %v864, %v1061
    %v1099 = vadd.f32 %v865, %v1015
    %v1100 = vadd.f32 %v866, %v1064
    %v1101 = vadd.f32 %v867, %v1017
    %v1102 = vadd.f32 %v868, %v1066
    %v1103 = vadd.f32 %v869, %v1020
    %v1104 = vadd.f32 %v870, %v1069
    %v1105 = vadd.f32 %v871, %v1022
    %v1106 = vadd.f32 %v872, %v1071
    %v1107 = vadd.f32 %v873, %v1025
    %v1108 = vadd.f32 %v874, %v1074
    %v1109 = vadd.f32 %v875, %v1027
    %v1110 = vadd.f32 %v876, %v1076
    %v1111 = vadd.f32 %v877, %v1030
    %v1112 = vadd.f32 %v878, %v1079
    %v1113 = vadd.f32 %v879, %v1032
    %v1114 = vadd.f32 %v880, %v1081
    %1115 = vst [vmem:[#allocation4] sm:$0xff] %v1083
    %1116 = vst [vmem:[#allocation4 + $0x8] sm:$0xff] %v1084
    %1117 = vst [vmem:[#allocation4 + $0x10] sm:$0xff] %v1085
    %1118 = vst [vmem:[#allocation4 + $0x18] sm:$0xff] %v1086
    %1119 = vst [vmem:[#allocation4 + $0x20] sm:$0xff] %v1087
    %1120 = vst [vmem:[#allocation4 + $0x28] sm:$0xff] %v1088
    %1121 = vst [vmem:[#allocation4 + $0x30] sm:$0xff] %v1089
    %1122 = vst [vmem:[#allocation4 + $0x38] sm:$0xff] %v1090
    %1123 = vst [vmem:[#allocation4 + $0x40] sm:$0xff] %v1091
    %1124 = vst [vmem:[#allocation4 + $0x48] sm:$0xff] %v1092
    %1125 = vst [vmem:[#allocation4 + $0x50] sm:$0xff] %v1093
    %1126 = vst [vmem:[#allocation4 + $0x58] sm:$0xff] %v1094
    %1127 = vst [vmem:[#allocation4 + $0x60] sm:$0xff] %v1095
    %1128 = vst [vmem:[#allocation4 + $0x68] sm:$0xff] %v1096
    %1129 = vst [vmem:[#allocation4 + $0x70] sm:$0xff] %v1097
    %1130 = vst [vmem:[#allocation4 + $0x78] sm:$0xff] %v1098
    %1131 = vst [vmem:[#allocation4 + $0x80] sm:$0xff] %v1099
    %1132 = vst [vmem:[#allocation4 + $0x88] sm:$0xff] %v1100
    %1133 = vst [vmem:[#allocation4 + $0x90] sm:$0xff] %v1101
    %1134 = vst [vmem:[#allocation4 + $0x98] sm:$0xff] %v1102
    %1135 = vst [vmem:[#allocation4 + $0xa0] sm:$0xff] %v1103
    %1136 = vst [vmem:[#allocation4 + $0xa8] sm:$0xff] %v1104
    %1137 = vst [vmem:[#allocation4 + $0xb0] sm:$0xff] %v1105
    %1138 = vst [vmem:[#allocation4 + $0xb8] sm:$0xff] %v1106
    %1139 = vst [vmem:[#allocation4 + $0xc0] sm:$0xff] %v1107
    %1140 = vst [vmem:[#allocation4 + $0xc8] sm:$0xff] %v1108
    %1141 = vst [vmem:[#allocation4 + $0xd0] sm:$0xff] %v1109
    %1142 = vst [vmem:[#allocation4 + $0xd8] sm:$0xff] %v1110
    %1143 = vst [vmem:[#allocation4 + $0xe0] sm:$0xff] %v1111
    %1144 = vst [vmem:[#allocation4 + $0xe8] sm:$0xff] %v1112
    %1145 = vst [vmem:[#allocation4 + $0xf0] sm:$0xff] %v1113
    %1146 = vst [vmem:[#allocation4 + $0xf8] sm:$0xff] %v1114
    %1147 = vst.msk [vmem:[#allocation2] sm:$0xff] %vm720, %v448
    %1148 = vst.msk [vmem:[#allocation2 + $0x8] sm:$0xff] %vm720, %v449
    %1149 = vst.msk [vmem:[#allocation2 + $0x10] sm:$0xff] %vm720, %v450
    %1150 = vst.msk [vmem:[#allocation2 + $0x18] sm:$0xff] %vm720, %v451
    %1151 = vst.msk [vmem:[#allocation2 + $0x20] sm:$0xff] %vm720, %v452
    %1152 = vst.msk [vmem:[#allocation2 + $0x28] sm:$0xff] %vm720, %v453
    %1153 = vst.msk [vmem:[#allocation2 + $0x30] sm:$0xff] %vm720, %v454
    %1154 = vst.msk [vmem:[#allocation2 + $0x38] sm:$0xff] %vm720, %v455
    %1155 = vst.msk [vmem:[#allocation2 + $0x40] sm:$0xff] %vm720, %v456
    %1156 = vst.msk [vmem:[#allocation2 + $0x48] sm:$0xff] %vm720, %v457
    %1157 = vst.msk [vmem:[#allocation2 + $0x50] sm:$0xff] %vm720, %v458
    %1158 = vst.msk [vmem:[#allocation2 + $0x58] sm:$0xff] %vm720, %v459
    %1159 = vst.msk [vmem:[#allocation2 + $0x60] sm:$0xff] %vm720, %v460
    %1160 = vst.msk [vmem:[#allocation2 + $0x68] sm:$0xff] %vm720, %v461
    %1161 = vst.msk [vmem:[#allocation2 + $0x70] sm:$0xff] %vm720, %v462
    %1162 = vst.msk [vmem:[#allocation2 + $0x78] sm:$0xff] %vm720, %v463
    // Predicated region
    $region58: #{tpu_custom_call.1} parent=1 // pred_check
      %p1163 = pneg %p99
    $region59: #{tpu_custom_call.1} parent=1 // pred_check_branch
      %1165 = sbr.rel (%p1163) target = $region61
    $region60: #{tpu_custom_call.1} parent=1 // pred_region
      %v1166 = vld [vmem:[#allocation4] sm:$0xff]
      %v1167 = vld [vmem:[#allocation4 + $0x8] sm:$0xff]
      %v1168 = vld [vmem:[#allocation4 + $0x10] sm:$0xff]
      %v1169 = vld [vmem:[#allocation4 + $0x18] sm:$0xff]
      %v1170 = vld [vmem:[#allocation4 + $0x20] sm:$0xff]
      %v1171 = vld [vmem:[#allocation4 + $0x28] sm:$0xff]
      %v1172 = vld [vmem:[#allocation4 + $0x30] sm:$0xff]
      %v1173 = vld [vmem:[#allocation4 + $0x38] sm:$0xff]
      %v1174 = vld [vmem:[#allocation4 + $0x40] sm:$0xff]
      %v1175 = vld [vmem:[#allocation4 + $0x48] sm:$0xff]
      %v1176 = vld [vmem:[#allocation4 + $0x50] sm:$0xff]
      %v1177 = vld [vmem:[#allocation4 + $0x58] sm:$0xff]
      %v1178 = vld [vmem:[#allocation4 + $0x60] sm:$0xff]
      %v1179 = vld [vmem:[#allocation4 + $0x68] sm:$0xff]
      %v1180 = vld [vmem:[#allocation4 + $0x70] sm:$0xff]
      %v1181 = vld [vmem:[#allocation4 + $0x78] sm:$0xff]
      %v1182 = vld [vmem:[#allocation4 + $0x80] sm:$0xff]
      %v1183 = vld [vmem:[#allocation4 + $0x88] sm:$0xff]
      %v1184 = vld [vmem:[#allocation4 + $0x90] sm:$0xff]
      %v1185 = vld [vmem:[#allocation4 + $0x98] sm:$0xff]
      %v1186 = vld [vmem:[#allocation4 + $0xa0] sm:$0xff]
      %v1187 = vld [vmem:[#allocation4 + $0xa8] sm:$0xff]
      %v1188 = vld [vmem:[#allocation4 + $0xb0] sm:$0xff]
      %v1189 = vld [vmem:[#allocation4 + $0xb8] sm:$0xff]
      %v1190 = vld [vmem:[#allocation4 + $0xc0] sm:$0xff]
      %v1191 = vld [vmem:[#allocation4 + $0xc8] sm:$0xff]
      %v1192 = vld [vmem:[#allocation4 + $0xd0] sm:$0xff]
      %v1193 = vld [vmem:[#allocation4 + $0xd8] sm:$0xff]
      %v1194 = vld [vmem:[#allocation4 + $0xe0] sm:$0xff]
      %v1195 = vld [vmem:[#allocation4 + $0xe8] sm:$0xff]
      %v1196 = vld [vmem:[#allocation4 + $0xf0] sm:$0xff]
      %v1197 = vld [vmem:[#allocation4 + $0xf8] sm:$0xff]
      %v1198 = vld [vmem:[#allocation3] sm:$0xff]
      %v1199 = vld [vmem:[#allocation3 + $0x8] sm:$0xff]
      %v1200 = vld [vmem:[#allocation3 + $0x10] sm:$0xff]
      %v1201 = vld [vmem:[#allocation3 + $0x18] sm:$0xff]
      %v1202 = vld [vmem:[#allocation3 + $0x20] sm:$0xff]
      %v1203 = vld [vmem:[#allocation3 + $0x28] sm:$0xff]
      %v1204 = vld [vmem:[#allocation3 + $0x30] sm:$0xff]
      %v1205 = vld [vmem:[#allocation3 + $0x38] sm:$0xff]
      %v1206 = vld [vmem:[#allocation3 + $0x40] sm:$0xff]
      %v1207 = vld [vmem:[#allocation3 + $0x48] sm:$0xff]
      %v1208 = vld [vmem:[#allocation3 + $0x50] sm:$0xff]
      %v1209 = vld [vmem:[#allocation3 + $0x58] sm:$0xff]
      %v1210 = vld [vmem:[#allocation3 + $0x60] sm:$0xff]
      %v1211 = vld [vmem:[#allocation3 + $0x68] sm:$0xff]
      %v1212 = vld [vmem:[#allocation3 + $0x70] sm:$0xff]
      %v1213 = vld [vmem:[#allocation3 + $0x78] sm:$0xff]
      %v1214 = vrcp.pop %v1198
      %v1215 = vrcp.pop %v1199
      %v1216 = vrcp.pop %v1200
      %v1217 = vrcp.pop %v1201
      %v1218 = vrcp.pop %v1202
      %v1219 = vrcp.pop %v1203
      %v1220 = vrcp.pop %v1204
      %v1221 = vrcp.pop %v1205
      %v1222 = vrcp.pop %v1206
      %v1223 = vrcp.pop %v1207
      %v1224 = vrcp.pop %v1208
      %v1225 = vrcp.pop %v1209
      %v1226 = vrcp.pop %v1210
      %v1227 = vrcp.pop %v1211
      %v1228 = vrcp.pop %v1212
      %v1229 = vrcp.pop %v1213
      %1231 = vset.pattern.permute.xlu0 0
      %1232 = vperm.xlu0 %1231, %v1214
      %v1233 = vpop.permute.xlu0 %1232
      %1236 = vset.pattern.permute.xlu0 0
      %1237 = vperm.xlu0 %1236, %v1215
      %v1238 = vpop.permute.xlu0 %1237
      %1241 = vset.pattern.permute.xlu0 0
      %1242 = vperm.xlu0 %1241, %v1216
      %v1243 = vpop.permute.xlu0 %1242
      %1246 = vset.pattern.permute.xlu0 0
      %1247 = vperm.xlu0 %1246, %v1217
      %v1248 = vpop.permute.xlu0 %1247
      %1251 = vset.pattern.permute.xlu0 0
      %1252 = vperm.xlu0 %1251, %v1218
      %v1253 = vpop.permute.xlu0 %1252
      %1256 = vset.pattern.permute.xlu0 0
      %1257 = vperm.xlu0 %1256, %v1219
      %v1258 = vpop.permute.xlu0 %1257
      %1261 = vset.pattern.permute.xlu0 0
      %1262 = vperm.xlu0 %1261, %v1220
      %v1263 = vpop.permute.xlu0 %1262
      %1266 = vset.pattern.permute.xlu0 0
      %1267 = vperm.xlu0 %1266, %v1221
      %v1268 = vpop.permute.xlu0 %1267
      %1271 = vset.pattern.permute.xlu0 0
      %1272 = vperm.xlu0 %1271, %v1222
      %v1273 = vpop.permute.xlu0 %1272
      %1276 = vset.pattern.permute.xlu0 0
      %1277 = vperm.xlu0 %1276, %v1223
      %v1278 = vpop.permute.xlu0 %1277
      %1281 = vset.pattern.permute.xlu0 0
      %1282 = vperm.xlu0 %1281, %v1224
      %v1283 = vpop.permute.xlu0 %1282
      %1286 = vset.pattern.permute.xlu0 0
      %1287 = vperm.xlu0 %1286, %v1225
      %v1288 = vpop.permute.xlu0 %1287
      %1291 = vset.pattern.permute.xlu0 0
      %1292 = vperm.xlu0 %1291, %v1226
      %v1293 = vpop.permute.xlu0 %1292
      %1296 = vset.pattern.permute.xlu0 0
      %1297 = vperm.xlu0 %1296, %v1227
      %v1298 = vpop.permute.xlu0 %1297
      %1301 = vset.pattern.permute.xlu0 0
      %1302 = vperm.xlu0 %1301, %v1228
      %v1303 = vpop.permute.xlu0 %1302
      %1306 = vset.pattern.permute.xlu0 0
      %1307 = vperm.xlu0 %1306, %v1229
      %v1308 = vpop.permute.xlu0 %1307
      %v1310 = vmul.f32 %v1166, %v1233
      %v1311 = vmul.f32 %v1167, %v1233
      %v1312 = vmul.f32 %v1168, %v1238
      %v1313 = vmul.f32 %v1169, %v1238
      %v1314 = vmul.f32 %v1170, %v1243
      %v1315 = vmul.f32 %v1171, %v1243
      %v1316 = vmul.f32 %v1172, %v1248
      %v1317 = vmul.f32 %v1173, %v1248
      %v1318 = vmul.f32 %v1174, %v1253
      %v1319 = vmul.f32 %v1175, %v1253
      %v1320 = vmul.f32 %v1176, %v1258
      %v1321 = vmul.f32 %v1177, %v1258
      %v1322 = vmul.f32 %v1178, %v1263
      %v1323 = vmul.f32 %v1179, %v1263
      %v1324 = vmul.f32 %v1180, %v1268
      %v1325 = vmul.f32 %v1181, %v1268
      %v1326 = vmul.f32 %v1182, %v1273
      %v1327 = vmul.f32 %v1183, %v1273
      %v1328 = vmul.f32 %v1184, %v1278
      %v1329 = vmul.f32 %v1185, %v1278
      %v1330 = vmul.f32 %v1186, %v1283
      %v1331 = vmul.f32 %v1187, %v1283
      %v1332 = vmul.f32 %v1188, %v1288
      %v1333 = vmul.f32 %v1189, %v1288
      %v1334 = vmul.f32 %v1190, %v1293
      %v1335 = vmul.f32 %v1191, %v1293
      %v1336 = vmul.f32 %v1192, %v1298
      %v1337 = vmul.f32 %v1193, %v1298
      %v1338 = vmul.f32 %v1194, %v1303
      %v1339 = vmul.f32 %v1195, %v1303
      %v1340 = vmul.f32 %v1196, %v1308
      %v1341 = vmul.f32 %v1197, %v1308
      %v1342 = vld [vmem:[%s4] sm:$0x3]
      %v1344 = vperm.slane %v1342, 0
      %v1345 = vperm.slane %v1342, 1
      %v1348 = vadd.f32 %v1310, %v1344
      %v1349 = vadd.f32 %v1311, %v1345
      %v1350 = vadd.f32 %v1312, %v1344
      %v1351 = vadd.f32 %v1313, %v1345
      %v1352 = vadd.f32 %v1314, %v1344
      %v1353 = vadd.f32 %v1315, %v1345
      %v1354 = vadd.f32 %v1316, %v1344
      %v1355 = vadd.f32 %v1317, %v1345
      %v1356 = vadd.f32 %v1318, %v1344
      %v1357 = vadd.f32 %v1319, %v1345
      %v1358 = vadd.f32 %v1320, %v1344
      %v1359 = vadd.f32 %v1321, %v1345
      %v1360 = vadd.f32 %v1322, %v1344
      %v1361 = vadd.f32 %v1323, %v1345
      %v1362 = vadd.f32 %v1324, %v1344
      %v1363 = vadd.f32 %v1325, %v1345
      %v1364 = vadd.f32 %v1326, %v1344
      %v1365 = vadd.f32 %v1327, %v1345
      %v1366 = vadd.f32 %v1328, %v1344
      %v1367 = vadd.f32 %v1329, %v1345
      %v1368 = vadd.f32 %v1330, %v1344
      %v1369 = vadd.f32 %v1331, %v1345
      %v1370 = vadd.f32 %v1332, %v1344
      %v1371 = vadd.f32 %v1333, %v1345
      %v1372 = vadd.f32 %v1334, %v1344
      %v1373 = vadd.f32 %v1335, %v1345
      %v1374 = vadd.f32 %v1336, %v1344
      %v1375 = vadd.f32 %v1337, %v1345
      %v1376 = vadd.f32 %v1338, %v1344
      %v1377 = vadd.f32 %v1339, %v1345
      %v1378 = vadd.f32 %v1340, %v1344
      %v1379 = vadd.f32 %v1341, %v1345
      %v1380 = vtanh.pop %v1348
      %v1381 = vtanh.pop %v1349
      %v1382 = vtanh.pop %v1350
      %v1383 = vtanh.pop %v1351
      %v1384 = vtanh.pop %v1352
      %v1385 = vtanh.pop %v1353
      %v1386 = vtanh.pop %v1354
      %v1387 = vtanh.pop %v1355
      %v1388 = vtanh.pop %v1356
      %v1389 = vtanh.pop %v1357
      %v1390 = vtanh.pop %v1358
      %v1391 = vtanh.pop %v1359
      %v1392 = vtanh.pop %v1360
      %v1393 = vtanh.pop %v1361
      %v1394 = vtanh.pop %v1362
      %v1395 = vtanh.pop %v1363
      %v1396 = vtanh.pop %v1364
      %v1397 = vtanh.pop %v1365
      %v1398 = vtanh.pop %v1366
      %v1399 = vtanh.pop %v1367
      %v1400 = vtanh.pop %v1368
      %v1401 = vtanh.pop %v1369
      %v1402 = vtanh.pop %v1370
      %v1403 = vtanh.pop %v1371
      %v1404 = vtanh.pop %v1372
      %v1405 = vtanh.pop %v1373
      %v1406 = vtanh.pop %v1374
      %v1407 = vtanh.pop %v1375
      %v1408 = vtanh.pop %v1376
      %v1409 = vtanh.pop %v1377
      %v1410 = vtanh.pop %v1378
      %v1411 = vtanh.pop %v1379
      %v1412 = vpack.c.bf16 %v1382, %v1380
      %v1413 = vpack.c.bf16 %v1383, %v1381
      %v1414 = vpack.c.bf16 %v1386, %v1384
      %v1415 = vpack.c.bf16 %v1387, %v1385
      %v1416 = vpack.c.bf16 %v1390, %v1388
      %v1417 = vpack.c.bf16 %v1391, %v1389
      %v1418 = vpack.c.bf16 %v1394, %v1392
      %v1419 = vpack.c.bf16 %v1395, %v1393
      %v1420 = vpack.c.bf16 %v1398, %v1396
      %v1421 = vpack.c.bf16 %v1399, %v1397
      %v1422 = vpack.c.bf16 %v1402, %v1400
      %v1423 = vpack.c.bf16 %v1403, %v1401
      %v1424 = vpack.c.bf16 %v1406, %v1404
      %v1425 = vpack.c.bf16 %v1407, %v1405
      %v1426 = vpack.c.bf16 %v1410, %v1408
      %v1427 = vpack.c.bf16 %v1411, %v1409
      %v1428 = vld [vmem:[#allocation10] sm:$0xff]
      %v1429 = vld [vmem:[#allocation10 + $0x8] sm:$0xff]
      %v1430 = vld [vmem:[#allocation10 + $0x10] sm:$0xff]
      %v1431 = vld [vmem:[#allocation10 + $0x18] sm:$0xff]
      %v1432 = vld [vmem:[#allocation10 + $0x20] sm:$0xff]
      %v1433 = vld [vmem:[#allocation10 + $0x28] sm:$0xff]
      %v1434 = vld [vmem:[#allocation10 + $0x30] sm:$0xff]
      %v1435 = vld [vmem:[#allocation10 + $0x38] sm:$0xff]
      %v1436 = vld [vmem:[#allocation10 + $0x40] sm:$0xff]
      %v1437 = vld [vmem:[#allocation10 + $0x48] sm:$0xff]
      %v1438 = vld [vmem:[#allocation10 + $0x50] sm:$0xff]
      %v1439 = vld [vmem:[#allocation10 + $0x58] sm:$0xff]
      %v1440 = vld [vmem:[#allocation10 + $0x60] sm:$0xff]
      %v1441 = vld [vmem:[#allocation10 + $0x68] sm:$0xff]
      %v1442 = vld [vmem:[#allocation10 + $0x70] sm:$0xff]
      %v1443 = vld [vmem:[#allocation10 + $0x78] sm:$0xff]
      %v1444 = vld [vmem:[#allocation10 + $0x80] sm:$0xff]
      %v1445 = vld [vmem:[#allocation10 + $0x88] sm:$0xff]
      %v1446 = vld [vmem:[#allocation10 + $0x90] sm:$0xff]
      %v1447 = vld [vmem:[#allocation10 + $0x98] sm:$0xff]
      %v1448 = vld [vmem:[#allocation10 + $0xa0] sm:$0xff]
      %v1449 = vld [vmem:[#allocation10 + $0xa8] sm:$0xff]
      %v1450 = vld [vmem:[#allocation10 + $0xb0] sm:$0xff]
      %v1451 = vld [vmem:[#allocation10 + $0xb8] sm:$0xff]
      %v1452 = vld [vmem:[#allocation10 + $0xc0] sm:$0xff]
      %v1453 = vld [vmem:[#allocation10 + $0xc8] sm:$0xff]
      %v1454 = vld [vmem:[#allocation10 + $0xd0] sm:$0xff]
      %v1455 = vld [vmem:[#allocation10 + $0xd8] sm:$0xff]
      %v1456 = vld [vmem:[#allocation10 + $0xe0] sm:$0xff]
      %v1457 = vld [vmem:[#allocation10 + $0xe8] sm:$0xff]
      %v1458 = vld [vmem:[#allocation10 + $0xf0] sm:$0xff]
      %v1459 = vld [vmem:[#allocation10 + $0xf8] sm:$0xff]
      %v1460 = vld [vmem:[#allocation10 + $0x100] sm:$0xff]
      %v1461 = vld [vmem:[#allocation10 + $0x108] sm:$0xff]
      %v1462 = vld [vmem:[#allocation10 + $0x110] sm:$0xff]
      %v1463 = vld [vmem:[#allocation10 + $0x118] sm:$0xff]
      %v1464 = vld [vmem:[#allocation10 + $0x120] sm:$0xff]
      %v1465 = vld [vmem:[#allocation10 + $0x128] sm:$0xff]
      %v1466 = vld [vmem:[#allocation10 + $0x130] sm:$0xff]
      %v1467 = vld [vmem:[#allocation10 + $0x138] sm:$0xff]
      %v1468 = vld [vmem:[#allocation10 + $0x140] sm:$0xff]
      %v1469 = vld [vmem:[#allocation10 + $0x148] sm:$0xff]
      %v1470 = vld [vmem:[#allocation10 + $0x150] sm:$0xff]
      %v1471 = vld [vmem:[#allocation10 + $0x158] sm:$0xff]
      %v1472 = vld [vmem:[#allocation10 + $0x160] sm:$0xff]
      %v1473 = vld [vmem:[#allocation10 + $0x168] sm:$0xff]
      %v1474 = vld [vmem:[#allocation10 + $0x170] sm:$0xff]
      %v1475 = vld [vmem:[#allocation10 + $0x178] sm:$0xff]
      %v1476 = vld [vmem:[#allocation10 + $0x180] sm:$0xff]
      %v1477 = vld [vmem:[#allocation10 + $0x188] sm:$0xff]
      %v1478 = vld [vmem:[#allocation10 + $0x190] sm:$0xff]
      %v1479 = vld [vmem:[#allocation10 + $0x198] sm:$0xff]
      %v1480 = vld [vmem:[#allocation10 + $0x1a0] sm:$0xff]
      %v1481 = vld [vmem:[#allocation10 + $0x1a8] sm:$0xff]
      %v1482 = vld [vmem:[#allocation10 + $0x1b0] sm:$0xff]
      %v1483 = vld [vmem:[#allocation10 + $0x1b8] sm:$0xff]
      %v1484 = vld [vmem:[#allocation10 + $0x1c0] sm:$0xff]
      %v1485 = vld [vmem:[#allocation10 + $0x1c8] sm:$0xff]
      %v1486 = vld [vmem:[#allocation10 + $0x1d0] sm:$0xff]
      %v1487 = vld [vmem:[#allocation10 + $0x1d8] sm:$0xff]
      %v1488 = vld [vmem:[#allocation10 + $0x1e0] sm:$0xff]
      %v1489 = vld [vmem:[#allocation10 + $0x1e8] sm:$0xff]
      %v1490 = vld [vmem:[#allocation10 + $0x1f0] sm:$0xff]
      %v1491 = vld [vmem:[#allocation10 + $0x1f8] sm:$0xff]
      %v1492 = vld [vmem:[#allocation10 + $0x200] sm:$0xff]
      %v1493 = vld [vmem:[#allocation10 + $0x208] sm:$0xff]
      %v1494 = vld [vmem:[#allocation10 + $0x210] sm:$0xff]
      %v1495 = vld [vmem:[#allocation10 + $0x218] sm:$0xff]
      %v1496 = vld [vmem:[#allocation10 + $0x220] sm:$0xff]
      %v1497 = vld [vmem:[#allocation10 + $0x228] sm:$0xff]
      %v1498 = vld [vmem:[#allocation10 + $0x230] sm:$0xff]
      %v1499 = vld [vmem:[#allocation10 + $0x238] sm:$0xff]
      %v1500 = vld [vmem:[#allocation10 + $0x240] sm:$0xff]
      %v1501 = vld [vmem:[#allocation10 + $0x248] sm:$0xff]
      %v1502 = vld [vmem:[#allocation10 + $0x250] sm:$0xff]
      %v1503 = vld [vmem:[#allocation10 + $0x258] sm:$0xff]
      %v1504 = vld [vmem:[#allocation10 + $0x260] sm:$0xff]
      %v1505 = vld [vmem:[#allocation10 + $0x268] sm:$0xff]
      %v1506 = vld [vmem:[#allocation10 + $0x270] sm:$0xff]
      %v1507 = vld [vmem:[#allocation10 + $0x278] sm:$0xff]
      %v1508 = vld [vmem:[#allocation10 + $0x280] sm:$0xff]
      %v1509 = vld [vmem:[#allocation10 + $0x288] sm:$0xff]
      %v1510 = vld [vmem:[#allocation10 + $0x290] sm:$0xff]
      %v1511 = vld [vmem:[#allocation10 + $0x298] sm:$0xff]
      %v1512 = vld [vmem:[#allocation10 + $0x2a0] sm:$0xff]
      %v1513 = vld [vmem:[#allocation10 + $0x2a8] sm:$0xff]
      %v1514 = vld [vmem:[#allocation10 + $0x2b0] sm:$0xff]
      %v1515 = vld [vmem:[#allocation10 + $0x2b8] sm:$0xff]
      %v1516 = vld [vmem:[#allocation10 + $0x2c0] sm:$0xff]
      %v1517 = vld [vmem:[#allocation10 + $0x2c8] sm:$0xff]
      %v1518 = vld [vmem:[#allocation10 + $0x2d0] sm:$0xff]
      %v1519 = vld [vmem:[#allocation10 + $0x2d8] sm:$0xff]
      %v1520 = vld [vmem:[#allocation10 + $0x2e0] sm:$0xff]
      %v1521 = vld [vmem:[#allocation10 + $0x2e8] sm:$0xff]
      %v1522 = vld [vmem:[#allocation10 + $0x2f0] sm:$0xff]
      %v1523 = vld [vmem:[#allocation10 + $0x2f8] sm:$0xff]
      %v1524 = vld [vmem:[#allocation10 + $0x300] sm:$0xff]
      %v1525 = vld [vmem:[#allocation10 + $0x308] sm:$0xff]
      %v1526 = vld [vmem:[#allocation10 + $0x310] sm:$0xff]
      %v1527 = vld [vmem:[#allocation10 + $0x318] sm:$0xff]
      %v1528 = vld [vmem:[#allocation10 + $0x320] sm:$0xff]
      %v1529 = vld [vmem:[#allocation10 + $0x328] sm:$0xff]
      %v1530 = vld [vmem:[#allocation10 + $0x330] sm:$0xff]
      %v1531 = vld [vmem:[#allocation10 + $0x338] sm:$0xff]
      %v1532 = vld [vmem:[#allocation10 + $0x340] sm:$0xff]
      %v1533 = vld [vmem:[#allocation10 + $0x348] sm:$0xff]
      %v1534 = vld [vmem:[#allocation10 + $0x350] sm:$0xff]
      %v1535 = vld [vmem:[#allocation10 + $0x358] sm:$0xff]
      %v1536 = vld [vmem:[#allocation10 + $0x360] sm:$0xff]
      %v1537 = vld [vmem:[#allocation10 + $0x368] sm:$0xff]
      %v1538 = vld [vmem:[#allocation10 + $0x370] sm:$0xff]
      %v1539 = vld [vmem:[#allocation10 + $0x378] sm:$0xff]
      %v1540 = vld [vmem:[#allocation10 + $0x380] sm:$0xff]
      %v1541 = vld [vmem:[#allocation10 + $0x388] sm:$0xff]
      %v1542 = vld [vmem:[#allocation10 + $0x390] sm:$0xff]
      %v1543 = vld [vmem:[#allocation10 + $0x398] sm:$0xff]
      %v1544 = vld [vmem:[#allocation10 + $0x3a0] sm:$0xff]
      %v1545 = vld [vmem:[#allocation10 + $0x3a8] sm:$0xff]
      %v1546 = vld [vmem:[#allocation10 + $0x3b0] sm:$0xff]
      %v1547 = vld [vmem:[#allocation10 + $0x3b8] sm:$0xff]
      %v1548 = vld [vmem:[#allocation10 + $0x3c0] sm:$0xff]
      %v1549 = vld [vmem:[#allocation10 + $0x3c8] sm:$0xff]
      %v1550 = vld [vmem:[#allocation10 + $0x3d0] sm:$0xff]
      %v1551 = vld [vmem:[#allocation10 + $0x3d8] sm:$0xff]
      %v1552 = vld [vmem:[#allocation10 + $0x3e0] sm:$0xff]
      %v1553 = vld [vmem:[#allocation10 + $0x3e8] sm:$0xff]
      %v1554 = vld [vmem:[#allocation10 + $0x3f0] sm:$0xff]
      %v1555 = vld [vmem:[#allocation10 + $0x3f8] sm:$0xff]
      %v1556 = vld [vmem:[#allocation5] sm:$0xff]
      %v1557 = vld [vmem:[#allocation5 + $0x8] sm:$0xff]
      %v1558 = vld [vmem:[#allocation5 + $0x10] sm:$0xff]
      %v1559 = vld [vmem:[#allocation5 + $0x18] sm:$0xff]
      %v1560 = vld [vmem:[#allocation5 + $0x20] sm:$0xff]
      %v1561 = vld [vmem:[#allocation5 + $0x28] sm:$0xff]
      %v1562 = vld [vmem:[#allocation5 + $0x30] sm:$0xff]
      %v1563 = vld [vmem:[#allocation5 + $0x38] sm:$0xff]
      %v1564 = vld [vmem:[#allocation5 + $0x40] sm:$0xff]
      %v1565 = vld [vmem:[#allocation5 + $0x48] sm:$0xff]
      %v1566 = vld [vmem:[#allocation5 + $0x50] sm:$0xff]
      %v1567 = vld [vmem:[#allocation5 + $0x58] sm:$0xff]
      %v1568 = vld [vmem:[#allocation5 + $0x60] sm:$0xff]
      %v1569 = vld [vmem:[#allocation5 + $0x68] sm:$0xff]
      %v1570 = vld [vmem:[#allocation5 + $0x70] sm:$0xff]
      %v1571 = vld [vmem:[#allocation5 + $0x78] sm:$0xff]
      %v1572 = vld [vmem:[#allocation5 + $0x80] sm:$0xff]
      %v1573 = vld [vmem:[#allocation5 + $0x88] sm:$0xff]
      %v1574 = vld [vmem:[#allocation5 + $0x90] sm:$0xff]
      %v1575 = vld [vmem:[#allocation5 + $0x98] sm:$0xff]
      %v1576 = vld [vmem:[#allocation5 + $0xa0] sm:$0xff]
      %v1577 = vld [vmem:[#allocation5 + $0xa8] sm:$0xff]
      %v1578 = vld [vmem:[#allocation5 + $0xb0] sm:$0xff]
      %v1579 = vld [vmem:[#allocation5 + $0xb8] sm:$0xff]
      %v1580 = vld [vmem:[#allocation5 + $0xc0] sm:$0xff]
      %v1581 = vld [vmem:[#allocation5 + $0xc8] sm:$0xff]
      %v1582 = vld [vmem:[#allocation5 + $0xd0] sm:$0xff]
      %v1583 = vld [vmem:[#allocation5 + $0xd8] sm:$0xff]
      %v1584 = vld [vmem:[#allocation5 + $0xe0] sm:$0xff]
      %v1585 = vld [vmem:[#allocation5 + $0xe8] sm:$0xff]
      %v1586 = vld [vmem:[#allocation5 + $0xf0] sm:$0xff]
      %v1587 = vld [vmem:[#allocation5 + $0xf8] sm:$0xff]
      %v1588 = vpack.c.bf16 %v1558, %v1556
      %v1589 = vpack.c.bf16 %v1559, %v1557
      %v1590 = vpack.c.bf16 %v1562, %v1560
      %v1591 = vpack.c.bf16 %v1563, %v1561
      %v1592 = vpack.c.bf16 %v1566, %v1564
      %v1593 = vpack.c.bf16 %v1567, %v1565
      %v1594 = vpack.c.bf16 %v1570, %v1568
      %v1595 = vpack.c.bf16 %v1571, %v1569
      %v1596 = vpack.c.bf16 %v1574, %v1572
      %v1597 = vpack.c.bf16 %v1575, %v1573
      %v1598 = vpack.c.bf16 %v1578, %v1576
      %v1599 = vpack.c.bf16 %v1579, %v1577
      %v1600 = vpack.c.bf16 %v1582, %v1580
      %v1601 = vpack.c.bf16 %v1583, %v1581
      %v1602 = vpack.c.bf16 %v1586, %v1584
      %v1603 = vpack.c.bf16 %v1587, %v1585
      %v1604 = vld [vmem:[#allocation11] sm:$0xff]
      %v1605 = vld [vmem:[#allocation11 + $0x8] sm:$0xff]
      %v1606 = vld [vmem:[#allocation11 + $0x10] sm:$0xff]
      %v1607 = vld [vmem:[#allocation11 + $0x18] sm:$0xff]
      %v1608 = vld [vmem:[#allocation11 + $0x20] sm:$0xff]
      %v1609 = vld [vmem:[#allocation11 + $0x28] sm:$0xff]
      %v1610 = vld [vmem:[#allocation11 + $0x30] sm:$0xff]
      %v1611 = vld [vmem:[#allocation11 + $0x38] sm:$0xff]
      %v1612 = vld [vmem:[#allocation11 + $0x40] sm:$0xff]
      %v1613 = vld [vmem:[#allocation11 + $0x48] sm:$0xff]
      %v1614 = vld [vmem:[#allocation11 + $0x50] sm:$0xff]
      %v1615 = vld [vmem:[#allocation11 + $0x58] sm:$0xff]
      %v1616 = vld [vmem:[#allocation11 + $0x60] sm:$0xff]
      %v1617 = vld [vmem:[#allocation11 + $0x68] sm:$0xff]
      %v1618 = vld [vmem:[#allocation11 + $0x70] sm:$0xff]
      %v1619 = vld [vmem:[#allocation11 + $0x78] sm:$0xff]
      %v1620 = vld [vmem:[#allocation11 + $0x80] sm:$0xff]
      %v1621 = vld [vmem:[#allocation11 + $0x88] sm:$0xff]
      %v1622 = vld [vmem:[#allocation11 + $0x90] sm:$0xff]
      %v1623 = vld [vmem:[#allocation11 + $0x98] sm:$0xff]
      %v1624 = vld [vmem:[#allocation11 + $0xa0] sm:$0xff]
      %v1625 = vld [vmem:[#allocation11 + $0xa8] sm:$0xff]
      %v1626 = vld [vmem:[#allocation11 + $0xb0] sm:$0xff]
      %v1627 = vld [vmem:[#allocation11 + $0xb8] sm:$0xff]
      %v1628 = vld [vmem:[#allocation11 + $0xc0] sm:$0xff]
      %v1629 = vld [vmem:[#allocation11 + $0xc8] sm:$0xff]
      %v1630 = vld [vmem:[#allocation11 + $0xd0] sm:$0xff]
      %v1631 = vld [vmem:[#allocation11 + $0xd8] sm:$0xff]
      %v1632 = vld [vmem:[#allocation11 + $0xe0] sm:$0xff]
      %v1633 = vld [vmem:[#allocation11 + $0xe8] sm:$0xff]
      %v1634 = vld [vmem:[#allocation11 + $0xf0] sm:$0xff]
      %v1635 = vld [vmem:[#allocation11 + $0xf8] sm:$0xff]
      %v1636 = vld [vmem:[#allocation11 + $0x100] sm:$0xff]
      %v1637 = vld [vmem:[#allocation11 + $0x108] sm:$0xff]
      %v1638 = vld [vmem:[#allocation11 + $0x110] sm:$0xff]
      %v1639 = vld [vmem:[#allocation11 + $0x118] sm:$0xff]
      %v1640 = vld [vmem:[#allocation11 + $0x120] sm:$0xff]
      %v1641 = vld [vmem:[#allocation11 + $0x128] sm:$0xff]
      %v1642 = vld [vmem:[#allocation11 + $0x130] sm:$0xff]
      %v1643 = vld [vmem:[#allocation11 + $0x138] sm:$0xff]
      %v1644 = vld [vmem:[#allocation11 + $0x140] sm:$0xff]
      %v1645 = vld [vmem:[#allocation11 + $0x148] sm:$0xff]
      %v1646 = vld [vmem:[#allocation11 + $0x150] sm:$0xff]
      %v1647 = vld [vmem:[#allocation11 + $0x158] sm:$0xff]
      %v1648 = vld [vmem:[#allocation11 + $0x160] sm:$0xff]
      %v1649 = vld [vmem:[#allocation11 + $0x168] sm:$0xff]
      %v1650 = vld [vmem:[#allocation11 + $0x170] sm:$0xff]
      %v1651 = vld [vmem:[#allocation11 + $0x178] sm:$0xff]
      %v1652 = vld [vmem:[#allocation11 + $0x180] sm:$0xff]
      %v1653 = vld [vmem:[#allocation11 + $0x188] sm:$0xff]
      %v1654 = vld [vmem:[#allocation11 + $0x190] sm:$0xff]
      %v1655 = vld [vmem:[#allocation11 + $0x198] sm:$0xff]
      %v1656 = vld [vmem:[#allocation11 + $0x1a0] sm:$0xff]
      %v1657 = vld [vmem:[#allocation11 + $0x1a8] sm:$0xff]
      %v1658 = vld [vmem:[#allocation11 + $0x1b0] sm:$0xff]
      %v1659 = vld [vmem:[#allocation11 + $0x1b8] sm:$0xff]
      %v1660 = vld [vmem:[#allocation11 + $0x1c0] sm:$0xff]
      %v1661 = vld [vmem:[#allocation11 + $0x1c8] sm:$0xff]
      %v1662 = vld [vmem:[#allocation11 + $0x1d0] sm:$0xff]
      %v1663 = vld [vmem:[#allocation11 + $0x1d8] sm:$0xff]
      %v1664 = vld [vmem:[#allocation11 + $0x1e0] sm:$0xff]
      %v1665 = vld [vmem:[#allocation11 + $0x1e8] sm:$0xff]
      %v1666 = vld [vmem:[#allocation11 + $0x1f0] sm:$0xff]
      %v1667 = vld [vmem:[#allocation11 + $0x1f8] sm:$0xff]
      %v1668 = vld [vmem:[#allocation11 + $0x200] sm:$0xff]
      %v1669 = vld [vmem:[#allocation11 + $0x208] sm:$0xff]
      %v1670 = vld [vmem:[#allocation11 + $0x210] sm:$0xff]
      %v1671 = vld [vmem:[#allocation11 + $0x218] sm:$0xff]
      %v1672 = vld [vmem:[#allocation11 + $0x220] sm:$0xff]
      %v1673 = vld [vmem:[#allocation11 + $0x228] sm:$0xff]
      %v1674 = vld [vmem:[#allocation11 + $0x230] sm:$0xff]
      %v1675 = vld [vmem:[#allocation11 + $0x238] sm:$0xff]
      %v1676 = vld [vmem:[#allocation11 + $0x240] sm:$0xff]
      %v1677 = vld [vmem:[#allocation11 + $0x248] sm:$0xff]
      %v1678 = vld [vmem:[#allocation11 + $0x250] sm:$0xff]
      %v1679 = vld [vmem:[#allocation11 + $0x258] sm:$0xff]
      %v1680 = vld [vmem:[#allocation11 + $0x260] sm:$0xff]
      %v1681 = vld [vmem:[#allocation11 + $0x268] sm:$0xff]
      %v1682 = vld [vmem:[#allocation11 + $0x270] sm:$0xff]
      %v1683 = vld [vmem:[#allocation11 + $0x278] sm:$0xff]
      %v1684 = vld [vmem:[#allocation11 + $0x280] sm:$0xff]
      %v1685 = vld [vmem:[#allocation11 + $0x288] sm:$0xff]
      %v1686 = vld [vmem:[#allocation11 + $0x290] sm:$0xff]
      %v1687 = vld [vmem:[#allocation11 + $0x298] sm:$0xff]
      %v1688 = vld [vmem:[#allocation11 + $0x2a0] sm:$0xff]
      %v1689 = vld [vmem:[#allocation11 + $0x2a8] sm:$0xff]
      %v1690 = vld [vmem:[#allocation11 + $0x2b0] sm:$0xff]
      %v1691 = vld [vmem:[#allocation11 + $0x2b8] sm:$0xff]
      %v1692 = vld [vmem:[#allocation11 + $0x2c0] sm:$0xff]
      %v1693 = vld [vmem:[#allocation11 + $0x2c8] sm:$0xff]
      %v1694 = vld [vmem:[#allocation11 + $0x2d0] sm:$0xff]
      %v1695 = vld [vmem:[#allocation11 + $0x2d8] sm:$0xff]
      %v1696 = vld [vmem:[#allocation11 + $0x2e0] sm:$0xff]
      %v1697 = vld [vmem:[#allocation11 + $0x2e8] sm:$0xff]
      %v1698 = vld [vmem:[#allocation11 + $0x2f0] sm:$0xff]
      %v1699 = vld [vmem:[#allocation11 + $0x2f8] sm:$0xff]
      %v1700 = vld [vmem:[#allocation11 + $0x300] sm:$0xff]
      %v1701 = vld [vmem:[#allocation11 + $0x308] sm:$0xff]
      %v1702 = vld [vmem:[#allocation11 + $0x310] sm:$0xff]
      %v1703 = vld [vmem:[#allocation11 + $0x318] sm:$0xff]
      %v1704 = vld [vmem:[#allocation11 + $0x320] sm:$0xff]
      %v1705 = vld [vmem:[#allocation11 + $0x328] sm:$0xff]
      %v1706 = vld [vmem:[#allocation11 + $0x330] sm:$0xff]
      %v1707 = vld [vmem:[#allocation11 + $0x338] sm:$0xff]
      %v1708 = vld [vmem:[#allocation11 + $0x340] sm:$0xff]
      %v1709 = vld [vmem:[#allocation11 + $0x348] sm:$0xff]
      %v1710 = vld [vmem:[#allocation11 + $0x350] sm:$0xff]
      %v1711 = vld [vmem:[#allocation11 + $0x358] sm:$0xff]
      %v1712 = vld [vmem:[#allocation11 + $0x360] sm:$0xff]
      %v1713 = vld [vmem:[#allocation11 + $0x368] sm:$0xff]
      %v1714 = vld [vmem:[#allocation11 + $0x370] sm:$0xff]
      %v1715 = vld [vmem:[#allocation11 + $0x378] sm:$0xff]
      %v1716 = vld [vmem:[#allocation11 + $0x380] sm:$0xff]
      %v1717 = vld [vmem:[#allocation11 + $0x388] sm:$0xff]
      %v1718 = vld [vmem:[#allocation11 + $0x390] sm:$0xff]
      %v1719 = vld [vmem:[#allocation11 + $0x398] sm:$0xff]
      %v1720 = vld [vmem:[#allocation11 + $0x3a0] sm:$0xff]
      %v1721 = vld [vmem:[#allocation11 + $0x3a8] sm:$0xff]
      %v1722 = vld [vmem:[#allocation11 + $0x3b0] sm:$0xff]
      %v1723 = vld [vmem:[#allocation11 + $0x3b8] sm:$0xff]
      %v1724 = vld [vmem:[#allocation11 + $0x3c0] sm:$0xff]
      %v1725 = vld [vmem:[#allocation11 + $0x3c8] sm:$0xff]
      %v1726 = vld [vmem:[#allocation11 + $0x3d0] sm:$0xff]
      %v1727 = vld [vmem:[#allocation11 + $0x3d8] sm:$0xff]
      %v1728 = vld [vmem:[#allocation11 + $0x3e0] sm:$0xff]
      %v1729 = vld [vmem:[#allocation11 + $0x3e8] sm:$0xff]
      %v1730 = vld [vmem:[#allocation11 + $0x3f0] sm:$0xff]
      %v1731 = vld [vmem:[#allocation11 + $0x3f8] sm:$0xff]
      %v1860 = vunpack.c.l.b16 %v1604
      %v1861 = vunpack.c.h.b16 %v1604
      %v1862 = vunpack.c.l.b16 %v1605
      %v1863 = vunpack.c.h.b16 %v1605
      %v1864 = vunpack.c.l.b16 %v1606
      %v1865 = vunpack.c.h.b16 %v1606
      %v1866 = vunpack.c.l.b16 %v1607
      %v1867 = vunpack.c.h.b16 %v1607
      %v1868 = vunpack.c.l.b16 %v1608
      %v1869 = vunpack.c.h.b16 %v1608
      %v1870 = vunpack.c.l.b16 %v1609
      %v1871 = vunpack.c.h.b16 %v1609
      %v1872 = vunpack.c.l.b16 %v1610
      %v1873 = vunpack.c.h.b16 %v1610
      %v1874 = vunpack.c.l.b16 %v1611
      %v1875 = vunpack.c.h.b16 %v1611
      %v1876 = vunpack.c.l.b16 %v1612
      %v1877 = vunpack.c.h.b16 %v1612
      %v1878 = vunpack.c.l.b16 %v1613
      %v1879 = vunpack.c.h.b16 %v1613
      %v1880 = vunpack.c.l.b16 %v1614
      %v1881 = vunpack.c.h.b16 %v1614
      %v1882 = vunpack.c.l.b16 %v1615
      %v1883 = vunpack.c.h.b16 %v1615
      %v1884 = vunpack.c.l.b16 %v1616
      %v1885 = vunpack.c.h.b16 %v1616
      %v1886 = vunpack.c.l.b16 %v1617
      %v1887 = vunpack.c.h.b16 %v1617
      %v1888 = vunpack.c.l.b16 %v1618
      %v1889 = vunpack.c.h.b16 %v1618
      %v1890 = vunpack.c.l.b16 %v1619
      %v1891 = vunpack.c.h.b16 %v1619
      %v1892 = vunpack.c.l.b16 %v1620
      %v1893 = vunpack.c.h.b16 %v1620
      %v1894 = vunpack.c.l.b16 %v1621
      %v1895 = vunpack.c.h.b16 %v1621
      %v1896 = vunpack.c.l.b16 %v1622
      %v1897 = vunpack.c.h.b16 %v1622
      %v1898 = vunpack.c.l.b16 %v1623
      %v1899 = vunpack.c.h.b16 %v1623
      %v1900 = vunpack.c.l.b16 %v1624
      %v1901 = vunpack.c.h.b16 %v1624
      %v1902 = vunpack.c.l.b16 %v1625
      %v1903 = vunpack.c.h.b16 %v1625
      %v1904 = vunpack.c.l.b16 %v1626
      %v1905 = vunpack.c.h.b16 %v1626
      %v1906 = vunpack.c.l.b16 %v1627
      %v1907 = vunpack.c.h.b16 %v1627
      %v1908 = vunpack.c.l.b16 %v1628
      %v1909 = vunpack.c.h.b16 %v1628
      %v1910 = vunpack.c.l.b16 %v1629
      %v1911 = vunpack.c.h.b16 %v1629
      %v1912 = vunpack.c.l.b16 %v1630
      %v1913 = vunpack.c.h.b16 %v1630
      %v1914 = vunpack.c.l.b16 %v1631
      %v1915 = vunpack.c.h.b16 %v1631
      %v1916 = vunpack.c.l.b16 %v1632
      %v1917 = vunpack.c.h.b16 %v1632
      %v1918 = vunpack.c.l.b16 %v1633
      %v1919 = vunpack.c.h.b16 %v1633
      %v1920 = vunpack.c.l.b16 %v1634
      %v1921 = vunpack.c.h.b16 %v1634
      %v1922 = vunpack.c.l.b16 %v1635
      %v1923 = vunpack.c.h.b16 %v1635
      %v1924 = vunpack.c.l.b16 %v1636
      %v1925 = vunpack.c.h.b16 %v1636
      %v1926 = vunpack.c.l.b16 %v1637
      %v1927 = vunpack.c.h.b16 %v1637
      %v1928 = vunpack.c.l.b16 %v1638
      %v1929 = vunpack.c.h.b16 %v1638
      %v1930 = vunpack.c.l.b16 %v1639
      %v1931 = vunpack.c.h.b16 %v1639
      %v1932 = vunpack.c.l.b16 %v1640
      %v1933 = vunpack.c.h.b16 %v1640
      %v1934 = vunpack.c.l.b16 %v1641
      %v1935 = vunpack.c.h.b16 %v1641
      %v1936 = vunpack.c.l.b16 %v1642
      %v1937 = vunpack.c.h.b16 %v1642
      %v1938 = vunpack.c.l.b16 %v1643
      %v1939 = vunpack.c.h.b16 %v1643
      %v1940 = vunpack.c.l.b16 %v1644
      %v1941 = vunpack.c.h.b16 %v1644
      %v1942 = vunpack.c.l.b16 %v1645
      %v1943 = vunpack.c.h.b16 %v1645
      %v1944 = vunpack.c.l.b16 %v1646
      %v1945 = vunpack.c.h.b16 %v1646
      %v1946 = vunpack.c.l.b16 %v1647
      %v1947 = vunpack.c.h.b16 %v1647
      %v1948 = vunpack.c.l.b16 %v1648
      %v1949 = vunpack.c.h.b16 %v1648
      %v1950 = vunpack.c.l.b16 %v1649
      %v1951 = vunpack.c.h.b16 %v1649
      %v1952 = vunpack.c.l.b16 %v1650
      %v1953 = vunpack.c.h.b16 %v1650
      %v1954 = vunpack.c.l.b16 %v1651
      %v1955 = vunpack.c.h.b16 %v1651
      %v1956 = vunpack.c.l.b16 %v1652
      %v1957 = vunpack.c.h.b16 %v1652
      %v1958 = vunpack.c.l.b16 %v1653
      %v1959 = vunpack.c.h.b16 %v1653
      %v1960 = vunpack.c.l.b16 %v1654
      %v1961 = vunpack.c.h.b16 %v1654
      %v1962 = vunpack.c.l.b16 %v1655
      %v1963 = vunpack.c.h.b16 %v1655
      %v1964 = vunpack.c.l.b16 %v1656
      %v1965 = vunpack.c.h.b16 %v1656
      %v1966 = vunpack.c.l.b16 %v1657
      %v1967 = vunpack.c.h.b16 %v1657
      %v1968 = vunpack.c.l.b16 %v1658
      %v1969 = vunpack.c.h.b16 %v1658
      %v1970 = vunpack.c.l.b16 %v1659
      %v1971 = vunpack.c.h.b16 %v1659
      %v1972 = vunpack.c.l.b16 %v1660
      %v1973 = vunpack.c.h.b16 %v1660
      %v1974 = vunpack.c.l.b16 %v1661
      %v1975 = vunpack.c.h.b16 %v1661
      %v1976 = vunpack.c.l.b16 %v1662
      %v1977 = vunpack.c.h.b16 %v1662
      %v1978 = vunpack.c.l.b16 %v1663
      %v1979 = vunpack.c.h.b16 %v1663
      %v1980 = vunpack.c.l.b16 %v1664
      %v1981 = vunpack.c.h.b16 %v1664
      %v1982 = vunpack.c.l.b16 %v1665
      %v1983 = vunpack.c.h.b16 %v1665
      %v1984 = vunpack.c.l.b16 %v1666
      %v1985 = vunpack.c.h.b16 %v1666
      %v1986 = vunpack.c.l.b16 %v1667
      %v1987 = vunpack.c.h.b16 %v1667
      %v1988 = vunpack.c.l.b16 %v1668
      %v1989 = vunpack.c.h.b16 %v1668
      %v1990 = vunpack.c.l.b16 %v1669
      %v1991 = vunpack.c.h.b16 %v1669
      %v1992 = vunpack.c.l.b16 %v1670
      %v1993 = vunpack.c.h.b16 %v1670
      %v1994 = vunpack.c.l.b16 %v1671
      %v1995 = vunpack.c.h.b16 %v1671
      %v1996 = vunpack.c.l.b16 %v1672
      %v1997 = vunpack.c.h.b16 %v1672
      %v1998 = vunpack.c.l.b16 %v1673
      %v1999 = vunpack.c.h.b16 %v1673
      %v2000 = vunpack.c.l.b16 %v1674
      %v2001 = vunpack.c.h.b16 %v1674
      %v2002 = vunpack.c.l.b16 %v1675
      %v2003 = vunpack.c.h.b16 %v1675
      %v2004 = vunpack.c.l.b16 %v1676
      %v2005 = vunpack.c.h.b16 %v1676
      %v2006 = vunpack.c.l.b16 %v1677
      %v2007 = vunpack.c.h.b16 %v1677
      %v2008 = vunpack.c.l.b16 %v1678
      %v2009 = vunpack.c.h.b16 %v1678
      %v2010 = vunpack.c.l.b16 %v1679
      %v2011 = vunpack.c.h.b16 %v1679
      %v2012 = vunpack.c.l.b16 %v1680
      %v2013 = vunpack.c.h.b16 %v1680
      %v2014 = vunpack.c.l.b16 %v1681
      %v2015 = vunpack.c.h.b16 %v1681
      %v2016 = vunpack.c.l.b16 %v1682
      %v2017 = vunpack.c.h.b16 %v1682
      %v2018 = vunpack.c.l.b16 %v1683
      %v2019 = vunpack.c.h.b16 %v1683
      %v2020 = vunpack.c.l.b16 %v1684
      %v2021 = vunpack.c.h.b16 %v1684
      %v2022 = vunpack.c.l.b16 %v1685
      %v2023 = vunpack.c.h.b16 %v1685
      %v2024 = vunpack.c.l.b16 %v1686
      %v2025 = vunpack.c.h.b16 %v1686
      %v2026 = vunpack.c.l.b16 %v1687
      %v2027 = vunpack.c.h.b16 %v1687
      %v2028 = vunpack.c.l.b16 %v1688
      %v2029 = vunpack.c.h.b16 %v1688
      %v2030 = vunpack.c.l.b16 %v1689
      %v2031 = vunpack.c.h.b16 %v1689
      %v2032 = vunpack.c.l.b16 %v1690
      %v2033 = vunpack.c.h.b16 %v1690
      %v2034 = vunpack.c.l.b16 %v1691
      %v2035 = vunpack.c.h.b16 %v1691
      %v2036 = vunpack.c.l.b16 %v1692
      %v2037 = vunpack.c.h.b16 %v1692
      %v2038 = vunpack.c.l.b16 %v1693
      %v2039 = vunpack.c.h.b16 %v1693
      %v2040 = vunpack.c.l.b16 %v1694
      %v2041 = vunpack.c.h.b16 %v1694
      %v2042 = vunpack.c.l.b16 %v1695
      %v2043 = vunpack.c.h.b16 %v1695
      %v2044 = vunpack.c.l.b16 %v1696
      %v2045 = vunpack.c.h.b16 %v1696
      %v2046 = vunpack.c.l.b16 %v1697
      %v2047 = vunpack.c.h.b16 %v1697
      %v2048 = vunpack.c.l.b16 %v1698
      %v2049 = vunpack.c.h.b16 %v1698
      %v2050 = vunpack.c.l.b16 %v1699
      %v2051 = vunpack.c.h.b16 %v1699
      %v2052 = vunpack.c.l.b16 %v1700
      %v2053 = vunpack.c.h.b16 %v1700
      %v2054 = vunpack.c.l.b16 %v1701
      %v2055 = vunpack.c.h.b16 %v1701
      %v2056 = vunpack.c.l.b16 %v1702
      %v2057 = vunpack.c.h.b16 %v1702
      %v2058 = vunpack.c.l.b16 %v1703
      %v2059 = vunpack.c.h.b16 %v1703
      %v2060 = vunpack.c.l.b16 %v1704
      %v2061 = vunpack.c.h.b16 %v1704
      %v2062 = vunpack.c.l.b16 %v1705
      %v2063 = vunpack.c.h.b16 %v1705
      %v2064 = vunpack.c.l.b16 %v1706
      %v2065 = vunpack.c.h.b16 %v1706
      %v2066 = vunpack.c.l.b16 %v1707
      %v2067 = vunpack.c.h.b16 %v1707
      %v2068 = vunpack.c.l.b16 %v1708
      %v2069 = vunpack.c.h.b16 %v1708
      %v2070 = vunpack.c.l.b16 %v1709
      %v2071 = vunpack.c.h.b16 %v1709
      %v2072 = vunpack.c.l.b16 %v1710
      %v2073 = vunpack.c.h.b16 %v1710
      %v2074 = vunpack.c.l.b16 %v1711
      %v2075 = vunpack.c.h.b16 %v1711
      %v2076 = vunpack.c.l.b16 %v1712
      %v2077 = vunpack.c.h.b16 %v1712
      %v2078 = vunpack.c.l.b16 %v1713
      %v2079 = vunpack.c.h.b16 %v1713
      %v2080 = vunpack.c.l.b16 %v1714
      %v2081 = vunpack.c.h.b16 %v1714
      %v2082 = vunpack.c.l.b16 %v1715
      %v2083 = vunpack.c.h.b16 %v1715
      %v2084 = vunpack.c.l.b16 %v1716
      %v2085 = vunpack.c.h.b16 %v1716
      %v2086 = vunpack.c.l.b16 %v1717
      %v2087 = vunpack.c.h.b16 %v1717
      %v2088 = vunpack.c.l.b16 %v1718
      %v2089 = vunpack.c.h.b16 %v1718
      %v2090 = vunpack.c.l.b16 %v1719
      %v2091 = vunpack.c.h.b16 %v1719
      %v2092 = vunpack.c.l.b16 %v1720
      %v2093 = vunpack.c.h.b16 %v1720
      %v2094 = vunpack.c.l.b16 %v1721
      %v2095 = vunpack.c.h.b16 %v1721
      %v2096 = vunpack.c.l.b16 %v1722
      %v2097 = vunpack.c.h.b16 %v1722
      %v2098 = vunpack.c.l.b16 %v1723
      %v2099 = vunpack.c.h.b16 %v1723
      %v2100 = vunpack.c.l.b16 %v1724
      %v2101 = vunpack.c.h.b16 %v1724
      %v2102 = vunpack.c.l.b16 %v1725
      %v2103 = vunpack.c.h.b16 %v1725
      %v2104 = vunpack.c.l.b16 %v1726
      %v2105 = vunpack.c.h.b16 %v1726
      %v2106 = vunpack.c.l.b16 %v1727
      %v2107 = vunpack.c.h.b16 %v1727
      %v2108 = vunpack.c.l.b16 %v1728
      %v2109 = vunpack.c.h.b16 %v1728
      %v2110 = vunpack.c.l.b16 %v1729
      %v2111 = vunpack.c.h.b16 %v1729
      %v2112 = vunpack.c.l.b16 %v1730
      %v2113 = vunpack.c.h.b16 %v1730
      %v2114 = vunpack.c.l.b16 %v1731
      %v2115 = vunpack.c.h.b16 %v1731
      %v2116 = vpack.c.b16 %v1868, %v1860
      %v2117 = vpack.c.b16 %v1869, %v1861
      %v2118 = vpack.c.b16 %v1870, %v1862
      %v2119 = vpack.c.b16 %v1871, %v1863
      %v2120 = vpack.c.b16 %v1872, %v1864
      %v2121 = vpack.c.b16 %v1873, %v1865
      %v2122 = vpack.c.b16 %v1874, %v1866
      %v2123 = vpack.c.b16 %v1875, %v1867
      %v2124 = vpack.c.b16 %v1884, %v1876
      %v2125 = vpack.c.b16 %v1885, %v1877
      %v2126 = vpack.c.b16 %v1886, %v1878
      %v2127 = vpack.c.b16 %v1887, %v1879
      %v2128 = vpack.c.b16 %v1888, %v1880
      %v2129 = vpack.c.b16 %v1889, %v1881
      %v2130 = vpack.c.b16 %v1890, %v1882
      %v2131 = vpack.c.b16 %v1891, %v1883
      %v2132 = vpack.c.b16 %v1900, %v1892
      %v2133 = vpack.c.b16 %v1901, %v1893
      %v2134 = vpack.c.b16 %v1902, %v1894
      %v2135 = vpack.c.b16 %v1903, %v1895
      %v2136 = vpack.c.b16 %v1904, %v1896
      %v2137 = vpack.c.b16 %v1905, %v1897
      %v2138 = vpack.c.b16 %v1906, %v1898
      %v2139 = vpack.c.b16 %v1907, %v1899
      %v2140 = vpack.c.b16 %v1916, %v1908
      %v2141 = vpack.c.b16 %v1917, %v1909
      %v2142 = vpack.c.b16 %v1918, %v1910
      %v2143 = vpack.c.b16 %v1919, %v1911
      %v2144 = vpack.c.b16 %v1920, %v1912
      %v2145 = vpack.c.b16 %v1921, %v1913
      %v2146 = vpack.c.b16 %v1922, %v1914
      %v2147 = vpack.c.b16 %v1923, %v1915
      %v2148 = vpack.c.b16 %v1932, %v1924
      %v2149 = vpack.c.b16 %v1933, %v1925
      %v2150 = vpack.c.b16 %v1934, %v1926
      %v2151 = vpack.c.b16 %v1935, %v1927
      %v2152 = vpack.c.b16 %v1936, %v1928
      %v2153 = vpack.c.b16 %v1937, %v1929
      %v2154 = vpack.c.b16 %v1938, %v1930
      %v2155 = vpack.c.b16 %v1939, %v1931
      %v2156 = vpack.c.b16 %v1948, %v1940
      %v2157 = vpack.c.b16 %v1949, %v1941
      %v2158 = vpack.c.b16 %v1950, %v1942
      %v2159 = vpack.c.b16 %v1951, %v1943
      %v2160 = vpack.c.b16 %v1952, %v1944
      %v2161 = vpack.c.b16 %v1953, %v1945
      %v2162 = vpack.c.b16 %v1954, %v1946
      %v2163 = vpack.c.b16 %v1955, %v1947
      %v2164 = vpack.c.b16 %v1964, %v1956
      %v2165 = vpack.c.b16 %v1965, %v1957
      %v2166 = vpack.c.b16 %v1966, %v1958
      %v2167 = vpack.c.b16 %v1967, %v1959
      %v2168 = vpack.c.b16 %v1968, %v1960
      %v2169 = vpack.c.b16 %v1969, %v1961
      %v2170 = vpack.c.b16 %v1970, %v1962
      %v2171 = vpack.c.b16 %v1971, %v1963
      %v2172 = vpack.c.b16 %v1980, %v1972
      %v2173 = vpack.c.b16 %v1981, %v1973
      %v2174 = vpack.c.b16 %v1982, %v1974
      %v2175 = vpack.c.b16 %v1983, %v1975
      %v2176 = vpack.c.b16 %v1984, %v1976
      %v2177 = vpack.c.b16 %v1985, %v1977
      %v2178 = vpack.c.b16 %v1986, %v1978
      %v2179 = vpack.c.b16 %v1987, %v1979
      %v2180 = vpack.c.b16 %v1996, %v1988
      %v2181 = vpack.c.b16 %v1997, %v1989
      %v2182 = vpack.c.b16 %v1998, %v1990
      %v2183 = vpack.c.b16 %v1999, %v1991
      %v2184 = vpack.c.b16 %v2000, %v1992
      %v2185 = vpack.c.b16 %v2001, %v1993
      %v2186 = vpack.c.b16 %v2002, %v1994
      %v2187 = vpack.c.b16 %v2003, %v1995
      %v2188 = vpack.c.b16 %v2012, %v2004
      %v2189 = vpack.c.b16 %v2013, %v2005
      %v2190 = vpack.c.b16 %v2014, %v2006
      %v2191 = vpack.c.b16 %v2015, %v2007
      %v2192 = vpack.c.b16 %v2016, %v2008
      %v2193 = vpack.c.b16 %v2017, %v2009
      %v2194 = vpack.c.b16 %v2018, %v2010
      %v2195 = vpack.c.b16 %v2019, %v2011
      %v2196 = vpack.c.b16 %v2028, %v2020
      %v2197 = vpack.c.b16 %v2029, %v2021
      %v2198 = vpack.c.b16 %v2030, %v2022
      %v2199 = vpack.c.b16 %v2031, %v2023
      %v2200 = vpack.c.b16 %v2032, %v2024
      %v2201 = vpack.c.b16 %v2033, %v2025
      %v2202 = vpack.c.b16 %v2034, %v2026
      %v2203 = vpack.c.b16 %v2035, %v2027
      %v2204 = vpack.c.b16 %v2044, %v2036
      %v2205 = vpack.c.b16 %v2045, %v2037
      %v2206 = vpack.c.b16 %v2046, %v2038
      %v2207 = vpack.c.b16 %v2047, %v2039
      %v2208 = vpack.c.b16 %v2048, %v2040
      %v2209 = vpack.c.b16 %v2049, %v2041
      %v2210 = vpack.c.b16 %v2050, %v2042
      %v2211 = vpack.c.b16 %v2051, %v2043
      %v2212 = vpack.c.b16 %v2060, %v2052
      %v2213 = vpack.c.b16 %v2061, %v2053
      %v2214 = vpack.c.b16 %v2062, %v2054
      %v2215 = vpack.c.b16 %v2063, %v2055
      %v2216 = vpack.c.b16 %v2064, %v2056
      %v2217 = vpack.c.b16 %v2065, %v2057
      %v2218 = vpack.c.b16 %v2066, %v2058
      %v2219 = vpack.c.b16 %v2067, %v2059
      %v2220 = vpack.c.b16 %v2076, %v2068
      %v2221 = vpack.c.b16 %v2077, %v2069
      %v2222 = vpack.c.b16 %v2078, %v2070
      %v2223 = vpack.c.b16 %v2079, %v2071
      %v2224 = vpack.c.b16 %v2080, %v2072
      %v2225 = vpack.c.b16 %v2081, %v2073
      %v2226 = vpack.c.b16 %v2082, %v2074
      %v2227 = vpack.c.b16 %v2083, %v2075
      %v2228 = vpack.c.b16 %v2092, %v2084
      %v2229 = vpack.c.b16 %v2093, %v2085
      %v2230 = vpack.c.b16 %v2094, %v2086
      %v2231 = vpack.c.b16 %v2095, %v2087
      %v2232 = vpack.c.b16 %v2096, %v2088
      %v2233 = vpack.c.b16 %v2097, %v2089
      %v2234 = vpack.c.b16 %v2098, %v2090
      %v2235 = vpack.c.b16 %v2099, %v2091
      %v2236 = vpack.c.b16 %v2108, %v2100
      %v2237 = vpack.c.b16 %v2109, %v2101
      %v2238 = vpack.c.b16 %v2110, %v2102
      %v2239 = vpack.c.b16 %v2111, %v2103
      %v2240 = vpack.c.b16 %v2112, %v2104
      %v2241 = vpack.c.b16 %v2113, %v2105
      %v2242 = vpack.c.b16 %v2114, %v2106
      %v2243 = vpack.c.b16 %v2115, %v2107
      %2372 = vmatpush.bf16.msra.mxu0 %v2172
      %2373 = vmatpush.bf16.msra.mxu0 %v2164
      %2374 = vmatpush.bf16.msra.mxu0 %v2156
      %2375 = vmatpush.bf16.msra.mxu0 %v2148
      %2376 = vmatpush.bf16.msra.mxu0 %v2140
      %2377 = vmatpush.bf16.msra.mxu0 %v2132
      %2378 = vmatpush.bf16.msra.mxu0 %v2124
      %2379 = vmatpush.bf16.msra.mxu0 %v2116
      %2380 = vmatmul.bf16.gmra.mxu0 %v1588
      %v2381 = vpop.f32.mrf.mxu0
      %v2382 = vadd.f32 0.0, %v2381
      %v2383 = vpop.f32.mrf.mxu0
      %v2384 = vadd.f32 0.0, %v2383
      %2385 = vmatmul.bf16.gmra.mxu0 %v1590
      %v2386 = vpop.f32.mrf.mxu0
      %v2387 = vadd.f32 0.0, %v2386
      %v2388 = vpop.f32.mrf.mxu0
      %v2389 = vadd.f32 0.0, %v2388
      %2390 = vmatmul.bf16.gmra.mxu0 %v1592
      %v2391 = vpop.f32.mrf.mxu0
      %v2392 = vadd.f32 0.0, %v2391
      %v2393 = vpop.f32.mrf.mxu0
      %v2394 = vadd.f32 0.0, %v2393
      %2395 = vmatmul.bf16.gmra.mxu0 %v1594
      %v2396 = vpop.f32.mrf.mxu0
      %v2397 = vadd.f32 0.0, %v2396
      %v2398 = vpop.f32.mrf.mxu0
      %v2399 = vadd.f32 0.0, %v2398
      %2400 = vmatmul.bf16.gmra.mxu0 %v1596
      %v2401 = vpop.f32.mrf.mxu0
      %v2402 = vadd.f32 0.0, %v2401
      %v2403 = vpop.f32.mrf.mxu0
      %v2404 = vadd.f32 0.0, %v2403
      %2405 = vmatmul.bf16.gmra.mxu0 %v1598
      %v2406 = vpop.f32.mrf.mxu0
      %v2407 = vadd.f32 0.0, %v2406
      %v2408 = vpop.f32.mrf.mxu0
      %v2409 = vadd.f32 0.0, %v2408
      %2410 = vmatmul.bf16.gmra.mxu0 %v1600
      %v2411 = vpop.f32.mrf.mxu0
      %v2412 = vadd.f32 0.0, %v2411
      %v2413 = vpop.f32.mrf.mxu0
      %v2414 = vadd.f32 0.0, %v2413
      %2415 = vmatmul.bf16.gmra.mxu0 %v1602
      %v2416 = vpop.f32.mrf.mxu0
      %v2417 = vadd.f32 0.0, %v2416
      %v2418 = vpop.f32.mrf.mxu0
      %v2419 = vadd.f32 0.0, %v2418
      %2420 = vdwg.mxu0
      %2421 = vmatpush.bf16.msra.mxu0 %v2236
      %2422 = vmatpush.bf16.msra.mxu0 %v2228
      %2423 = vmatpush.bf16.msra.mxu0 %v2220
      %2424 = vmatpush.bf16.msra.mxu0 %v2212
      %2425 = vmatpush.bf16.msra.mxu0 %v2204
      %2426 = vmatpush.bf16.msra.mxu0 %v2196
      %2427 = vmatpush.bf16.msra.mxu0 %v2188
      %2428 = vmatpush.bf16.msra.mxu0 %v2180
      %2429 = vmatmul.bf16.gmra.mxu0 %v1589
      %v2430 = vpop.f32.mrf.mxu0
      %v2431 = vadd.f32 %v2382, %v2430
      %v2432 = vpop.f32.mrf.mxu0
      %v2433 = vadd.f32 %v2384, %v2432
      %2434 = vmatmul.bf16.gmra.mxu0 %v1591
      %v2435 = vpop.f32.mrf.mxu0
      %v2436 = vadd.f32 %v2387, %v2435
      %v2437 = vpop.f32.mrf.mxu0
      %v2438 = vadd.f32 %v2389, %v2437
      %2439 = vmatmul.bf16.gmra.mxu0 %v1593
      %v2440 = vpop.f32.mrf.mxu0
      %v2441 = vadd.f32 %v2392, %v2440
      %v2442 = vpop.f32.mrf.mxu0
      %v2443 = vadd.f32 %v2394, %v2442
      %2444 = vmatmul.bf16.gmra.mxu0 %v1595
      %v2445 = vpop.f32.mrf.mxu0
      %v2446 = vadd.f32 %v2397, %v2445
      %v2447 = vpop.f32.mrf.mxu0
      %v2448 = vadd.f32 %v2399, %v2447
      %2449 = vmatmul.bf16.gmra.mxu0 %v1597
      %v2450 = vpop.f32.mrf.mxu0
      %v2451 = vadd.f32 %v2402, %v2450
      %v2452 = vpop.f32.mrf.mxu0
      %v2453 = vadd.f32 %v2404, %v2452
      %2454 = vmatmul.bf16.gmra.mxu0 %v1599
      %v2455 = vpop.f32.mrf.mxu0
      %v2456 = vadd.f32 %v2407, %v2455
      %v2457 = vpop.f32.mrf.mxu0
      %v2458 = vadd.f32 %v2409, %v2457
      %2459 = vmatmul.bf16.gmra.mxu0 %v1601
      %v2460 = vpop.f32.mrf.mxu0
      %v2461 = vadd.f32 %v2412, %v2460
      %v2462 = vpop.f32.mrf.mxu0
      %v2463 = vadd.f32 %v2414, %v2462
      %2464 = vmatmul.bf16.gmra.mxu0 %v1603
      %v2465 = vpop.f32.mrf.mxu0
      %v2466 = vadd.f32 %v2417, %v2465
      %v2467 = vpop.f32.mrf.mxu0
      %v2468 = vadd.f32 %v2419, %v2467
      %2469 = vdwg.mxu0
      %2470 = vmatpush.bf16.msra.mxu0 %v2173
      %2471 = vmatpush.bf16.msra.mxu0 %v2165
      %2472 = vmatpush.bf16.msra.mxu0 %v2157
      %2473 = vmatpush.bf16.msra.mxu0 %v2149
      %2474 = vmatpush.bf16.msra.mxu0 %v2141
      %2475 = vmatpush.bf16.msra.mxu0 %v2133
      %2476 = vmatpush.bf16.msra.mxu0 %v2125
      %2477 = vmatpush.bf16.msra.mxu0 %v2117
      %2478 = vmatmul.bf16.gmra.mxu0 %v1588
      %v2479 = vpop.f32.mrf.mxu0
      %v2480 = vadd.f32 0.0, %v2479
      %v2481 = vpop.f32.mrf.mxu0
      %v2482 = vadd.f32 0.0, %v2481
      %2483 = vmatmul.bf16.gmra.mxu0 %v1590
      %v2484 = vpop.f32.mrf.mxu0
      %v2485 = vadd.f32 0.0, %v2484
      %v2486 = vpop.f32.mrf.mxu0
      %v2487 = vadd.f32 0.0, %v2486
      %2488 = vmatmul.bf16.gmra.mxu0 %v1592
      %v2489 = vpop.f32.mrf.mxu0
      %v2490 = vadd.f32 0.0, %v2489
      %v2491 = vpop.f32.mrf.mxu0
      %v2492 = vadd.f32 0.0, %v2491
      %2493 = vmatmul.bf16.gmra.mxu0 %v1594
      %v2494 = vpop.f32.mrf.mxu0
      %v2495 = vadd.f32 0.0, %v2494
      %v2496 = vpop.f32.mrf.mxu0
      %v2497 = vadd.f32 0.0, %v2496
      %2498 = vmatmul.bf16.gmra.mxu0 %v1596
      %v2499 = vpop.f32.mrf.mxu0
      %v2500 = vadd.f32 0.0, %v2499
      %v2501 = vpop.f32.mrf.mxu0
      %v2502 = vadd.f32 0.0, %v2501
      %2503 = vmatmul.bf16.gmra.mxu0 %v1598
      %v2504 = vpop.f32.mrf.mxu0
      %v2505 = vadd.f32 0.0, %v2504
      %v2506 = vpop.f32.mrf.mxu0
      %v2507 = vadd.f32 0.0, %v2506
      %2508 = vmatmul.bf16.gmra.mxu0 %v1600
      %v2509 = vpop.f32.mrf.mxu0
      %v2510 = vadd.f32 0.0, %v2509
      %v2511 = vpop.f32.mrf.mxu0
      %v2512 = vadd.f32 0.0, %v2511
      %2513 = vmatmul.bf16.gmra.mxu0 %v1602
      %v2514 = vpop.f32.mrf.mxu0
      %v2515 = vadd.f32 0.0, %v2514
      %v2516 = vpop.f32.mrf.mxu0
      %v2517 = vadd.f32 0.0, %v2516
      %2518 = vdwg.mxu0
      %2519 = vmatpush.bf16.msra.mxu0 %v2237
      %2520 = vmatpush.bf16.msra.mxu0 %v2229
      %2521 = vmatpush.bf16.msra.mxu0 %v2221
      %2522 = vmatpush.bf16.msra.mxu0 %v2213
      %2523 = vmatpush.bf16.msra.mxu0 %v2205
      %2524 = vmatpush.bf16.msra.mxu0 %v2197
      %2525 = vmatpush.bf16.msra.mxu0 %v2189
      %2526 = vmatpush.bf16.msra.mxu0 %v2181
      %2527 = vmatmul.bf16.gmra.mxu0 %v1589
      %v2528 = vpop.f32.mrf.mxu0
      %v2529 = vadd.f32 %v2480, %v2528
      %v2530 = vpop.f32.mrf.mxu0
      %v2531 = vadd.f32 %v2482, %v2530
      %2532 = vmatmul.bf16.gmra.mxu0 %v1591
      %v2533 = vpop.f32.mrf.mxu0
      %v2534 = vadd.f32 %v2485, %v2533
      %v2535 = vpop.f32.mrf.mxu0
      %v2536 = vadd.f32 %v2487, %v2535
      %2537 = vmatmul.bf16.gmra.mxu0 %v1593
      %v2538 = vpop.f32.mrf.mxu0
      %v2539 = vadd.f32 %v2490, %v2538
      %v2540 = vpop.f32.mrf.mxu0
      %v2541 = vadd.f32 %v2492, %v2540
      %2542 = vmatmul.bf16.gmra.mxu0 %v1595
      %v2543 = vpop.f32.mrf.mxu0
      %v2544 = vadd.f32 %v2495, %v2543
      %v2545 = vpop.f32.mrf.mxu0
      %v2546 = vadd.f32 %v2497, %v2545
      %2547 = vmatmul.bf16.gmra.mxu0 %v1597
      %v2548 = vpop.f32.mrf.mxu0
      %v2549 = vadd.f32 %v2500, %v2548
      %v2550 = vpop.f32.mrf.mxu0
      %v2551 = vadd.f32 %v2502, %v2550
      %2552 = vmatmul.bf16.gmra.mxu0 %v1599
      %v2553 = vpop.f32.mrf.mxu0
      %v2554 = vadd.f32 %v2505, %v2553
      %v2555 = vpop.f32.mrf.mxu0
      %v2556 = vadd.f32 %v2507, %v2555
      %2557 = vmatmul.bf16.gmra.mxu0 %v1601
      %v2558 = vpop.f32.mrf.mxu0
      %v2559 = vadd.f32 %v2510, %v2558
      %v2560 = vpop.f32.mrf.mxu0
      %v2561 = vadd.f32 %v2512, %v2560
      %2562 = vmatmul.bf16.gmra.mxu0 %v1603
      %v2563 = vpop.f32.mrf.mxu0
      %v2564 = vadd.f32 %v2515, %v2563
      %v2565 = vpop.f32.mrf.mxu0
      %v2566 = vadd.f32 %v2517, %v2565
      %2567 = vdwg.mxu0
      %2568 = vmatpush.bf16.msra.mxu0 %v2174
      %2569 = vmatpush.bf16.msra.mxu0 %v2166
      %2570 = vmatpush.bf16.msra.mxu0 %v2158
      %2571 = vmatpush.bf16.msra.mxu0 %v2150
      %2572 = vmatpush.bf16.msra.mxu0 %v2142
      %2573 = vmatpush.bf16.msra.mxu0 %v2134
      %2574 = vmatpush.bf16.msra.mxu0 %v2126
      %2575 = vmatpush.bf16.msra.mxu0 %v2118
      %2576 = vmatmul.bf16.gmra.mxu0 %v1588
      %v2577 = vpop.f32.mrf.mxu0
      %v2578 = vadd.f32 0.0, %v2577
      %v2579 = vpop.f32.mrf.mxu0
      %v2580 = vadd.f32 0.0, %v2579
      %2581 = vmatmul.bf16.gmra.mxu0 %v1590
      %v2582 = vpop.f32.mrf.mxu0
      %v2583 = vadd.f32 0.0, %v2582
      %v2584 = vpop.f32.mrf.mxu0
      %v2585 = vadd.f32 0.0, %v2584
      %2586 = vmatmul.bf16.gmra.mxu0 %v1592
      %v2587 = vpop.f32.mrf.mxu0
      %v2588 = vadd.f32 0.0, %v2587
      %v2589 = vpop.f32.mrf.mxu0
      %v2590 = vadd.f32 0.0, %v2589
      %2591 = vmatmul.bf16.gmra.mxu0 %v1594
      %v2592 = vpop.f32.mrf.mxu0
      %v2593 = vadd.f32 0.0, %v2592
      %v2594 = vpop.f32.mrf.mxu0
      %v2595 = vadd.f32 0.0, %v2594
      %2596 = vmatmul.bf16.gmra.mxu0 %v1596
      %v2597 = vpop.f32.mrf.mxu0
      %v2598 = vadd.f32 0.0, %v2597
      %v2599 = vpop.f32.mrf.mxu0
      %v2600 = vadd.f32 0.0, %v2599
      %2601 = vmatmul.bf16.gmra.mxu0 %v1598
      %v2602 = vpop.f32.mrf.mxu0
      %v2603 = vadd.f32 0.0, %v2602
      %v2604 = vpop.f32.mrf.mxu0
      %v2605 = vadd.f32 0.0, %v2604
      %2606 = vmatmul.bf16.gmra.mxu0 %v1600
      %v2607 = vpop.f32.mrf.mxu0
      %v2608 = vadd.f32 0.0, %v2607
      %v2609 = vpop.f32.mrf.mxu0
      %v2610 = vadd.f32 0.0, %v2609
      %2611 = vmatmul.bf16.gmra.mxu0 %v1602
      %v2612 = vpop.f32.mrf.mxu0
      %v2613 = vadd.f32 0.0, %v2612
      %v2614 = vpop.f32.mrf.mxu0
      %v2615 = vadd.f32 0.0, %v2614
      %2616 = vdwg.mxu0
      %2617 = vmatpush.bf16.msra.mxu0 %v2238
      %2618 = vmatpush.bf16.msra.mxu0 %v2230
      %2619 = vmatpush.bf16.msra.mxu0 %v2222
      %2620 = vmatpush.bf16.msra.mxu0 %v2214
      %2621 = vmatpush.bf16.msra.mxu0 %v2206
      %2622 = vmatpush.bf16.msra.mxu0 %v2198
      %2623 = vmatpush.bf16.msra.mxu0 %v2190
      %2624 = vmatpush.bf16.msra.mxu0 %v2182
      %2625 = vmatmul.bf16.gmra.mxu0 %v1589
      %v2626 = vpop.f32.mrf.mxu0
      %v2627 = vadd.f32 %v2578, %v2626
      %v2628 = vpop.f32.mrf.mxu0
      %v2629 = vadd.f32 %v2580, %v2628
      %2630 = vmatmul.bf16.gmra.mxu0 %v1591
      %v2631 = vpop.f32.mrf.mxu0
      %v2632 = vadd.f32 %v2583, %v2631
      %v2633 = vpop.f32.mrf.mxu0
      %v2634 = vadd.f32 %v2585, %v2633
      %2635 = vmatmul.bf16.gmra.mxu0 %v1593
      %v2636 = vpop.f32.mrf.mxu0
      %v2637 = vadd.f32 %v2588, %v2636
      %v2638 = vpop.f32.mrf.mxu0
      %v2639 = vadd.f32 %v2590, %v2638
      %2640 = vmatmul.bf16.gmra.mxu0 %v1595
      %v2641 = vpop.f32.mrf.mxu0
      %v2642 = vadd.f32 %v2593, %v2641
      %v2643 = vpop.f32.mrf.mxu0
      %v2644 = vadd.f32 %v2595, %v2643
      %2645 = vmatmul.bf16.gmra.mxu0 %v1597
      %v2646 = vpop.f32.mrf.mxu0
      %v2647 = vadd.f32 %v2598, %v2646
      %v2648 = vpop.f32.mrf.mxu0
      %v2649 = vadd.f32 %v2600, %v2648
      %2650 = vmatmul.bf16.gmra.mxu0 %v1599
      %v2651 = vpop.f32.mrf.mxu0
      %v2652 = vadd.f32 %v2603, %v2651
      %v2653 = vpop.f32.mrf.mxu0
      %v2654 = vadd.f32 %v2605, %v2653
      %2655 = vmatmul.bf16.gmra.mxu0 %v1601
      %v2656 = vpop.f32.mrf.mxu0
      %v2657 = vadd.f32 %v2608, %v2656
      %v2658 = vpop.f32.mrf.mxu0
      %v2659 = vadd.f32 %v2610, %v2658
      %2660 = vmatmul.bf16.gmra.mxu0 %v1603
      %v2661 = vpop.f32.mrf.mxu0
      %v2662 = vadd.f32 %v2613, %v2661
      %v2663 = vpop.f32.mrf.mxu0
      %v2664 = vadd.f32 %v2615, %v2663
      %2665 = vdwg.mxu0
      %2666 = vmatpush.bf16.msra.mxu0 %v2175
      %2667 = vmatpush.bf16.msra.mxu0 %v2167
      %2668 = vmatpush.bf16.msra.mxu0 %v2159
      %2669 = vmatpush.bf16.msra.mxu0 %v2151
      %2670 = vmatpush.bf16.msra.mxu0 %v2143
      %2671 = vmatpush.bf16.msra.mxu0 %v2135
      %2672 = vmatpush.bf16.msra.mxu0 %v2127
      %2673 = vmatpush.bf16.msra.mxu0 %v2119
      %2674 = vmatmul.bf16.gmra.mxu0 %v1588
      %v2675 = vpop.f32.mrf.mxu0
      %v2676 = vadd.f32 0.0, %v2675
      %v2677 = vpop.f32.mrf.mxu0
      %v2678 = vadd.f32 0.0, %v2677
      %2679 = vmatmul.bf16.gmra.mxu0 %v1590
      %v2680 = vpop.f32.mrf.mxu0
      %v2681 = vadd.f32 0.0, %v2680
      %v2682 = vpop.f32.mrf.mxu0
      %v2683 = vadd.f32 0.0, %v2682
      %2684 = vmatmul.bf16.gmra.mxu0 %v1592
      %v2685 = vpop.f32.mrf.mxu0
      %v2686 = vadd.f32 0.0, %v2685
      %v2687 = vpop.f32.mrf.mxu0
      %v2688 = vadd.f32 0.0, %v2687
      %2689 = vmatmul.bf16.gmra.mxu0 %v1594
      %v2690 = vpop.f32.mrf.mxu0
      %v2691 = vadd.f32 0.0, %v2690
      %v2692 = vpop.f32.mrf.mxu0
      %v2693 = vadd.f32 0.0, %v2692
      %2694 = vmatmul.bf16.gmra.mxu0 %v1596
      %v2695 = vpop.f32.mrf.mxu0
      %v2696 = vadd.f32 0.0, %v2695
      %v2697 = vpop.f32.mrf.mxu0
      %v2698 = vadd.f32 0.0, %v2697
      %2699 = vmatmul.bf16.gmra.mxu0 %v1598
      %v2700 = vpop.f32.mrf.mxu0
      %v2701 = vadd.f32 0.0, %v2700
      %v2702 = vpop.f32.mrf.mxu0
      %v2703 = vadd.f32 0.0, %v2702
      %2704 = vmatmul.bf16.gmra.mxu0 %v1600
      %v2705 = vpop.f32.mrf.mxu0
      %v2706 = vadd.f32 0.0, %v2705
      %v2707 = vpop.f32.mrf.mxu0
      %v2708 = vadd.f32 0.0, %v2707
      %2709 = vmatmul.bf16.gmra.mxu0 %v1602
      %v2710 = vpop.f32.mrf.mxu0
      %v2711 = vadd.f32 0.0, %v2710
      %v2712 = vpop.f32.mrf.mxu0
      %v2713 = vadd.f32 0.0, %v2712
      %2714 = vdwg.mxu0
      %2715 = vmatpush.bf16.msra.mxu0 %v2239
      %2716 = vmatpush.bf16.msra.mxu0 %v2231
      %2717 = vmatpush.bf16.msra.mxu0 %v2223
      %2718 = vmatpush.bf16.msra.mxu0 %v2215
      %2719 = vmatpush.bf16.msra.mxu0 %v2207
      %2720 = vmatpush.bf16.msra.mxu0 %v2199
      %2721 = vmatpush.bf16.msra.mxu0 %v2191
      %2722 = vmatpush.bf16.msra.mxu0 %v2183
      %2723 = vmatmul.bf16.gmra.mxu0 %v1589
      %v2724 = vpop.f32.mrf.mxu0
      %v2725 = vadd.f32 %v2676, %v2724
      %v2726 = vpop.f32.mrf.mxu0
      %v2727 = vadd.f32 %v2678, %v2726
      %2728 = vmatmul.bf16.gmra.mxu0 %v1591
      %v2729 = vpop.f32.mrf.mxu0
      %v2730 = vadd.f32 %v2681, %v2729
      %v2731 = vpop.f32.mrf.mxu0
      %v2732 = vadd.f32 %v2683, %v2731
      %2733 = vmatmul.bf16.gmra.mxu0 %v1593
      %v2734 = vpop.f32.mrf.mxu0
      %v2735 = vadd.f32 %v2686, %v2734
      %v2736 = vpop.f32.mrf.mxu0
      %v2737 = vadd.f32 %v2688, %v2736
      %2738 = vmatmul.bf16.gmra.mxu0 %v1595
      %v2739 = vpop.f32.mrf.mxu0
      %v2740 = vadd.f32 %v2691, %v2739
      %v2741 = vpop.f32.mrf.mxu0
      %v2742 = vadd.f32 %v2693, %v2741
      %2743 = vmatmul.bf16.gmra.mxu0 %v1597
      %v2744 = vpop.f32.mrf.mxu0
      %v2745 = vadd.f32 %v2696, %v2744
      %v2746 = vpop.f32.mrf.mxu0
      %v2747 = vadd.f32 %v2698, %v2746
      %2748 = vmatmul.bf16.gmra.mxu0 %v1599
      %v2749 = vpop.f32.mrf.mxu0
      %v2750 = vadd.f32 %v2701, %v2749
      %v2751 = vpop.f32.mrf.mxu0
      %v2752 = vadd.f32 %v2703, %v2751
      %2753 = vmatmul.bf16.gmra.mxu0 %v1601
      %v2754 = vpop.f32.mrf.mxu0
      %v2755 = vadd.f32 %v2706, %v2754
      %v2756 = vpop.f32.mrf.mxu0
      %v2757 = vadd.f32 %v2708, %v2756
      %2758 = vmatmul.bf16.gmra.mxu0 %v1603
      %v2759 = vpop.f32.mrf.mxu0
      %v2760 = vadd.f32 %v2711, %v2759
      %v2761 = vpop.f32.mrf.mxu0
      %v2762 = vadd.f32 %v2713, %v2761
      %2763 = vdwg.mxu0
      %2764 = vmatpush.bf16.msra.mxu0 %v2176
      %2765 = vmatpush.bf16.msra.mxu0 %v2168
      %2766 = vmatpush.bf16.msra.mxu0 %v2160
      %2767 = vmatpush.bf16.msra.mxu0 %v2152
      %2768 = vmatpush.bf16.msra.mxu0 %v2144
      %2769 = vmatpush.bf16.msra.mxu0 %v2136
      %2770 = vmatpush.bf16.msra.mxu0 %v2128
      %2771 = vmatpush.bf16.msra.mxu0 %v2120
      %2772 = vmatmul.bf16.gmra.mxu0 %v1588
      %v2773 = vpop.f32.mrf.mxu0
      %v2774 = vadd.f32 0.0, %v2773
      %v2775 = vpop.f32.mrf.mxu0
      %v2776 = vadd.f32 0.0, %v2775
      %2777 = vmatmul.bf16.gmra.mxu0 %v1590
      %v2778 = vpop.f32.mrf.mxu0
      %v2779 = vadd.f32 0.0, %v2778
      %v2780 = vpop.f32.mrf.mxu0
      %v2781 = vadd.f32 0.0, %v2780
      %2782 = vmatmul.bf16.gmra.mxu0 %v1592
      %v2783 = vpop.f32.mrf.mxu0
      %v2784 = vadd.f32 0.0, %v2783
      %v2785 = vpop.f32.mrf.mxu0
      %v2786 = vadd.f32 0.0, %v2785
      %2787 = vmatmul.bf16.gmra.mxu0 %v1594
      %v2788 = vpop.f32.mrf.mxu0
      %v2789 = vadd.f32 0.0, %v2788
      %v2790 = vpop.f32.mrf.mxu0
      %v2791 = vadd.f32 0.0, %v2790
      %2792 = vmatmul.bf16.gmra.mxu0 %v1596
      %v2793 = vpop.f32.mrf.mxu0
      %v2794 = vadd.f32 0.0, %v2793
      %v2795 = vpop.f32.mrf.mxu0
      %v2796 = vadd.f32 0.0, %v2795
      %2797 = vmatmul.bf16.gmra.mxu0 %v1598
      %v2798 = vpop.f32.mrf.mxu0
      %v2799 = vadd.f32 0.0, %v2798
      %v2800 = vpop.f32.mrf.mxu0
      %v2801 = vadd.f32 0.0, %v2800
      %2802 = vmatmul.bf16.gmra.mxu0 %v1600
      %v2803 = vpop.f32.mrf.mxu0
      %v2804 = vadd.f32 0.0, %v2803
      %v2805 = vpop.f32.mrf.mxu0
      %v2806 = vadd.f32 0.0, %v2805
      %2807 = vmatmul.bf16.gmra.mxu0 %v1602
      %v2808 = vpop.f32.mrf.mxu0
      %v2809 = vadd.f32 0.0, %v2808
      %v2810 = vpop.f32.mrf.mxu0
      %v2811 = vadd.f32 0.0, %v2810
      %2812 = vdwg.mxu0
      %2813 = vmatpush.bf16.msra.mxu0 %v2240
      %2814 = vmatpush.bf16.msra.mxu0 %v2232
      %2815 = vmatpush.bf16.msra.mxu0 %v2224
      %2816 = vmatpush.bf16.msra.mxu0 %v2216
      %2817 = vmatpush.bf16.msra.mxu0 %v2208
      %2818 = vmatpush.bf16.msra.mxu0 %v2200
      %2819 = vmatpush.bf16.msra.mxu0 %v2192
      %2820 = vmatpush.bf16.msra.mxu0 %v2184
      %2821 = vmatmul.bf16.gmra.mxu0 %v1589
      %v2822 = vpop.f32.mrf.mxu0
      %v2823 = vadd.f32 %v2774, %v2822
      %v2824 = vpop.f32.mrf.mxu0
      %v2825 = vadd.f32 %v2776, %v2824
      %2826 = vmatmul.bf16.gmra.mxu0 %v1591
      %v2827 = vpop.f32.mrf.mxu0
      %v2828 = vadd.f32 %v2779, %v2827
      %v2829 = vpop.f32.mrf.mxu0
      %v2830 = vadd.f32 %v2781, %v2829
      %2831 = vmatmul.bf16.gmra.mxu0 %v1593
      %v2832 = vpop.f32.mrf.mxu0
      %v2833 = vadd.f32 %v2784, %v2832
      %v2834 = vpop.f32.mrf.mxu0
      %v2835 = vadd.f32 %v2786, %v2834
      %2836 = vmatmul.bf16.gmra.mxu0 %v1595
      %v2837 = vpop.f32.mrf.mxu0
      %v2838 = vadd.f32 %v2789, %v2837
      %v2839 = vpop.f32.mrf.mxu0
      %v2840 = vadd.f32 %v2791, %v2839
      %2841 = vmatmul.bf16.gmra.mxu0 %v1597
      %v2842 = vpop.f32.mrf.mxu0
      %v2843 = vadd.f32 %v2794, %v2842
      %v2844 = vpop.f32.mrf.mxu0
      %v2845 = vadd.f32 %v2796, %v2844
      %2846 = vmatmul.bf16.gmra.mxu0 %v1599
      %v2847 = vpop.f32.mrf.mxu0
      %v2848 = vadd.f32 %v2799, %v2847
      %v2849 = vpop.f32.mrf.mxu0
      %v2850 = vadd.f32 %v2801, %v2849
      %2851 = vmatmul.bf16.gmra.mxu0 %v1601
      %v2852 = vpop.f32.mrf.mxu0
      %v2853 = vadd.f32 %v2804, %v2852
      %v2854 = vpop.f32.mrf.mxu0
      %v2855 = vadd.f32 %v2806, %v2854
      %2856 = vmatmul.bf16.gmra.mxu0 %v1603
      %v2857 = vpop.f32.mrf.mxu0
      %v2858 = vadd.f32 %v2809, %v2857
      %v2859 = vpop.f32.mrf.mxu0
      %v2860 = vadd.f32 %v2811, %v2859
      %2861 = vdwg.mxu0
      %2862 = vmatpush.bf16.msra.mxu0 %v2177
      %2863 = vmatpush.bf16.msra.mxu0 %v2169
      %2864 = vmatpush.bf16.msra.mxu0 %v2161
      %2865 = vmatpush.bf16.msra.mxu0 %v2153
      %2866 = vmatpush.bf16.msra.mxu0 %v2145
      %2867 = vmatpush.bf16.msra.mxu0 %v2137
      %2868 = vmatpush.bf16.msra.mxu0 %v2129
      %2869 = vmatpush.bf16.msra.mxu0 %v2121
      %2870 = vmatmul.bf16.gmra.mxu0 %v1588
      %v2871 = vpop.f32.mrf.mxu0
      %v2872 = vadd.f32 0.0, %v2871
      %v2873 = vpop.f32.mrf.mxu0
      %v2874 = vadd.f32 0.0, %v2873
      %2875 = vmatmul.bf16.gmra.mxu0 %v1590
      %v2876 = vpop.f32.mrf.mxu0
      %v2877 = vadd.f32 0.0, %v2876
      %v2878 = vpop.f32.mrf.mxu0
      %v2879 = vadd.f32 0.0, %v2878
      %2880 = vmatmul.bf16.gmra.mxu0 %v1592
      %v2881 = vpop.f32.mrf.mxu0
      %v2882 = vadd.f32 0.0, %v2881
      %v2883 = vpop.f32.mrf.mxu0
      %v2884 = vadd.f32 0.0, %v2883
      %2885 = vmatmul.bf16.gmra.mxu0 %v1594
      %v2886 = vpop.f32.mrf.mxu0
      %v2887 = vadd.f32 0.0, %v2886
      %v2888 = vpop.f32.mrf.mxu0
      %v2889 = vadd.f32 0.0, %v2888
      %2890 = vmatmul.bf16.gmra.mxu0 %v1596
      %v2891 = vpop.f32.mrf.mxu0
      %v2892 = vadd.f32 0.0, %v2891
      %v2893 = vpop.f32.mrf.mxu0
      %v2894 = vadd.f32 0.0, %v2893
      %2895 = vmatmul.bf16.gmra.mxu0 %v1598
      %v2896 = vpop.f32.mrf.mxu0
      %v2897 = vadd.f32 0.0, %v2896
      %v2898 = vpop.f32.mrf.mxu0
      %v2899 = vadd.f32 0.0, %v2898
      %2900 = vmatmul.bf16.gmra.mxu0 %v1600
      %v2901 = vpop.f32.mrf.mxu0
      %v2902 = vadd.f32 0.0, %v2901
      %v2903 = vpop.f32.mrf.mxu0
      %v2904 = vadd.f32 0.0, %v2903
      %2905 = vmatmul.bf16.gmra.mxu0 %v1602
      %v2906 = vpop.f32.mrf.mxu0
      %v2907 = vadd.f32 0.0, %v2906
      %v2908 = vpop.f32.mrf.mxu0
      %v2909 = vadd.f32 0.0, %v2908
      %2910 = vdwg.mxu0
      %2911 = vmatpush.bf16.msra.mxu0 %v2241
      %2912 = vmatpush.bf16.msra.mxu0 %v2233
      %2913 = vmatpush.bf16.msra.mxu0 %v2225
      %2914 = vmatpush.bf16.msra.mxu0 %v2217
      %2915 = vmatpush.bf16.msra.mxu0 %v2209
      %2916 = vmatpush.bf16.msra.mxu0 %v2201
      %2917 = vmatpush.bf16.msra.mxu0 %v2193
      %2918 = vmatpush.bf16.msra.mxu0 %v2185
      %2919 = vmatmul.bf16.gmra.mxu0 %v1589
      %v2920 = vpop.f32.mrf.mxu0
      %v2921 = vadd.f32 %v2872, %v2920
      %v2922 = vpop.f32.mrf.mxu0
      %v2923 = vadd.f32 %v2874, %v2922
      %2924 = vmatmul.bf16.gmra.mxu0 %v1591
      %v2925 = vpop.f32.mrf.mxu0
      %v2926 = vadd.f32 %v2877, %v2925
      %v2927 = vpop.f32.mrf.mxu0
      %v2928 = vadd.f32 %v2879, %v2927
      %2929 = vmatmul.bf16.gmra.mxu0 %v1593
      %v2930 = vpop.f32.mrf.mxu0
      %v2931 = vadd.f32 %v2882, %v2930
      %v2932 = vpop.f32.mrf.mxu0
      %v2933 = vadd.f32 %v2884, %v2932
      %2934 = vmatmul.bf16.gmra.mxu0 %v1595
      %v2935 = vpop.f32.mrf.mxu0
      %v2936 = vadd.f32 %v2887, %v2935
      %v2937 = vpop.f32.mrf.mxu0
      %v2938 = vadd.f32 %v2889, %v2937
      %2939 = vmatmul.bf16.gmra.mxu0 %v1597
      %v2940 = vpop.f32.mrf.mxu0
      %v2941 = vadd.f32 %v2892, %v2940
      %v2942 = vpop.f32.mrf.mxu0
      %v2943 = vadd.f32 %v2894, %v2942
      %2944 = vmatmul.bf16.gmra.mxu0 %v1599
      %v2945 = vpop.f32.mrf.mxu0
      %v2946 = vadd.f32 %v2897, %v2945
      %v2947 = vpop.f32.mrf.mxu0
      %v2948 = vadd.f32 %v2899, %v2947
      %2949 = vmatmul.bf16.gmra.mxu0 %v1601
      %v2950 = vpop.f32.mrf.mxu0
      %v2951 = vadd.f32 %v2902, %v2950
      %v2952 = vpop.f32.mrf.mxu0
      %v2953 = vadd.f32 %v2904, %v2952
      %2954 = vmatmul.bf16.gmra.mxu0 %v1603
      %v2955 = vpop.f32.mrf.mxu0
      %v2956 = vadd.f32 %v2907, %v2955
      %v2957 = vpop.f32.mrf.mxu0
      %v2958 = vadd.f32 %v2909, %v2957
      %2959 = vdwg.mxu0
      %2960 = vmatpush.bf16.msra.mxu0 %v2178
      %2961 = vmatpush.bf16.msra.mxu0 %v2170
      %2962 = vmatpush.bf16.msra.mxu0 %v2162
      %2963 = vmatpush.bf16.msra.mxu0 %v2154
      %2964 = vmatpush.bf16.msra.mxu0 %v2146
      %2965 = vmatpush.bf16.msra.mxu0 %v2138
      %2966 = vmatpush.bf16.msra.mxu0 %v2130
      %2967 = vmatpush.bf16.msra.mxu0 %v2122
      %2968 = vmatmul.bf16.gmra.mxu0 %v1588
      %v2969 = vpop.f32.mrf.mxu0
      %v2970 = vadd.f32 0.0, %v2969
      %v2971 = vpop.f32.mrf.mxu0
      %v2972 = vadd.f32 0.0, %v2971
      %2973 = vmatmul.bf16.gmra.mxu0 %v1590
      %v2974 = vpop.f32.mrf.mxu0
      %v2975 = vadd.f32 0.0, %v2974
      %v2976 = vpop.f32.mrf.mxu0
      %v2977 = vadd.f32 0.0, %v2976
      %2978 = vmatmul.bf16.gmra.mxu0 %v1592
      %v2979 = vpop.f32.mrf.mxu0
      %v2980 = vadd.f32 0.0, %v2979
      %v2981 = vpop.f32.mrf.mxu0
      %v2982 = vadd.f32 0.0, %v2981
      %2983 = vmatmul.bf16.gmra.mxu0 %v1594
      %v2984 = vpop.f32.mrf.mxu0
      %v2985 = vadd.f32 0.0, %v2984
      %v2986 = vpop.f32.mrf.mxu0
      %v2987 = vadd.f32 0.0, %v2986
      %2988 = vmatmul.bf16.gmra.mxu0 %v1596
      %v2989 = vpop.f32.mrf.mxu0
      %v2990 = vadd.f32 0.0, %v2989
      %v2991 = vpop.f32.mrf.mxu0
      %v2992 = vadd.f32 0.0, %v2991
      %2993 = vmatmul.bf16.gmra.mxu0 %v1598
      %v2994 = vpop.f32.mrf.mxu0
      %v2995 = vadd.f32 0.0, %v2994
      %v2996 = vpop.f32.mrf.mxu0
      %v2997 = vadd.f32 0.0, %v2996
      %2998 = vmatmul.bf16.gmra.mxu0 %v1600
      %v2999 = vpop.f32.mrf.mxu0
      %v3000 = vadd.f32 0.0, %v2999
      %v3001 = vpop.f32.mrf.mxu0
      %v3002 = vadd.f32 0.0, %v3001
      %3003 = vmatmul.bf16.gmra.mxu0 %v1602
      %v3004 = vpop.f32.mrf.mxu0
      %v3005 = vadd.f32 0.0, %v3004
      %v3006 = vpop.f32.mrf.mxu0
      %v3007 = vadd.f32 0.0, %v3006
      %3008 = vdwg.mxu0
      %3009 = vmatpush.bf16.msra.mxu0 %v2242
      %3010 = vmatpush.bf16.msra.mxu0 %v2234
      %3011 = vmatpush.bf16.msra.mxu0 %v2226
      %3012 = vmatpush.bf16.msra.mxu0 %v2218
      %3013 = vmatpush.bf16.msra.mxu0 %v2210
      %3014 = vmatpush.bf16.msra.mxu0 %v2202
      %3015 = vmatpush.bf16.msra.mxu0 %v2194
      %3016 = vmatpush.bf16.msra.mxu0 %v2186
      %3017 = vmatmul.bf16.gmra.mxu0 %v1589
      %v3018 = vpop.f32.mrf.mxu0
      %v3019 = vadd.f32 %v2970, %v3018
      %v3020 = vpop.f32.mrf.mxu0
      %v3021 = vadd.f32 %v2972, %v3020
      %3022 = vmatmul.bf16.gmra.mxu0 %v1591
      %v3023 = vpop.f32.mrf.mxu0
      %v3024 = vadd.f32 %v2975, %v3023
      %v3025 = vpop.f32.mrf.mxu0
      %v3026 = vadd.f32 %v2977, %v3025
      %3027 = vmatmul.bf16.gmra.mxu0 %v1593
      %v3028 = vpop.f32.mrf.mxu0
      %v3029 = vadd.f32 %v2980, %v3028
      %v3030 = vpop.f32.mrf.mxu0
      %v3031 = vadd.f32 %v2982, %v3030
      %3032 = vmatmul.bf16.gmra.mxu0 %v1595
      %v3033 = vpop.f32.mrf.mxu0
      %v3034 = vadd.f32 %v2985, %v3033
      %v3035 = vpop.f32.mrf.mxu0
      %v3036 = vadd.f32 %v2987, %v3035
      %3037 = vmatmul.bf16.gmra.mxu0 %v1597
      %v3038 = vpop.f32.mrf.mxu0
      %v3039 = vadd.f32 %v2990, %v3038
      %v3040 = vpop.f32.mrf.mxu0
      %v3041 = vadd.f32 %v2992, %v3040
      %3042 = vmatmul.bf16.gmra.mxu0 %v1599
      %v3043 = vpop.f32.mrf.mxu0
      %v3044 = vadd.f32 %v2995, %v3043
      %v3045 = vpop.f32.mrf.mxu0
      %v3046 = vadd.f32 %v2997, %v3045
      %3047 = vmatmul.bf16.gmra.mxu0 %v1601
      %v3048 = vpop.f32.mrf.mxu0
      %v3049 = vadd.f32 %v3000, %v3048
      %v3050 = vpop.f32.mrf.mxu0
      %v3051 = vadd.f32 %v3002, %v3050
      %3052 = vmatmul.bf16.gmra.mxu0 %v1603
      %v3053 = vpop.f32.mrf.mxu0
      %v3054 = vadd.f32 %v3005, %v3053
      %v3055 = vpop.f32.mrf.mxu0
      %v3056 = vadd.f32 %v3007, %v3055
      %3057 = vdwg.mxu0
      %3058 = vmatpush.bf16.msra.mxu0 %v2179
      %3059 = vmatpush.bf16.msra.mxu0 %v2171
      %3060 = vmatpush.bf16.msra.mxu0 %v2163
      %3061 = vmatpush.bf16.msra.mxu0 %v2155
      %3062 = vmatpush.bf16.msra.mxu0 %v2147
      %3063 = vmatpush.bf16.msra.mxu0 %v2139
      %3064 = vmatpush.bf16.msra.mxu0 %v2131
      %3065 = vmatpush.bf16.msra.mxu0 %v2123
      %3066 = vmatmul.bf16.gmra.mxu0 %v1588
      %v3067 = vpop.f32.mrf.mxu0
      %v3068 = vadd.f32 0.0, %v3067
      %v3069 = vpop.f32.mrf.mxu0
      %v3070 = vadd.f32 0.0, %v3069
      %3071 = vmatmul.bf16.gmra.mxu0 %v1590
      %v3072 = vpop.f32.mrf.mxu0
      %v3073 = vadd.f32 0.0, %v3072
      %v3074 = vpop.f32.mrf.mxu0
      %v3075 = vadd.f32 0.0, %v3074
      %3076 = vmatmul.bf16.gmra.mxu0 %v1592
      %v3077 = vpop.f32.mrf.mxu0
      %v3078 = vadd.f32 0.0, %v3077
      %v3079 = vpop.f32.mrf.mxu0
      %v3080 = vadd.f32 0.0, %v3079
      %3081 = vmatmul.bf16.gmra.mxu0 %v1594
      %v3082 = vpop.f32.mrf.mxu0
      %v3083 = vadd.f32 0.0, %v3082
      %v3084 = vpop.f32.mrf.mxu0
      %v3085 = vadd.f32 0.0, %v3084
      %3086 = vmatmul.bf16.gmra.mxu0 %v1596
      %v3087 = vpop.f32.mrf.mxu0
      %v3088 = vadd.f32 0.0, %v3087
      %v3089 = vpop.f32.mrf.mxu0
      %v3090 = vadd.f32 0.0, %v3089
      %3091 = vmatmul.bf16.gmra.mxu0 %v1598
      %v3092 = vpop.f32.mrf.mxu0
      %v3093 = vadd.f32 0.0, %v3092
      %v3094 = vpop.f32.mrf.mxu0
      %v3095 = vadd.f32 0.0, %v3094
      %3096 = vmatmul.bf16.gmra.mxu0 %v1600
      %v3097 = vpop.f32.mrf.mxu0
      %v3098 = vadd.f32 0.0, %v3097
      %v3099 = vpop.f32.mrf.mxu0
      %v3100 = vadd.f32 0.0, %v3099
      %3101 = vmatmul.bf16.gmra.mxu0 %v1602
      %v3102 = vpop.f32.mrf.mxu0
      %v3103 = vadd.f32 0.0, %v3102
      %v3104 = vpop.f32.mrf.mxu0
      %v3105 = vadd.f32 0.0, %v3104
      %3106 = vdwg.mxu0
      %3107 = vmatpush.bf16.msra.mxu0 %v2243
      %3108 = vmatpush.bf16.msra.mxu0 %v2235
      %3109 = vmatpush.bf16.msra.mxu0 %v2227
      %3110 = vmatpush.bf16.msra.mxu0 %v2219
      %3111 = vmatpush.bf16.msra.mxu0 %v2211
      %3112 = vmatpush.bf16.msra.mxu0 %v2203
      %3113 = vmatpush.bf16.msra.mxu0 %v2195
      %3114 = vmatpush.bf16.msra.mxu0 %v2187
      %3115 = vmatmul.bf16.gmra.mxu0 %v1589
      %v3116 = vpop.f32.mrf.mxu0
      %v3117 = vadd.f32 %v3068, %v3116
      %v3118 = vpop.f32.mrf.mxu0
      %v3119 = vadd.f32 %v3070, %v3118
      %3120 = vmatmul.bf16.gmra.mxu0 %v1591
      %v3121 = vpop.f32.mrf.mxu0
      %v3122 = vadd.f32 %v3073, %v3121
      %v3123 = vpop.f32.mrf.mxu0
      %v3124 = vadd.f32 %v3075, %v3123
      %3125 = vmatmul.bf16.gmra.mxu0 %v1593
      %v3126 = vpop.f32.mrf.mxu0
      %v3127 = vadd.f32 %v3078, %v3126
      %v3128 = vpop.f32.mrf.mxu0
      %v3129 = vadd.f32 %v3080, %v3128
      %3130 = vmatmul.bf16.gmra.mxu0 %v1595
      %v3131 = vpop.f32.mrf.mxu0
      %v3132 = vadd.f32 %v3083, %v3131
      %v3133 = vpop.f32.mrf.mxu0
      %v3134 = vadd.f32 %v3085, %v3133
      %3135 = vmatmul.bf16.gmra.mxu0 %v1597
      %v3136 = vpop.f32.mrf.mxu0
      %v3137 = vadd.f32 %v3088, %v3136
      %v3138 = vpop.f32.mrf.mxu0
      %v3139 = vadd.f32 %v3090, %v3138
      %3140 = vmatmul.bf16.gmra.mxu0 %v1599
      %v3141 = vpop.f32.mrf.mxu0
      %v3142 = vadd.f32 %v3093, %v3141
      %v3143 = vpop.f32.mrf.mxu0
      %v3144 = vadd.f32 %v3095, %v3143
      %3145 = vmatmul.bf16.gmra.mxu0 %v1601
      %v3146 = vpop.f32.mrf.mxu0
      %v3147 = vadd.f32 %v3098, %v3146
      %v3148 = vpop.f32.mrf.mxu0
      %v3149 = vadd.f32 %v3100, %v3148
      %3150 = vmatmul.bf16.gmra.mxu0 %v1603
      %v3151 = vpop.f32.mrf.mxu0
      %v3152 = vadd.f32 %v3103, %v3151
      %v3153 = vpop.f32.mrf.mxu0
      %v3154 = vadd.f32 %v3105, %v3153
      %3155 = vdwg.mxu0
      %v3284 = vunpack.c.l.b16 %v1428
      %v3285 = vunpack.c.h.b16 %v1428
      %v3286 = vunpack.c.l.b16 %v1429
      %v3287 = vunpack.c.h.b16 %v1429
      %v3288 = vunpack.c.l.b16 %v1430
      %v3289 = vunpack.c.h.b16 %v1430
      %v3290 = vunpack.c.l.b16 %v1431
      %v3291 = vunpack.c.h.b16 %v1431
      %v3292 = vunpack.c.l.b16 %v1432
      %v3293 = vunpack.c.h.b16 %v1432
      %v3294 = vunpack.c.l.b16 %v1433
      %v3295 = vunpack.c.h.b16 %v1433
      %v3296 = vunpack.c.l.b16 %v1434
      %v3297 = vunpack.c.h.b16 %v1434
      %v3298 = vunpack.c.l.b16 %v1435
      %v3299 = vunpack.c.h.b16 %v1435
      %v3300 = vunpack.c.l.b16 %v1436
      %v3301 = vunpack.c.h.b16 %v1436
      %v3302 = vunpack.c.l.b16 %v1437
      %v3303 = vunpack.c.h.b16 %v1437
      %v3304 = vunpack.c.l.b16 %v1438
      %v3305 = vunpack.c.h.b16 %v1438
      %v3306 = vunpack.c.l.b16 %v1439
      %v3307 = vunpack.c.h.b16 %v1439
      %v3308 = vunpack.c.l.b16 %v1440
      %v3309 = vunpack.c.h.b16 %v1440
      %v3310 = vunpack.c.l.b16 %v1441
      %v3311 = vunpack.c.h.b16 %v1441
      %v3312 = vunpack.c.l.b16 %v1442
      %v3313 = vunpack.c.h.b16 %v1442
      %v3314 = vunpack.c.l.b16 %v1443
      %v3315 = vunpack.c.h.b16 %v1443
      %v3316 = vunpack.c.l.b16 %v1444
      %v3317 = vunpack.c.h.b16 %v1444
      %v3318 = vunpack.c.l.b16 %v1445
      %v3319 = vunpack.c.h.b16 %v1445
      %v3320 = vunpack.c.l.b16 %v1446
      %v3321 = vunpack.c.h.b16 %v1446
      %v3322 = vunpack.c.l.b16 %v1447
      %v3323 = vunpack.c.h.b16 %v1447
      %v3324 = vunpack.c.l.b16 %v1448
      %v3325 = vunpack.c.h.b16 %v1448
      %v3326 = vunpack.c.l.b16 %v1449
      %v3327 = vunpack.c.h.b16 %v1449
      %v3328 = vunpack.c.l.b16 %v1450
      %v3329 = vunpack.c.h.b16 %v1450
      %v3330 = vunpack.c.l.b16 %v1451
      %v3331 = vunpack.c.h.b16 %v1451
      %v3332 = vunpack.c.l.b16 %v1452
      %v3333 = vunpack.c.h.b16 %v1452
      %v3334 = vunpack.c.l.b16 %v1453
      %v3335 = vunpack.c.h.b16 %v1453
      %v3336 = vunpack.c.l.b16 %v1454
      %v3337 = vunpack.c.h.b16 %v1454
      %v3338 = vunpack.c.l.b16 %v1455
      %v3339 = vunpack.c.h.b16 %v1455
      %v3340 = vunpack.c.l.b16 %v1456
      %v3341 = vunpack.c.h.b16 %v1456
      %v3342 = vunpack.c.l.b16 %v1457
      %v3343 = vunpack.c.h.b16 %v1457
      %v3344 = vunpack.c.l.b16 %v1458
      %v3345 = vunpack.c.h.b16 %v1458
      %v3346 = vunpack.c.l.b16 %v1459
      %v3347 = vunpack.c.h.b16 %v1459
      %v3348 = vunpack.c.l.b16 %v1460
      %v3349 = vunpack.c.h.b16 %v1460
      %v3350 = vunpack.c.l.b16 %v1461
      %v3351 = vunpack.c.h.b16 %v1461
      %v3352 = vunpack.c.l.b16 %v1462
      %v3353 = vunpack.c.h.b16 %v1462
      %v3354 = vunpack.c.l.b16 %v1463
      %v3355 = vunpack.c.h.b16 %v1463
      %v3356 = vunpack.c.l.b16 %v1464
      %v3357 = vunpack.c.h.b16 %v1464
      %v3358 = vunpack.c.l.b16 %v1465
      %v3359 = vunpack.c.h.b16 %v1465
      %v3360 = vunpack.c.l.b16 %v1466
      %v3361 = vunpack.c.h.b16 %v1466
      %v3362 = vunpack.c.l.b16 %v1467
      %v3363 = vunpack.c.h.b16 %v1467
      %v3364 = vunpack.c.l.b16 %v1468
      %v3365 = vunpack.c.h.b16 %v1468
      %v3366 = vunpack.c.l.b16 %v1469
      %v3367 = vunpack.c.h.b16 %v1469
      %v3368 = vunpack.c.l.b16 %v1470
      %v3369 = vunpack.c.h.b16 %v1470
      %v3370 = vunpack.c.l.b16 %v1471
      %v3371 = vunpack.c.h.b16 %v1471
      %v3372 = vunpack.c.l.b16 %v1472
      %v3373 = vunpack.c.h.b16 %v1472
      %v3374 = vunpack.c.l.b16 %v1473
      %v3375 = vunpack.c.h.b16 %v1473
      %v3376 = vunpack.c.l.b16 %v1474
      %v3377 = vunpack.c.h.b16 %v1474
      %v3378 = vunpack.c.l.b16 %v1475
      %v3379 = vunpack.c.h.b16 %v1475
      %v3380 = vunpack.c.l.b16 %v1476
      %v3381 = vunpack.c.h.b16 %v1476
      %v3382 = vunpack.c.l.b16 %v1477
      %v3383 = vunpack.c.h.b16 %v1477
      %v3384 = vunpack.c.l.b16 %v1478
      %v3385 = vunpack.c.h.b16 %v1478
      %v3386 = vunpack.c.l.b16 %v1479
      %v3387 = vunpack.c.h.b16 %v1479
      %v3388 = vunpack.c.l.b16 %v1480
      %v3389 = vunpack.c.h.b16 %v1480
      %v3390 = vunpack.c.l.b16 %v1481
      %v3391 = vunpack.c.h.b16 %v1481
      %v3392 = vunpack.c.l.b16 %v1482
      %v3393 = vunpack.c.h.b16 %v1482
      %v3394 = vunpack.c.l.b16 %v1483
      %v3395 = vunpack.c.h.b16 %v1483
      %v3396 = vunpack.c.l.b16 %v1484
      %v3397 = vunpack.c.h.b16 %v1484
      %v3398 = vunpack.c.l.b16 %v1485
      %v3399 = vunpack.c.h.b16 %v1485
      %v3400 = vunpack.c.l.b16 %v1486
      %v3401 = vunpack.c.h.b16 %v1486
      %v3402 = vunpack.c.l.b16 %v1487
      %v3403 = vunpack.c.h.b16 %v1487
      %v3404 = vunpack.c.l.b16 %v1488
      %v3405 = vunpack.c.h.b16 %v1488
      %v3406 = vunpack.c.l.b16 %v1489
      %v3407 = vunpack.c.h.b16 %v1489
      %v3408 = vunpack.c.l.b16 %v1490
      %v3409 = vunpack.c.h.b16 %v1490
      %v3410 = vunpack.c.l.b16 %v1491
      %v3411 = vunpack.c.h.b16 %v1491
      %v3412 = vunpack.c.l.b16 %v1492
      %v3413 = vunpack.c.h.b16 %v1492
      %v3414 = vunpack.c.l.b16 %v1493
      %v3415 = vunpack.c.h.b16 %v1493
      %v3416 = vunpack.c.l.b16 %v1494
      %v3417 = vunpack.c.h.b16 %v1494
      %v3418 = vunpack.c.l.b16 %v1495
      %v3419 = vunpack.c.h.b16 %v1495
      %v3420 = vunpack.c.l.b16 %v1496
      %v3421 = vunpack.c.h.b16 %v1496
      %v3422 = vunpack.c.l.b16 %v1497
      %v3423 = vunpack.c.h.b16 %v1497
      %v3424 = vunpack.c.l.b16 %v1498
      %v3425 = vunpack.c.h.b16 %v1498
      %v3426 = vunpack.c.l.b16 %v1499
      %v3427 = vunpack.c.h.b16 %v1499
      %v3428 = vunpack.c.l.b16 %v1500
      %v3429 = vunpack.c.h.b16 %v1500
      %v3430 = vunpack.c.l.b16 %v1501
      %v3431 = vunpack.c.h.b16 %v1501
      %v3432 = vunpack.c.l.b16 %v1502
      %v3433 = vunpack.c.h.b16 %v1502
      %v3434 = vunpack.c.l.b16 %v1503
      %v3435 = vunpack.c.h.b16 %v1503
      %v3436 = vunpack.c.l.b16 %v1504
      %v3437 = vunpack.c.h.b16 %v1504
      %v3438 = vunpack.c.l.b16 %v1505
      %v3439 = vunpack.c.h.b16 %v1505
      %v3440 = vunpack.c.l.b16 %v1506
      %v3441 = vunpack.c.h.b16 %v1506
      %v3442 = vunpack.c.l.b16 %v1507
      %v3443 = vunpack.c.h.b16 %v1507
      %v3444 = vunpack.c.l.b16 %v1508
      %v3445 = vunpack.c.h.b16 %v1508
      %v3446 = vunpack.c.l.b16 %v1509
      %v3447 = vunpack.c.h.b16 %v1509
      %v3448 = vunpack.c.l.b16 %v1510
      %v3449 = vunpack.c.h.b16 %v1510
      %v3450 = vunpack.c.l.b16 %v1511
      %v3451 = vunpack.c.h.b16 %v1511
      %v3452 = vunpack.c.l.b16 %v1512
      %v3453 = vunpack.c.h.b16 %v1512
      %v3454 = vunpack.c.l.b16 %v1513
      %v3455 = vunpack.c.h.b16 %v1513
      %v3456 = vunpack.c.l.b16 %v1514
      %v3457 = vunpack.c.h.b16 %v1514
      %v3458 = vunpack.c.l.b16 %v1515
      %v3459 = vunpack.c.h.b16 %v1515
      %v3460 = vunpack.c.l.b16 %v1516
      %v3461 = vunpack.c.h.b16 %v1516
      %v3462 = vunpack.c.l.b16 %v1517
      %v3463 = vunpack.c.h.b16 %v1517
      %v3464 = vunpack.c.l.b16 %v1518
      %v3465 = vunpack.c.h.b16 %v1518
      %v3466 = vunpack.c.l.b16 %v1519
      %v3467 = vunpack.c.h.b16 %v1519
      %v3468 = vunpack.c.l.b16 %v1520
      %v3469 = vunpack.c.h.b16 %v1520
      %v3470 = vunpack.c.l.b16 %v1521
      %v3471 = vunpack.c.h.b16 %v1521
      %v3472 = vunpack.c.l.b16 %v1522
      %v3473 = vunpack.c.h.b16 %v1522
      %v3474 = vunpack.c.l.b16 %v1523
      %v3475 = vunpack.c.h.b16 %v1523
      %v3476 = vunpack.c.l.b16 %v1524
      %v3477 = vunpack.c.h.b16 %v1524
      %v3478 = vunpack.c.l.b16 %v1525
      %v3479 = vunpack.c.h.b16 %v1525
      %v3480 = vunpack.c.l.b16 %v1526
      %v3481 = vunpack.c.h.b16 %v1526
      %v3482 = vunpack.c.l.b16 %v1527
      %v3483 = vunpack.c.h.b16 %v1527
      %v3484 = vunpack.c.l.b16 %v1528
      %v3485 = vunpack.c.h.b16 %v1528
      %v3486 = vunpack.c.l.b16 %v1529
      %v3487 = vunpack.c.h.b16 %v1529
      %v3488 = vunpack.c.l.b16 %v1530
      %v3489 = vunpack.c.h.b16 %v1530
      %v3490 = vunpack.c.l.b16 %v1531
      %v3491 = vunpack.c.h.b16 %v1531
      %v3492 = vunpack.c.l.b16 %v1532
      %v3493 = vunpack.c.h.b16 %v1532
      %v3494 = vunpack.c.l.b16 %v1533
      %v3495 = vunpack.c.h.b16 %v1533
      %v3496 = vunpack.c.l.b16 %v1534
      %v3497 = vunpack.c.h.b16 %v1534
      %v3498 = vunpack.c.l.b16 %v1535
      %v3499 = vunpack.c.h.b16 %v1535
      %v3500 = vunpack.c.l.b16 %v1536
      %v3501 = vunpack.c.h.b16 %v1536
      %v3502 = vunpack.c.l.b16 %v1537
      %v3503 = vunpack.c.h.b16 %v1537
      %v3504 = vunpack.c.l.b16 %v1538
      %v3505 = vunpack.c.h.b16 %v1538
      %v3506 = vunpack.c.l.b16 %v1539
      %v3507 = vunpack.c.h.b16 %v1539
      %v3508 = vunpack.c.l.b16 %v1540
      %v3509 = vunpack.c.h.b16 %v1540
      %v3510 = vunpack.c.l.b16 %v1541
      %v3511 = vunpack.c.h.b16 %v1541
      %v3512 = vunpack.c.l.b16 %v1542
      %v3513 = vunpack.c.h.b16 %v1542
      %v3514 = vunpack.c.l.b16 %v1543
      %v3515 = vunpack.c.h.b16 %v1543
      %v3516 = vunpack.c.l.b16 %v1544
      %v3517 = vunpack.c.h.b16 %v1544
      %v3518 = vunpack.c.l.b16 %v1545
      %v3519 = vunpack.c.h.b16 %v1545
      %v3520 = vunpack.c.l.b16 %v1546
      %v3521 = vunpack.c.h.b16 %v1546
      %v3522 = vunpack.c.l.b16 %v1547
      %v3523 = vunpack.c.h.b16 %v1547
      %v3524 = vunpack.c.l.b16 %v1548
      %v3525 = vunpack.c.h.b16 %v1548
      %v3526 = vunpack.c.l.b16 %v1549
      %v3527 = vunpack.c.h.b16 %v1549
      %v3528 = vunpack.c.l.b16 %v1550
      %v3529 = vunpack.c.h.b16 %v1550
      %v3530 = vunpack.c.l.b16 %v1551
      %v3531 = vunpack.c.h.b16 %v1551
      %v3532 = vunpack.c.l.b16 %v1552
      %v3533 = vunpack.c.h.b16 %v1552
      %v3534 = vunpack.c.l.b16 %v1553
      %v3535 = vunpack.c.h.b16 %v1553
      %v3536 = vunpack.c.l.b16 %v1554
      %v3537 = vunpack.c.h.b16 %v1554
      %v3538 = vunpack.c.l.b16 %v1555
      %v3539 = vunpack.c.h.b16 %v1555
      %v3540 = vpack.c.b16 %v3292, %v3284
      %v3541 = vpack.c.b16 %v3293, %v3285
      %v3542 = vpack.c.b16 %v3294, %v3286
      %v3543 = vpack.c.b16 %v3295, %v3287
      %v3544 = vpack.c.b16 %v3296, %v3288
      %v3545 = vpack.c.b16 %v3297, %v3289
      %v3546 = vpack.c.b16 %v3298, %v3290
      %v3547 = vpack.c.b16 %v3299, %v3291
      %v3548 = vpack.c.b16 %v3308, %v3300
      %v3549 = vpack.c.b16 %v3309, %v3301
      %v3550 = vpack.c.b16 %v3310, %v3302
      %v3551 = vpack.c.b16 %v3311, %v3303
      %v3552 = vpack.c.b16 %v3312, %v3304
      %v3553 = vpack.c.b16 %v3313, %v3305
      %v3554 = vpack.c.b16 %v3314, %v3306
      %v3555 = vpack.c.b16 %v3315, %v3307
      %v3556 = vpack.c.b16 %v3324, %v3316
      %v3557 = vpack.c.b16 %v3325, %v3317
      %v3558 = vpack.c.b16 %v3326, %v3318
      %v3559 = vpack.c.b16 %v3327, %v3319
      %v3560 = vpack.c.b16 %v3328, %v3320
      %v3561 = vpack.c.b16 %v3329, %v3321
      %v3562 = vpack.c.b16 %v3330, %v3322
      %v3563 = vpack.c.b16 %v3331, %v3323
      %v3564 = vpack.c.b16 %v3340, %v3332
      %v3565 = vpack.c.b16 %v3341, %v3333
      %v3566 = vpack.c.b16 %v3342, %v3334
      %v3567 = vpack.c.b16 %v3343, %v3335
      %v3568 = vpack.c.b16 %v3344, %v3336
      %v3569 = vpack.c.b16 %v3345, %v3337
      %v3570 = vpack.c.b16 %v3346, %v3338
      %v3571 = vpack.c.b16 %v3347, %v3339
      %v3572 = vpack.c.b16 %v3356, %v3348
      %v3573 = vpack.c.b16 %v3357, %v3349
      %v3574 = vpack.c.b16 %v3358, %v3350
      %v3575 = vpack.c.b16 %v3359, %v3351
      %v3576 = vpack.c.b16 %v3360, %v3352
      %v3577 = vpack.c.b16 %v3361, %v3353
      %v3578 = vpack.c.b16 %v3362, %v3354
      %v3579 = vpack.c.b16 %v3363, %v3355
      %v3580 = vpack.c.b16 %v3372, %v3364
      %v3581 = vpack.c.b16 %v3373, %v3365
      %v3582 = vpack.c.b16 %v3374, %v3366
      %v3583 = vpack.c.b16 %v3375, %v3367
      %v3584 = vpack.c.b16 %v3376, %v3368
      %v3585 = vpack.c.b16 %v3377, %v3369
      %v3586 = vpack.c.b16 %v3378, %v3370
      %v3587 = vpack.c.b16 %v3379, %v3371
      %v3588 = vpack.c.b16 %v3388, %v3380
      %v3589 = vpack.c.b16 %v3389, %v3381
      %v3590 = vpack.c.b16 %v3390, %v3382
      %v3591 = vpack.c.b16 %v3391, %v3383
      %v3592 = vpack.c.b16 %v3392, %v3384
      %v3593 = vpack.c.b16 %v3393, %v3385
      %v3594 = vpack.c.b16 %v3394, %v3386
      %v3595 = vpack.c.b16 %v3395, %v3387
      %v3596 = vpack.c.b16 %v3404, %v3396
      %v3597 = vpack.c.b16 %v3405, %v3397
      %v3598 = vpack.c.b16 %v3406, %v3398
      %v3599 = vpack.c.b16 %v3407, %v3399
      %v3600 = vpack.c.b16 %v3408, %v3400
      %v3601 = vpack.c.b16 %v3409, %v3401
      %v3602 = vpack.c.b16 %v3410, %v3402
      %v3603 = vpack.c.b16 %v3411, %v3403
      %v3604 = vpack.c.b16 %v3420, %v3412
      %v3605 = vpack.c.b16 %v3421, %v3413
      %v3606 = vpack.c.b16 %v3422, %v3414
      %v3607 = vpack.c.b16 %v3423, %v3415
      %v3608 = vpack.c.b16 %v3424, %v3416
      %v3609 = vpack.c.b16 %v3425, %v3417
      %v3610 = vpack.c.b16 %v3426, %v3418
      %v3611 = vpack.c.b16 %v3427, %v3419
      %v3612 = vpack.c.b16 %v3436, %v3428
      %v3613 = vpack.c.b16 %v3437, %v3429
      %v3614 = vpack.c.b16 %v3438, %v3430
      %v3615 = vpack.c.b16 %v3439, %v3431
      %v3616 = vpack.c.b16 %v3440, %v3432
      %v3617 = vpack.c.b16 %v3441, %v3433
      %v3618 = vpack.c.b16 %v3442, %v3434
      %v3619 = vpack.c.b16 %v3443, %v3435
      %v3620 = vpack.c.b16 %v3452, %v3444
      %v3621 = vpack.c.b16 %v3453, %v3445
      %v3622 = vpack.c.b16 %v3454, %v3446
      %v3623 = vpack.c.b16 %v3455, %v3447
      %v3624 = vpack.c.b16 %v3456, %v3448
      %v3625 = vpack.c.b16 %v3457, %v3449
      %v3626 = vpack.c.b16 %v3458, %v3450
      %v3627 = vpack.c.b16 %v3459, %v3451
      %v3628 = vpack.c.b16 %v3468, %v3460
      %v3629 = vpack.c.b16 %v3469, %v3461
      %v3630 = vpack.c.b16 %v3470, %v3462
      %v3631 = vpack.c.b16 %v3471, %v3463
      %v3632 = vpack.c.b16 %v3472, %v3464
      %v3633 = vpack.c.b16 %v3473, %v3465
      %v3634 = vpack.c.b16 %v3474, %v3466
      %v3635 = vpack.c.b16 %v3475, %v3467
      %v3636 = vpack.c.b16 %v3484, %v3476
      %v3637 = vpack.c.b16 %v3485, %v3477
      %v3638 = vpack.c.b16 %v3486, %v3478
      %v3639 = vpack.c.b16 %v3487, %v3479
      %v3640 = vpack.c.b16 %v3488, %v3480
      %v3641 = vpack.c.b16 %v3489, %v3481
      %v3642 = vpack.c.b16 %v3490, %v3482
      %v3643 = vpack.c.b16 %v3491, %v3483
      %v3644 = vpack.c.b16 %v3500, %v3492
      %v3645 = vpack.c.b16 %v3501, %v3493
      %v3646 = vpack.c.b16 %v3502, %v3494
      %v3647 = vpack.c.b16 %v3503, %v3495
      %v3648 = vpack.c.b16 %v3504, %v3496
      %v3649 = vpack.c.b16 %v3505, %v3497
      %v3650 = vpack.c.b16 %v3506, %v3498
      %v3651 = vpack.c.b16 %v3507, %v3499
      %v3652 = vpack.c.b16 %v3516, %v3508
      %v3653 = vpack.c.b16 %v3517, %v3509
      %v3654 = vpack.c.b16 %v3518, %v3510
      %v3655 = vpack.c.b16 %v3519, %v3511
      %v3656 = vpack.c.b16 %v3520, %v3512
      %v3657 = vpack.c.b16 %v3521, %v3513
      %v3658 = vpack.c.b16 %v3522, %v3514
      %v3659 = vpack.c.b16 %v3523, %v3515
      %v3660 = vpack.c.b16 %v3532, %v3524
      %v3661 = vpack.c.b16 %v3533, %v3525
      %v3662 = vpack.c.b16 %v3534, %v3526
      %v3663 = vpack.c.b16 %v3535, %v3527
      %v3664 = vpack.c.b16 %v3536, %v3528
      %v3665 = vpack.c.b16 %v3537, %v3529
      %v3666 = vpack.c.b16 %v3538, %v3530
      %v3667 = vpack.c.b16 %v3539, %v3531
      %3796 = vmatpush.bf16.msra.mxu0 %v3596
      %3797 = vmatpush.bf16.msra.mxu0 %v3588
      %3798 = vmatpush.bf16.msra.mxu0 %v3580
      %3799 = vmatpush.bf16.msra.mxu0 %v3572
      %3800 = vmatpush.bf16.msra.mxu0 %v3564
      %3801 = vmatpush.bf16.msra.mxu0 %v3556
      %3802 = vmatpush.bf16.msra.mxu0 %v3548
      %3803 = vmatpush.bf16.msra.mxu0 %v3540
      %3804 = vmatmul.bf16.gmra.mxu0 %v1412
      %v3805 = vpop.f32.mrf.mxu0
      %v3806 = vadd.f32 %v2431, %v3805
      %v3807 = vpop.f32.mrf.mxu0
      %v3808 = vadd.f32 %v2433, %v3807
      %3809 = vmatmul.bf16.gmra.mxu0 %v1414
      %v3810 = vpop.f32.mrf.mxu0
      %v3811 = vadd.f32 %v2436, %v3810
      %v3812 = vpop.f32.mrf.mxu0
      %v3813 = vadd.f32 %v2438, %v3812
      %3814 = vmatmul.bf16.gmra.mxu0 %v1416
      %v3815 = vpop.f32.mrf.mxu0
      %v3816 = vadd.f32 %v2441, %v3815
      %v3817 = vpop.f32.mrf.mxu0
      %v3818 = vadd.f32 %v2443, %v3817
      %3819 = vmatmul.bf16.gmra.mxu0 %v1418
      %v3820 = vpop.f32.mrf.mxu0
      %v3821 = vadd.f32 %v2446, %v3820
      %v3822 = vpop.f32.mrf.mxu0
      %v3823 = vadd.f32 %v2448, %v3822
      %3824 = vmatmul.bf16.gmra.mxu0 %v1420
      %v3825 = vpop.f32.mrf.mxu0
      %v3826 = vadd.f32 %v2451, %v3825
      %v3827 = vpop.f32.mrf.mxu0
      %v3828 = vadd.f32 %v2453, %v3827
      %3829 = vmatmul.bf16.gmra.mxu0 %v1422
      %v3830 = vpop.f32.mrf.mxu0
      %v3831 = vadd.f32 %v2456, %v3830
      %v3832 = vpop.f32.mrf.mxu0
      %v3833 = vadd.f32 %v2458, %v3832
      %3834 = vmatmul.bf16.gmra.mxu0 %v1424
      %v3835 = vpop.f32.mrf.mxu0
      %v3836 = vadd.f32 %v2461, %v3835
      %v3837 = vpop.f32.mrf.mxu0
      %v3838 = vadd.f32 %v2463, %v3837
      %3839 = vmatmul.bf16.gmra.mxu0 %v1426
      %v3840 = vpop.f32.mrf.mxu0
      %v3841 = vadd.f32 %v2466, %v3840
      %v3842 = vpop.f32.mrf.mxu0
      %v3843 = vadd.f32 %v2468, %v3842
      %3844 = vdwg.mxu0
      %3845 = vmatpush.bf16.msra.mxu0 %v3660
      %3846 = vmatpush.bf16.msra.mxu0 %v3652
      %3847 = vmatpush.bf16.msra.mxu0 %v3644
      %3848 = vmatpush.bf16.msra.mxu0 %v3636
      %3849 = vmatpush.bf16.msra.mxu0 %v3628
      %3850 = vmatpush.bf16.msra.mxu0 %v3620
      %3851 = vmatpush.bf16.msra.mxu0 %v3612
      %3852 = vmatpush.bf16.msra.mxu0 %v3604
      %3853 = vmatmul.bf16.gmra.mxu0 %v1413
      %v3854 = vpop.f32.mrf.mxu0
      %v3855 = vadd.f32 %v3806, %v3854
      %v3856 = vpop.f32.mrf.mxu0
      %v3857 = vadd.f32 %v3808, %v3856
      %3858 = vmatmul.bf16.gmra.mxu0 %v1415
      %v3859 = vpop.f32.mrf.mxu0
      %v3860 = vadd.f32 %v3811, %v3859
      %v3861 = vpop.f32.mrf.mxu0
      %v3862 = vadd.f32 %v3813, %v3861
      %3863 = vmatmul.bf16.gmra.mxu0 %v1417
      %v3864 = vpop.f32.mrf.mxu0
      %v3865 = vadd.f32 %v3816, %v3864
      %v3866 = vpop.f32.mrf.mxu0
      %v3867 = vadd.f32 %v3818, %v3866
      %3868 = vmatmul.bf16.gmra.mxu0 %v1419
      %v3869 = vpop.f32.mrf.mxu0
      %v3870 = vadd.f32 %v3821, %v3869
      %v3871 = vpop.f32.mrf.mxu0
      %v3872 = vadd.f32 %v3823, %v3871
      %3873 = vmatmul.bf16.gmra.mxu0 %v1421
      %v3874 = vpop.f32.mrf.mxu0
      %v3875 = vadd.f32 %v3826, %v3874
      %v3876 = vpop.f32.mrf.mxu0
      %v3877 = vadd.f32 %v3828, %v3876
      %3878 = vmatmul.bf16.gmra.mxu0 %v1423
      %v3879 = vpop.f32.mrf.mxu0
      %v3880 = vadd.f32 %v3831, %v3879
      %v3881 = vpop.f32.mrf.mxu0
      %v3882 = vadd.f32 %v3833, %v3881
      %3883 = vmatmul.bf16.gmra.mxu0 %v1425
      %v3884 = vpop.f32.mrf.mxu0
      %v3885 = vadd.f32 %v3836, %v3884
      %v3886 = vpop.f32.mrf.mxu0
      %v3887 = vadd.f32 %v3838, %v3886
      %3888 = vmatmul.bf16.gmra.mxu0 %v1427
      %v3889 = vpop.f32.mrf.mxu0
      %v3890 = vadd.f32 %v3841, %v3889
      %v3891 = vpop.f32.mrf.mxu0
      %v3892 = vadd.f32 %v3843, %v3891
      %3893 = vdwg.mxu0
      %3894 = vmatpush.bf16.msra.mxu0 %v3597
      %3895 = vmatpush.bf16.msra.mxu0 %v3589
      %3896 = vmatpush.bf16.msra.mxu0 %v3581
      %3897 = vmatpush.bf16.msra.mxu0 %v3573
      %3898 = vmatpush.bf16.msra.mxu0 %v3565
      %3899 = vmatpush.bf16.msra.mxu0 %v3557
      %3900 = vmatpush.bf16.msra.mxu0 %v3549
      %3901 = vmatpush.bf16.msra.mxu0 %v3541
      %3902 = vmatmul.bf16.gmra.mxu0 %v1412
      %v3903 = vpop.f32.mrf.mxu0
      %v3904 = vadd.f32 %v2529, %v3903
      %v3905 = vpop.f32.mrf.mxu0
      %v3906 = vadd.f32 %v2531, %v3905
      %3907 = vmatmul.bf16.gmra.mxu0 %v1414
      %v3908 = vpop.f32.mrf.mxu0
      %v3909 = vadd.f32 %v2534, %v3908
      %v3910 = vpop.f32.mrf.mxu0
      %v3911 = vadd.f32 %v2536, %v3910
      %3912 = vmatmul.bf16.gmra.mxu0 %v1416
      %v3913 = vpop.f32.mrf.mxu0
      %v3914 = vadd.f32 %v2539, %v3913
      %v3915 = vpop.f32.mrf.mxu0
      %v3916 = vadd.f32 %v2541, %v3915
      %3917 = vmatmul.bf16.gmra.mxu0 %v1418
      %v3918 = vpop.f32.mrf.mxu0
      %v3919 = vadd.f32 %v2544, %v3918
      %v3920 = vpop.f32.mrf.mxu0
      %v3921 = vadd.f32 %v2546, %v3920
      %3922 = vmatmul.bf16.gmra.mxu0 %v1420
      %v3923 = vpop.f32.mrf.mxu0
      %v3924 = vadd.f32 %v2549, %v3923
      %v3925 = vpop.f32.mrf.mxu0
      %v3926 = vadd.f32 %v2551, %v3925
      %3927 = vmatmul.bf16.gmra.mxu0 %v1422
      %v3928 = vpop.f32.mrf.mxu0
      %v3929 = vadd.f32 %v2554, %v3928
      %v3930 = vpop.f32.mrf.mxu0
      %v3931 = vadd.f32 %v2556, %v3930
      %3932 = vmatmul.bf16.gmra.mxu0 %v1424
      %v3933 = vpop.f32.mrf.mxu0
      %v3934 = vadd.f32 %v2559, %v3933
      %v3935 = vpop.f32.mrf.mxu0
      %v3936 = vadd.f32 %v2561, %v3935
      %3937 = vmatmul.bf16.gmra.mxu0 %v1426
      %v3938 = vpop.f32.mrf.mxu0
      %v3939 = vadd.f32 %v2564, %v3938
      %v3940 = vpop.f32.mrf.mxu0
      %v3941 = vadd.f32 %v2566, %v3940
      %3942 = vdwg.mxu0
      %3943 = vmatpush.bf16.msra.mxu0 %v3661
      %3944 = vmatpush.bf16.msra.mxu0 %v3653
      %3945 = vmatpush.bf16.msra.mxu0 %v3645
      %3946 = vmatpush.bf16.msra.mxu0 %v3637
      %3947 = vmatpush.bf16.msra.mxu0 %v3629
      %3948 = vmatpush.bf16.msra.mxu0 %v3621
      %3949 = vmatpush.bf16.msra.mxu0 %v3613
      %3950 = vmatpush.bf16.msra.mxu0 %v3605
      %3951 = vmatmul.bf16.gmra.mxu0 %v1413
      %v3952 = vpop.f32.mrf.mxu0
      %v3953 = vadd.f32 %v3904, %v3952
      %v3954 = vpop.f32.mrf.mxu0
      %v3955 = vadd.f32 %v3906, %v3954
      %3956 = vmatmul.bf16.gmra.mxu0 %v1415
      %v3957 = vpop.f32.mrf.mxu0
      %v3958 = vadd.f32 %v3909, %v3957
      %v3959 = vpop.f32.mrf.mxu0
      %v3960 = vadd.f32 %v3911, %v3959
      %3961 = vmatmul.bf16.gmra.mxu0 %v1417
      %v3962 = vpop.f32.mrf.mxu0
      %v3963 = vadd.f32 %v3914, %v3962
      %v3964 = vpop.f32.mrf.mxu0
      %v3965 = vadd.f32 %v3916, %v3964
      %3966 = vmatmul.bf16.gmra.mxu0 %v1419
      %v3967 = vpop.f32.mrf.mxu0
      %v3968 = vadd.f32 %v3919, %v3967
      %v3969 = vpop.f32.mrf.mxu0
      %v3970 = vadd.f32 %v3921, %v3969
      %3971 = vmatmul.bf16.gmra.mxu0 %v1421
      %v3972 = vpop.f32.mrf.mxu0
      %v3973 = vadd.f32 %v3924, %v3972
      %v3974 = vpop.f32.mrf.mxu0
      %v3975 = vadd.f32 %v3926, %v3974
      %3976 = vmatmul.bf16.gmra.mxu0 %v1423
      %v3977 = vpop.f32.mrf.mxu0
      %v3978 = vadd.f32 %v3929, %v3977
      %v3979 = vpop.f32.mrf.mxu0
      %v3980 = vadd.f32 %v3931, %v3979
      %3981 = vmatmul.bf16.gmra.mxu0 %v1425
      %v3982 = vpop.f32.mrf.mxu0
      %v3983 = vadd.f32 %v3934, %v3982
      %v3984 = vpop.f32.mrf.mxu0
      %v3985 = vadd.f32 %v3936, %v3984
      %3986 = vmatmul.bf16.gmra.mxu0 %v1427
      %v3987 = vpop.f32.mrf.mxu0
      %v3988 = vadd.f32 %v3939, %v3987
      %v3989 = vpop.f32.mrf.mxu0
      %v3990 = vadd.f32 %v3941, %v3989
      %3991 = vdwg.mxu0
      %3992 = vmatpush.bf16.msra.mxu0 %v3598
      %3993 = vmatpush.bf16.msra.mxu0 %v3590
      %3994 = vmatpush.bf16.msra.mxu0 %v3582
      %3995 = vmatpush.bf16.msra.mxu0 %v3574
      %3996 = vmatpush.bf16.msra.mxu0 %v3566
      %3997 = vmatpush.bf16.msra.mxu0 %v3558
      %3998 = vmatpush.bf16.msra.mxu0 %v3550
      %3999 = vmatpush.bf16.msra.mxu0 %v3542
      %4000 = vmatmul.bf16.gmra.mxu0 %v1412
      %v4001 = vpop.f32.mrf.mxu0
      %v4002 = vadd.f32 %v2627, %v4001
      %v4003 = vpop.f32.mrf.mxu0
      %v4004 = vadd.f32 %v2629, %v4003
      %4005 = vmatmul.bf16.gmra.mxu0 %v1414
      %v4006 = vpop.f32.mrf.mxu0
      %v4007 = vadd.f32 %v2632, %v4006
      %v4008 = vpop.f32.mrf.mxu0
      %v4009 = vadd.f32 %v2634, %v4008
      %4010 = vmatmul.bf16.gmra.mxu0 %v1416
      %v4011 = vpop.f32.mrf.mxu0
      %v4012 = vadd.f32 %v2637, %v4011
      %v4013 = vpop.f32.mrf.mxu0
      %v4014 = vadd.f32 %v2639, %v4013
      %4015 = vmatmul.bf16.gmra.mxu0 %v1418
      %v4016 = vpop.f32.mrf.mxu0
      %v4017 = vadd.f32 %v2642, %v4016
      %v4018 = vpop.f32.mrf.mxu0
      %v4019 = vadd.f32 %v2644, %v4018
      %4020 = vmatmul.bf16.gmra.mxu0 %v1420
      %v4021 = vpop.f32.mrf.mxu0
      %v4022 = vadd.f32 %v2647, %v4021
      %v4023 = vpop.f32.mrf.mxu0
      %v4024 = vadd.f32 %v2649, %v4023
      %4025 = vmatmul.bf16.gmra.mxu0 %v1422
      %v4026 = vpop.f32.mrf.mxu0
      %v4027 = vadd.f32 %v2652, %v4026
      %v4028 = vpop.f32.mrf.mxu0
      %v4029 = vadd.f32 %v2654, %v4028
      %4030 = vmatmul.bf16.gmra.mxu0 %v1424
      %v4031 = vpop.f32.mrf.mxu0
      %v4032 = vadd.f32 %v2657, %v4031
      %v4033 = vpop.f32.mrf.mxu0
      %v4034 = vadd.f32 %v2659, %v4033
      %4035 = vmatmul.bf16.gmra.mxu0 %v1426
      %v4036 = vpop.f32.mrf.mxu0
      %v4037 = vadd.f32 %v2662, %v4036
      %v4038 = vpop.f32.mrf.mxu0
      %v4039 = vadd.f32 %v2664, %v4038
      %4040 = vdwg.mxu0
      %4041 = vmatpush.bf16.msra.mxu0 %v3662
      %4042 = vmatpush.bf16.msra.mxu0 %v3654
      %4043 = vmatpush.bf16.msra.mxu0 %v3646
      %4044 = vmatpush.bf16.msra.mxu0 %v3638
      %4045 = vmatpush.bf16.msra.mxu0 %v3630
      %4046 = vmatpush.bf16.msra.mxu0 %v3622
      %4047 = vmatpush.bf16.msra.mxu0 %v3614
      %4048 = vmatpush.bf16.msra.mxu0 %v3606
      %4049 = vmatmul.bf16.gmra.mxu0 %v1413
      %v4050 = vpop.f32.mrf.mxu0
      %v4051 = vadd.f32 %v4002, %v4050
      %v4052 = vpop.f32.mrf.mxu0
      %v4053 = vadd.f32 %v4004, %v4052
      %4054 = vmatmul.bf16.gmra.mxu0 %v1415
      %v4055 = vpop.f32.mrf.mxu0
      %v4056 = vadd.f32 %v4007, %v4055
      %v4057 = vpop.f32.mrf.mxu0
      %v4058 = vadd.f32 %v4009, %v4057
      %4059 = vmatmul.bf16.gmra.mxu0 %v1417
      %v4060 = vpop.f32.mrf.mxu0
      %v4061 = vadd.f32 %v4012, %v4060
      %v4062 = vpop.f32.mrf.mxu0
      %v4063 = vadd.f32 %v4014, %v4062
      %4064 = vmatmul.bf16.gmra.mxu0 %v1419
      %v4065 = vpop.f32.mrf.mxu0
      %v4066 = vadd.f32 %v4017, %v4065
      %v4067 = vpop.f32.mrf.mxu0
      %v4068 = vadd.f32 %v4019, %v4067
      %4069 = vmatmul.bf16.gmra.mxu0 %v1421
      %v4070 = vpop.f32.mrf.mxu0
      %v4071 = vadd.f32 %v4022, %v4070
      %v4072 = vpop.f32.mrf.mxu0
      %v4073 = vadd.f32 %v4024, %v4072
      %4074 = vmatmul.bf16.gmra.mxu0 %v1423
      %v4075 = vpop.f32.mrf.mxu0
      %v4076 = vadd.f32 %v4027, %v4075
      %v4077 = vpop.f32.mrf.mxu0
      %v4078 = vadd.f32 %v4029, %v4077
      %4079 = vmatmul.bf16.gmra.mxu0 %v1425
      %v4080 = vpop.f32.mrf.mxu0
      %v4081 = vadd.f32 %v4032, %v4080
      %v4082 = vpop.f32.mrf.mxu0
      %v4083 = vadd.f32 %v4034, %v4082
      %4084 = vmatmul.bf16.gmra.mxu0 %v1427
      %v4085 = vpop.f32.mrf.mxu0
      %v4086 = vadd.f32 %v4037, %v4085
      %v4087 = vpop.f32.mrf.mxu0
      %v4088 = vadd.f32 %v4039, %v4087
      %4089 = vdwg.mxu0
      %4090 = vmatpush.bf16.msra.mxu0 %v3599
      %4091 = vmatpush.bf16.msra.mxu0 %v3591
      %4092 = vmatpush.bf16.msra.mxu0 %v3583
      %4093 = vmatpush.bf16.msra.mxu0 %v3575
      %4094 = vmatpush.bf16.msra.mxu0 %v3567
      %4095 = vmatpush.bf16.msra.mxu0 %v3559
      %4096 = vmatpush.bf16.msra.mxu0 %v3551
      %4097 = vmatpush.bf16.msra.mxu0 %v3543
      %4098 = vmatmul.bf16.gmra.mxu0 %v1412
      %v4099 = vpop.f32.mrf.mxu0
      %v4100 = vadd.f32 %v2725, %v4099
      %v4101 = vpop.f32.mrf.mxu0
      %v4102 = vadd.f32 %v2727, %v4101
      %4103 = vmatmul.bf16.gmra.mxu0 %v1414
      %v4104 = vpop.f32.mrf.mxu0
      %v4105 = vadd.f32 %v2730, %v4104
      %v4106 = vpop.f32.mrf.mxu0
      %v4107 = vadd.f32 %v2732, %v4106
      %4108 = vmatmul.bf16.gmra.mxu0 %v1416
      %v4109 = vpop.f32.mrf.mxu0
      %v4110 = vadd.f32 %v2735, %v4109
      %v4111 = vpop.f32.mrf.mxu0
      %v4112 = vadd.f32 %v2737, %v4111
      %4113 = vmatmul.bf16.gmra.mxu0 %v1418
      %v4114 = vpop.f32.mrf.mxu0
      %v4115 = vadd.f32 %v2740, %v4114
      %v4116 = vpop.f32.mrf.mxu0
      %v4117 = vadd.f32 %v2742, %v4116
      %4118 = vmatmul.bf16.gmra.mxu0 %v1420
      %v4119 = vpop.f32.mrf.mxu0
      %v4120 = vadd.f32 %v2745, %v4119
      %v4121 = vpop.f32.mrf.mxu0
      %v4122 = vadd.f32 %v2747, %v4121
      %4123 = vmatmul.bf16.gmra.mxu0 %v1422
      %v4124 = vpop.f32.mrf.mxu0
      %v4125 = vadd.f32 %v2750, %v4124
      %v4126 = vpop.f32.mrf.mxu0
      %v4127 = vadd.f32 %v2752, %v4126
      %4128 = vmatmul.bf16.gmra.mxu0 %v1424
      %v4129 = vpop.f32.mrf.mxu0
      %v4130 = vadd.f32 %v2755, %v4129
      %v4131 = vpop.f32.mrf.mxu0
      %v4132 = vadd.f32 %v2757, %v4131
      %4133 = vmatmul.bf16.gmra.mxu0 %v1426
      %v4134 = vpop.f32.mrf.mxu0
      %v4135 = vadd.f32 %v2760, %v4134
      %v4136 = vpop.f32.mrf.mxu0
      %v4137 = vadd.f32 %v2762, %v4136
      %4138 = vdwg.mxu0
      %4139 = vmatpush.bf16.msra.mxu0 %v3663
      %4140 = vmatpush.bf16.msra.mxu0 %v3655
      %4141 = vmatpush.bf16.msra.mxu0 %v3647
      %4142 = vmatpush.bf16.msra.mxu0 %v3639
      %4143 = vmatpush.bf16.msra.mxu0 %v3631
      %4144 = vmatpush.bf16.msra.mxu0 %v3623
      %4145 = vmatpush.bf16.msra.mxu0 %v3615
      %4146 = vmatpush.bf16.msra.mxu0 %v3607
      %4147 = vmatmul.bf16.gmra.mxu0 %v1413
      %v4148 = vpop.f32.mrf.mxu0
      %v4149 = vadd.f32 %v4100, %v4148
      %v4150 = vpop.f32.mrf.mxu0
      %v4151 = vadd.f32 %v4102, %v4150
      %4152 = vmatmul.bf16.gmra.mxu0 %v1415
      %v4153 = vpop.f32.mrf.mxu0
      %v4154 = vadd.f32 %v4105, %v4153
      %v4155 = vpop.f32.mrf.mxu0
      %v4156 = vadd.f32 %v4107, %v4155
      %4157 = vmatmul.bf16.gmra.mxu0 %v1417
      %v4158 = vpop.f32.mrf.mxu0
      %v4159 = vadd.f32 %v4110, %v4158
      %v4160 = vpop.f32.mrf.mxu0
      %v4161 = vadd.f32 %v4112, %v4160
      %4162 = vmatmul.bf16.gmra.mxu0 %v1419
      %v4163 = vpop.f32.mrf.mxu0
      %v4164 = vadd.f32 %v4115, %v4163
      %v4165 = vpop.f32.mrf.mxu0
      %v4166 = vadd.f32 %v4117, %v4165
      %4167 = vmatmul.bf16.gmra.mxu0 %v1421
      %v4168 = vpop.f32.mrf.mxu0
      %v4169 = vadd.f32 %v4120, %v4168
      %v4170 = vpop.f32.mrf.mxu0
      %v4171 = vadd.f32 %v4122, %v4170
      %4172 = vmatmul.bf16.gmra.mxu0 %v1423
      %v4173 = vpop.f32.mrf.mxu0
      %v4174 = vadd.f32 %v4125, %v4173
      %v4175 = vpop.f32.mrf.mxu0
      %v4176 = vadd.f32 %v4127, %v4175
      %4177 = vmatmul.bf16.gmra.mxu0 %v1425
      %v4178 = vpop.f32.mrf.mxu0
      %v4179 = vadd.f32 %v4130, %v4178
      %v4180 = vpop.f32.mrf.mxu0
      %v4181 = vadd.f32 %v4132, %v4180
      %4182 = vmatmul.bf16.gmra.mxu0 %v1427
      %v4183 = vpop.f32.mrf.mxu0
      %v4184 = vadd.f32 %v4135, %v4183
      %v4185 = vpop.f32.mrf.mxu0
      %v4186 = vadd.f32 %v4137, %v4185
      %4187 = vdwg.mxu0
      %4188 = vmatpush.bf16.msra.mxu0 %v3600
      %4189 = vmatpush.bf16.msra.mxu0 %v3592
      %4190 = vmatpush.bf16.msra.mxu0 %v3584
      %4191 = vmatpush.bf16.msra.mxu0 %v3576
      %4192 = vmatpush.bf16.msra.mxu0 %v3568
      %4193 = vmatpush.bf16.msra.mxu0 %v3560
      %4194 = vmatpush.bf16.msra.mxu0 %v3552
      %4195 = vmatpush.bf16.msra.mxu0 %v3544
      %4196 = vmatmul.bf16.gmra.mxu0 %v1412
      %v4197 = vpop.f32.mrf.mxu0
      %v4198 = vadd.f32 %v2823, %v4197
      %v4199 = vpop.f32.mrf.mxu0
      %v4200 = vadd.f32 %v2825, %v4199
      %4201 = vmatmul.bf16.gmra.mxu0 %v1414
      %v4202 = vpop.f32.mrf.mxu0
      %v4203 = vadd.f32 %v2828, %v4202
      %v4204 = vpop.f32.mrf.mxu0
      %v4205 = vadd.f32 %v2830, %v4204
      %4206 = vmatmul.bf16.gmra.mxu0 %v1416
      %v4207 = vpop.f32.mrf.mxu0
      %v4208 = vadd.f32 %v2833, %v4207
      %v4209 = vpop.f32.mrf.mxu0
      %v4210 = vadd.f32 %v2835, %v4209
      %4211 = vmatmul.bf16.gmra.mxu0 %v1418
      %v4212 = vpop.f32.mrf.mxu0
      %v4213 = vadd.f32 %v2838, %v4212
      %v4214 = vpop.f32.mrf.mxu0
      %v4215 = vadd.f32 %v2840, %v4214
      %4216 = vmatmul.bf16.gmra.mxu0 %v1420
      %v4217 = vpop.f32.mrf.mxu0
      %v4218 = vadd.f32 %v2843, %v4217
      %v4219 = vpop.f32.mrf.mxu0
      %v4220 = vadd.f32 %v2845, %v4219
      %4221 = vmatmul.bf16.gmra.mxu0 %v1422
      %v4222 = vpop.f32.mrf.mxu0
      %v4223 = vadd.f32 %v2848, %v4222
      %v4224 = vpop.f32.mrf.mxu0
      %v4225 = vadd.f32 %v2850, %v4224
      %4226 = vmatmul.bf16.gmra.mxu0 %v1424
      %v4227 = vpop.f32.mrf.mxu0
      %v4228 = vadd.f32 %v2853, %v4227
      %v4229 = vpop.f32.mrf.mxu0
      %v4230 = vadd.f32 %v2855, %v4229
      %4231 = vmatmul.bf16.gmra.mxu0 %v1426
      %v4232 = vpop.f32.mrf.mxu0
      %v4233 = vadd.f32 %v2858, %v4232
      %v4234 = vpop.f32.mrf.mxu0
      %v4235 = vadd.f32 %v2860, %v4234
      %4236 = vdwg.mxu0
      %4237 = vmatpush.bf16.msra.mxu0 %v3664
      %4238 = vmatpush.bf16.msra.mxu0 %v3656
      %4239 = vmatpush.bf16.msra.mxu0 %v3648
      %4240 = vmatpush.bf16.msra.mxu0 %v3640
      %4241 = vmatpush.bf16.msra.mxu0 %v3632
      %4242 = vmatpush.bf16.msra.mxu0 %v3624
      %4243 = vmatpush.bf16.msra.mxu0 %v3616
      %4244 = vmatpush.bf16.msra.mxu0 %v3608
      %4245 = vmatmul.bf16.gmra.mxu0 %v1413
      %v4246 = vpop.f32.mrf.mxu0
      %v4247 = vadd.f32 %v4198, %v4246
      %v4248 = vpop.f32.mrf.mxu0
      %v4249 = vadd.f32 %v4200, %v4248
      %4250 = vmatmul.bf16.gmra.mxu0 %v1415
      %v4251 = vpop.f32.mrf.mxu0
      %v4252 = vadd.f32 %v4203, %v4251
      %v4253 = vpop.f32.mrf.mxu0
      %v4254 = vadd.f32 %v4205, %v4253
      %4255 = vmatmul.bf16.gmra.mxu0 %v1417
      %v4256 = vpop.f32.mrf.mxu0
      %v4257 = vadd.f32 %v4208, %v4256
      %v4258 = vpop.f32.mrf.mxu0
      %v4259 = vadd.f32 %v4210, %v4258
      %4260 = vmatmul.bf16.gmra.mxu0 %v1419
      %v4261 = vpop.f32.mrf.mxu0
      %v4262 = vadd.f32 %v4213, %v4261
      %v4263 = vpop.f32.mrf.mxu0
      %v4264 = vadd.f32 %v4215, %v4263
      %4265 = vmatmul.bf16.gmra.mxu0 %v1421
      %v4266 = vpop.f32.mrf.mxu0
      %v4267 = vadd.f32 %v4218, %v4266
      %v4268 = vpop.f32.mrf.mxu0
      %v4269 = vadd.f32 %v4220, %v4268
      %4270 = vmatmul.bf16.gmra.mxu0 %v1423
      %v4271 = vpop.f32.mrf.mxu0
      %v4272 = vadd.f32 %v4223, %v4271
      %v4273 = vpop.f32.mrf.mxu0
      %v4274 = vadd.f32 %v4225, %v4273
      %4275 = vmatmul.bf16.gmra.mxu0 %v1425
      %v4276 = vpop.f32.mrf.mxu0
      %v4277 = vadd.f32 %v4228, %v4276
      %v4278 = vpop.f32.mrf.mxu0
      %v4279 = vadd.f32 %v4230, %v4278
      %4280 = vmatmul.bf16.gmra.mxu0 %v1427
      %v4281 = vpop.f32.mrf.mxu0
      %v4282 = vadd.f32 %v4233, %v4281
      %v4283 = vpop.f32.mrf.mxu0
      %v4284 = vadd.f32 %v4235, %v4283
      %4285 = vdwg.mxu0
      %4286 = vmatpush.bf16.msra.mxu0 %v3601
      %4287 = vmatpush.bf16.msra.mxu0 %v3593
      %4288 = vmatpush.bf16.msra.mxu0 %v3585
      %4289 = vmatpush.bf16.msra.mxu0 %v3577
      %4290 = vmatpush.bf16.msra.mxu0 %v3569
      %4291 = vmatpush.bf16.msra.mxu0 %v3561
      %4292 = vmatpush.bf16.msra.mxu0 %v3553
      %4293 = vmatpush.bf16.msra.mxu0 %v3545
      %4294 = vmatmul.bf16.gmra.mxu0 %v1412
      %v4295 = vpop.f32.mrf.mxu0
      %v4296 = vadd.f32 %v2921, %v4295
      %v4297 = vpop.f32.mrf.mxu0
      %v4298 = vadd.f32 %v2923, %v4297
      %4299 = vmatmul.bf16.gmra.mxu0 %v1414
      %v4300 = vpop.f32.mrf.mxu0
      %v4301 = vadd.f32 %v2926, %v4300
      %v4302 = vpop.f32.mrf.mxu0
      %v4303 = vadd.f32 %v2928, %v4302
      %4304 = vmatmul.bf16.gmra.mxu0 %v1416
      %v4305 = vpop.f32.mrf.mxu0
      %v4306 = vadd.f32 %v2931, %v4305
      %v4307 = vpop.f32.mrf.mxu0
      %v4308 = vadd.f32 %v2933, %v4307
      %4309 = vmatmul.bf16.gmra.mxu0 %v1418
      %v4310 = vpop.f32.mrf.mxu0
      %v4311 = vadd.f32 %v2936, %v4310
      %v4312 = vpop.f32.mrf.mxu0
      %v4313 = vadd.f32 %v2938, %v4312
      %4314 = vmatmul.bf16.gmra.mxu0 %v1420
      %v4315 = vpop.f32.mrf.mxu0
      %v4316 = vadd.f32 %v2941, %v4315
      %v4317 = vpop.f32.mrf.mxu0
      %v4318 = vadd.f32 %v2943, %v4317
      %4319 = vmatmul.bf16.gmra.mxu0 %v1422
      %v4320 = vpop.f32.mrf.mxu0
      %v4321 = vadd.f32 %v2946, %v4320
      %v4322 = vpop.f32.mrf.mxu0
      %v4323 = vadd.f32 %v2948, %v4322
      %4324 = vmatmul.bf16.gmra.mxu0 %v1424
      %v4325 = vpop.f32.mrf.mxu0
      %v4326 = vadd.f32 %v2951, %v4325
      %v4327 = vpop.f32.mrf.mxu0
      %v4328 = vadd.f32 %v2953, %v4327
      %4329 = vmatmul.bf16.gmra.mxu0 %v1426
      %v4330 = vpop.f32.mrf.mxu0
      %v4331 = vadd.f32 %v2956, %v4330
      %v4332 = vpop.f32.mrf.mxu0
      %v4333 = vadd.f32 %v2958, %v4332
      %4334 = vdwg.mxu0
      %4335 = vmatpush.bf16.msra.mxu0 %v3665
      %4336 = vmatpush.bf16.msra.mxu0 %v3657
      %4337 = vmatpush.bf16.msra.mxu0 %v3649
      %4338 = vmatpush.bf16.msra.mxu0 %v3641
      %4339 = vmatpush.bf16.msra.mxu0 %v3633
      %4340 = vmatpush.bf16.msra.mxu0 %v3625
      %4341 = vmatpush.bf16.msra.mxu0 %v3617
      %4342 = vmatpush.bf16.msra.mxu0 %v3609
      %4343 = vmatmul.bf16.gmra.mxu0 %v1413
      %v4344 = vpop.f32.mrf.mxu0
      %v4345 = vadd.f32 %v4296, %v4344
      %v4346 = vpop.f32.mrf.mxu0
      %v4347 = vadd.f32 %v4298, %v4346
      %4348 = vmatmul.bf16.gmra.mxu0 %v1415
      %v4349 = vpop.f32.mrf.mxu0
      %v4350 = vadd.f32 %v4301, %v4349
      %v4351 = vpop.f32.mrf.mxu0
      %v4352 = vadd.f32 %v4303, %v4351
      %4353 = vmatmul.bf16.gmra.mxu0 %v1417
      %v4354 = vpop.f32.mrf.mxu0
      %v4355 = vadd.f32 %v4306, %v4354
      %v4356 = vpop.f32.mrf.mxu0
      %v4357 = vadd.f32 %v4308, %v4356
      %4358 = vmatmul.bf16.gmra.mxu0 %v1419
      %v4359 = vpop.f32.mrf.mxu0
      %v4360 = vadd.f32 %v4311, %v4359
      %v4361 = vpop.f32.mrf.mxu0
      %v4362 = vadd.f32 %v4313, %v4361
      %4363 = vmatmul.bf16.gmra.mxu0 %v1421
      %v4364 = vpop.f32.mrf.mxu0
      %v4365 = vadd.f32 %v4316, %v4364
      %v4366 = vpop.f32.mrf.mxu0
      %v4367 = vadd.f32 %v4318, %v4366
      %4368 = vmatmul.bf16.gmra.mxu0 %v1423
      %v4369 = vpop.f32.mrf.mxu0
      %v4370 = vadd.f32 %v4321, %v4369
      %v4371 = vpop.f32.mrf.mxu0
      %v4372 = vadd.f32 %v4323, %v4371
      %4373 = vmatmul.bf16.gmra.mxu0 %v1425
      %v4374 = vpop.f32.mrf.mxu0
      %v4375 = vadd.f32 %v4326, %v4374
      %v4376 = vpop.f32.mrf.mxu0
      %v4377 = vadd.f32 %v4328, %v4376
      %4378 = vmatmul.bf16.gmra.mxu0 %v1427
      %v4379 = vpop.f32.mrf.mxu0
      %v4380 = vadd.f32 %v4331, %v4379
      %v4381 = vpop.f32.mrf.mxu0
      %v4382 = vadd.f32 %v4333, %v4381
      %4383 = vdwg.mxu0
      %4384 = vmatpush.bf16.msra.mxu0 %v3602
      %4385 = vmatpush.bf16.msra.mxu0 %v3594
      %4386 = vmatpush.bf16.msra.mxu0 %v3586
      %4387 = vmatpush.bf16.msra.mxu0 %v3578
      %4388 = vmatpush.bf16.msra.mxu0 %v3570
      %4389 = vmatpush.bf16.msra.mxu0 %v3562
      %4390 = vmatpush.bf16.msra.mxu0 %v3554
      %4391 = vmatpush.bf16.msra.mxu0 %v3546
      %4392 = vmatmul.bf16.gmra.mxu0 %v1412
      %v4393 = vpop.f32.mrf.mxu0
      %v4394 = vadd.f32 %v3019, %v4393
      %v4395 = vpop.f32.mrf.mxu0
      %v4396 = vadd.f32 %v3021, %v4395
      %4397 = vmatmul.bf16.gmra.mxu0 %v1414
      %v4398 = vpop.f32.mrf.mxu0
      %v4399 = vadd.f32 %v3024, %v4398
      %v4400 = vpop.f32.mrf.mxu0
      %v4401 = vadd.f32 %v3026, %v4400
      %4402 = vmatmul.bf16.gmra.mxu0 %v1416
      %v4403 = vpop.f32.mrf.mxu0
      %v4404 = vadd.f32 %v3029, %v4403
      %v4405 = vpop.f32.mrf.mxu0
      %v4406 = vadd.f32 %v3031, %v4405
      %4407 = vmatmul.bf16.gmra.mxu0 %v1418
      %v4408 = vpop.f32.mrf.mxu0
      %v4409 = vadd.f32 %v3034, %v4408
      %v4410 = vpop.f32.mrf.mxu0
      %v4411 = vadd.f32 %v3036, %v4410
      %4412 = vmatmul.bf16.gmra.mxu0 %v1420
      %v4413 = vpop.f32.mrf.mxu0
      %v4414 = vadd.f32 %v3039, %v4413
      %v4415 = vpop.f32.mrf.mxu0
      %v4416 = vadd.f32 %v3041, %v4415
      %4417 = vmatmul.bf16.gmra.mxu0 %v1422
      %v4418 = vpop.f32.mrf.mxu0
      %v4419 = vadd.f32 %v3044, %v4418
      %v4420 = vpop.f32.mrf.mxu0
      %v4421 = vadd.f32 %v3046, %v4420
      %4422 = vmatmul.bf16.gmra.mxu0 %v1424
      %v4423 = vpop.f32.mrf.mxu0
      %v4424 = vadd.f32 %v3049, %v4423
      %v4425 = vpop.f32.mrf.mxu0
      %v4426 = vadd.f32 %v3051, %v4425
      %4427 = vmatmul.bf16.gmra.mxu0 %v1426
      %v4428 = vpop.f32.mrf.mxu0
      %v4429 = vadd.f32 %v3054, %v4428
      %v4430 = vpop.f32.mrf.mxu0
      %v4431 = vadd.f32 %v3056, %v4430
      %4432 = vdwg.mxu0
      %4433 = vmatpush.bf16.msra.mxu0 %v3666
      %4434 = vmatpush.bf16.msra.mxu0 %v3658
      %4435 = vmatpush.bf16.msra.mxu0 %v3650
      %4436 = vmatpush.bf16.msra.mxu0 %v3642
      %4437 = vmatpush.bf16.msra.mxu0 %v3634
      %4438 = vmatpush.bf16.msra.mxu0 %v3626
      %4439 = vmatpush.bf16.msra.mxu0 %v3618
      %4440 = vmatpush.bf16.msra.mxu0 %v3610
      %4441 = vmatmul.bf16.gmra.mxu0 %v1413
      %v4442 = vpop.f32.mrf.mxu0
      %v4443 = vadd.f32 %v4394, %v4442
      %v4444 = vpop.f32.mrf.mxu0
      %v4445 = vadd.f32 %v4396, %v4444
      %4446 = vmatmul.bf16.gmra.mxu0 %v1415
      %v4447 = vpop.f32.mrf.mxu0
      %v4448 = vadd.f32 %v4399, %v4447
      %v4449 = vpop.f32.mrf.mxu0
      %v4450 = vadd.f32 %v4401, %v4449
      %4451 = vmatmul.bf16.gmra.mxu0 %v1417
      %v4452 = vpop.f32.mrf.mxu0
      %v4453 = vadd.f32 %v4404, %v4452
      %v4454 = vpop.f32.mrf.mxu0
      %v4455 = vadd.f32 %v4406, %v4454
      %4456 = vmatmul.bf16.gmra.mxu0 %v1419
      %v4457 = vpop.f32.mrf.mxu0
      %v4458 = vadd.f32 %v4409, %v4457
      %v4459 = vpop.f32.mrf.mxu0
      %v4460 = vadd.f32 %v4411, %v4459
      %4461 = vmatmul.bf16.gmra.mxu0 %v1421
      %v4462 = vpop.f32.mrf.mxu0
      %v4463 = vadd.f32 %v4414, %v4462
      %v4464 = vpop.f32.mrf.mxu0
      %v4465 = vadd.f32 %v4416, %v4464
      %4466 = vmatmul.bf16.gmra.mxu0 %v1423
      %v4467 = vpop.f32.mrf.mxu0
      %v4468 = vadd.f32 %v4419, %v4467
      %v4469 = vpop.f32.mrf.mxu0
      %v4470 = vadd.f32 %v4421, %v4469
      %4471 = vmatmul.bf16.gmra.mxu0 %v1425
      %v4472 = vpop.f32.mrf.mxu0
      %v4473 = vadd.f32 %v4424, %v4472
      %v4474 = vpop.f32.mrf.mxu0
      %v4475 = vadd.f32 %v4426, %v4474
      %4476 = vmatmul.bf16.gmra.mxu0 %v1427
      %v4477 = vpop.f32.mrf.mxu0
      %v4478 = vadd.f32 %v4429, %v4477
      %v4479 = vpop.f32.mrf.mxu0
      %v4480 = vadd.f32 %v4431, %v4479
      %4481 = vdwg.mxu0
      %4482 = vmatpush.bf16.msra.mxu0 %v3603
      %4483 = vmatpush.bf16.msra.mxu0 %v3595
      %4484 = vmatpush.bf16.msra.mxu0 %v3587
      %4485 = vmatpush.bf16.msra.mxu0 %v3579
      %4486 = vmatpush.bf16.msra.mxu0 %v3571
      %4487 = vmatpush.bf16.msra.mxu0 %v3563
      %4488 = vmatpush.bf16.msra.mxu0 %v3555
      %4489 = vmatpush.bf16.msra.mxu0 %v3547
      %4490 = vmatmul.bf16.gmra.mxu0 %v1412
      %v4491 = vpop.f32.mrf.mxu0
      %v4492 = vadd.f32 %v3117, %v4491
      %v4493 = vpop.f32.mrf.mxu0
      %v4494 = vadd.f32 %v3119, %v4493
      %4495 = vmatmul.bf16.gmra.mxu0 %v1414
      %v4496 = vpop.f32.mrf.mxu0
      %v4497 = vadd.f32 %v3122, %v4496
      %v4498 = vpop.f32.mrf.mxu0
      %v4499 = vadd.f32 %v3124, %v4498
      %4500 = vmatmul.bf16.gmra.mxu0 %v1416
      %v4501 = vpop.f32.mrf.mxu0
      %v4502 = vadd.f32 %v3127, %v4501
      %v4503 = vpop.f32.mrf.mxu0
      %v4504 = vadd.f32 %v3129, %v4503
      %4505 = vmatmul.bf16.gmra.mxu0 %v1418
      %v4506 = vpop.f32.mrf.mxu0
      %v4507 = vadd.f32 %v3132, %v4506
      %v4508 = vpop.f32.mrf.mxu0
      %v4509 = vadd.f32 %v3134, %v4508
      %4510 = vmatmul.bf16.gmra.mxu0 %v1420
      %v4511 = vpop.f32.mrf.mxu0
      %v4512 = vadd.f32 %v3137, %v4511
      %v4513 = vpop.f32.mrf.mxu0
      %v4514 = vadd.f32 %v3139, %v4513
      %4515 = vmatmul.bf16.gmra.mxu0 %v1422
      %v4516 = vpop.f32.mrf.mxu0
      %v4517 = vadd.f32 %v3142, %v4516
      %v4518 = vpop.f32.mrf.mxu0
      %v4519 = vadd.f32 %v3144, %v4518
      %4520 = vmatmul.bf16.gmra.mxu0 %v1424
      %v4521 = vpop.f32.mrf.mxu0
      %v4522 = vadd.f32 %v3147, %v4521
      %v4523 = vpop.f32.mrf.mxu0
      %v4524 = vadd.f32 %v3149, %v4523
      %4525 = vmatmul.bf16.gmra.mxu0 %v1426
      %v4526 = vpop.f32.mrf.mxu0
      %v4527 = vadd.f32 %v3152, %v4526
      %v4528 = vpop.f32.mrf.mxu0
      %v4529 = vadd.f32 %v3154, %v4528
      %4530 = vdwg.mxu0
      %4531 = vmatpush.bf16.msra.mxu0 %v3667
      %4532 = vmatpush.bf16.msra.mxu0 %v3659
      %4533 = vmatpush.bf16.msra.mxu0 %v3651
      %4534 = vmatpush.bf16.msra.mxu0 %v3643
      %4535 = vmatpush.bf16.msra.mxu0 %v3635
      %4536 = vmatpush.bf16.msra.mxu0 %v3627
      %4537 = vmatpush.bf16.msra.mxu0 %v3619
      %4538 = vmatpush.bf16.msra.mxu0 %v3611
      %4539 = vmatmul.bf16.gmra.mxu0 %v1413
      %v4540 = vpop.f32.mrf.mxu0
      %v4541 = vadd.f32 %v4492, %v4540
      %v4542 = vpop.f32.mrf.mxu0
      %v4543 = vadd.f32 %v4494, %v4542
      %4544 = vmatmul.bf16.gmra.mxu0 %v1415
      %v4545 = vpop.f32.mrf.mxu0
      %v4546 = vadd.f32 %v4497, %v4545
      %v4547 = vpop.f32.mrf.mxu0
      %v4548 = vadd.f32 %v4499, %v4547
      %4549 = vmatmul.bf16.gmra.mxu0 %v1417
      %v4550 = vpop.f32.mrf.mxu0
      %v4551 = vadd.f32 %v4502, %v4550
      %v4552 = vpop.f32.mrf.mxu0
      %v4553 = vadd.f32 %v4504, %v4552
      %4554 = vmatmul.bf16.gmra.mxu0 %v1419
      %v4555 = vpop.f32.mrf.mxu0
      %v4556 = vadd.f32 %v4507, %v4555
      %v4557 = vpop.f32.mrf.mxu0
      %v4558 = vadd.f32 %v4509, %v4557
      %4559 = vmatmul.bf16.gmra.mxu0 %v1421
      %v4560 = vpop.f32.mrf.mxu0
      %v4561 = vadd.f32 %v4512, %v4560
      %v4562 = vpop.f32.mrf.mxu0
      %v4563 = vadd.f32 %v4514, %v4562
      %4564 = vmatmul.bf16.gmra.mxu0 %v1423
      %v4565 = vpop.f32.mrf.mxu0
      %v4566 = vadd.f32 %v4517, %v4565
      %v4567 = vpop.f32.mrf.mxu0
      %v4568 = vadd.f32 %v4519, %v4567
      %4569 = vmatmul.bf16.gmra.mxu0 %v1425
      %v4570 = vpop.f32.mrf.mxu0
      %v4571 = vadd.f32 %v4522, %v4570
      %v4572 = vpop.f32.mrf.mxu0
      %v4573 = vadd.f32 %v4524, %v4572
      %4574 = vmatmul.bf16.gmra.mxu0 %v1427
      %v4575 = vpop.f32.mrf.mxu0
      %v4576 = vadd.f32 %v4527, %v4575
      %v4577 = vpop.f32.mrf.mxu0
      %v4578 = vadd.f32 %v4529, %v4577
      %4579 = vdwg.mxu0
      %v4580 = vxor.u32 %v3855, 2147483648
      %v4581 = vxor.u32 %v3953, 2147483648
      %v4582 = vxor.u32 %v3857, 2147483648
      %v4583 = vxor.u32 %v3955, 2147483648
      %v4584 = vxor.u32 %v3860, 2147483648
      %v4585 = vxor.u32 %v3958, 2147483648
      %v4586 = vxor.u32 %v3862, 2147483648
      %v4587 = vxor.u32 %v3960, 2147483648
      %v4588 = vxor.u32 %v3865, 2147483648
      %v4589 = vxor.u32 %v3963, 2147483648
      %v4590 = vxor.u32 %v3867, 2147483648
      %v4591 = vxor.u32 %v3965, 2147483648
      %v4592 = vxor.u32 %v3870, 2147483648
      %v4593 = vxor.u32 %v3968, 2147483648
      %v4594 = vxor.u32 %v3872, 2147483648
      %v4595 = vxor.u32 %v3970, 2147483648
      %v4596 = vxor.u32 %v3875, 2147483648
      %v4597 = vxor.u32 %v3973, 2147483648
      %v4598 = vxor.u32 %v3877, 2147483648
      %v4599 = vxor.u32 %v3975, 2147483648
      %v4600 = vxor.u32 %v3880, 2147483648
      %v4601 = vxor.u32 %v3978, 2147483648
      %v4602 = vxor.u32 %v3882, 2147483648
      %v4603 = vxor.u32 %v3980, 2147483648
      %v4604 = vxor.u32 %v3885, 2147483648
      %v4605 = vxor.u32 %v3983, 2147483648
      %v4606 = vxor.u32 %v3887, 2147483648
      %v4607 = vxor.u32 %v3985, 2147483648
      %v4608 = vxor.u32 %v3890, 2147483648
      %v4609 = vxor.u32 %v3988, 2147483648
      %v4610 = vxor.u32 %v3892, 2147483648
      %v4611 = vxor.u32 %v3990, 2147483648
      %v4612 = vmul.f32 %v4580, 1.442695
      %v4613 = vpow.pop %v4612
      %v4614 = vmul.f32 %v4581, 1.442695
      %v4615 = vpow.pop %v4614
      %v4616 = vmul.f32 %v4582, 1.442695
      %v4617 = vpow.pop %v4616
      %v4618 = vmul.f32 %v4583, 1.442695
      %v4619 = vpow.pop %v4618
      %v4620 = vmul.f32 %v4584, 1.442695
      %v4621 = vpow.pop %v4620
      %v4622 = vmul.f32 %v4585, 1.442695
      %v4623 = vpow.pop %v4622
      %v4624 = vmul.f32 %v4586, 1.442695
      %v4625 = vpow.pop %v4624
      %v4626 = vmul.f32 %v4587, 1.442695
      %v4627 = vpow.pop %v4626
      %v4628 = vmul.f32 %v4588, 1.442695
      %v4629 = vpow.pop %v4628
      %v4630 = vmul.f32 %v4589, 1.442695
      %v4631 = vpow.pop %v4630
      %v4632 = vmul.f32 %v4590, 1.442695
      %v4633 = vpow.pop %v4632
      %v4634 = vmul.f32 %v4591, 1.442695
      %v4635 = vpow.pop %v4634
      %v4636 = vmul.f32 %v4592, 1.442695
      %v4637 = vpow.pop %v4636
      %v4638 = vmul.f32 %v4593, 1.442695
      %v4639 = vpow.pop %v4638
      %v4640 = vmul.f32 %v4594, 1.442695
      %v4641 = vpow.pop %v4640
      %v4642 = vmul.f32 %v4595, 1.442695
      %v4643 = vpow.pop %v4642
      %v4644 = vmul.f32 %v4596, 1.442695
      %v4645 = vpow.pop %v4644
      %v4646 = vmul.f32 %v4597, 1.442695
      %v4647 = vpow.pop %v4646
      %v4648 = vmul.f32 %v4598, 1.442695
      %v4649 = vpow.pop %v4648
      %v4650 = vmul.f32 %v4599, 1.442695
      %v4651 = vpow.pop %v4650
      %v4652 = vmul.f32 %v4600, 1.442695
      %v4653 = vpow.pop %v4652
      %v4654 = vmul.f32 %v4601, 1.442695
      %v4655 = vpow.pop %v4654
      %v4656 = vmul.f32 %v4602, 1.442695
      %v4657 = vpow.pop %v4656
      %v4658 = vmul.f32 %v4603, 1.442695
      %v4659 = vpow.pop %v4658
      %v4660 = vmul.f32 %v4604, 1.442695
      %v4661 = vpow.pop %v4660
      %v4662 = vmul.f32 %v4605, 1.442695
      %v4663 = vpow.pop %v4662
      %v4664 = vmul.f32 %v4606, 1.442695
      %v4665 = vpow.pop %v4664
      %v4666 = vmul.f32 %v4607, 1.442695
      %v4667 = vpow.pop %v4666
      %v4668 = vmul.f32 %v4608, 1.442695
      %v4669 = vpow.pop %v4668
      %v4670 = vmul.f32 %v4609, 1.442695
      %v4671 = vpow.pop %v4670
      %v4672 = vmul.f32 %v4610, 1.442695
      %v4673 = vpow.pop %v4672
      %v4674 = vmul.f32 %v4611, 1.442695
      %v4675 = vpow.pop %v4674
      %v4676 = vadd.f32 %v4613, 1.0
      %v4677 = vadd.f32 %v4615, 1.0
      %v4678 = vadd.f32 %v4617, 1.0
      %v4679 = vadd.f32 %v4619, 1.0
      %v4680 = vadd.f32 %v4621, 1.0
      %v4681 = vadd.f32 %v4623, 1.0
      %v4682 = vadd.f32 %v4625, 1.0
      %v4683 = vadd.f32 %v4627, 1.0
      %v4684 = vadd.f32 %v4629, 1.0
      %v4685 = vadd.f32 %v4631, 1.0
      %v4686 = vadd.f32 %v4633, 1.0
      %v4687 = vadd.f32 %v4635, 1.0
      %v4688 = vadd.f32 %v4637, 1.0
      %v4689 = vadd.f32 %v4639, 1.0
      %v4690 = vadd.f32 %v4641, 1.0
      %v4691 = vadd.f32 %v4643, 1.0
      %v4692 = vadd.f32 %v4645, 1.0
      %v4693 = vadd.f32 %v4647, 1.0
      %v4694 = vadd.f32 %v4649, 1.0
      %v4695 = vadd.f32 %v4651, 1.0
      %v4696 = vadd.f32 %v4653, 1.0
      %v4697 = vadd.f32 %v4655, 1.0
      %v4698 = vadd.f32 %v4657, 1.0
      %v4699 = vadd.f32 %v4659, 1.0
      %v4700 = vadd.f32 %v4661, 1.0
      %v4701 = vadd.f32 %v4663, 1.0
      %v4702 = vadd.f32 %v4665, 1.0
      %v4703 = vadd.f32 %v4667, 1.0
      %v4704 = vadd.f32 %v4669, 1.0
      %v4705 = vadd.f32 %v4671, 1.0
      %v4706 = vadd.f32 %v4673, 1.0
      %v4707 = vadd.f32 %v4675, 1.0
      %v4708 = vrcp.pop %v4676
      %v4709 = vmul.f32 %v4676, %v4708
      %v4710 = vsub.f32 1.0, %v4709
      %v4711 = vmul.f32 %v4708, %v4710
      %v4712 = vadd.f32 %v4708, %v4711
      %vm4713 = vweird.f32 %v4676
      %vm4714 = vweird.f32 %v4708
      %vm4715 = vmor %vm4713, %vm4714
      %v4716 = vsel %vm4715, %v4708, %v4712
      %v4717 = vand.u32 2147483647, %v4676
      %vm4718 = vcmp.eq.f32.partialorder %v4717, 8.507059e+37
      %v4719 = vand.u32 %v4676, 2147483648
      %v4720 = vor.u32 1.1754944e-38, %v4719
      %v4721 = vsel %vm4718, %v4720, %v4716
      %v4722 = vmul.f32 1.0, %v4721
      %v4723 = vrcp.pop %v4677
      %v4724 = vmul.f32 %v4677, %v4723
      %v4725 = vsub.f32 1.0, %v4724
      %v4726 = vmul.f32 %v4723, %v4725
      %v4727 = vadd.f32 %v4723, %v4726
      %vm4728 = vweird.f32 %v4677
      %vm4729 = vweird.f32 %v4723
      %vm4730 = vmor %vm4728, %vm4729
      %v4731 = vsel %vm4730, %v4723, %v4727
      %v4732 = vand.u32 2147483647, %v4677
      %vm4733 = vcmp.eq.f32.partialorder %v4732, 8.507059e+37
      %v4734 = vand.u32 %v4677, 2147483648
      %v4735 = vor.u32 1.1754944e-38, %v4734
      %v4736 = vsel %vm4733, %v4735, %v4731
      %v4737 = vmul.f32 1.0, %v4736
      %v4738 = vrcp.pop %v4678
      %v4739 = vmul.f32 %v4678, %v4738
      %v4740 = vsub.f32 1.0, %v4739
      %v4741 = vmul.f32 %v4738, %v4740
      %v4742 = vadd.f32 %v4738, %v4741
      %vm4743 = vweird.f32 %v4678
      %vm4744 = vweird.f32 %v4738
      %vm4745 = vmor %vm4743, %vm4744
      %v4746 = vsel %vm4745, %v4738, %v4742
      %v4747 = vand.u32 2147483647, %v4678
      %vm4748 = vcmp.eq.f32.partialorder %v4747, 8.507059e+37
      %v4749 = vand.u32 %v4678, 2147483648
      %v4750 = vor.u32 1.1754944e-38, %v4749
      %v4751 = vsel %vm4748, %v4750, %v4746
      %v4752 = vmul.f32 1.0, %v4751
      %v4753 = vrcp.pop %v4679
      %v4754 = vmul.f32 %v4679, %v4753
      %v4755 = vsub.f32 1.0, %v4754
      %v4756 = vmul.f32 %v4753, %v4755
      %v4757 = vadd.f32 %v4753, %v4756
      %vm4758 = vweird.f32 %v4679
      %vm4759 = vweird.f32 %v4753
      %vm4760 = vmor %vm4758, %vm4759
      %v4761 = vsel %vm4760, %v4753, %v4757
      %v4762 = vand.u32 2147483647, %v4679
      %vm4763 = vcmp.eq.f32.partialorder %v4762, 8.507059e+37
      %v4764 = vand.u32 %v4679, 2147483648
      %v4765 = vor.u32 1.1754944e-38, %v4764
      %v4766 = vsel %vm4763, %v4765, %v4761
      %v4767 = vmul.f32 1.0, %v4766
      %v4768 = vrcp.pop %v4680
      %v4769 = vmul.f32 %v4680, %v4768
      %v4770 = vsub.f32 1.0, %v4769
      %v4771 = vmul.f32 %v4768, %v4770
      %v4772 = vadd.f32 %v4768, %v4771
      %vm4773 = vweird.f32 %v4680
      %vm4774 = vweird.f32 %v4768
      %vm4775 = vmor %vm4773, %vm4774
      %v4776 = vsel %vm4775, %v4768, %v4772
      %v4777 = vand.u32 2147483647, %v4680
      %vm4778 = vcmp.eq.f32.partialorder %v4777, 8.507059e+37
      %v4779 = vand.u32 %v4680, 2147483648
      %v4780 = vor.u32 1.1754944e-38, %v4779
      %v4781 = vsel %vm4778, %v4780, %v4776
      %v4782 = vmul.f32 1.0, %v4781
      %v4783 = vrcp.pop %v4681
      %v4784 = vmul.f32 %v4681, %v4783
      %v4785 = vsub.f32 1.0, %v4784
      %v4786 = vmul.f32 %v4783, %v4785
      %v4787 = vadd.f32 %v4783, %v4786
      %vm4788 = vweird.f32 %v4681
      %vm4789 = vweird.f32 %v4783
      %vm4790 = vmor %vm4788, %vm4789
      %v4791 = vsel %vm4790, %v4783, %v4787
      %v4792 = vand.u32 2147483647, %v4681
      %vm4793 = vcmp.eq.f32.partialorder %v4792, 8.507059e+37
      %v4794 = vand.u32 %v4681, 2147483648
      %v4795 = vor.u32 1.1754944e-38, %v4794
      %v4796 = vsel %vm4793, %v4795, %v4791
      %v4797 = vmul.f32 1.0, %v4796
      %v4798 = vrcp.pop %v4682
      %v4799 = vmul.f32 %v4682, %v4798
      %v4800 = vsub.f32 1.0, %v4799
      %v4801 = vmul.f32 %v4798, %v4800
      %v4802 = vadd.f32 %v4798, %v4801
      %vm4803 = vweird.f32 %v4682
      %vm4804 = vweird.f32 %v4798
      %vm4805 = vmor %vm4803, %vm4804
      %v4806 = vsel %vm4805, %v4798, %v4802
      %v4807 = vand.u32 2147483647, %v4682
      %vm4808 = vcmp.eq.f32.partialorder %v4807, 8.507059e+37
      %v4809 = vand.u32 %v4682, 2147483648
      %v4810 = vor.u32 1.1754944e-38, %v4809
      %v4811 = vsel %vm4808, %v4810, %v4806
      %v4812 = vmul.f32 1.0, %v4811
      %v4813 = vrcp.pop %v4683
      %v4814 = vmul.f32 %v4683, %v4813
      %v4815 = vsub.f32 1.0, %v4814
      %v4816 = vmul.f32 %v4813, %v4815
      %v4817 = vadd.f32 %v4813, %v4816
      %vm4818 = vweird.f32 %v4683
      %vm4819 = vweird.f32 %v4813
      %vm4820 = vmor %vm4818, %vm4819
      %v4821 = vsel %vm4820, %v4813, %v4817
      %v4822 = vand.u32 2147483647, %v4683
      %vm4823 = vcmp.eq.f32.partialorder %v4822, 8.507059e+37
      %v4824 = vand.u32 %v4683, 2147483648
      %v4825 = vor.u32 1.1754944e-38, %v4824
      %v4826 = vsel %vm4823, %v4825, %v4821
      %v4827 = vmul.f32 1.0, %v4826
      %v4828 = vrcp.pop %v4684
      %v4829 = vmul.f32 %v4684, %v4828
      %v4830 = vsub.f32 1.0, %v4829
      %v4831 = vmul.f32 %v4828, %v4830
      %v4832 = vadd.f32 %v4828, %v4831
      %vm4833 = vweird.f32 %v4684
      %vm4834 = vweird.f32 %v4828
      %vm4835 = vmor %vm4833, %vm4834
      %v4836 = vsel %vm4835, %v4828, %v4832
      %v4837 = vand.u32 2147483647, %v4684
      %vm4838 = vcmp.eq.f32.partialorder %v4837, 8.507059e+37
      %v4839 = vand.u32 %v4684, 2147483648
      %v4840 = vor.u32 1.1754944e-38, %v4839
      %v4841 = vsel %vm4838, %v4840, %v4836
      %v4842 = vmul.f32 1.0, %v4841
      %v4843 = vrcp.pop %v4685
      %v4844 = vmul.f32 %v4685, %v4843
      %v4845 = vsub.f32 1.0, %v4844
      %v4846 = vmul.f32 %v4843, %v4845
      %v4847 = vadd.f32 %v4843, %v4846
      %vm4848 = vweird.f32 %v4685
      %vm4849 = vweird.f32 %v4843
      %vm4850 = vmor %vm4848, %vm4849
      %v4851 = vsel %vm4850, %v4843, %v4847
      %v4852 = vand.u32 2147483647, %v4685
      %vm4853 = vcmp.eq.f32.partialorder %v4852, 8.507059e+37
      %v4854 = vand.u32 %v4685, 2147483648
      %v4855 = vor.u32 1.1754944e-38, %v4854
      %v4856 = vsel %vm4853, %v4855, %v4851
      %v4857 = vmul.f32 1.0, %v4856
      %v4858 = vrcp.pop %v4686
      %v4859 = vmul.f32 %v4686, %v4858
      %v4860 = vsub.f32 1.0, %v4859
      %v4861 = vmul.f32 %v4858, %v4860
      %v4862 = vadd.f32 %v4858, %v4861
      %vm4863 = vweird.f32 %v4686
      %vm4864 = vweird.f32 %v4858
      %vm4865 = vmor %vm4863, %vm4864
      %v4866 = vsel %vm4865, %v4858, %v4862
      %v4867 = vand.u32 2147483647, %v4686
      %vm4868 = vcmp.eq.f32.partialorder %v4867, 8.507059e+37
      %v4869 = vand.u32 %v4686, 2147483648
      %v4870 = vor.u32 1.1754944e-38, %v4869
      %v4871 = vsel %vm4868, %v4870, %v4866
      %v4872 = vmul.f32 1.0, %v4871
      %v4873 = vrcp.pop %v4687
      %v4874 = vmul.f32 %v4687, %v4873
      %v4875 = vsub.f32 1.0, %v4874
      %v4876 = vmul.f32 %v4873, %v4875
      %v4877 = vadd.f32 %v4873, %v4876
      %vm4878 = vweird.f32 %v4687
      %vm4879 = vweird.f32 %v4873
      %vm4880 = vmor %vm4878, %vm4879
      %v4881 = vsel %vm4880, %v4873, %v4877
      %v4882 = vand.u32 2147483647, %v4687
      %vm4883 = vcmp.eq.f32.partialorder %v4882, 8.507059e+37
      %v4884 = vand.u32 %v4687, 2147483648
      %v4885 = vor.u32 1.1754944e-38, %v4884
      %v4886 = vsel %vm4883, %v4885, %v4881
      %v4887 = vmul.f32 1.0, %v4886
      %v4888 = vrcp.pop %v4688
      %v4889 = vmul.f32 %v4688, %v4888
      %v4890 = vsub.f32 1.0, %v4889
      %v4891 = vmul.f32 %v4888, %v4890
      %v4892 = vadd.f32 %v4888, %v4891
      %vm4893 = vweird.f32 %v4688
      %vm4894 = vweird.f32 %v4888
      %vm4895 = vmor %vm4893, %vm4894
      %v4896 = vsel %vm4895, %v4888, %v4892
      %v4897 = vand.u32 2147483647, %v4688
      %vm4898 = vcmp.eq.f32.partialorder %v4897, 8.507059e+37
      %v4899 = vand.u32 %v4688, 2147483648
      %v4900 = vor.u32 1.1754944e-38, %v4899
      %v4901 = vsel %vm4898, %v4900, %v4896
      %v4902 = vmul.f32 1.0, %v4901
      %v4903 = vrcp.pop %v4689
      %v4904 = vmul.f32 %v4689, %v4903
      %v4905 = vsub.f32 1.0, %v4904
      %v4906 = vmul.f32 %v4903, %v4905
      %v4907 = vadd.f32 %v4903, %v4906
      %vm4908 = vweird.f32 %v4689
      %vm4909 = vweird.f32 %v4903
      %vm4910 = vmor %vm4908, %vm4909
      %v4911 = vsel %vm4910, %v4903, %v4907
      %v4912 = vand.u32 2147483647, %v4689
      %vm4913 = vcmp.eq.f32.partialorder %v4912, 8.507059e+37
      %v4914 = vand.u32 %v4689, 2147483648
      %v4915 = vor.u32 1.1754944e-38, %v4914
      %v4916 = vsel %vm4913, %v4915, %v4911
      %v4917 = vmul.f32 1.0, %v4916
      %v4918 = vrcp.pop %v4690
      %v4919 = vmul.f32 %v4690, %v4918
      %v4920 = vsub.f32 1.0, %v4919
      %v4921 = vmul.f32 %v4918, %v4920
      %v4922 = vadd.f32 %v4918, %v4921
      %vm4923 = vweird.f32 %v4690
      %vm4924 = vweird.f32 %v4918
      %vm4925 = vmor %vm4923, %vm4924
      %v4926 = vsel %vm4925, %v4918, %v4922
      %v4927 = vand.u32 2147483647, %v4690
      %vm4928 = vcmp.eq.f32.partialorder %v4927, 8.507059e+37
      %v4929 = vand.u32 %v4690, 2147483648
      %v4930 = vor.u32 1.1754944e-38, %v4929
      %v4931 = vsel %vm4928, %v4930, %v4926
      %v4932 = vmul.f32 1.0, %v4931
      %v4933 = vrcp.pop %v4691
      %v4934 = vmul.f32 %v4691, %v4933
      %v4935 = vsub.f32 1.0, %v4934
      %v4936 = vmul.f32 %v4933, %v4935
      %v4937 = vadd.f32 %v4933, %v4936
      %vm4938 = vweird.f32 %v4691
      %vm4939 = vweird.f32 %v4933
      %vm4940 = vmor %vm4938, %vm4939
      %v4941 = vsel %vm4940, %v4933, %v4937
      %v4942 = vand.u32 2147483647, %v4691
      %vm4943 = vcmp.eq.f32.partialorder %v4942, 8.507059e+37
      %v4944 = vand.u32 %v4691, 2147483648
      %v4945 = vor.u32 1.1754944e-38, %v4944
      %v4946 = vsel %vm4943, %v4945, %v4941
      %v4947 = vmul.f32 1.0, %v4946
      %v4948 = vrcp.pop %v4692
      %v4949 = vmul.f32 %v4692, %v4948
      %v4950 = vsub.f32 1.0, %v4949
      %v4951 = vmul.f32 %v4948, %v4950
      %v4952 = vadd.f32 %v4948, %v4951
      %vm4953 = vweird.f32 %v4692
      %vm4954 = vweird.f32 %v4948
      %vm4955 = vmor %vm4953, %vm4954
      %v4956 = vsel %vm4955, %v4948, %v4952
      %v4957 = vand.u32 2147483647, %v4692
      %vm4958 = vcmp.eq.f32.partialorder %v4957, 8.507059e+37
      %v4959 = vand.u32 %v4692, 2147483648
      %v4960 = vor.u32 1.1754944e-38, %v4959
      %v4961 = vsel %vm4958, %v4960, %v4956
      %v4962 = vmul.f32 1.0, %v4961
      %v4963 = vrcp.pop %v4693
      %v4964 = vmul.f32 %v4693, %v4963
      %v4965 = vsub.f32 1.0, %v4964
      %v4966 = vmul.f32 %v4963, %v4965
      %v4967 = vadd.f32 %v4963, %v4966
      %vm4968 = vweird.f32 %v4693
      %vm4969 = vweird.f32 %v4963
      %vm4970 = vmor %vm4968, %vm4969
      %v4971 = vsel %vm4970, %v4963, %v4967
      %v4972 = vand.u32 2147483647, %v4693
      %vm4973 = vcmp.eq.f32.partialorder %v4972, 8.507059e+37
      %v4974 = vand.u32 %v4693, 2147483648
      %v4975 = vor.u32 1.1754944e-38, %v4974
      %v4976 = vsel %vm4973, %v4975, %v4971
      %v4977 = vmul.f32 1.0, %v4976
      %v4978 = vrcp.pop %v4694
      %v4979 = vmul.f32 %v4694, %v4978
      %v4980 = vsub.f32 1.0, %v4979
      %v4981 = vmul.f32 %v4978, %v4980
      %v4982 = vadd.f32 %v4978, %v4981
      %vm4983 = vweird.f32 %v4694
      %vm4984 = vweird.f32 %v4978
      %vm4985 = vmor %vm4983, %vm4984
      %v4986 = vsel %vm4985, %v4978, %v4982
      %v4987 = vand.u32 2147483647, %v4694
      %vm4988 = vcmp.eq.f32.partialorder %v4987, 8.507059e+37
      %v4989 = vand.u32 %v4694, 2147483648
      %v4990 = vor.u32 1.1754944e-38, %v4989
      %v4991 = vsel %vm4988, %v4990, %v4986
      %v4992 = vmul.f32 1.0, %v4991
      %v4993 = vrcp.pop %v4695
      %v4994 = vmul.f32 %v4695, %v4993
      %v4995 = vsub.f32 1.0, %v4994
      %v4996 = vmul.f32 %v4993, %v4995
      %v4997 = vadd.f32 %v4993, %v4996
      %vm4998 = vweird.f32 %v4695
      %vm4999 = vweird.f32 %v4993
      %vm5000 = vmor %vm4998, %vm4999
      %v5001 = vsel %vm5000, %v4993, %v4997
      %v5002 = vand.u32 2147483647, %v4695
      %vm5003 = vcmp.eq.f32.partialorder %v5002, 8.507059e+37
      %v5004 = vand.u32 %v4695, 2147483648
      %v5005 = vor.u32 1.1754944e-38, %v5004
      %v5006 = vsel %vm5003, %v5005, %v5001
      %v5007 = vmul.f32 1.0, %v5006
      %v5008 = vrcp.pop %v4696
      %v5009 = vmul.f32 %v4696, %v5008
      %v5010 = vsub.f32 1.0, %v5009
      %v5011 = vmul.f32 %v5008, %v5010
      %v5012 = vadd.f32 %v5008, %v5011
      %vm5013 = vweird.f32 %v4696
      %vm5014 = vweird.f32 %v5008
      %vm5015 = vmor %vm5013, %vm5014
      %v5016 = vsel %vm5015, %v5008, %v5012
      %v5017 = vand.u32 2147483647, %v4696
      %vm5018 = vcmp.eq.f32.partialorder %v5017, 8.507059e+37
      %v5019 = vand.u32 %v4696, 2147483648
      %v5020 = vor.u32 1.1754944e-38, %v5019
      %v5021 = vsel %vm5018, %v5020, %v5016
      %v5022 = vmul.f32 1.0, %v5021
      %v5023 = vrcp.pop %v4697
      %v5024 = vmul.f32 %v4697, %v5023
      %v5025 = vsub.f32 1.0, %v5024
      %v5026 = vmul.f32 %v5023, %v5025
      %v5027 = vadd.f32 %v5023, %v5026
      %vm5028 = vweird.f32 %v4697
      %vm5029 = vweird.f32 %v5023
      %vm5030 = vmor %vm5028, %vm5029
      %v5031 = vsel %vm5030, %v5023, %v5027
      %v5032 = vand.u32 2147483647, %v4697
      %vm5033 = vcmp.eq.f32.partialorder %v5032, 8.507059e+37
      %v5034 = vand.u32 %v4697, 2147483648
      %v5035 = vor.u32 1.1754944e-38, %v5034
      %v5036 = vsel %vm5033, %v5035, %v5031
      %v5037 = vmul.f32 1.0, %v5036
      %v5038 = vrcp.pop %v4698
      %v5039 = vmul.f32 %v4698, %v5038
      %v5040 = vsub.f32 1.0, %v5039
      %v5041 = vmul.f32 %v5038, %v5040
      %v5042 = vadd.f32 %v5038, %v5041
      %vm5043 = vweird.f32 %v4698
      %vm5044 = vweird.f32 %v5038
      %vm5045 = vmor %vm5043, %vm5044
      %v5046 = vsel %vm5045, %v5038, %v5042
      %v5047 = vand.u32 2147483647, %v4698
      %vm5048 = vcmp.eq.f32.partialorder %v5047, 8.507059e+37
      %v5049 = vand.u32 %v4698, 2147483648
      %v5050 = vor.u32 1.1754944e-38, %v5049
      %v5051 = vsel %vm5048, %v5050, %v5046
      %v5052 = vmul.f32 1.0, %v5051
      %v5053 = vrcp.pop %v4699
      %v5054 = vmul.f32 %v4699, %v5053
      %v5055 = vsub.f32 1.0, %v5054
      %v5056 = vmul.f32 %v5053, %v5055
      %v5057 = vadd.f32 %v5053, %v5056
      %vm5058 = vweird.f32 %v4699
      %vm5059 = vweird.f32 %v5053
      %vm5060 = vmor %vm5058, %vm5059
      %v5061 = vsel %vm5060, %v5053, %v5057
      %v5062 = vand.u32 2147483647, %v4699
      %vm5063 = vcmp.eq.f32.partialorder %v5062, 8.507059e+37
      %v5064 = vand.u32 %v4699, 2147483648
      %v5065 = vor.u32 1.1754944e-38, %v5064
      %v5066 = vsel %vm5063, %v5065, %v5061
      %v5067 = vmul.f32 1.0, %v5066
      %v5068 = vrcp.pop %v4700
      %v5069 = vmul.f32 %v4700, %v5068
      %v5070 = vsub.f32 1.0, %v5069
      %v5071 = vmul.f32 %v5068, %v5070
      %v5072 = vadd.f32 %v5068, %v5071
      %vm5073 = vweird.f32 %v4700
      %vm5074 = vweird.f32 %v5068
      %vm5075 = vmor %vm5073, %vm5074
      %v5076 = vsel %vm5075, %v5068, %v5072
      %v5077 = vand.u32 2147483647, %v4700
      %vm5078 = vcmp.eq.f32.partialorder %v5077, 8.507059e+37
      %v5079 = vand.u32 %v4700, 2147483648
      %v5080 = vor.u32 1.1754944e-38, %v5079
      %v5081 = vsel %vm5078, %v5080, %v5076
      %v5082 = vmul.f32 1.0, %v5081
      %v5083 = vrcp.pop %v4701
      %v5084 = vmul.f32 %v4701, %v5083
      %v5085 = vsub.f32 1.0, %v5084
      %v5086 = vmul.f32 %v5083, %v5085
      %v5087 = vadd.f32 %v5083, %v5086
      %vm5088 = vweird.f32 %v4701
      %vm5089 = vweird.f32 %v5083
      %vm5090 = vmor %vm5088, %vm5089
      %v5091 = vsel %vm5090, %v5083, %v5087
      %v5092 = vand.u32 2147483647, %v4701
      %vm5093 = vcmp.eq.f32.partialorder %v5092, 8.507059e+37
      %v5094 = vand.u32 %v4701, 2147483648
      %v5095 = vor.u32 1.1754944e-38, %v5094
      %v5096 = vsel %vm5093, %v5095, %v5091
      %v5097 = vmul.f32 1.0, %v5096
      %v5098 = vrcp.pop %v4702
      %v5099 = vmul.f32 %v4702, %v5098
      %v5100 = vsub.f32 1.0, %v5099
      %v5101 = vmul.f32 %v5098, %v5100
      %v5102 = vadd.f32 %v5098, %v5101
      %vm5103 = vweird.f32 %v4702
      %vm5104 = vweird.f32 %v5098
      %vm5105 = vmor %vm5103, %vm5104
      %v5106 = vsel %vm5105, %v5098, %v5102
      %v5107 = vand.u32 2147483647, %v4702
      %vm5108 = vcmp.eq.f32.partialorder %v5107, 8.507059e+37
      %v5109 = vand.u32 %v4702, 2147483648
      %v5110 = vor.u32 1.1754944e-38, %v5109
      %v5111 = vsel %vm5108, %v5110, %v5106
      %v5112 = vmul.f32 1.0, %v5111
      %v5113 = vrcp.pop %v4703
      %v5114 = vmul.f32 %v4703, %v5113
      %v5115 = vsub.f32 1.0, %v5114
      %v5116 = vmul.f32 %v5113, %v5115
      %v5117 = vadd.f32 %v5113, %v5116
      %vm5118 = vweird.f32 %v4703
      %vm5119 = vweird.f32 %v5113
      %vm5120 = vmor %vm5118, %vm5119
      %v5121 = vsel %vm5120, %v5113, %v5117
      %v5122 = vand.u32 2147483647, %v4703
      %vm5123 = vcmp.eq.f32.partialorder %v5122, 8.507059e+37
      %v5124 = vand.u32 %v4703, 2147483648
      %v5125 = vor.u32 1.1754944e-38, %v5124
      %v5126 = vsel %vm5123, %v5125, %v5121
      %v5127 = vmul.f32 1.0, %v5126
      %v5128 = vrcp.pop %v4704
      %v5129 = vmul.f32 %v4704, %v5128
      %v5130 = vsub.f32 1.0, %v5129
      %v5131 = vmul.f32 %v5128, %v5130
      %v5132 = vadd.f32 %v5128, %v5131
      %vm5133 = vweird.f32 %v4704
      %vm5134 = vweird.f32 %v5128
      %vm5135 = vmor %vm5133, %vm5134
      %v5136 = vsel %vm5135, %v5128, %v5132
      %v5137 = vand.u32 2147483647, %v4704
      %vm5138 = vcmp.eq.f32.partialorder %v5137, 8.507059e+37
      %v5139 = vand.u32 %v4704, 2147483648
      %v5140 = vor.u32 1.1754944e-38, %v5139
      %v5141 = vsel %vm5138, %v5140, %v5136
      %v5142 = vmul.f32 1.0, %v5141
      %v5143 = vrcp.pop %v4705
      %v5144 = vmul.f32 %v4705, %v5143
      %v5145 = vsub.f32 1.0, %v5144
      %v5146 = vmul.f32 %v5143, %v5145
      %v5147 = vadd.f32 %v5143, %v5146
      %vm5148 = vweird.f32 %v4705
      %vm5149 = vweird.f32 %v5143
      %vm5150 = vmor %vm5148, %vm5149
      %v5151 = vsel %vm5150, %v5143, %v5147
      %v5152 = vand.u32 2147483647, %v4705
      %vm5153 = vcmp.eq.f32.partialorder %v5152, 8.507059e+37
      %v5154 = vand.u32 %v4705, 2147483648
      %v5155 = vor.u32 1.1754944e-38, %v5154
      %v5156 = vsel %vm5153, %v5155, %v5151
      %v5157 = vmul.f32 1.0, %v5156
      %v5158 = vrcp.pop %v4706
      %v5159 = vmul.f32 %v4706, %v5158
      %v5160 = vsub.f32 1.0, %v5159
      %v5161 = vmul.f32 %v5158, %v5160
      %v5162 = vadd.f32 %v5158, %v5161
      %vm5163 = vweird.f32 %v4706
      %vm5164 = vweird.f32 %v5158
      %vm5165 = vmor %vm5163, %vm5164
      %v5166 = vsel %vm5165, %v5158, %v5162
      %v5167 = vand.u32 2147483647, %v4706
      %vm5168 = vcmp.eq.f32.partialorder %v5167, 8.507059e+37
      %v5169 = vand.u32 %v4706, 2147483648
      %v5170 = vor.u32 1.1754944e-38, %v5169
      %v5171 = vsel %vm5168, %v5170, %v5166
      %v5172 = vmul.f32 1.0, %v5171
      %v5173 = vrcp.pop %v4707
      %v5174 = vmul.f32 %v4707, %v5173
      %v5175 = vsub.f32 1.0, %v5174
      %v5176 = vmul.f32 %v5173, %v5175
      %v5177 = vadd.f32 %v5173, %v5176
      %vm5178 = vweird.f32 %v4707
      %vm5179 = vweird.f32 %v5173
      %vm5180 = vmor %vm5178, %vm5179
      %v5181 = vsel %vm5180, %v5173, %v5177
      %v5182 = vand.u32 2147483647, %v4707
      %vm5183 = vcmp.eq.f32.partialorder %v5182, 8.507059e+37
      %v5184 = vand.u32 %v4707, 2147483648
      %v5185 = vor.u32 1.1754944e-38, %v5184
      %v5186 = vsel %vm5183, %v5185, %v5181
      %v5187 = vmul.f32 1.0, %v5186
      %v5188 = vxor.u32 %v4051, 2147483648
      %v5189 = vxor.u32 %v4149, 2147483648
      %v5190 = vxor.u32 %v4053, 2147483648
      %v5191 = vxor.u32 %v4151, 2147483648
      %v5192 = vxor.u32 %v4056, 2147483648
      %v5193 = vxor.u32 %v4154, 2147483648
      %v5194 = vxor.u32 %v4058, 2147483648
      %v5195 = vxor.u32 %v4156, 2147483648
      %v5196 = vxor.u32 %v4061, 2147483648
      %v5197 = vxor.u32 %v4159, 2147483648
      %v5198 = vxor.u32 %v4063, 2147483648
      %v5199 = vxor.u32 %v4161, 2147483648
      %v5200 = vxor.u32 %v4066, 2147483648
      %v5201 = vxor.u32 %v4164, 2147483648
      %v5202 = vxor.u32 %v4068, 2147483648
      %v5203 = vxor.u32 %v4166, 2147483648
      %v5204 = vxor.u32 %v4071, 2147483648
      %v5205 = vxor.u32 %v4169, 2147483648
      %v5206 = vxor.u32 %v4073, 2147483648
      %v5207 = vxor.u32 %v4171, 2147483648
      %v5208 = vxor.u32 %v4076, 2147483648
      %v5209 = vxor.u32 %v4174, 2147483648
      %v5210 = vxor.u32 %v4078, 2147483648
      %v5211 = vxor.u32 %v4176, 2147483648
      %v5212 = vxor.u32 %v4081, 2147483648
      %v5213 = vxor.u32 %v4179, 2147483648
      %v5214 = vxor.u32 %v4083, 2147483648
      %v5215 = vxor.u32 %v4181, 2147483648
      %v5216 = vxor.u32 %v4086, 2147483648
      %v5217 = vxor.u32 %v4184, 2147483648
      %v5218 = vxor.u32 %v4088, 2147483648
      %v5219 = vxor.u32 %v4186, 2147483648
      %v5220 = vmul.f32 %v5188, 1.442695
      %v5221 = vpow.pop %v5220
      %v5222 = vmul.f32 %v5189, 1.442695
      %v5223 = vpow.pop %v5222
      %v5224 = vmul.f32 %v5190, 1.442695
      %v5225 = vpow.pop %v5224
      %v5226 = vmul.f32 %v5191, 1.442695
      %v5227 = vpow.pop %v5226
      %v5228 = vmul.f32 %v5192, 1.442695
      %v5229 = vpow.pop %v5228
      %v5230 = vmul.f32 %v5193, 1.442695
      %v5231 = vpow.pop %v5230
      %v5232 = vmul.f32 %v5194, 1.442695
      %v5233 = vpow.pop %v5232
      %v5234 = vmul.f32 %v5195, 1.442695
      %v5235 = vpow.pop %v5234
      %v5236 = vmul.f32 %v5196, 1.442695
      %v5237 = vpow.pop %v5236
      %v5238 = vmul.f32 %v5197, 1.442695
      %v5239 = vpow.pop %v5238
      %v5240 = vmul.f32 %v5198, 1.442695
      %v5241 = vpow.pop %v5240
      %v5242 = vmul.f32 %v5199, 1.442695
      %v5243 = vpow.pop %v5242
      %v5244 = vmul.f32 %v5200, 1.442695
      %v5245 = vpow.pop %v5244
      %v5246 = vmul.f32 %v5201, 1.442695
      %v5247 = vpow.pop %v5246
      %v5248 = vmul.f32 %v5202, 1.442695
      %v5249 = vpow.pop %v5248
      %v5250 = vmul.f32 %v5203, 1.442695
      %v5251 = vpow.pop %v5250
      %v5252 = vmul.f32 %v5204, 1.442695
      %v5253 = vpow.pop %v5252
      %v5254 = vmul.f32 %v5205, 1.442695
      %v5255 = vpow.pop %v5254
      %v5256 = vmul.f32 %v5206, 1.442695
      %v5257 = vpow.pop %v5256
      %v5258 = vmul.f32 %v5207, 1.442695
      %v5259 = vpow.pop %v5258
      %v5260 = vmul.f32 %v5208, 1.442695
      %v5261 = vpow.pop %v5260
      %v5262 = vmul.f32 %v5209, 1.442695
      %v5263 = vpow.pop %v5262
      %v5264 = vmul.f32 %v5210, 1.442695
      %v5265 = vpow.pop %v5264
      %v5266 = vmul.f32 %v5211, 1.442695
      %v5267 = vpow.pop %v5266
      %v5268 = vmul.f32 %v5212, 1.442695
      %v5269 = vpow.pop %v5268
      %v5270 = vmul.f32 %v5213, 1.442695
      %v5271 = vpow.pop %v5270
      %v5272 = vmul.f32 %v5214, 1.442695
      %v5273 = vpow.pop %v5272
      %v5274 = vmul.f32 %v5215, 1.442695
      %v5275 = vpow.pop %v5274
      %v5276 = vmul.f32 %v5216, 1.442695
      %v5277 = vpow.pop %v5276
      %v5278 = vmul.f32 %v5217, 1.442695
      %v5279 = vpow.pop %v5278
      %v5280 = vmul.f32 %v5218, 1.442695
      %v5281 = vpow.pop %v5280
      %v5282 = vmul.f32 %v5219, 1.442695
      %v5283 = vpow.pop %v5282
      %v5284 = vadd.f32 %v5221, 1.0
      %v5285 = vadd.f32 %v5223, 1.0
      %v5286 = vadd.f32 %v5225, 1.0
      %v5287 = vadd.f32 %v5227, 1.0
      %v5288 = vadd.f32 %v5229, 1.0
      %v5289 = vadd.f32 %v5231, 1.0
      %v5290 = vadd.f32 %v5233, 1.0
      %v5291 = vadd.f32 %v5235, 1.0
      %v5292 = vadd.f32 %v5237, 1.0
      %v5293 = vadd.f32 %v5239, 1.0
      %v5294 = vadd.f32 %v5241, 1.0
      %v5295 = vadd.f32 %v5243, 1.0
      %v5296 = vadd.f32 %v5245, 1.0
      %v5297 = vadd.f32 %v5247, 1.0
      %v5298 = vadd.f32 %v5249, 1.0
      %v5299 = vadd.f32 %v5251, 1.0
      %v5300 = vadd.f32 %v5253, 1.0
      %v5301 = vadd.f32 %v5255, 1.0
      %v5302 = vadd.f32 %v5257, 1.0
      %v5303 = vadd.f32 %v5259, 1.0
      %v5304 = vadd.f32 %v5261, 1.0
      %v5305 = vadd.f32 %v5263, 1.0
      %v5306 = vadd.f32 %v5265, 1.0
      %v5307 = vadd.f32 %v5267, 1.0
      %v5308 = vadd.f32 %v5269, 1.0
      %v5309 = vadd.f32 %v5271, 1.0
      %v5310 = vadd.f32 %v5273, 1.0
      %v5311 = vadd.f32 %v5275, 1.0
      %v5312 = vadd.f32 %v5277, 1.0
      %v5313 = vadd.f32 %v5279, 1.0
      %v5314 = vadd.f32 %v5281, 1.0
      %v5315 = vadd.f32 %v5283, 1.0
      %v5316 = vrcp.pop %v5284
      %v5317 = vmul.f32 %v5284, %v5316
      %v5318 = vsub.f32 1.0, %v5317
      %v5319 = vmul.f32 %v5316, %v5318
      %v5320 = vadd.f32 %v5316, %v5319
      %vm5321 = vweird.f32 %v5284
      %vm5322 = vweird.f32 %v5316
      %vm5323 = vmor %vm5321, %vm5322
      %v5324 = vsel %vm5323, %v5316, %v5320
      %v5325 = vand.u32 2147483647, %v5284
      %vm5326 = vcmp.eq.f32.partialorder %v5325, 8.507059e+37
      %v5327 = vand.u32 %v5284, 2147483648
      %v5328 = vor.u32 1.1754944e-38, %v5327
      %v5329 = vsel %vm5326, %v5328, %v5324
      %v5330 = vmul.f32 1.0, %v5329
      %v5331 = vrcp.pop %v5285
      %v5332 = vmul.f32 %v5285, %v5331
      %v5333 = vsub.f32 1.0, %v5332
      %v5334 = vmul.f32 %v5331, %v5333
      %v5335 = vadd.f32 %v5331, %v5334
      %vm5336 = vweird.f32 %v5285
      %vm5337 = vweird.f32 %v5331
      %vm5338 = vmor %vm5336, %vm5337
      %v5339 = vsel %vm5338, %v5331, %v5335
      %v5340 = vand.u32 2147483647, %v5285
      %vm5341 = vcmp.eq.f32.partialorder %v5340, 8.507059e+37
      %v5342 = vand.u32 %v5285, 2147483648
      %v5343 = vor.u32 1.1754944e-38, %v5342
      %v5344 = vsel %vm5341, %v5343, %v5339
      %v5345 = vmul.f32 1.0, %v5344
      %v5346 = vrcp.pop %v5286
      %v5347 = vmul.f32 %v5286, %v5346
      %v5348 = vsub.f32 1.0, %v5347
      %v5349 = vmul.f32 %v5346, %v5348
      %v5350 = vadd.f32 %v5346, %v5349
      %vm5351 = vweird.f32 %v5286
      %vm5352 = vweird.f32 %v5346
      %vm5353 = vmor %vm5351, %vm5352
      %v5354 = vsel %vm5353, %v5346, %v5350
      %v5355 = vand.u32 2147483647, %v5286
      %vm5356 = vcmp.eq.f32.partialorder %v5355, 8.507059e+37
      %v5357 = vand.u32 %v5286, 2147483648
      %v5358 = vor.u32 1.1754944e-38, %v5357
      %v5359 = vsel %vm5356, %v5358, %v5354
      %v5360 = vmul.f32 1.0, %v5359
      %v5361 = vrcp.pop %v5287
      %v5362 = vmul.f32 %v5287, %v5361
      %v5363 = vsub.f32 1.0, %v5362
      %v5364 = vmul.f32 %v5361, %v5363
      %v5365 = vadd.f32 %v5361, %v5364
      %vm5366 = vweird.f32 %v5287
      %vm5367 = vweird.f32 %v5361
      %vm5368 = vmor %vm5366, %vm5367
      %v5369 = vsel %vm5368, %v5361, %v5365
      %v5370 = vand.u32 2147483647, %v5287
      %vm5371 = vcmp.eq.f32.partialorder %v5370, 8.507059e+37
      %v5372 = vand.u32 %v5287, 2147483648
      %v5373 = vor.u32 1.1754944e-38, %v5372
      %v5374 = vsel %vm5371, %v5373, %v5369
      %v5375 = vmul.f32 1.0, %v5374
      %v5376 = vrcp.pop %v5288
      %v5377 = vmul.f32 %v5288, %v5376
      %v5378 = vsub.f32 1.0, %v5377
      %v5379 = vmul.f32 %v5376, %v5378
      %v5380 = vadd.f32 %v5376, %v5379
      %vm5381 = vweird.f32 %v5288
      %vm5382 = vweird.f32 %v5376
      %vm5383 = vmor %vm5381, %vm5382
      %v5384 = vsel %vm5383, %v5376, %v5380
      %v5385 = vand.u32 2147483647, %v5288
      %vm5386 = vcmp.eq.f32.partialorder %v5385, 8.507059e+37
      %v5387 = vand.u32 %v5288, 2147483648
      %v5388 = vor.u32 1.1754944e-38, %v5387
      %v5389 = vsel %vm5386, %v5388, %v5384
      %v5390 = vmul.f32 1.0, %v5389
      %v5391 = vrcp.pop %v5289
      %v5392 = vmul.f32 %v5289, %v5391
      %v5393 = vsub.f32 1.0, %v5392
      %v5394 = vmul.f32 %v5391, %v5393
      %v5395 = vadd.f32 %v5391, %v5394
      %vm5396 = vweird.f32 %v5289
      %vm5397 = vweird.f32 %v5391
      %vm5398 = vmor %vm5396, %vm5397
      %v5399 = vsel %vm5398, %v5391, %v5395
      %v5400 = vand.u32 2147483647, %v5289
      %vm5401 = vcmp.eq.f32.partialorder %v5400, 8.507059e+37
      %v5402 = vand.u32 %v5289, 2147483648
      %v5403 = vor.u32 1.1754944e-38, %v5402
      %v5404 = vsel %vm5401, %v5403, %v5399
      %v5405 = vmul.f32 1.0, %v5404
      %v5406 = vrcp.pop %v5290
      %v5407 = vmul.f32 %v5290, %v5406
      %v5408 = vsub.f32 1.0, %v5407
      %v5409 = vmul.f32 %v5406, %v5408
      %v5410 = vadd.f32 %v5406, %v5409
      %vm5411 = vweird.f32 %v5290
      %vm5412 = vweird.f32 %v5406
      %vm5413 = vmor %vm5411, %vm5412
      %v5414 = vsel %vm5413, %v5406, %v5410
      %v5415 = vand.u32 2147483647, %v5290
      %vm5416 = vcmp.eq.f32.partialorder %v5415, 8.507059e+37
      %v5417 = vand.u32 %v5290, 2147483648
      %v5418 = vor.u32 1.1754944e-38, %v5417
      %v5419 = vsel %vm5416, %v5418, %v5414
      %v5420 = vmul.f32 1.0, %v5419
      %v5421 = vrcp.pop %v5291
      %v5422 = vmul.f32 %v5291, %v5421
      %v5423 = vsub.f32 1.0, %v5422
      %v5424 = vmul.f32 %v5421, %v5423
      %v5425 = vadd.f32 %v5421, %v5424
      %vm5426 = vweird.f32 %v5291
      %vm5427 = vweird.f32 %v5421
      %vm5428 = vmor %vm5426, %vm5427
      %v5429 = vsel %vm5428, %v5421, %v5425
      %v5430 = vand.u32 2147483647, %v5291
      %vm5431 = vcmp.eq.f32.partialorder %v5430, 8.507059e+37
      %v5432 = vand.u32 %v5291, 2147483648
      %v5433 = vor.u32 1.1754944e-38, %v5432
      %v5434 = vsel %vm5431, %v5433, %v5429
      %v5435 = vmul.f32 1.0, %v5434
      %v5436 = vrcp.pop %v5292
      %v5437 = vmul.f32 %v5292, %v5436
      %v5438 = vsub.f32 1.0, %v5437
      %v5439 = vmul.f32 %v5436, %v5438
      %v5440 = vadd.f32 %v5436, %v5439
      %vm5441 = vweird.f32 %v5292
      %vm5442 = vweird.f32 %v5436
      %vm5443 = vmor %vm5441, %vm5442
      %v5444 = vsel %vm5443, %v5436, %v5440
      %v5445 = vand.u32 2147483647, %v5292
      %vm5446 = vcmp.eq.f32.partialorder %v5445, 8.507059e+37
      %v5447 = vand.u32 %v5292, 2147483648
      %v5448 = vor.u32 1.1754944e-38, %v5447
      %v5449 = vsel %vm5446, %v5448, %v5444
      %v5450 = vmul.f32 1.0, %v5449
      %v5451 = vrcp.pop %v5293
      %v5452 = vmul.f32 %v5293, %v5451
      %v5453 = vsub.f32 1.0, %v5452
      %v5454 = vmul.f32 %v5451, %v5453
      %v5455 = vadd.f32 %v5451, %v5454
      %vm5456 = vweird.f32 %v5293
      %vm5457 = vweird.f32 %v5451
      %vm5458 = vmor %vm5456, %vm5457
      %v5459 = vsel %vm5458, %v5451, %v5455
      %v5460 = vand.u32 2147483647, %v5293
      %vm5461 = vcmp.eq.f32.partialorder %v5460, 8.507059e+37
      %v5462 = vand.u32 %v5293, 2147483648
      %v5463 = vor.u32 1.1754944e-38, %v5462
      %v5464 = vsel %vm5461, %v5463, %v5459
      %v5465 = vmul.f32 1.0, %v5464
      %v5466 = vrcp.pop %v5294
      %v5467 = vmul.f32 %v5294, %v5466
      %v5468 = vsub.f32 1.0, %v5467
      %v5469 = vmul.f32 %v5466, %v5468
      %v5470 = vadd.f32 %v5466, %v5469
      %vm5471 = vweird.f32 %v5294
      %vm5472 = vweird.f32 %v5466
      %vm5473 = vmor %vm5471, %vm5472
      %v5474 = vsel %vm5473, %v5466, %v5470
      %v5475 = vand.u32 2147483647, %v5294
      %vm5476 = vcmp.eq.f32.partialorder %v5475, 8.507059e+37
      %v5477 = vand.u32 %v5294, 2147483648
      %v5478 = vor.u32 1.1754944e-38, %v5477
      %v5479 = vsel %vm5476, %v5478, %v5474
      %v5480 = vmul.f32 1.0, %v5479
      %v5481 = vrcp.pop %v5295
      %v5482 = vmul.f32 %v5295, %v5481
      %v5483 = vsub.f32 1.0, %v5482
      %v5484 = vmul.f32 %v5481, %v5483
      %v5485 = vadd.f32 %v5481, %v5484
      %vm5486 = vweird.f32 %v5295
      %vm5487 = vweird.f32 %v5481
      %vm5488 = vmor %vm5486, %vm5487
      %v5489 = vsel %vm5488, %v5481, %v5485
      %v5490 = vand.u32 2147483647, %v5295
      %vm5491 = vcmp.eq.f32.partialorder %v5490, 8.507059e+37
      %v5492 = vand.u32 %v5295, 2147483648
      %v5493 = vor.u32 1.1754944e-38, %v5492
      %v5494 = vsel %vm5491, %v5493, %v5489
      %v5495 = vmul.f32 1.0, %v5494
      %v5496 = vrcp.pop %v5296
      %v5497 = vmul.f32 %v5296, %v5496
      %v5498 = vsub.f32 1.0, %v5497
      %v5499 = vmul.f32 %v5496, %v5498
      %v5500 = vadd.f32 %v5496, %v5499
      %vm5501 = vweird.f32 %v5296
      %vm5502 = vweird.f32 %v5496
      %vm5503 = vmor %vm5501, %vm5502
      %v5504 = vsel %vm5503, %v5496, %v5500
      %v5505 = vand.u32 2147483647, %v5296
      %vm5506 = vcmp.eq.f32.partialorder %v5505, 8.507059e+37
      %v5507 = vand.u32 %v5296, 2147483648
      %v5508 = vor.u32 1.1754944e-38, %v5507
      %v5509 = vsel %vm5506, %v5508, %v5504
      %v5510 = vmul.f32 1.0, %v5509
      %v5511 = vrcp.pop %v5297
      %v5512 = vmul.f32 %v5297, %v5511
      %v5513 = vsub.f32 1.0, %v5512
      %v5514 = vmul.f32 %v5511, %v5513
      %v5515 = vadd.f32 %v5511, %v5514
      %vm5516 = vweird.f32 %v5297
      %vm5517 = vweird.f32 %v5511
      %vm5518 = vmor %vm5516, %vm5517
      %v5519 = vsel %vm5518, %v5511, %v5515
      %v5520 = vand.u32 2147483647, %v5297
      %vm5521 = vcmp.eq.f32.partialorder %v5520, 8.507059e+37
      %v5522 = vand.u32 %v5297, 2147483648
      %v5523 = vor.u32 1.1754944e-38, %v5522
      %v5524 = vsel %vm5521, %v5523, %v5519
      %v5525 = vmul.f32 1.0, %v5524
      %v5526 = vrcp.pop %v5298
      %v5527 = vmul.f32 %v5298, %v5526
      %v5528 = vsub.f32 1.0, %v5527
      %v5529 = vmul.f32 %v5526, %v5528
      %v5530 = vadd.f32 %v5526, %v5529
      %vm5531 = vweird.f32 %v5298
      %vm5532 = vweird.f32 %v5526
      %vm5533 = vmor %vm5531, %vm5532
      %v5534 = vsel %vm5533, %v5526, %v5530
      %v5535 = vand.u32 2147483647, %v5298
      %vm5536 = vcmp.eq.f32.partialorder %v5535, 8.507059e+37
      %v5537 = vand.u32 %v5298, 2147483648
      %v5538 = vor.u32 1.1754944e-38, %v5537
      %v5539 = vsel %vm5536, %v5538, %v5534
      %v5540 = vmul.f32 1.0, %v5539
      %v5541 = vrcp.pop %v5299
      %v5542 = vmul.f32 %v5299, %v5541
      %v5543 = vsub.f32 1.0, %v5542
      %v5544 = vmul.f32 %v5541, %v5543
      %v5545 = vadd.f32 %v5541, %v5544
      %vm5546 = vweird.f32 %v5299
      %vm5547 = vweird.f32 %v5541
      %vm5548 = vmor %vm5546, %vm5547
      %v5549 = vsel %vm5548, %v5541, %v5545
      %v5550 = vand.u32 2147483647, %v5299
      %vm5551 = vcmp.eq.f32.partialorder %v5550, 8.507059e+37
      %v5552 = vand.u32 %v5299, 2147483648
      %v5553 = vor.u32 1.1754944e-38, %v5552
      %v5554 = vsel %vm5551, %v5553, %v5549
      %v5555 = vmul.f32 1.0, %v5554
      %v5556 = vrcp.pop %v5300
      %v5557 = vmul.f32 %v5300, %v5556
      %v5558 = vsub.f32 1.0, %v5557
      %v5559 = vmul.f32 %v5556, %v5558
      %v5560 = vadd.f32 %v5556, %v5559
      %vm5561 = vweird.f32 %v5300
      %vm5562 = vweird.f32 %v5556
      %vm5563 = vmor %vm5561, %vm5562
      %v5564 = vsel %vm5563, %v5556, %v5560
      %v5565 = vand.u32 2147483647, %v5300
      %vm5566 = vcmp.eq.f32.partialorder %v5565, 8.507059e+37
      %v5567 = vand.u32 %v5300, 2147483648
      %v5568 = vor.u32 1.1754944e-38, %v5567
      %v5569 = vsel %vm5566, %v5568, %v5564
      %v5570 = vmul.f32 1.0, %v5569
      %v5571 = vrcp.pop %v5301
      %v5572 = vmul.f32 %v5301, %v5571
      %v5573 = vsub.f32 1.0, %v5572
      %v5574 = vmul.f32 %v5571, %v5573
      %v5575 = vadd.f32 %v5571, %v5574
      %vm5576 = vweird.f32 %v5301
      %vm5577 = vweird.f32 %v5571
      %vm5578 = vmor %vm5576, %vm5577
      %v5579 = vsel %vm5578, %v5571, %v5575
      %v5580 = vand.u32 2147483647, %v5301
      %vm5581 = vcmp.eq.f32.partialorder %v5580, 8.507059e+37
      %v5582 = vand.u32 %v5301, 2147483648
      %v5583 = vor.u32 1.1754944e-38, %v5582
      %v5584 = vsel %vm5581, %v5583, %v5579
      %v5585 = vmul.f32 1.0, %v5584
      %v5586 = vrcp.pop %v5302
      %v5587 = vmul.f32 %v5302, %v5586
      %v5588 = vsub.f32 1.0, %v5587
      %v5589 = vmul.f32 %v5586, %v5588
      %v5590 = vadd.f32 %v5586, %v5589
      %vm5591 = vweird.f32 %v5302
      %vm5592 = vweird.f32 %v5586
      %vm5593 = vmor %vm5591, %vm5592
      %v5594 = vsel %vm5593, %v5586, %v5590
      %v5595 = vand.u32 2147483647, %v5302
      %vm5596 = vcmp.eq.f32.partialorder %v5595, 8.507059e+37
      %v5597 = vand.u32 %v5302, 2147483648
      %v5598 = vor.u32 1.1754944e-38, %v5597
      %v5599 = vsel %vm5596, %v5598, %v5594
      %v5600 = vmul.f32 1.0, %v5599
      %v5601 = vrcp.pop %v5303
      %v5602 = vmul.f32 %v5303, %v5601
      %v5603 = vsub.f32 1.0, %v5602
      %v5604 = vmul.f32 %v5601, %v5603
      %v5605 = vadd.f32 %v5601, %v5604
      %vm5606 = vweird.f32 %v5303
      %vm5607 = vweird.f32 %v5601
      %vm5608 = vmor %vm5606, %vm5607
      %v5609 = vsel %vm5608, %v5601, %v5605
      %v5610 = vand.u32 2147483647, %v5303
      %vm5611 = vcmp.eq.f32.partialorder %v5610, 8.507059e+37
      %v5612 = vand.u32 %v5303, 2147483648
      %v5613 = vor.u32 1.1754944e-38, %v5612
      %v5614 = vsel %vm5611, %v5613, %v5609
      %v5615 = vmul.f32 1.0, %v5614
      %v5616 = vrcp.pop %v5304
      %v5617 = vmul.f32 %v5304, %v5616
      %v5618 = vsub.f32 1.0, %v5617
      %v5619 = vmul.f32 %v5616, %v5618
      %v5620 = vadd.f32 %v5616, %v5619
      %vm5621 = vweird.f32 %v5304
      %vm5622 = vweird.f32 %v5616
      %vm5623 = vmor %vm5621, %vm5622
      %v5624 = vsel %vm5623, %v5616, %v5620
      %v5625 = vand.u32 2147483647, %v5304
      %vm5626 = vcmp.eq.f32.partialorder %v5625, 8.507059e+37
      %v5627 = vand.u32 %v5304, 2147483648
      %v5628 = vor.u32 1.1754944e-38, %v5627
      %v5629 = vsel %vm5626, %v5628, %v5624
      %v5630 = vmul.f32 1.0, %v5629
      %v5631 = vrcp.pop %v5305
      %v5632 = vmul.f32 %v5305, %v5631
      %v5633 = vsub.f32 1.0, %v5632
      %v5634 = vmul.f32 %v5631, %v5633
      %v5635 = vadd.f32 %v5631, %v5634
      %vm5636 = vweird.f32 %v5305
      %vm5637 = vweird.f32 %v5631
      %vm5638 = vmor %vm5636, %vm5637
      %v5639 = vsel %vm5638, %v5631, %v5635
      %v5640 = vand.u32 2147483647, %v5305
      %vm5641 = vcmp.eq.f32.partialorder %v5640, 8.507059e+37
      %v5642 = vand.u32 %v5305, 2147483648
      %v5643 = vor.u32 1.1754944e-38, %v5642
      %v5644 = vsel %vm5641, %v5643, %v5639
      %v5645 = vmul.f32 1.0, %v5644
      %v5646 = vrcp.pop %v5306
      %v5647 = vmul.f32 %v5306, %v5646
      %v5648 = vsub.f32 1.0, %v5647
      %v5649 = vmul.f32 %v5646, %v5648
      %v5650 = vadd.f32 %v5646, %v5649
      %vm5651 = vweird.f32 %v5306
      %vm5652 = vweird.f32 %v5646
      %vm5653 = vmor %vm5651, %vm5652
      %v5654 = vsel %vm5653, %v5646, %v5650
      %v5655 = vand.u32 2147483647, %v5306
      %vm5656 = vcmp.eq.f32.partialorder %v5655, 8.507059e+37
      %v5657 = vand.u32 %v5306, 2147483648
      %v5658 = vor.u32 1.1754944e-38, %v5657
      %v5659 = vsel %vm5656, %v5658, %v5654
      %v5660 = vmul.f32 1.0, %v5659
      %v5661 = vrcp.pop %v5307
      %v5662 = vmul.f32 %v5307, %v5661
      %v5663 = vsub.f32 1.0, %v5662
      %v5664 = vmul.f32 %v5661, %v5663
      %v5665 = vadd.f32 %v5661, %v5664
      %vm5666 = vweird.f32 %v5307
      %vm5667 = vweird.f32 %v5661
      %vm5668 = vmor %vm5666, %vm5667
      %v5669 = vsel %vm5668, %v5661, %v5665
      %v5670 = vand.u32 2147483647, %v5307
      %vm5671 = vcmp.eq.f32.partialorder %v5670, 8.507059e+37
      %v5672 = vand.u32 %v5307, 2147483648
      %v5673 = vor.u32 1.1754944e-38, %v5672
      %v5674 = vsel %vm5671, %v5673, %v5669
      %v5675 = vmul.f32 1.0, %v5674
      %v5676 = vrcp.pop %v5308
      %v5677 = vmul.f32 %v5308, %v5676
      %v5678 = vsub.f32 1.0, %v5677
      %v5679 = vmul.f32 %v5676, %v5678
      %v5680 = vadd.f32 %v5676, %v5679
      %vm5681 = vweird.f32 %v5308
      %vm5682 = vweird.f32 %v5676
      %vm5683 = vmor %vm5681, %vm5682
      %v5684 = vsel %vm5683, %v5676, %v5680
      %v5685 = vand.u32 2147483647, %v5308
      %vm5686 = vcmp.eq.f32.partialorder %v5685, 8.507059e+37
      %v5687 = vand.u32 %v5308, 2147483648
      %v5688 = vor.u32 1.1754944e-38, %v5687
      %v5689 = vsel %vm5686, %v5688, %v5684
      %v5690 = vmul.f32 1.0, %v5689
      %v5691 = vrcp.pop %v5309
      %v5692 = vmul.f32 %v5309, %v5691
      %v5693 = vsub.f32 1.0, %v5692
      %v5694 = vmul.f32 %v5691, %v5693
      %v5695 = vadd.f32 %v5691, %v5694
      %vm5696 = vweird.f32 %v5309
      %vm5697 = vweird.f32 %v5691
      %vm5698 = vmor %vm5696, %vm5697
      %v5699 = vsel %vm5698, %v5691, %v5695
      %v5700 = vand.u32 2147483647, %v5309
      %vm5701 = vcmp.eq.f32.partialorder %v5700, 8.507059e+37
      %v5702 = vand.u32 %v5309, 2147483648
      %v5703 = vor.u32 1.1754944e-38, %v5702
      %v5704 = vsel %vm5701, %v5703, %v5699
      %v5705 = vmul.f32 1.0, %v5704
      %v5706 = vrcp.pop %v5310
      %v5707 = vmul.f32 %v5310, %v5706
      %v5708 = vsub.f32 1.0, %v5707
      %v5709 = vmul.f32 %v5706, %v5708
      %v5710 = vadd.f32 %v5706, %v5709
      %vm5711 = vweird.f32 %v5310
      %vm5712 = vweird.f32 %v5706
      %vm5713 = vmor %vm5711, %vm5712
      %v5714 = vsel %vm5713, %v5706, %v5710
      %v5715 = vand.u32 2147483647, %v5310
      %vm5716 = vcmp.eq.f32.partialorder %v5715, 8.507059e+37
      %v5717 = vand.u32 %v5310, 2147483648
      %v5718 = vor.u32 1.1754944e-38, %v5717
      %v5719 = vsel %vm5716, %v5718, %v5714
      %v5720 = vmul.f32 1.0, %v5719
      %v5721 = vrcp.pop %v5311
      %v5722 = vmul.f32 %v5311, %v5721
      %v5723 = vsub.f32 1.0, %v5722
      %v5724 = vmul.f32 %v5721, %v5723
      %v5725 = vadd.f32 %v5721, %v5724
      %vm5726 = vweird.f32 %v5311
      %vm5727 = vweird.f32 %v5721
      %vm5728 = vmor %vm5726, %vm5727
      %v5729 = vsel %vm5728, %v5721, %v5725
      %v5730 = vand.u32 2147483647, %v5311
      %vm5731 = vcmp.eq.f32.partialorder %v5730, 8.507059e+37
      %v5732 = vand.u32 %v5311, 2147483648
      %v5733 = vor.u32 1.1754944e-38, %v5732
      %v5734 = vsel %vm5731, %v5733, %v5729
      %v5735 = vmul.f32 1.0, %v5734
      %v5736 = vrcp.pop %v5312
      %v5737 = vmul.f32 %v5312, %v5736
      %v5738 = vsub.f32 1.0, %v5737
      %v5739 = vmul.f32 %v5736, %v5738
      %v5740 = vadd.f32 %v5736, %v5739
      %vm5741 = vweird.f32 %v5312
      %vm5742 = vweird.f32 %v5736
      %vm5743 = vmor %vm5741, %vm5742
      %v5744 = vsel %vm5743, %v5736, %v5740
      %v5745 = vand.u32 2147483647, %v5312
      %vm5746 = vcmp.eq.f32.partialorder %v5745, 8.507059e+37
      %v5747 = vand.u32 %v5312, 2147483648
      %v5748 = vor.u32 1.1754944e-38, %v5747
      %v5749 = vsel %vm5746, %v5748, %v5744
      %v5750 = vmul.f32 1.0, %v5749
      %v5751 = vrcp.pop %v5313
      %v5752 = vmul.f32 %v5313, %v5751
      %v5753 = vsub.f32 1.0, %v5752
      %v5754 = vmul.f32 %v5751, %v5753
      %v5755 = vadd.f32 %v5751, %v5754
      %vm5756 = vweird.f32 %v5313
      %vm5757 = vweird.f32 %v5751
      %vm5758 = vmor %vm5756, %vm5757
      %v5759 = vsel %vm5758, %v5751, %v5755
      %v5760 = vand.u32 2147483647, %v5313
      %vm5761 = vcmp.eq.f32.partialorder %v5760, 8.507059e+37
      %v5762 = vand.u32 %v5313, 2147483648
      %v5763 = vor.u32 1.1754944e-38, %v5762
      %v5764 = vsel %vm5761, %v5763, %v5759
      %v5765 = vmul.f32 1.0, %v5764
      %v5766 = vrcp.pop %v5314
      %v5767 = vmul.f32 %v5314, %v5766
      %v5768 = vsub.f32 1.0, %v5767
      %v5769 = vmul.f32 %v5766, %v5768
      %v5770 = vadd.f32 %v5766, %v5769
      %vm5771 = vweird.f32 %v5314
      %vm5772 = vweird.f32 %v5766
      %vm5773 = vmor %vm5771, %vm5772
      %v5774 = vsel %vm5773, %v5766, %v5770
      %v5775 = vand.u32 2147483647, %v5314
      %vm5776 = vcmp.eq.f32.partialorder %v5775, 8.507059e+37
      %v5777 = vand.u32 %v5314, 2147483648
      %v5778 = vor.u32 1.1754944e-38, %v5777
      %v5779 = vsel %vm5776, %v5778, %v5774
      %v5780 = vmul.f32 1.0, %v5779
      %v5781 = vrcp.pop %v5315
      %v5782 = vmul.f32 %v5315, %v5781
      %v5783 = vsub.f32 1.0, %v5782
      %v5784 = vmul.f32 %v5781, %v5783
      %v5785 = vadd.f32 %v5781, %v5784
      %vm5786 = vweird.f32 %v5315
      %vm5787 = vweird.f32 %v5781
      %vm5788 = vmor %vm5786, %vm5787
      %v5789 = vsel %vm5788, %v5781, %v5785
      %v5790 = vand.u32 2147483647, %v5315
      %vm5791 = vcmp.eq.f32.partialorder %v5790, 8.507059e+37
      %v5792 = vand.u32 %v5315, 2147483648
      %v5793 = vor.u32 1.1754944e-38, %v5792
      %v5794 = vsel %vm5791, %v5793, %v5789
      %v5795 = vmul.f32 1.0, %v5794
      %v5796 = vtanh.pop %v4247
      %v5797 = vtanh.pop %v4345
      %v5798 = vtanh.pop %v4249
      %v5799 = vtanh.pop %v4347
      %v5800 = vtanh.pop %v4252
      %v5801 = vtanh.pop %v4350
      %v5802 = vtanh.pop %v4254
      %v5803 = vtanh.pop %v4352
      %v5804 = vtanh.pop %v4257
      %v5805 = vtanh.pop %v4355
      %v5806 = vtanh.pop %v4259
      %v5807 = vtanh.pop %v4357
      %v5808 = vtanh.pop %v4262
      %v5809 = vtanh.pop %v4360
      %v5810 = vtanh.pop %v4264
      %v5811 = vtanh.pop %v4362
      %v5812 = vtanh.pop %v4267
      %v5813 = vtanh.pop %v4365
      %v5814 = vtanh.pop %v4269
      %v5815 = vtanh.pop %v4367
      %v5816 = vtanh.pop %v4272
      %v5817 = vtanh.pop %v4370
      %v5818 = vtanh.pop %v4274
      %v5819 = vtanh.pop %v4372
      %v5820 = vtanh.pop %v4277
      %v5821 = vtanh.pop %v4375
      %v5822 = vtanh.pop %v4279
      %v5823 = vtanh.pop %v4377
      %v5824 = vtanh.pop %v4282
      %v5825 = vtanh.pop %v4380
      %v5826 = vtanh.pop %v4284
      %v5827 = vtanh.pop %v4382
      %v5828 = vxor.u32 %v4443, 2147483648
      %v5829 = vxor.u32 %v4541, 2147483648
      %v5830 = vxor.u32 %v4445, 2147483648
      %v5831 = vxor.u32 %v4543, 2147483648
      %v5832 = vxor.u32 %v4448, 2147483648
      %v5833 = vxor.u32 %v4546, 2147483648
      %v5834 = vxor.u32 %v4450, 2147483648
      %v5835 = vxor.u32 %v4548, 2147483648
      %v5836 = vxor.u32 %v4453, 2147483648
      %v5837 = vxor.u32 %v4551, 2147483648
      %v5838 = vxor.u32 %v4455, 2147483648
      %v5839 = vxor.u32 %v4553, 2147483648
      %v5840 = vxor.u32 %v4458, 2147483648
      %v5841 = vxor.u32 %v4556, 2147483648
      %v5842 = vxor.u32 %v4460, 2147483648
      %v5843 = vxor.u32 %v4558, 2147483648
      %v5844 = vxor.u32 %v4463, 2147483648
      %v5845 = vxor.u32 %v4561, 2147483648
      %v5846 = vxor.u32 %v4465, 2147483648
      %v5847 = vxor.u32 %v4563, 2147483648
      %v5848 = vxor.u32 %v4468, 2147483648
      %v5849 = vxor.u32 %v4566, 2147483648
      %v5850 = vxor.u32 %v4470, 2147483648
      %v5851 = vxor.u32 %v4568, 2147483648
      %v5852 = vxor.u32 %v4473, 2147483648
      %v5853 = vxor.u32 %v4571, 2147483648
      %v5854 = vxor.u32 %v4475, 2147483648
      %v5855 = vxor.u32 %v4573, 2147483648
      %v5856 = vxor.u32 %v4478, 2147483648
      %v5857 = vxor.u32 %v4576, 2147483648
      %v5858 = vxor.u32 %v4480, 2147483648
      %v5859 = vxor.u32 %v4578, 2147483648
      %v5860 = vmul.f32 %v5828, 1.442695
      %v5861 = vpow.pop %v5860
      %v5862 = vmul.f32 %v5829, 1.442695
      %v5863 = vpow.pop %v5862
      %v5864 = vmul.f32 %v5830, 1.442695
      %v5865 = vpow.pop %v5864
      %v5866 = vmul.f32 %v5831, 1.442695
      %v5867 = vpow.pop %v5866
      %v5868 = vmul.f32 %v5832, 1.442695
      %v5869 = vpow.pop %v5868
      %v5870 = vmul.f32 %v5833, 1.442695
      %v5871 = vpow.pop %v5870
      %v5872 = vmul.f32 %v5834, 1.442695
      %v5873 = vpow.pop %v5872
      %v5874 = vmul.f32 %v5835, 1.442695
      %v5875 = vpow.pop %v5874
      %v5876 = vmul.f32 %v5836, 1.442695
      %v5877 = vpow.pop %v5876
      %v5878 = vmul.f32 %v5837, 1.442695
      %v5879 = vpow.pop %v5878
      %v5880 = vmul.f32 %v5838, 1.442695
      %v5881 = vpow.pop %v5880
      %v5882 = vmul.f32 %v5839, 1.442695
      %v5883 = vpow.pop %v5882
      %v5884 = vmul.f32 %v5840, 1.442695
      %v5885 = vpow.pop %v5884
      %v5886 = vmul.f32 %v5841, 1.442695
      %v5887 = vpow.pop %v5886
      %v5888 = vmul.f32 %v5842, 1.442695
      %v5889 = vpow.pop %v5888
      %v5890 = vmul.f32 %v5843, 1.442695
      %v5891 = vpow.pop %v5890
      %v5892 = vmul.f32 %v5844, 1.442695
      %v5893 = vpow.pop %v5892
      %v5894 = vmul.f32 %v5845, 1.442695
      %v5895 = vpow.pop %v5894
      %v5896 = vmul.f32 %v5846, 1.442695
      %v5897 = vpow.pop %v5896
      %v5898 = vmul.f32 %v5847, 1.442695
      %v5899 = vpow.pop %v5898
      %v5900 = vmul.f32 %v5848, 1.442695
      %v5901 = vpow.pop %v5900
      %v5902 = vmul.f32 %v5849, 1.442695
      %v5903 = vpow.pop %v5902
      %v5904 = vmul.f32 %v5850, 1.442695
      %v5905 = vpow.pop %v5904
      %v5906 = vmul.f32 %v5851, 1.442695
      %v5907 = vpow.pop %v5906
      %v5908 = vmul.f32 %v5852, 1.442695
      %v5909 = vpow.pop %v5908
      %v5910 = vmul.f32 %v5853, 1.442695
      %v5911 = vpow.pop %v5910
      %v5912 = vmul.f32 %v5854, 1.442695
      %v5913 = vpow.pop %v5912
      %v5914 = vmul.f32 %v5855, 1.442695
      %v5915 = vpow.pop %v5914
      %v5916 = vmul.f32 %v5856, 1.442695
      %v5917 = vpow.pop %v5916
      %v5918 = vmul.f32 %v5857, 1.442695
      %v5919 = vpow.pop %v5918
      %v5920 = vmul.f32 %v5858, 1.442695
      %v5921 = vpow.pop %v5920
      %v5922 = vmul.f32 %v5859, 1.442695
      %v5923 = vpow.pop %v5922
      %v5924 = vadd.f32 %v5861, 1.0
      %v5925 = vadd.f32 %v5863, 1.0
      %v5926 = vadd.f32 %v5865, 1.0
      %v5927 = vadd.f32 %v5867, 1.0
      %v5928 = vadd.f32 %v5869, 1.0
      %v5929 = vadd.f32 %v5871, 1.0
      %v5930 = vadd.f32 %v5873, 1.0
      %v5931 = vadd.f32 %v5875, 1.0
      %v5932 = vadd.f32 %v5877, 1.0
      %v5933 = vadd.f32 %v5879, 1.0
      %v5934 = vadd.f32 %v5881, 1.0
      %v5935 = vadd.f32 %v5883, 1.0
      %v5936 = vadd.f32 %v5885, 1.0
      %v5937 = vadd.f32 %v5887, 1.0
      %v5938 = vadd.f32 %v5889, 1.0
      %v5939 = vadd.f32 %v5891, 1.0
      %v5940 = vadd.f32 %v5893, 1.0
      %v5941 = vadd.f32 %v5895, 1.0
      %v5942 = vadd.f32 %v5897, 1.0
      %v5943 = vadd.f32 %v5899, 1.0
      %v5944 = vadd.f32 %v5901, 1.0
      %v5945 = vadd.f32 %v5903, 1.0
      %v5946 = vadd.f32 %v5905, 1.0
      %v5947 = vadd.f32 %v5907, 1.0
      %v5948 = vadd.f32 %v5909, 1.0
      %v5949 = vadd.f32 %v5911, 1.0
      %v5950 = vadd.f32 %v5913, 1.0
      %v5951 = vadd.f32 %v5915, 1.0
      %v5952 = vadd.f32 %v5917, 1.0
      %v5953 = vadd.f32 %v5919, 1.0
      %v5954 = vadd.f32 %v5921, 1.0
      %v5955 = vadd.f32 %v5923, 1.0
      %v5956 = vrcp.pop %v5924
      %v5957 = vmul.f32 %v5924, %v5956
      %v5958 = vsub.f32 1.0, %v5957
      %v5959 = vmul.f32 %v5956, %v5958
      %v5960 = vadd.f32 %v5956, %v5959
      %vm5961 = vweird.f32 %v5924
      %vm5962 = vweird.f32 %v5956
      %vm5963 = vmor %vm5961, %vm5962
      %v5964 = vsel %vm5963, %v5956, %v5960
      %v5965 = vand.u32 2147483647, %v5924
      %vm5966 = vcmp.eq.f32.partialorder %v5965, 8.507059e+37
      %v5967 = vand.u32 %v5924, 2147483648
      %v5968 = vor.u32 1.1754944e-38, %v5967
      %v5969 = vsel %vm5966, %v5968, %v5964
      %v5970 = vmul.f32 1.0, %v5969
      %v5971 = vrcp.pop %v5925
      %v5972 = vmul.f32 %v5925, %v5971
      %v5973 = vsub.f32 1.0, %v5972
      %v5974 = vmul.f32 %v5971, %v5973
      %v5975 = vadd.f32 %v5971, %v5974
      %vm5976 = vweird.f32 %v5925
      %vm5977 = vweird.f32 %v5971
      %vm5978 = vmor %vm5976, %vm5977
      %v5979 = vsel %vm5978, %v5971, %v5975
      %v5980 = vand.u32 2147483647, %v5925
      %vm5981 = vcmp.eq.f32.partialorder %v5980, 8.507059e+37
      %v5982 = vand.u32 %v5925, 2147483648
      %v5983 = vor.u32 1.1754944e-38, %v5982
      %v5984 = vsel %vm5981, %v5983, %v5979
      %v5985 = vmul.f32 1.0, %v5984
      %v5986 = vrcp.pop %v5926
      %v5987 = vmul.f32 %v5926, %v5986
      %v5988 = vsub.f32 1.0, %v5987
      %v5989 = vmul.f32 %v5986, %v5988
      %v5990 = vadd.f32 %v5986, %v5989
      %vm5991 = vweird.f32 %v5926
      %vm5992 = vweird.f32 %v5986
      %vm5993 = vmor %vm5991, %vm5992
      %v5994 = vsel %vm5993, %v5986, %v5990
      %v5995 = vand.u32 2147483647, %v5926
      %vm5996 = vcmp.eq.f32.partialorder %v5995, 8.507059e+37
      %v5997 = vand.u32 %v5926, 2147483648
      %v5998 = vor.u32 1.1754944e-38, %v5997
      %v5999 = vsel %vm5996, %v5998, %v5994
      %v6000 = vmul.f32 1.0, %v5999
      %v6001 = vrcp.pop %v5927
      %v6002 = vmul.f32 %v5927, %v6001
      %v6003 = vsub.f32 1.0, %v6002
      %v6004 = vmul.f32 %v6001, %v6003
      %v6005 = vadd.f32 %v6001, %v6004
      %vm6006 = vweird.f32 %v5927
      %vm6007 = vweird.f32 %v6001
      %vm6008 = vmor %vm6006, %vm6007
      %v6009 = vsel %vm6008, %v6001, %v6005
      %v6010 = vand.u32 2147483647, %v5927
      %vm6011 = vcmp.eq.f32.partialorder %v6010, 8.507059e+37
      %v6012 = vand.u32 %v5927, 2147483648
      %v6013 = vor.u32 1.1754944e-38, %v6012
      %v6014 = vsel %vm6011, %v6013, %v6009
      %v6015 = vmul.f32 1.0, %v6014
      %v6016 = vrcp.pop %v5928
      %v6017 = vmul.f32 %v5928, %v6016
      %v6018 = vsub.f32 1.0, %v6017
      %v6019 = vmul.f32 %v6016, %v6018
      %v6020 = vadd.f32 %v6016, %v6019
      %vm6021 = vweird.f32 %v5928
      %vm6022 = vweird.f32 %v6016
      %vm6023 = vmor %vm6021, %vm6022
      %v6024 = vsel %vm6023, %v6016, %v6020
      %v6025 = vand.u32 2147483647, %v5928
      %vm6026 = vcmp.eq.f32.partialorder %v6025, 8.507059e+37
      %v6027 = vand.u32 %v5928, 2147483648
      %v6028 = vor.u32 1.1754944e-38, %v6027
      %v6029 = vsel %vm6026, %v6028, %v6024
      %v6030 = vmul.f32 1.0, %v6029
      %v6031 = vrcp.pop %v5929
      %v6032 = vmul.f32 %v5929, %v6031
      %v6033 = vsub.f32 1.0, %v6032
      %v6034 = vmul.f32 %v6031, %v6033
      %v6035 = vadd.f32 %v6031, %v6034
      %vm6036 = vweird.f32 %v5929
      %vm6037 = vweird.f32 %v6031
      %vm6038 = vmor %vm6036, %vm6037
      %v6039 = vsel %vm6038, %v6031, %v6035
      %v6040 = vand.u32 2147483647, %v5929
      %vm6041 = vcmp.eq.f32.partialorder %v6040, 8.507059e+37
      %v6042 = vand.u32 %v5929, 2147483648
      %v6043 = vor.u32 1.1754944e-38, %v6042
      %v6044 = vsel %vm6041, %v6043, %v6039
      %v6045 = vmul.f32 1.0, %v6044
      %v6046 = vrcp.pop %v5930
      %v6047 = vmul.f32 %v5930, %v6046
      %v6048 = vsub.f32 1.0, %v6047
      %v6049 = vmul.f32 %v6046, %v6048
      %v6050 = vadd.f32 %v6046, %v6049
      %vm6051 = vweird.f32 %v5930
      %vm6052 = vweird.f32 %v6046
      %vm6053 = vmor %vm6051, %vm6052
      %v6054 = vsel %vm6053, %v6046, %v6050
      %v6055 = vand.u32 2147483647, %v5930
      %vm6056 = vcmp.eq.f32.partialorder %v6055, 8.507059e+37
      %v6057 = vand.u32 %v5930, 2147483648
      %v6058 = vor.u32 1.1754944e-38, %v6057
      %v6059 = vsel %vm6056, %v6058, %v6054
      %v6060 = vmul.f32 1.0, %v6059
      %v6061 = vrcp.pop %v5931
      %v6062 = vmul.f32 %v5931, %v6061
      %v6063 = vsub.f32 1.0, %v6062
      %v6064 = vmul.f32 %v6061, %v6063
      %v6065 = vadd.f32 %v6061, %v6064
      %vm6066 = vweird.f32 %v5931
      %vm6067 = vweird.f32 %v6061
      %vm6068 = vmor %vm6066, %vm6067
      %v6069 = vsel %vm6068, %v6061, %v6065
      %v6070 = vand.u32 2147483647, %v5931
      %vm6071 = vcmp.eq.f32.partialorder %v6070, 8.507059e+37
      %v6072 = vand.u32 %v5931, 2147483648
      %v6073 = vor.u32 1.1754944e-38, %v6072
      %v6074 = vsel %vm6071, %v6073, %v6069
      %v6075 = vmul.f32 1.0, %v6074
      %v6076 = vrcp.pop %v5932
      %v6077 = vmul.f32 %v5932, %v6076
      %v6078 = vsub.f32 1.0, %v6077
      %v6079 = vmul.f32 %v6076, %v6078
      %v6080 = vadd.f32 %v6076, %v6079
      %vm6081 = vweird.f32 %v5932
      %vm6082 = vweird.f32 %v6076
      %vm6083 = vmor %vm6081, %vm6082
      %v6084 = vsel %vm6083, %v6076, %v6080
      %v6085 = vand.u32 2147483647, %v5932
      %vm6086 = vcmp.eq.f32.partialorder %v6085, 8.507059e+37
      %v6087 = vand.u32 %v5932, 2147483648
      %v6088 = vor.u32 1.1754944e-38, %v6087
      %v6089 = vsel %vm6086, %v6088, %v6084
      %v6090 = vmul.f32 1.0, %v6089
      %v6091 = vrcp.pop %v5933
      %v6092 = vmul.f32 %v5933, %v6091
      %v6093 = vsub.f32 1.0, %v6092
      %v6094 = vmul.f32 %v6091, %v6093
      %v6095 = vadd.f32 %v6091, %v6094
      %vm6096 = vweird.f32 %v5933
      %vm6097 = vweird.f32 %v6091
      %vm6098 = vmor %vm6096, %vm6097
      %v6099 = vsel %vm6098, %v6091, %v6095
      %v6100 = vand.u32 2147483647, %v5933
      %vm6101 = vcmp.eq.f32.partialorder %v6100, 8.507059e+37
      %v6102 = vand.u32 %v5933, 2147483648
      %v6103 = vor.u32 1.1754944e-38, %v6102
      %v6104 = vsel %vm6101, %v6103, %v6099
      %v6105 = vmul.f32 1.0, %v6104
      %v6106 = vrcp.pop %v5934
      %v6107 = vmul.f32 %v5934, %v6106
      %v6108 = vsub.f32 1.0, %v6107
      %v6109 = vmul.f32 %v6106, %v6108
      %v6110 = vadd.f32 %v6106, %v6109
      %vm6111 = vweird.f32 %v5934
      %vm6112 = vweird.f32 %v6106
      %vm6113 = vmor %vm6111, %vm6112
      %v6114 = vsel %vm6113, %v6106, %v6110
      %v6115 = vand.u32 2147483647, %v5934
      %vm6116 = vcmp.eq.f32.partialorder %v6115, 8.507059e+37
      %v6117 = vand.u32 %v5934, 2147483648
      %v6118 = vor.u32 1.1754944e-38, %v6117
      %v6119 = vsel %vm6116, %v6118, %v6114
      %v6120 = vmul.f32 1.0, %v6119
      %v6121 = vrcp.pop %v5935
      %v6122 = vmul.f32 %v5935, %v6121
      %v6123 = vsub.f32 1.0, %v6122
      %v6124 = vmul.f32 %v6121, %v6123
      %v6125 = vadd.f32 %v6121, %v6124
      %vm6126 = vweird.f32 %v5935
      %vm6127 = vweird.f32 %v6121
      %vm6128 = vmor %vm6126, %vm6127
      %v6129 = vsel %vm6128, %v6121, %v6125
      %v6130 = vand.u32 2147483647, %v5935
      %vm6131 = vcmp.eq.f32.partialorder %v6130, 8.507059e+37
      %v6132 = vand.u32 %v5935, 2147483648
      %v6133 = vor.u32 1.1754944e-38, %v6132
      %v6134 = vsel %vm6131, %v6133, %v6129
      %v6135 = vmul.f32 1.0, %v6134
      %v6136 = vrcp.pop %v5936
      %v6137 = vmul.f32 %v5936, %v6136
      %v6138 = vsub.f32 1.0, %v6137
      %v6139 = vmul.f32 %v6136, %v6138
      %v6140 = vadd.f32 %v6136, %v6139
      %vm6141 = vweird.f32 %v5936
      %vm6142 = vweird.f32 %v6136
      %vm6143 = vmor %vm6141, %vm6142
      %v6144 = vsel %vm6143, %v6136, %v6140
      %v6145 = vand.u32 2147483647, %v5936
      %vm6146 = vcmp.eq.f32.partialorder %v6145, 8.507059e+37
      %v6147 = vand.u32 %v5936, 2147483648
      %v6148 = vor.u32 1.1754944e-38, %v6147
      %v6149 = vsel %vm6146, %v6148, %v6144
      %v6150 = vmul.f32 1.0, %v6149
      %v6151 = vrcp.pop %v5937
      %v6152 = vmul.f32 %v5937, %v6151
      %v6153 = vsub.f32 1.0, %v6152
      %v6154 = vmul.f32 %v6151, %v6153
      %v6155 = vadd.f32 %v6151, %v6154
      %vm6156 = vweird.f32 %v5937
      %vm6157 = vweird.f32 %v6151
      %vm6158 = vmor %vm6156, %vm6157
      %v6159 = vsel %vm6158, %v6151, %v6155
      %v6160 = vand.u32 2147483647, %v5937
      %vm6161 = vcmp.eq.f32.partialorder %v6160, 8.507059e+37
      %v6162 = vand.u32 %v5937, 2147483648
      %v6163 = vor.u32 1.1754944e-38, %v6162
      %v6164 = vsel %vm6161, %v6163, %v6159
      %v6165 = vmul.f32 1.0, %v6164
      %v6166 = vrcp.pop %v5938
      %v6167 = vmul.f32 %v5938, %v6166
      %v6168 = vsub.f32 1.0, %v6167
      %v6169 = vmul.f32 %v6166, %v6168
      %v6170 = vadd.f32 %v6166, %v6169
      %vm6171 = vweird.f32 %v5938
      %vm6172 = vweird.f32 %v6166
      %vm6173 = vmor %vm6171, %vm6172
      %v6174 = vsel %vm6173, %v6166, %v6170
      %v6175 = vand.u32 2147483647, %v5938
      %vm6176 = vcmp.eq.f32.partialorder %v6175, 8.507059e+37
      %v6177 = vand.u32 %v5938, 2147483648
      %v6178 = vor.u32 1.1754944e-38, %v6177
      %v6179 = vsel %vm6176, %v6178, %v6174
      %v6180 = vmul.f32 1.0, %v6179
      %v6181 = vrcp.pop %v5939
      %v6182 = vmul.f32 %v5939, %v6181
      %v6183 = vsub.f32 1.0, %v6182
      %v6184 = vmul.f32 %v6181, %v6183
      %v6185 = vadd.f32 %v6181, %v6184
      %vm6186 = vweird.f32 %v5939
      %vm6187 = vweird.f32 %v6181
      %vm6188 = vmor %vm6186, %vm6187
      %v6189 = vsel %vm6188, %v6181, %v6185
      %v6190 = vand.u32 2147483647, %v5939
      %vm6191 = vcmp.eq.f32.partialorder %v6190, 8.507059e+37
      %v6192 = vand.u32 %v5939, 2147483648
      %v6193 = vor.u32 1.1754944e-38, %v6192
      %v6194 = vsel %vm6191, %v6193, %v6189
      %v6195 = vmul.f32 1.0, %v6194
      %v6196 = vrcp.pop %v5940
      %v6197 = vmul.f32 %v5940, %v6196
      %v6198 = vsub.f32 1.0, %v6197
      %v6199 = vmul.f32 %v6196, %v6198
      %v6200 = vadd.f32 %v6196, %v6199
      %vm6201 = vweird.f32 %v5940
      %vm6202 = vweird.f32 %v6196
      %vm6203 = vmor %vm6201, %vm6202
      %v6204 = vsel %vm6203, %v6196, %v6200
      %v6205 = vand.u32 2147483647, %v5940
      %vm6206 = vcmp.eq.f32.partialorder %v6205, 8.507059e+37
      %v6207 = vand.u32 %v5940, 2147483648
      %v6208 = vor.u32 1.1754944e-38, %v6207
      %v6209 = vsel %vm6206, %v6208, %v6204
      %v6210 = vmul.f32 1.0, %v6209
      %v6211 = vrcp.pop %v5941
      %v6212 = vmul.f32 %v5941, %v6211
      %v6213 = vsub.f32 1.0, %v6212
      %v6214 = vmul.f32 %v6211, %v6213
      %v6215 = vadd.f32 %v6211, %v6214
      %vm6216 = vweird.f32 %v5941
      %vm6217 = vweird.f32 %v6211
      %vm6218 = vmor %vm6216, %vm6217
      %v6219 = vsel %vm6218, %v6211, %v6215
      %v6220 = vand.u32 2147483647, %v5941
      %vm6221 = vcmp.eq.f32.partialorder %v6220, 8.507059e+37
      %v6222 = vand.u32 %v5941, 2147483648
      %v6223 = vor.u32 1.1754944e-38, %v6222
      %v6224 = vsel %vm6221, %v6223, %v6219
      %v6225 = vmul.f32 1.0, %v6224
      %v6226 = vrcp.pop %v5942
      %v6227 = vmul.f32 %v5942, %v6226
      %v6228 = vsub.f32 1.0, %v6227
      %v6229 = vmul.f32 %v6226, %v6228
      %v6230 = vadd.f32 %v6226, %v6229
      %vm6231 = vweird.f32 %v5942
      %vm6232 = vweird.f32 %v6226
      %vm6233 = vmor %vm6231, %vm6232
      %v6234 = vsel %vm6233, %v6226, %v6230
      %v6235 = vand.u32 2147483647, %v5942
      %vm6236 = vcmp.eq.f32.partialorder %v6235, 8.507059e+37
      %v6237 = vand.u32 %v5942, 2147483648
      %v6238 = vor.u32 1.1754944e-38, %v6237
      %v6239 = vsel %vm6236, %v6238, %v6234
      %v6240 = vmul.f32 1.0, %v6239
      %v6241 = vrcp.pop %v5943
      %v6242 = vmul.f32 %v5943, %v6241
      %v6243 = vsub.f32 1.0, %v6242
      %v6244 = vmul.f32 %v6241, %v6243
      %v6245 = vadd.f32 %v6241, %v6244
      %vm6246 = vweird.f32 %v5943
      %vm6247 = vweird.f32 %v6241
      %vm6248 = vmor %vm6246, %vm6247
      %v6249 = vsel %vm6248, %v6241, %v6245
      %v6250 = vand.u32 2147483647, %v5943
      %vm6251 = vcmp.eq.f32.partialorder %v6250, 8.507059e+37
      %v6252 = vand.u32 %v5943, 2147483648
      %v6253 = vor.u32 1.1754944e-38, %v6252
      %v6254 = vsel %vm6251, %v6253, %v6249
      %v6255 = vmul.f32 1.0, %v6254
      %v6256 = vrcp.pop %v5944
      %v6257 = vmul.f32 %v5944, %v6256
      %v6258 = vsub.f32 1.0, %v6257
      %v6259 = vmul.f32 %v6256, %v6258
      %v6260 = vadd.f32 %v6256, %v6259
      %vm6261 = vweird.f32 %v5944
      %vm6262 = vweird.f32 %v6256
      %vm6263 = vmor %vm6261, %vm6262
      %v6264 = vsel %vm6263, %v6256, %v6260
      %v6265 = vand.u32 2147483647, %v5944
      %vm6266 = vcmp.eq.f32.partialorder %v6265, 8.507059e+37
      %v6267 = vand.u32 %v5944, 2147483648
      %v6268 = vor.u32 1.1754944e-38, %v6267
      %v6269 = vsel %vm6266, %v6268, %v6264
      %v6270 = vmul.f32 1.0, %v6269
      %v6271 = vrcp.pop %v5945
      %v6272 = vmul.f32 %v5945, %v6271
      %v6273 = vsub.f32 1.0, %v6272
      %v6274 = vmul.f32 %v6271, %v6273
      %v6275 = vadd.f32 %v6271, %v6274
      %vm6276 = vweird.f32 %v5945
      %vm6277 = vweird.f32 %v6271
      %vm6278 = vmor %vm6276, %vm6277
      %v6279 = vsel %vm6278, %v6271, %v6275
      %v6280 = vand.u32 2147483647, %v5945
      %vm6281 = vcmp.eq.f32.partialorder %v6280, 8.507059e+37
      %v6282 = vand.u32 %v5945, 2147483648
      %v6283 = vor.u32 1.1754944e-38, %v6282
      %v6284 = vsel %vm6281, %v6283, %v6279
      %v6285 = vmul.f32 1.0, %v6284
      %v6286 = vrcp.pop %v5946
      %v6287 = vmul.f32 %v5946, %v6286
      %v6288 = vsub.f32 1.0, %v6287
      %v6289 = vmul.f32 %v6286, %v6288
      %v6290 = vadd.f32 %v6286, %v6289
      %vm6291 = vweird.f32 %v5946
      %vm6292 = vweird.f32 %v6286
      %vm6293 = vmor %vm6291, %vm6292
      %v6294 = vsel %vm6293, %v6286, %v6290
      %v6295 = vand.u32 2147483647, %v5946
      %vm6296 = vcmp.eq.f32.partialorder %v6295, 8.507059e+37
      %v6297 = vand.u32 %v5946, 2147483648
      %v6298 = vor.u32 1.1754944e-38, %v6297
      %v6299 = vsel %vm6296, %v6298, %v6294
      %v6300 = vmul.f32 1.0, %v6299
      %v6301 = vrcp.pop %v5947
      %v6302 = vmul.f32 %v5947, %v6301
      %v6303 = vsub.f32 1.0, %v6302
      %v6304 = vmul.f32 %v6301, %v6303
      %v6305 = vadd.f32 %v6301, %v6304
      %vm6306 = vweird.f32 %v5947
      %vm6307 = vweird.f32 %v6301
      %vm6308 = vmor %vm6306, %vm6307
      %v6309 = vsel %vm6308, %v6301, %v6305
      %v6310 = vand.u32 2147483647, %v5947
      %vm6311 = vcmp.eq.f32.partialorder %v6310, 8.507059e+37
      %v6312 = vand.u32 %v5947, 2147483648
      %v6313 = vor.u32 1.1754944e-38, %v6312
      %v6314 = vsel %vm6311, %v6313, %v6309
      %v6315 = vmul.f32 1.0, %v6314
      %v6316 = vrcp.pop %v5948
      %v6317 = vmul.f32 %v5948, %v6316
      %v6318 = vsub.f32 1.0, %v6317
      %v6319 = vmul.f32 %v6316, %v6318
      %v6320 = vadd.f32 %v6316, %v6319
      %vm6321 = vweird.f32 %v5948
      %vm6322 = vweird.f32 %v6316
      %vm6323 = vmor %vm6321, %vm6322
      %v6324 = vsel %vm6323, %v6316, %v6320
      %v6325 = vand.u32 2147483647, %v5948
      %vm6326 = vcmp.eq.f32.partialorder %v6325, 8.507059e+37
      %v6327 = vand.u32 %v5948, 2147483648
      %v6328 = vor.u32 1.1754944e-38, %v6327
      %v6329 = vsel %vm6326, %v6328, %v6324
      %v6330 = vmul.f32 1.0, %v6329
      %v6331 = vrcp.pop %v5949
      %v6332 = vmul.f32 %v5949, %v6331
      %v6333 = vsub.f32 1.0, %v6332
      %v6334 = vmul.f32 %v6331, %v6333
      %v6335 = vadd.f32 %v6331, %v6334
      %vm6336 = vweird.f32 %v5949
      %vm6337 = vweird.f32 %v6331
      %vm6338 = vmor %vm6336, %vm6337
      %v6339 = vsel %vm6338, %v6331, %v6335
      %v6340 = vand.u32 2147483647, %v5949
      %vm6341 = vcmp.eq.f32.partialorder %v6340, 8.507059e+37
      %v6342 = vand.u32 %v5949, 2147483648
      %v6343 = vor.u32 1.1754944e-38, %v6342
      %v6344 = vsel %vm6341, %v6343, %v6339
      %v6345 = vmul.f32 1.0, %v6344
      %v6346 = vrcp.pop %v5950
      %v6347 = vmul.f32 %v5950, %v6346
      %v6348 = vsub.f32 1.0, %v6347
      %v6349 = vmul.f32 %v6346, %v6348
      %v6350 = vadd.f32 %v6346, %v6349
      %vm6351 = vweird.f32 %v5950
      %vm6352 = vweird.f32 %v6346
      %vm6353 = vmor %vm6351, %vm6352
      %v6354 = vsel %vm6353, %v6346, %v6350
      %v6355 = vand.u32 2147483647, %v5950
      %vm6356 = vcmp.eq.f32.partialorder %v6355, 8.507059e+37
      %v6357 = vand.u32 %v5950, 2147483648
      %v6358 = vor.u32 1.1754944e-38, %v6357
      %v6359 = vsel %vm6356, %v6358, %v6354
      %v6360 = vmul.f32 1.0, %v6359
      %v6361 = vrcp.pop %v5951
      %v6362 = vmul.f32 %v5951, %v6361
      %v6363 = vsub.f32 1.0, %v6362
      %v6364 = vmul.f32 %v6361, %v6363
      %v6365 = vadd.f32 %v6361, %v6364
      %vm6366 = vweird.f32 %v5951
      %vm6367 = vweird.f32 %v6361
      %vm6368 = vmor %vm6366, %vm6367
      %v6369 = vsel %vm6368, %v6361, %v6365
      %v6370 = vand.u32 2147483647, %v5951
      %vm6371 = vcmp.eq.f32.partialorder %v6370, 8.507059e+37
      %v6372 = vand.u32 %v5951, 2147483648
      %v6373 = vor.u32 1.1754944e-38, %v6372
      %v6374 = vsel %vm6371, %v6373, %v6369
      %v6375 = vmul.f32 1.0, %v6374
      %v6376 = vrcp.pop %v5952
      %v6377 = vmul.f32 %v5952, %v6376
      %v6378 = vsub.f32 1.0, %v6377
      %v6379 = vmul.f32 %v6376, %v6378
      %v6380 = vadd.f32 %v6376, %v6379
      %vm6381 = vweird.f32 %v5952
      %vm6382 = vweird.f32 %v6376
      %vm6383 = vmor %vm6381, %vm6382
      %v6384 = vsel %vm6383, %v6376, %v6380
      %v6385 = vand.u32 2147483647, %v5952
      %vm6386 = vcmp.eq.f32.partialorder %v6385, 8.507059e+37
      %v6387 = vand.u32 %v5952, 2147483648
      %v6388 = vor.u32 1.1754944e-38, %v6387
      %v6389 = vsel %vm6386, %v6388, %v6384
      %v6390 = vmul.f32 1.0, %v6389
      %v6391 = vrcp.pop %v5953
      %v6392 = vmul.f32 %v5953, %v6391
      %v6393 = vsub.f32 1.0, %v6392
      %v6394 = vmul.f32 %v6391, %v6393
      %v6395 = vadd.f32 %v6391, %v6394
      %vm6396 = vweird.f32 %v5953
      %vm6397 = vweird.f32 %v6391
      %vm6398 = vmor %vm6396, %vm6397
      %v6399 = vsel %vm6398, %v6391, %v6395
      %v6400 = vand.u32 2147483647, %v5953
      %vm6401 = vcmp.eq.f32.partialorder %v6400, 8.507059e+37
      %v6402 = vand.u32 %v5953, 2147483648
      %v6403 = vor.u32 1.1754944e-38, %v6402
      %v6404 = vsel %vm6401, %v6403, %v6399
      %v6405 = vmul.f32 1.0, %v6404
      %v6406 = vrcp.pop %v5954
      %v6407 = vmul.f32 %v5954, %v6406
      %v6408 = vsub.f32 1.0, %v6407
      %v6409 = vmul.f32 %v6406, %v6408
      %v6410 = vadd.f32 %v6406, %v6409
      %vm6411 = vweird.f32 %v5954
      %vm6412 = vweird.f32 %v6406
      %vm6413 = vmor %vm6411, %vm6412
      %v6414 = vsel %vm6413, %v6406, %v6410
      %v6415 = vand.u32 2147483647, %v5954
      %vm6416 = vcmp.eq.f32.partialorder %v6415, 8.507059e+37
      %v6417 = vand.u32 %v5954, 2147483648
      %v6418 = vor.u32 1.1754944e-38, %v6417
      %v6419 = vsel %vm6416, %v6418, %v6414
      %v6420 = vmul.f32 1.0, %v6419
      %v6421 = vrcp.pop %v5955
      %v6422 = vmul.f32 %v5955, %v6421
      %v6423 = vsub.f32 1.0, %v6422
      %v6424 = vmul.f32 %v6421, %v6423
      %v6425 = vadd.f32 %v6421, %v6424
      %vm6426 = vweird.f32 %v5955
      %vm6427 = vweird.f32 %v6421
      %vm6428 = vmor %vm6426, %vm6427
      %v6429 = vsel %vm6428, %v6421, %v6425
      %v6430 = vand.u32 2147483647, %v5955
      %vm6431 = vcmp.eq.f32.partialorder %v6430, 8.507059e+37
      %v6432 = vand.u32 %v5955, 2147483648
      %v6433 = vor.u32 1.1754944e-38, %v6432
      %v6434 = vsel %vm6431, %v6433, %v6429
      %v6435 = vmul.f32 1.0, %v6434
      %v6436 = vld [vmem:[#allocation8] sm:$0xff]
      %v6437 = vld [vmem:[#allocation8 + $0x8] sm:$0xff]
      %v6438 = vld [vmem:[#allocation8 + $0x10] sm:$0xff]
      %v6439 = vld [vmem:[#allocation8 + $0x18] sm:$0xff]
      %v6440 = vld [vmem:[#allocation8 + $0x20] sm:$0xff]
      %v6441 = vld [vmem:[#allocation8 + $0x28] sm:$0xff]
      %v6442 = vld [vmem:[#allocation8 + $0x30] sm:$0xff]
      %v6443 = vld [vmem:[#allocation8 + $0x38] sm:$0xff]
      %v6444 = vld [vmem:[#allocation8 + $0x40] sm:$0xff]
      %v6445 = vld [vmem:[#allocation8 + $0x48] sm:$0xff]
      %v6446 = vld [vmem:[#allocation8 + $0x50] sm:$0xff]
      %v6447 = vld [vmem:[#allocation8 + $0x58] sm:$0xff]
      %v6448 = vld [vmem:[#allocation8 + $0x60] sm:$0xff]
      %v6449 = vld [vmem:[#allocation8 + $0x68] sm:$0xff]
      %v6450 = vld [vmem:[#allocation8 + $0x70] sm:$0xff]
      %v6451 = vld [vmem:[#allocation8 + $0x78] sm:$0xff]
      %v6452 = vld [vmem:[#allocation8 + $0x80] sm:$0xff]
      %v6453 = vld [vmem:[#allocation8 + $0x88] sm:$0xff]
      %v6454 = vld [vmem:[#allocation8 + $0x90] sm:$0xff]
      %v6455 = vld [vmem:[#allocation8 + $0x98] sm:$0xff]
      %v6456 = vld [vmem:[#allocation8 + $0xa0] sm:$0xff]
      %v6457 = vld [vmem:[#allocation8 + $0xa8] sm:$0xff]
      %v6458 = vld [vmem:[#allocation8 + $0xb0] sm:$0xff]
      %v6459 = vld [vmem:[#allocation8 + $0xb8] sm:$0xff]
      %v6460 = vld [vmem:[#allocation8 + $0xc0] sm:$0xff]
      %v6461 = vld [vmem:[#allocation8 + $0xc8] sm:$0xff]
      %v6462 = vld [vmem:[#allocation8 + $0xd0] sm:$0xff]
      %v6463 = vld [vmem:[#allocation8 + $0xd8] sm:$0xff]
      %v6464 = vld [vmem:[#allocation8 + $0xe0] sm:$0xff]
      %v6465 = vld [vmem:[#allocation8 + $0xe8] sm:$0xff]
      %v6466 = vld [vmem:[#allocation8 + $0xf0] sm:$0xff]
      %v6467 = vld [vmem:[#allocation8 + $0xf8] sm:$0xff]
      %v6468 = vmul.f32 %v5330, %v6436
      %v6469 = vmul.f32 %v5345, %v6437
      %v6470 = vmul.f32 %v5360, %v6438
      %v6471 = vmul.f32 %v5375, %v6439
      %v6472 = vmul.f32 %v5390, %v6440
      %v6473 = vmul.f32 %v5405, %v6441
      %v6474 = vmul.f32 %v5420, %v6442
      %v6475 = vmul.f32 %v5435, %v6443
      %v6476 = vmul.f32 %v5450, %v6444
      %v6477 = vmul.f32 %v5465, %v6445
      %v6478 = vmul.f32 %v5480, %v6446
      %v6479 = vmul.f32 %v5495, %v6447
      %v6480 = vmul.f32 %v5510, %v6448
      %v6481 = vmul.f32 %v5525, %v6449
      %v6482 = vmul.f32 %v5540, %v6450
      %v6483 = vmul.f32 %v5555, %v6451
      %v6484 = vmul.f32 %v5570, %v6452
      %v6485 = vmul.f32 %v5585, %v6453
      %v6486 = vmul.f32 %v5600, %v6454
      %v6487 = vmul.f32 %v5615, %v6455
      %v6488 = vmul.f32 %v5630, %v6456
      %v6489 = vmul.f32 %v5645, %v6457
      %v6490 = vmul.f32 %v5660, %v6458
      %v6491 = vmul.f32 %v5675, %v6459
      %v6492 = vmul.f32 %v5690, %v6460
      %v6493 = vmul.f32 %v5705, %v6461
      %v6494 = vmul.f32 %v5720, %v6462
      %v6495 = vmul.f32 %v5735, %v6463
      %v6496 = vmul.f32 %v5750, %v6464
      %v6497 = vmul.f32 %v5765, %v6465
      %v6498 = vmul.f32 %v5780, %v6466
      %v6499 = vmul.f32 %v5795, %v6467
      %v6500 = vmul.f32 %v4722, %v5796
      %v6501 = vmul.f32 %v4737, %v5797
      %v6502 = vmul.f32 %v4752, %v5798
      %v6503 = vmul.f32 %v4767, %v5799
      %v6504 = vmul.f32 %v4782, %v5800
      %v6505 = vmul.f32 %v4797, %v5801
      %v6506 = vmul.f32 %v4812, %v5802
      %v6507 = vmul.f32 %v4827, %v5803
      %v6508 = vmul.f32 %v4842, %v5804
      %v6509 = vmul.f32 %v4857, %v5805
      %v6510 = vmul.f32 %v4872, %v5806
      %v6511 = vmul.f32 %v4887, %v5807
      %v6512 = vmul.f32 %v4902, %v5808
      %v6513 = vmul.f32 %v4917, %v5809
      %v6514 = vmul.f32 %v4932, %v5810
      %v6515 = vmul.f32 %v4947, %v5811
      %v6516 = vmul.f32 %v4962, %v5812
      %v6517 = vmul.f32 %v4977, %v5813
      %v6518 = vmul.f32 %v4992, %v5814
      %v6519 = vmul.f32 %v5007, %v5815
      %v6520 = vmul.f32 %v5022, %v5816
      %v6521 = vmul.f32 %v5037, %v5817
      %v6522 = vmul.f32 %v5052, %v5818
      %v6523 = vmul.f32 %v5067, %v5819
      %v6524 = vmul.f32 %v5082, %v5820
      %v6525 = vmul.f32 %v5097, %v5821
      %v6526 = vmul.f32 %v5112, %v5822
      %v6527 = vmul.f32 %v5127, %v5823
      %v6528 = vmul.f32 %v5142, %v5824
      %v6529 = vmul.f32 %v5157, %v5825
      %v6530 = vmul.f32 %v5172, %v5826
      %v6531 = vmul.f32 %v5187, %v5827
      %v6532 = vadd.f32 %v6468, %v6500
      %v6533 = vadd.f32 %v6469, %v6501
      %v6534 = vadd.f32 %v6470, %v6502
      %v6535 = vadd.f32 %v6471, %v6503
      %v6536 = vadd.f32 %v6472, %v6504
      %v6537 = vadd.f32 %v6473, %v6505
      %v6538 = vadd.f32 %v6474, %v6506
      %v6539 = vadd.f32 %v6475, %v6507
      %v6540 = vadd.f32 %v6476, %v6508
      %v6541 = vadd.f32 %v6477, %v6509
      %v6542 = vadd.f32 %v6478, %v6510
      %v6543 = vadd.f32 %v6479, %v6511
      %v6544 = vadd.f32 %v6480, %v6512
      %v6545 = vadd.f32 %v6481, %v6513
      %v6546 = vadd.f32 %v6482, %v6514
      %v6547 = vadd.f32 %v6483, %v6515
      %v6548 = vadd.f32 %v6484, %v6516
      %v6549 = vadd.f32 %v6485, %v6517
      %v6550 = vadd.f32 %v6486, %v6518
      %v6551 = vadd.f32 %v6487, %v6519
      %v6552 = vadd.f32 %v6488, %v6520
      %v6553 = vadd.f32 %v6489, %v6521
      %v6554 = vadd.f32 %v6490, %v6522
      %v6555 = vadd.f32 %v6491, %v6523
      %v6556 = vadd.f32 %v6492, %v6524
      %v6557 = vadd.f32 %v6493, %v6525
      %v6558 = vadd.f32 %v6494, %v6526
      %v6559 = vadd.f32 %v6495, %v6527
      %v6560 = vadd.f32 %v6496, %v6528
      %v6561 = vadd.f32 %v6497, %v6529
      %v6562 = vadd.f32 %v6498, %v6530
      %v6563 = vadd.f32 %v6499, %v6531
      %v6564 = vtanh.pop %v6532
      %v6565 = vtanh.pop %v6533
      %v6566 = vtanh.pop %v6534
      %v6567 = vtanh.pop %v6535
      %v6568 = vtanh.pop %v6536
      %v6569 = vtanh.pop %v6537
      %v6570 = vtanh.pop %v6538
      %v6571 = vtanh.pop %v6539
      %v6572 = vtanh.pop %v6540
      %v6573 = vtanh.pop %v6541
      %v6574 = vtanh.pop %v6542
      %v6575 = vtanh.pop %v6543
      %v6576 = vtanh.pop %v6544
      %v6577 = vtanh.pop %v6545
      %v6578 = vtanh.pop %v6546
      %v6579 = vtanh.pop %v6547
      %v6580 = vtanh.pop %v6548
      %v6581 = vtanh.pop %v6549
      %v6582 = vtanh.pop %v6550
      %v6583 = vtanh.pop %v6551
      %v6584 = vtanh.pop %v6552
      %v6585 = vtanh.pop %v6553
      %v6586 = vtanh.pop %v6554
      %v6587 = vtanh.pop %v6555
      %v6588 = vtanh.pop %v6556
      %v6589 = vtanh.pop %v6557
      %v6590 = vtanh.pop %v6558
      %v6591 = vtanh.pop %v6559
      %v6592 = vtanh.pop %v6560
      %v6593 = vtanh.pop %v6561
      %v6594 = vtanh.pop %v6562
      %v6595 = vtanh.pop %v6563
      %v6596 = vmul.f32 %v5970, %v6564
      %v6597 = vmul.f32 %v5985, %v6565
      %v6598 = vmul.f32 %v6000, %v6566
      %v6599 = vmul.f32 %v6015, %v6567
      %v6600 = vmul.f32 %v6030, %v6568
      %v6601 = vmul.f32 %v6045, %v6569
      %v6602 = vmul.f32 %v6060, %v6570
      %v6603 = vmul.f32 %v6075, %v6571
      %v6604 = vmul.f32 %v6090, %v6572
      %v6605 = vmul.f32 %v6105, %v6573
      %v6606 = vmul.f32 %v6120, %v6574
      %v6607 = vmul.f32 %v6135, %v6575
      %v6608 = vmul.f32 %v6150, %v6576
      %v6609 = vmul.f32 %v6165, %v6577
      %v6610 = vmul.f32 %v6180, %v6578
      %v6611 = vmul.f32 %v6195, %v6579
      %v6612 = vmul.f32 %v6210, %v6580
      %v6613 = vmul.f32 %v6225, %v6581
      %v6614 = vmul.f32 %v6240, %v6582
      %v6615 = vmul.f32 %v6255, %v6583
      %v6616 = vmul.f32 %v6270, %v6584
      %v6617 = vmul.f32 %v6285, %v6585
      %v6618 = vmul.f32 %v6300, %v6586
      %v6619 = vmul.f32 %v6315, %v6587
      %v6620 = vmul.f32 %v6330, %v6588
      %v6621 = vmul.f32 %v6345, %v6589
      %v6622 = vmul.f32 %v6360, %v6590
      %v6623 = vmul.f32 %v6375, %v6591
      %v6624 = vmul.f32 %v6390, %v6592
      %v6625 = vmul.f32 %v6405, %v6593
      %v6626 = vmul.f32 %v6420, %v6594
      %v6627 = vmul.f32 %v6435, %v6595
      %6628 = vst [vmem:[#allocation13] sm:$0xff] %v6596
      %6629 = vst [vmem:[#allocation13 + $0x8] sm:$0xff] %v6597
      %6630 = vst [vmem:[#allocation13 + $0x10] sm:$0xff] %v6598
      %6631 = vst [vmem:[#allocation13 + $0x18] sm:$0xff] %v6599
      %6632 = vst [vmem:[#allocation13 + $0x20] sm:$0xff] %v6600
      %6633 = vst [vmem:[#allocation13 + $0x28] sm:$0xff] %v6601
      %6634 = vst [vmem:[#allocation13 + $0x30] sm:$0xff] %v6602
      %6635 = vst [vmem:[#allocation13 + $0x38] sm:$0xff] %v6603
      %6636 = vst [vmem:[#allocation13 + $0x40] sm:$0xff] %v6604
      %6637 = vst [vmem:[#allocation13 + $0x48] sm:$0xff] %v6605
      %6638 = vst [vmem:[#allocation13 + $0x50] sm:$0xff] %v6606
      %6639 = vst [vmem:[#allocation13 + $0x58] sm:$0xff] %v6607
      %6640 = vst [vmem:[#allocation13 + $0x60] sm:$0xff] %v6608
      %6641 = vst [vmem:[#allocation13 + $0x68] sm:$0xff] %v6609
      %6642 = vst [vmem:[#allocation13 + $0x70] sm:$0xff] %v6610
      %6643 = vst [vmem:[#allocation13 + $0x78] sm:$0xff] %v6611
      %6644 = vst [vmem:[#allocation13 + $0x80] sm:$0xff] %v6612
      %6645 = vst [vmem:[#allocation13 + $0x88] sm:$0xff] %v6613
      %6646 = vst [vmem:[#allocation13 + $0x90] sm:$0xff] %v6614
      %6647 = vst [vmem:[#allocation13 + $0x98] sm:$0xff] %v6615
      %6648 = vst [vmem:[#allocation13 + $0xa0] sm:$0xff] %v6616
      %6649 = vst [vmem:[#allocation13 + $0xa8] sm:$0xff] %v6617
      %6650 = vst [vmem:[#allocation13 + $0xb0] sm:$0xff] %v6618
      %6651 = vst [vmem:[#allocation13 + $0xb8] sm:$0xff] %v6619
      %6652 = vst [vmem:[#allocation13 + $0xc0] sm:$0xff] %v6620
      %6653 = vst [vmem:[#allocation13 + $0xc8] sm:$0xff] %v6621
      %6654 = vst [vmem:[#allocation13 + $0xd0] sm:$0xff] %v6622
      %6655 = vst [vmem:[#allocation13 + $0xd8] sm:$0xff] %v6623
      %6656 = vst [vmem:[#allocation13 + $0xe0] sm:$0xff] %v6624
      %6657 = vst [vmem:[#allocation13 + $0xe8] sm:$0xff] %v6625
      %6658 = vst [vmem:[#allocation13 + $0xf0] sm:$0xff] %v6626
      %6659 = vst [vmem:[#allocation13 + $0xf8] sm:$0xff] %v6627
      %6660 = vst [vmem:[#allocation14] sm:$0xff] %v6532
      %6661 = vst [vmem:[#allocation14 + $0x8] sm:$0xff] %v6533
      %6662 = vst [vmem:[#allocation14 + $0x10] sm:$0xff] %v6534
      %6663 = vst [vmem:[#allocation14 + $0x18] sm:$0xff] %v6535
      %6664 = vst [vmem:[#allocation14 + $0x20] sm:$0xff] %v6536
      %6665 = vst [vmem:[#allocation14 + $0x28] sm:$0xff] %v6537
      %6666 = vst [vmem:[#allocation14 + $0x30] sm:$0xff] %v6538
      %6667 = vst [vmem:[#allocation14 + $0x38] sm:$0xff] %v6539
      %6668 = vst [vmem:[#allocation14 + $0x40] sm:$0xff] %v6540
      %6669 = vst [vmem:[#allocation14 + $0x48] sm:$0xff] %v6541
      %6670 = vst [vmem:[#allocation14 + $0x50] sm:$0xff] %v6542
      %6671 = vst [vmem:[#allocation14 + $0x58] sm:$0xff] %v6543
      %6672 = vst [vmem:[#allocation14 + $0x60] sm:$0xff] %v6544
      %6673 = vst [vmem:[#allocation14 + $0x68] sm:$0xff] %v6545
      %6674 = vst [vmem:[#allocation14 + $0x70] sm:$0xff] %v6546
      %6675 = vst [vmem:[#allocation14 + $0x78] sm:$0xff] %v6547
      %6676 = vst [vmem:[#allocation14 + $0x80] sm:$0xff] %v6548
      %6677 = vst [vmem:[#allocation14 + $0x88] sm:$0xff] %v6549
      %6678 = vst [vmem:[#allocation14 + $0x90] sm:$0xff] %v6550
      %6679 = vst [vmem:[#allocation14 + $0x98] sm:$0xff] %v6551
      %6680 = vst [vmem:[#allocation14 + $0xa0] sm:$0xff] %v6552
      %6681 = vst [vmem:[#allocation14 + $0xa8] sm:$0xff] %v6553
      %6682 = vst [vmem:[#allocation14 + $0xb0] sm:$0xff] %v6554
      %6683 = vst [vmem:[#allocation14 + $0xb8] sm:$0xff] %v6555
      %6684 = vst [vmem:[#allocation14 + $0xc0] sm:$0xff] %v6556
      %6685 = vst [vmem:[#allocation14 + $0xc8] sm:$0xff] %v6557
      %6686 = vst [vmem:[#allocation14 + $0xd0] sm:$0xff] %v6558
      %6687 = vst [vmem:[#allocation14 + $0xd8] sm:$0xff] %v6559
      %6688 = vst [vmem:[#allocation14 + $0xe0] sm:$0xff] %v6560
      %6689 = vst [vmem:[#allocation14 + $0xe8] sm:$0xff] %v6561
      %6690 = vst [vmem:[#allocation14 + $0xf0] sm:$0xff] %v6562
      %6691 = vst [vmem:[#allocation14 + $0xf8] sm:$0xff] %v6563
    $region61: #{tpu_custom_call.1} parent=1 // pred_fallthru
      _
    // Predicated region
    $region62: #{tpu_custom_call.1} parent=1 // pred_check
      _
    $region63: #{tpu_custom_call.1} parent=1 // pred_check_branch
      %6693 = sbr.rel (0) target = $region65
    $region64: #{tpu_custom_call.1} parent=1 // pred_region
      %6695 = vsyncadd [#allocation7], 0
      %s6696 = sshll.u32 [#allocation13], 4
      %s6697 = int_to_ptr.vmem [resolvable:$true] %s6696
      %s6698 = sshll.u32 %s9, 4
      %s6699 = int_to_ptr.hbm [resolvable:$true] %s6698
      %6704 = dma.vmem_to_hbm [thread:$0]  %s6697, 4096, %s6699, [#allocation7], 256, 256, 16
    $region65: #{tpu_custom_call.1} parent=1 // pred_fallthru
      _
    // Predicated region
    $region66: #{tpu_custom_call.1} parent=1 // pred_check
      _
    $region67: #{tpu_custom_call.1} parent=1 // pred_check_branch
      %6706 = sbr.rel (0) target = $region69
    $region68: #{tpu_custom_call.1} parent=1 // pred_region
      %6708 = vsyncadd [#allocation15], 0
      %s6709 = sshll.u32 [#allocation14], 4
      %s6710 = int_to_ptr.vmem [resolvable:$true] %s6709
      %s6711 = sshll.u32 %s10, 4
      %s6712 = int_to_ptr.hbm [resolvable:$true] %s6711
      %6717 = dma.vmem_to_hbm [thread:$0]  %s6710, 4096, %s6712, [#allocation15], 256, 256, 16
    $region69: #{tpu_custom_call.1} parent=1 // pred_fallthru
      _
    // Predicated region
    $region70: #{tpu_custom_call.1} parent=1 // pred_check
      _
    $region71: #{tpu_custom_call.1} parent=1 // pred_check_branch
      %6719 = sbr.rel (0) target = $region73
    $region72: #{tpu_custom_call.1} parent=1 // pred_region
      %6721 = dma.done [#allocation7], 4096
    $region73: #{tpu_custom_call.1} parent=1 // pred_fallthru
      _
    // Predicated region
    $region74: #{tpu_custom_call.1} parent=1 // pred_check
      _
    $region75: #{tpu_custom_call.1} parent=1 // pred_check_branch
      %6723 = sbr.rel (0) target = $region77
    $region76: #{tpu_custom_call.1} parent=1 // pred_region
      %6725 = dma.done [#allocation15], 4096
    $region77: #{tpu_custom_call.1} parent=1 // pred_fallthru
      _
    %6726 = vsyncpa [#allocation6], 1
    %6727 = vsyncpa [#allocation9], 1
    %6728 = vsyncpa [#allocation12], 1
    %6729 = vsyncpa [#allocation7], 1
    %6730 = vsyncpa [#allocation15], 1

</llo_original>
